<compile_context>
chip_gen: v7x
topology: tpu7x:2x2x1
jax: 0.10.0
libtpu: 0.0.40
codegen_flags: <defaults>
</compile_context>

<pallas_src>
import functools

import jax
import jax.numpy as jnp
import numpy as np
from jax.experimental import pallas as pl
from jax.experimental.pallas import tpu as pltpu


# ----------------------------- helpers --------------------------------

def _spatial_dims(n):
    if n == 55296:
        return 24, 48, 48
    if n == 6912:
        return 12, 24, 24
    if n == 864:
        return 6, 12, 12
    raise ValueError("the input of sra attention is wrong.")


def _choose_tile(n, cap, min_blocks=1):
    """Largest multiple of 8 <= cap that divides n; else the full dim.

    min_blocks>1 additionally caps the tile so at least that many grid blocks
    exist (keeps both v7x TensorCores fed).  Returning the full dim is always a
    legal block (block == array dim).
    """
    cap = min(cap, n)
    if min_blocks > 1:
        cap = min(cap, max(8, n // min_blocks))
    for c in range(cap - cap % 8, 7, -8):
        if n % c == 0:
            return c
    return n


# ----------------------------- kernel bodies --------------------------------

def _sr_kv_kernel(p_ref, w_sr_ref, b_sr_ref, g_ref, beta_ref, wkv_ref, kv_out, *, eps):
    """Conv3d(kernel=stride=sr) as patch GEMM + bias + LayerNorm + fused K|V proj.

    bf16 MXU operands, f32 accumulation / LN math, single lane-dense (tm, 2C) store.
    """
    conv = jnp.dot(p_ref[...], w_sr_ref[...], preferred_element_type=jnp.float32)
    conv = conv + b_sr_ref[...]
    mu = jnp.mean(conv, axis=-1, keepdims=True)
    var = jnp.mean((conv - mu) ** 2, axis=-1, keepdims=True)
    xr = (conv - mu) * jax.lax.rsqrt(var + eps)
    xr = xr * g_ref[...] + beta_ref[...]
    kv_out[...] = jnp.dot(xr.astype(jnp.bfloat16), wkv_ref[...],
                          preferred_element_type=jnp.float32).astype(kv_out.dtype)


def _kv_kernel(x_ref, wkv_ref, kv_out):
    """sr_ratio == 1 path: fused K|V projection, lane-dense (tm, 2C) output."""
    kv_out[...] = jnp.dot(x_ref[...], wkv_ref[...],
                          preferred_element_type=jnp.float32).astype(kv_out.dtype)


def _attn_kernel_single(x_ref, wq_ref, k_ref, v_ref, wp_ref, bp_ref, o_ref,
                        q_s, o_s, *, num_heads, head_dim, scale):
    """Single-KV-tile fast path: q-proj + plain softmax attention + out-proj."""
    # Wide Q projection (lane-dense output), scale folded in, relaid head-major once.
    qw = jnp.dot(x_ref[0], wq_ref[...], preferred_element_type=jnp.float32) * scale
    qw = qw.astype(jnp.bfloat16)
    for h in range(num_heads):
        q_s[h] = qw[:, h * head_dim:(h + 1) * head_dim]

    k = k_ref[0]                                   # (H, Nk, hd) bf16
    v = v_ref[0]                                   # (H, Nk, hd) bf16
    s = jnp.einsum('hqd,hkd->hqk', q_s[...], k,
                   preferred_element_type=jnp.float32)          # (H, tq, Nk) f32
    m = jnp.max(s, axis=-1, keepdims=True)
    p = jnp.exp(s - m)
    l = jnp.sum(p, axis=-1, keepdims=True)
    o_h = jnp.einsum('hqk,hkd->hqd', p.astype(v.dtype), v,
                     preferred_element_type=jnp.float32)        # (H, tq, hd) f32
    o_h = o_h * pl.reciprocal(l, approx=True)

    # Head-major -> C-major relayout (once per q-tile), then fused out projection.
    for h in range(num_heads):
        o_s[:, h * head_dim:(h + 1) * head_dim] = o_h[h]
    out = jnp.dot(o_s[...].astype(jnp.bfloat16), wp_ref[...],
                  preferred_element_type=jnp.float32)
    o_ref[0] = (out + bp_ref[...]).astype(o_ref.dtype)


def _attn_kernel_multi(x_ref, wq_ref, k_ref, v_ref, wp_ref, bp_ref, o_ref,
                       q_s, m_s, l_s, acc_s, o_s, *, num_heads, head_dim, scale):
    """Flash attention: resident head-major Q, online softmax over KV tiles."""
    kvi = pl.program_id(2)

    @pl.when(kvi == 0)
    def _init():
        qw = jnp.dot(x_ref[0], wq_ref[...], preferred_element_type=jnp.float32) * scale
        qw = qw.astype(jnp.bfloat16)
        for h in range(num_heads):
            q_s[h] = qw[:, h * head_dim:(h + 1) * head_dim]
        m_s[...] = jnp.full_like(m_s, -jnp.inf)
        l_s[...] = jnp.zeros_like(l_s)
        acc_s[...] = jnp.zeros_like(acc_s)

    k = k_ref[0]                                   # (H, tk, hd) bf16
    v = v_ref[0]                                   # (H, tk, hd) bf16
    s = jnp.einsum('hqd,hkd->hqk', q_s[...], k,
                   preferred_element_type=jnp.float32)          # (H, tq, tk) f32
    m_prev = m_s[...]
    m_new = jnp.maximum(m_prev, jnp.max(s, axis=-1, keepdims=True))
    alpha = jnp.exp(m_prev - m_new)
    p = jnp.exp(s - m_new)
    l_s[...] = alpha * l_s[...] + jnp.sum(p, axis=-1, keepdims=True)
    acc_s[...] = alpha * acc_s[...] + jnp.einsum('hqk,hkd->hqd', p.astype(v.dtype), v,
                                                 preferred_element_type=jnp.float32)
    m_s[...] = m_new

    @pl.when(kvi == pl.num_programs(2) - 1)
    def _finalize():
        inv = pl.reciprocal(l_s[...], approx=True)
        o_h = acc_s[...] * inv                     # one broadcasted (H, tq, hd) multiply
        for h in range(num_heads):                 # relayout once per q-tile
            o_s[:, h * head_dim:(h + 1) * head_dim] = o_h[h]
        out = jnp.dot(o_s[...].astype(jnp.bfloat16), wp_ref[...],
                      preferred_element_type=jnp.float32)
        o_ref[0] = (out + bp_ref[...]).astype(o_ref.dtype)


# ----------------------------- pallas_call wrappers --------------------------------

def pallas_sr_kv(patches, w_sr_mat, b_sr, ln_g, ln_b, w_kv, *, out_dtype, eps=1e-5):
    M, Kp = patches.shape
    C = w_sr_mat.shape[1]
    C2 = w_kv.shape[1]
    tm = _choose_tile(M, 1024, min_blocks=2)
    kern = functools.partial(_sr_kv_kernel, eps=eps)
    return pl.pallas_call(
        kern,
        out_shape=jax.ShapeDtypeStruct((M, C2), out_dtype),
        grid=(M // tm,),
        in_specs=[
            pl.BlockSpec((tm, Kp), lambda i: (i, 0)),
            pl.BlockSpec((Kp, C), lambda i: (0, 0)),
            pl.BlockSpec((1, C), lambda i: (0, 0)),
            pl.BlockSpec((1, C), lambda i: (0, 0)),
            pl.BlockSpec((1, C), lambda i: (0, 0)),
            pl.BlockSpec((C, C2), lambda i: (0, 0)),
        ],
        out_specs=pl.BlockSpec((tm, C2), lambda i: (i, 0)),
        compiler_params=pltpu.CompilerParams(dimension_semantics=("parallel",)),
    )(patches, w_sr_mat, b_sr, ln_g, ln_b, w_kv)


def pallas_kv(x2d, w_kv, *, out_dtype):
    M, C = x2d.shape
    C2 = w_kv.shape[1]
    tm = _choose_tile(M, 1024, min_blocks=2)
    return pl.pallas_call(
        _kv_kernel,
        out_shape=jax.ShapeDtypeStruct((M, C2), out_dtype),
        grid=(M // tm,),
        in_specs=[pl.BlockSpec((tm, C), lambda i: (i, 0)),
                  pl.BlockSpec((C, C2), lambda i: (0, 0))],
        out_specs=pl.BlockSpec((tm, C2), lambda i: (i, 0)),
        compiler_params=pltpu.CompilerParams(dimension_semantics=("parallel",)),
    )(x2d, w_kv)


def pallas_attention_proj(x, w_q, k_hm, v_hm, w_proj, b_proj, *, num_heads, scale,
                          tq_cap=256, tk_cap=1024):
    """x: (B,N,C) bf16, k_hm/v_hm: (B,H,Nk,hd) bf16, w_proj: (C,2C) -> (B,N,2C) bf16."""
    B, N, C = x.shape
    _, H, Nk, hd = k_hm.shape
    assert H == num_heads and H * hd == C
    C2 = w_proj.shape[1]
    tq = _choose_tile(N, tq_cap, min_blocks=1 if B > 1 else 2)
    tk = _choose_tile(Nk, tk_cap)
    kv_steps = Nk // tk
    out_shape = jax.ShapeDtypeStruct((B, N, C2), jnp.bfloat16)

    if kv_steps == 1:
        kern = functools.partial(_attn_kernel_single, num_heads=num_heads,
                                 head_dim=hd, scale=scale)
        return pl.pallas_call(
            kern,
            out_shape=out_shape,
            grid=(B, N // tq),
            in_specs=[
                pl.BlockSpec((1, tq, C), lambda b, qi: (b, qi, 0)),
                pl.BlockSpec((C, C), lambda b, qi: (0, 0)),
                pl.BlockSpec((1, H, Nk, hd), lambda b, qi: (b, 0, 0, 0)),
                pl.BlockSpec((1, H, Nk, hd), lambda b, qi: (b, 0, 0, 0)),
                pl.BlockSpec((C, C2), lambda b, qi: (0, 0)),
                pl.BlockSpec((1, C2), lambda b, qi: (0, 0)),
            ],
            out_specs=pl.BlockSpec((1, tq, C2), lambda b, qi: (b, qi, 0)),
            scratch_shapes=[
                pltpu.VMEM((H, tq, hd), jnp.bfloat16),   # head-major, pre-scaled Q
                pltpu.VMEM((tq, C), jnp.float32),        # relayout buffer for out-proj
            ],
            compiler_params=pltpu.CompilerParams(
                dimension_semantics=("parallel", "parallel")),
        )(x, w_q, k_hm, v_hm, w_proj, b_proj)

    kern = functools.partial(_attn_kernel_multi, num_heads=num_heads,
                             head_dim=hd, scale=scale)
    return pl.pallas_call(
        kern,
        out_shape=out_shape,
        grid=(B, N // tq, kv_steps),
        in_specs=[
            pl.BlockSpec((1, tq, C), lambda b, qi, ki: (b, qi, 0)),
            pl.BlockSpec((C, C), lambda b, qi, ki: (0, 0)),
            pl.BlockSpec((1, H, tk, hd), lambda b, qi, ki: (b, 0, ki, 0)),
            pl.BlockSpec((1, H, tk, hd), lambda b, qi, ki: (b, 0, ki, 0)),
            pl.BlockSpec((C, C2), lambda b, qi, ki: (0, 0)),
            pl.BlockSpec((1, C2), lambda b, qi, ki: (0, 0)),
        ],
        out_specs=pl.BlockSpec((1, tq, C2), lambda b, qi, ki: (b, qi, 0)),
        scratch_shapes=[
            pltpu.VMEM((H, tq, hd), jnp.bfloat16),   # head-major, pre-scaled Q
            pltpu.VMEM((H, tq, 1), jnp.float32),     # running max (per head)
            pltpu.VMEM((H, tq, 1), jnp.float32),     # running sum (per head)
            pltpu.VMEM((H, tq, hd), jnp.float32),    # output accumulator
            pltpu.VMEM((tq, C), jnp.float32),        # relayout buffer for out-proj
        ],
        compiler_params=pltpu.CompilerParams(
            dimension_semantics=("parallel", "parallel", "arbitrary")),
    )(x, w_q, k_hm, v_hm, w_proj, b_proj)


# ----------------------------- parameter prep (hoisted out of forward) -----------------

def prepare_params(params, *, sr_ratio):
    C = params["w_q"].shape[0]
    prep = {
        "w_q": params["w_q"].astype(jnp.bfloat16),
        # K|V kept fused: a single (C, 2C) weight -> one lane-dense 2C-wide GEMM output.
        "w_kv": params["w_kv"].astype(jnp.bfloat16),
        "w_proj": params["w_proj"].astype(jnp.bfloat16),
        "b_proj": params["b_proj"].reshape(1, -1).astype(jnp.float32),
    }
    if sr_ratio > 1:
        sr = sr_ratio
        # Conv3d weight (C_out, C_in, kd, kh, kw) -> GEMM matrix with row order
        # (kd, kh, kw, C_in), matching the patch layout built in the forward.
        prep["w_sr_mat"] = params["w_sr"].transpose(2, 3, 4, 1, 0).reshape(
            sr ** 3 * C, C).astype(jnp.bfloat16)
        prep["b_sr"] = params["b_sr"].reshape(1, C).astype(jnp.float32)
        prep["ln_g"] = params["ln_g"].reshape(1, C).astype(jnp.float32)
        prep["ln_b"] = params["ln_b"].reshape(1, C).astype(jnp.float32)
    return prep


# ----------------------------- SRA attention forward --------------------------------

def sra_attention_forward(in_x, prep, *, num_heads, sr_ratio, attn_tk_cap=1024):
    """in_x: (seq_len, batch, dim)  ->  (seq_len, batch, 2*dim)."""
    orig_dtype = in_x.dtype
    x = jnp.transpose(in_x, (1, 0, 2)).astype(jnp.bfloat16)        # (B, N, C) bf16
    B, N, C = x.shape
    head_dim = C // num_heads
    scale = head_dim ** -0.5
    D, H, W = _spatial_dims(N)

    if sr_ratio > 1:
        sr = sr_ratio
        D2, H2, W2 = D // sr, H // sr, W // sr
        Nk = D2 * H2 * W2
        # Non-overlapping (sr,sr,sr) patch extraction == a pure permutation of x,
        # ordered (kd, kh, kw, ci) to match w_sr_mat.  Kept in XLA (bf16) for now,
        # see TODO(synk) in the header.
        patches = x.reshape(B, D2, sr, H2, sr, W2, sr, C)
        patches = patches.transpose(0, 1, 3, 5, 2, 4, 6, 7)
        patches = patches.reshape(B * Nk, sr * sr * sr * C)
        kv2d = pallas_sr_kv(patches, prep["w_sr_mat"], prep["b_sr"],
                            prep["ln_g"], prep["ln_b"], prep["w_kv"],
                            out_dtype=jnp.bfloat16)                # (B*Nk, 2C)
    else:
        Nk = N
        kv2d = pallas_kv(x.reshape(B * N, C), prep["w_kv"], out_dtype=jnp.bfloat16)

    # Head-major K/V layout (B, H, Nk, hd): one small XLA transpose over the
    # sr^3-reduced K/V so the attention kernel gets full-block, head-batched operands.
    kv = kv2d.reshape(B, Nk, 2, num_heads, head_dim).transpose(2, 0, 3, 1, 4)
    k_hm, v_hm = kv[0], kv[1]

    # Fused q-proj + flash attention + output projection (dropouts are identity, p=0).
    out = pallas_attention_proj(x, prep["w_q"], k_hm, v_hm,
                                prep["w_proj"], prep["b_proj"],
                                num_heads=num_heads, scale=scale,
                                tk_cap=attn_tk_cap)                # (B, N, 2C) bf16
    return jnp.transpose(out, (1, 0, 2)).astype(orig_dtype)        # (N, B, 2C)


# ----------------------------- pure-JAX reference (for sanity) --------------------------------

def sra_attention_reference(in_x, params, *, num_heads, sr_ratio):
    x = jnp.transpose(in_x, (1, 0, 2))
    B, N, C = x.shape
    hd = C // num_heads
    scale = hd ** -0.5
    D, H, W = _spatial_dims(N)
    q = (x.reshape(B * N, C) @ params["w_q"]).reshape(B, N, num_heads, hd).transpose(0, 2, 1, 3)
    if sr_ratio > 1:
        sr = sr_ratio
        Nk = (D // sr) * (H // sr) * (W // sr)
        x_ = x.transpose(0, 2, 1).reshape(B, C, D, H, W)
        conv = jax.lax.conv_general_dilated(
            x_, params["w_sr"], window_strides=(sr, sr, sr), padding="VALID",
            dimension_numbers=("NCDHW", "OIDHW", "NCDHW"))
        conv = conv + params["b_sr"].reshape(1, C, 1, 1, 1)
        xr = conv.reshape(B, C, Nk).transpose(0, 2, 1)
        mu = jnp.mean(xr, -1, keepdims=True)
        var = jnp.mean((xr - mu) ** 2, -1, keepdims=True)
        xr = (xr - mu) / jnp.sqrt(var + 1e-5) * params["ln_g"] + params["ln_b"]
        xr = xr.reshape(B * Nk, C)
    else:
        Nk = N
        xr = x.reshape(B * N, C)
    kv = (xr @ params["w_kv"]).reshape(B, Nk, 2, num_heads, hd).transpose(2, 0, 3, 1, 4)
    k, v = kv[0], kv[1]
    attn = jnp.einsum("bhnd,bhkd->bhnk", q, k) * scale
    attn = jax.nn.softmax(attn, axis=-1)
    o = jnp.einsum("bhnk,bhkd->bhnd", attn, v).transpose(0, 2, 1, 3).reshape(B * N, C)
    out = o @ params["w_proj"] + params["b_proj"]
    return out.reshape(B, N, 2 * C).transpose(1, 0, 2)


# ----------------------------- main --------------------------------

def _make_params(key, dim, sr):
    keys = jax.random.split(key, 8)
    C = dim
    dtype = jnp.float32
    params = {
        "w_q":    0.02 * jax.random.normal(keys[0], (C, C), dtype),              # Linear(dim, dim), no bias
        "w_kv":   0.02 * jax.random.normal(keys[1], (C, 2 * C), dtype),          # Linear(dim, 2*dim), no bias
        "w_proj": 0.02 * jax.random.normal(keys[2], (C, 2 * C), dtype),          # Linear(dim, 2*dim)
        "b_proj": 0.02 * jax.random.normal(keys[3], (2 * C,), dtype),
    }
    if sr > 1:
        params["w_sr"] = 0.02 * jax.random.normal(keys[4], (C, C, sr, sr, sr), dtype)  # Conv3d(dim,dim,k=s=sr)
        params["b_sr"] = 0.02 * jax.random.normal(keys[5], (C,), dtype)
        params["ln_g"] = jnp.ones((C,), dtype)                                         # LayerNorm(dim)
        params["ln_b"] = jnp.zeros((C,), dtype)
    return params, keys[6]


def _run_case(seq, batch, dim, num_heads, sr, key, *, attn_tk_cap=1024):
    params, xkey = _make_params(key, dim, sr)
    in_x = jax.random.normal(xkey, (seq, batch, dim), jnp.float32)
    prep = prepare_params(params, sr_ratio=sr)
    fwd = jax.jit(functools.partial(sra_attention_forward, num_heads=num_heads,
                                    sr_ratio=sr, attn_tk_cap=attn_tk_cap))
    out = jax.block_until_ready(fwd(in_x, prep))
    assert out.shape == (seq, batch, 2 * dim), out.shape
    ref = jax.block_until_ready(
        sra_attention_reference(in_x, params, num_heads=num_heads, sr_ratio=sr))
    # bf16 matmul operands (f32 accumulation) vs a pure-f32 reference.
    np.testing.assert_allclose(np.asarray(out), np.asarray(ref), rtol=2e-2, atol=1e-2)


if __name__ == "__main__":
    key = jax.random.PRNGKey(0)
    k1, k2 = jax.random.split(key)
    # Case 1: smallest valid spatial config (N=864 -> 6x12x12, Nk=108): the KV
    # axis collapses to a single tile -> plain-softmax fast path.
    _run_case(864, 2, 64, 8, 2, k1)
    # Case 2: N=6912 (12x24x24, Nk=864) with the KV tile cap lowered so the
    # online-softmax (multi KV-step) flash path is exercised as well.
    _run_case(6912, 2, 64, 8, 2, k2, attn_tk_cap=512)
    print("KERNEL_OK")
</pallas_src>

<mosaic_0001>
module attributes {stable_mosaic.version = 11 : i64} {
  func.func @_sr_kv_kernel(%arg0: i32, %arg1: memref<72x512xbf16, #tpu.memory_space<vmem>>, %arg2: memref<512x64xbf16, #tpu.memory_space<vmem>>, %arg3: memref<1x64xf32, #tpu.memory_space<vmem>>, %arg4: memref<1x64xf32, #tpu.memory_space<vmem>>, %arg5: memref<1x64xf32, #tpu.memory_space<vmem>>, %arg6: memref<64x128xbf16, #tpu.memory_space<vmem>>, %arg7: memref<72x128xbf16, #tpu.memory_space<vmem>>) attributes {dimension_semantics = [#tpu.dimension_semantics<parallel>], iteration_bounds = array<i64: 3>, scalar_prefetch = 0 : i64, scratch_operands = 0 : i64, tpu.core_type = #tpu.core_type<tc>, window_params = [{transform_indices = @transform_0, window_bounds = array<i64: 72, 512>}, {pipeline_mode = #tpu.pipeline_mode<synchronous>, transform_indices = @transform_1, window_bounds = array<i64: 512, 64>}, {pipeline_mode = #tpu.pipeline_mode<synchronous>, transform_indices = @transform_2, window_bounds = array<i64: 1, 64>}, {pipeline_mode = #tpu.pipeline_mode<synchronous>, transform_indices = @transform_3, window_bounds = array<i64: 1, 64>}, {pipeline_mode = #tpu.pipeline_mode<synchronous>, transform_indices = @transform_4, window_bounds = array<i64: 1, 64>}, {pipeline_mode = #tpu.pipeline_mode<synchronous>, transform_indices = @transform_5, window_bounds = array<i64: 64, 128>}, {transform_indices = @transform_6, window_bounds = array<i64: 72, 128>}]} {
    %c0 = arith.constant 0 : index
    %c0_0 = arith.constant 0 : index
    %0 = vector.load %arg1[%c0, %c0_0] : memref<72x512xbf16, #tpu.memory_space<vmem>>, vector<72x512xbf16>
    %c0_1 = arith.constant 0 : index
    %c0_2 = arith.constant 0 : index
    %1 = vector.load %arg2[%c0_1, %c0_2] : memref<512x64xbf16, #tpu.memory_space<vmem>>, vector<512x64xbf16>
    %cst = arith.constant dense<0.000000e+00> : vector<72x64xf32>
    %2 = tpu.matmul %0, %1, %cst {dimension_numbers = #tpu.dot_dimension_numbers<[1], [0], [0], [1], [0, 0, 1, 1], [], []>} : vector<72x512xbf16>, vector<512x64xbf16>, vector<72x64xf32> -> vector<72x64xf32>
    %c0_3 = arith.constant 0 : index
    %c0_4 = arith.constant 0 : index
    %3 = vector.load %arg3[%c0_3, %c0_4] : memref<1x64xf32, #tpu.memory_space<vmem>>, vector<1x64xf32>
    %4 = vector.broadcast %3 : vector<1x64xf32> to vector<72x64xf32>
    %5 = arith.addf %2, %4 : vector<72x64xf32>
    %cst_5 = arith.constant dense<0.000000e+00> : vector<72xf32>
    %6 = vector.multi_reduction <add>, %5, %cst_5 [1] : vector<72x64xf32> to vector<72xf32>
    %7 = vector.shape_cast %6 : vector<72xf32> to vector<72x1xf32>
    %cst_6 = arith.constant 6.400000e+01 : f32
    %8 = vector.broadcast %cst_6 : f32 to vector<72x1xf32>
    %9 = arith.divf %7, %8 : vector<72x1xf32>
    %10 = vector.broadcast %9 : vector<72x1xf32> to vector<72x64xf32>
    %11 = arith.subf %5, %10 : vector<72x64xf32>
    %12 = arith.mulf %11, %11 : vector<72x64xf32>
    %cst_7 = arith.constant dense<0.000000e+00> : vector<72xf32>
    %13 = vector.multi_reduction <add>, %12, %cst_7 [1] : vector<72x64xf32> to vector<72xf32>
    %14 = vector.shape_cast %13 : vector<72xf32> to vector<72x1xf32>
    %cst_8 = arith.constant 6.400000e+01 : f32
    %15 = vector.broadcast %cst_8 : f32 to vector<72x1xf32>
    %16 = arith.divf %14, %15 : vector<72x1xf32>
    %17 = vector.broadcast %9 : vector<72x1xf32> to vector<72x64xf32>
    %18 = arith.subf %5, %17 : vector<72x64xf32>
    %cst_9 = arith.constant 9.99999974E-6 : f32
    %19 = vector.broadcast %cst_9 : f32 to vector<72x1xf32>
    %20 = arith.addf %16, %19 : vector<72x1xf32>
    %21 = math.rsqrt %20 : vector<72x1xf32>
    %22 = vector.broadcast %21 : vector<72x1xf32> to vector<72x64xf32>
    %23 = arith.mulf %18, %22 : vector<72x64xf32>
    %c0_10 = arith.constant 0 : index
    %c0_11 = arith.constant 0 : index
    %24 = vector.load %arg4[%c0_10, %c0_11] : memref<1x64xf32, #tpu.memory_space<vmem>>, vector<1x64xf32>
    %25 = vector.broadcast %24 : vector<1x64xf32> to vector<72x64xf32>
    %26 = arith.mulf %23, %25 : vector<72x64xf32>
    %c0_12 = arith.constant 0 : index
    %c0_13 = arith.constant 0 : index
    %27 = vector.load %arg5[%c0_12, %c0_13] : memref<1x64xf32, #tpu.memory_space<vmem>>, vector<1x64xf32>
    %28 = vector.broadcast %27 : vector<1x64xf32> to vector<72x64xf32>
    %29 = arith.addf %26, %28 : vector<72x64xf32>
    %30 = arith.truncf %29 : vector<72x64xf32> to vector<72x64xbf16>
    %c0_14 = arith.constant 0 : index
    %c0_15 = arith.constant 0 : index
    %31 = vector.load %arg6[%c0_14, %c0_15] : memref<64x128xbf16, #tpu.memory_space<vmem>>, vector<64x128xbf16>
    %cst_16 = arith.constant dense<0.000000e+00> : vector<72x128xf32>
    %32 = tpu.matmul %30, %31, %cst_16 {dimension_numbers = #tpu.dot_dimension_numbers<[1], [0], [0], [1], [0, 0, 1, 1], [], []>} : vector<72x64xbf16>, vector<64x128xbf16>, vector<72x128xf32> -> vector<72x128xf32>
    %33 = arith.truncf %32 : vector<72x128xf32> to vector<72x128xbf16>
    %c0_17 = arith.constant 0 : index
    %c0_18 = arith.constant 0 : index
    %34 = vector.load %arg7[%c0_17, %c0_18] : memref<72x128xbf16, #tpu.memory_space<vmem>>, vector<72x128xbf16>
    tpu.vector_store %arg7[%c0_17, %c0_18], %33 {strides = array<i32>} : memref<72x128xbf16, #tpu.memory_space<vmem>>, vector<72x128xbf16>,
    return
  }
  func.func @transform_0(%arg0: i32) -> (i32, i32) {
    %c0_i32 = arith.constant 0 : i32
    %c0_i32_0 = arith.constant 0 : i32
    return %arg0, %c0_i32 : i32, i32
  }
  func.func @transform_1(%arg0: i32) -> (i32, i32) {
    %c0_i32 = arith.constant 0 : i32
    %c0_i32_0 = arith.constant 0 : i32
    %c0_i32_1 = arith.constant 0 : i32
    return %c0_i32, %c0_i32_0 : i32, i32
  }
  func.func @transform_2(%arg0: i32) -> (i32, i32) {
    %c0_i32 = arith.constant 0 : i32
    %c0_i32_0 = arith.constant 0 : i32
    %c0_i32_1 = arith.constant 0 : i32
    return %c0_i32, %c0_i32_0 : i32, i32
  }
  func.func @transform_3(%arg0: i32) -> (i32, i32) {
    %c0_i32 = arith.constant 0 : i32
    %c0_i32_0 = arith.constant 0 : i32
    %c0_i32_1 = arith.constant 0 : i32
    return %c0_i32, %c0_i32_0 : i32, i32
  }
  func.func @transform_4(%arg0: i32) -> (i32, i32) {
    %c0_i32 = arith.constant 0 : i32
    %c0_i32_0 = arith.constant 0 : i32
    %c0_i32_1 = arith.constant 0 : i32
    return %c0_i32, %c0_i32_0 : i32, i32
  }
  func.func @transform_5(%arg0: i32) -> (i32, i32) {
    %c0_i32 = arith.constant 0 : i32
    %c0_i32_0 = arith.constant 0 : i32
    %c0_i32_1 = arith.constant 0 : i32
    return %c0_i32, %c0_i32_0 : i32, i32
  }
  func.func @transform_6(%arg0: i32) -> (i32, i32) {
    %c0_i32 = arith.constant 0 : i32
    %c0_i32_0 = arith.constant 0 : i32
    return %arg0, %c0_i32 : i32, i32
  }
}

module attributes {stable_mosaic.version = 11 : i64} {
  func.func @_attn_kernel_single(%arg0: i32, %arg1: i32, %arg2: memref<1x216x64xbf16, #tpu.memory_space<vmem>>, %arg3: memref<64x64xbf16, #tpu.memory_space<vmem>>, %arg4: memref<1x8x108x8xbf16, #tpu.memory_space<vmem>>, %arg5: memref<1x8x108x8xbf16, #tpu.memory_space<vmem>>, %arg6: memref<64x128xbf16, #tpu.memory_space<vmem>>, %arg7: memref<1x128xf32, #tpu.memory_space<vmem>>, %arg8: memref<1x216x128xbf16, #tpu.memory_space<vmem>>, %arg9: memref<8x216x8xbf16, #tpu.memory_space<vmem>>, %arg10: memref<216x64xf32, #tpu.memory_space<vmem>>) attributes {dimension_semantics = [#tpu.dimension_semantics<parallel>, #tpu.dimension_semantics<parallel>], iteration_bounds = array<i64: 2, 4>, scalar_prefetch = 0 : i64, scratch_operands = 2 : i64, tpu.core_type = #tpu.core_type<tc>, window_params = [{transform_indices = @transform_0, window_bounds = array<i64: 1, 216, 64>}, {pipeline_mode = #tpu.pipeline_mode<synchronous>, transform_indices = @transform_1, window_bounds = array<i64: 64, 64>}, {transform_indices = @transform_2, window_bounds = array<i64: 1, 8, 108, 8>}, {transform_indices = @transform_3, window_bounds = array<i64: 1, 8, 108, 8>}, {pipeline_mode = #tpu.pipeline_mode<synchronous>, transform_indices = @transform_4, window_bounds = array<i64: 64, 128>}, {pipeline_mode = #tpu.pipeline_mode<synchronous>, transform_indices = @transform_5, window_bounds = array<i64: 1, 128>}, {transform_indices = @transform_6, window_bounds = array<i64: 1, 216, 128>}]} {
    %c0 = arith.constant 0 : index
    %c0_0 = arith.constant 0 : index
    %c0_1 = arith.constant 0 : index
    %0 = vector.load %arg2[%c0, %c0_0, %c0_1] : memref<1x216x64xbf16, #tpu.memory_space<vmem>>, vector<1x216x64xbf16>
    %1 = vector.shape_cast %0 : vector<1x216x64xbf16> to vector<216x64xbf16>
    %c0_2 = arith.constant 0 : index
    %c0_3 = arith.constant 0 : index
    %2 = vector.load %arg3[%c0_2, %c0_3] : memref<64x64xbf16, #tpu.memory_space<vmem>>, vector<64x64xbf16>
    %cst = arith.constant dense<0.000000e+00> : vector<216x64xf32>
    %3 = tpu.matmul %1, %2, %cst {dimension_numbers = #tpu.dot_dimension_numbers<[1], [0], [0], [1], [0, 0, 1, 1], [], []>} : vector<216x64xbf16>, vector<64x64xbf16>, vector<216x64xf32> -> vector<216x64xf32>
    %cst_4 = arith.constant 0.353553385 : f32
    %4 = vector.broadcast %cst_4 : f32 to vector<216x64xf32>
    %5 = arith.mulf %3, %4 : vector<216x64xf32>
    %6 = arith.truncf %5 : vector<216x64xf32> to vector<216x64xbf16>
    %7 = vector.extract_strided_slice %6 {offsets = [0, 0], sizes = [216, 8], strides = [1, 1]} : vector<216x64xbf16> to vector<216x8xbf16>
    %c0_5 = arith.constant 0 : index
    %c0_6 = arith.constant 0 : index
    %c0_7 = arith.constant 0 : index
    %8 = vector.load %arg9[%c0_5, %c0_6, %c0_7] : memref<8x216x8xbf16, #tpu.memory_space<vmem>>, vector<1x216x8xbf16>
    %9 = vector.shape_cast %8 : vector<1x216x8xbf16> to vector<216x8xbf16>
    %10 = vector.shape_cast %7 : vector<216x8xbf16> to vector<1x216x8xbf16>
    tpu.vector_store %arg9[%c0_5, %c0_6, %c0_7], %10 {strides = array<i32>} : memref<8x216x8xbf16, #tpu.memory_space<vmem>>, vector<1x216x8xbf16>,
    %11 = vector.extract_strided_slice %6 {offsets = [0, 8], sizes = [216, 8], strides = [1, 1]} : vector<216x64xbf16> to vector<216x8xbf16>
    %c1 = arith.constant 1 : index
    %c0_8 = arith.constant 0 : index
    %c0_9 = arith.constant 0 : index
    %12 = vector.load %arg9[%c1, %c0_8, %c0_9] : memref<8x216x8xbf16, #tpu.memory_space<vmem>>, vector<1x216x8xbf16>
    %13 = vector.shape_cast %12 : vector<1x216x8xbf16> to vector<216x8xbf16>
    %14 = vector.shape_cast %11 : vector<216x8xbf16> to vector<1x216x8xbf16>
    tpu.vector_store %arg9[%c1, %c0_8, %c0_9], %14 {strides = array<i32>} : memref<8x216x8xbf16, #tpu.memory_space<vmem>>, vector<1x216x8xbf16>,
    %15 = vector.extract_strided_slice %6 {offsets = [0, 16], sizes = [216, 8], strides = [1, 1]} : vector<216x64xbf16> to vector<216x8xbf16>
    %c2 = arith.constant 2 : index
    %c0_10 = arith.constant 0 : index
    %c0_11 = arith.constant 0 : index
    %16 = vector.load %arg9[%c2, %c0_10, %c0_11] : memref<8x216x8xbf16, #tpu.memory_space<vmem>>, vector<1x216x8xbf16>
    %17 = vector.shape_cast %16 : vector<1x216x8xbf16> to vector<216x8xbf16>
    %18 = vector.shape_cast %15 : vector<216x8xbf16> to vector<1x216x8xbf16>
    tpu.vector_store %arg9[%c2, %c0_10, %c0_11], %18 {strides = array<i32>} : memref<8x216x8xbf16, #tpu.memory_space<vmem>>, vector<1x216x8xbf16>,
    %19 = vector.extract_strided_slice %6 {offsets = [0, 24], sizes = [216, 8], strides = [1, 1]} : vector<216x64xbf16> to vector<216x8xbf16>
    %c3 = arith.constant 3 : index
    %c0_12 = arith.constant 0 : index
    %c0_13 = arith.constant 0 : index
    %20 = vector.load %arg9[%c3, %c0_12, %c0_13] : memref<8x216x8xbf16, #tpu.memory_space<vmem>>, vector<1x216x8xbf16>
    %21 = vector.shape_cast %20 : vector<1x216x8xbf16> to vector<216x8xbf16>
    %22 = vector.shape_cast %19 : vector<216x8xbf16> to vector<1x216x8xbf16>
    tpu.vector_store %arg9[%c3, %c0_12, %c0_13], %22 {strides = array<i32>} : memref<8x216x8xbf16, #tpu.memory_space<vmem>>, vector<1x216x8xbf16>,
    %23 = vector.extract_strided_slice %6 {offsets = [0, 32], sizes = [216, 8], strides = [1, 1]} : vector<216x64xbf16> to vector<216x8xbf16>
    %c4 = arith.constant 4 : index
    %c0_14 = arith.constant 0 : index
    %c0_15 = arith.constant 0 : index
    %24 = vector.load %arg9[%c4, %c0_14, %c0_15] : memref<8x216x8xbf16, #tpu.memory_space<vmem>>, vector<1x216x8xbf16>
    %25 = vector.shape_cast %24 : vector<1x216x8xbf16> to vector<216x8xbf16>
    %26 = vector.shape_cast %23 : vector<216x8xbf16> to vector<1x216x8xbf16>
    tpu.vector_store %arg9[%c4, %c0_14, %c0_15], %26 {strides = array<i32>} : memref<8x216x8xbf16, #tpu.memory_space<vmem>>, vector<1x216x8xbf16>,
    %27 = vector.extract_strided_slice %6 {offsets = [0, 40], sizes = [216, 8], strides = [1, 1]} : vector<216x64xbf16> to vector<216x8xbf16>
    %c5 = arith.constant 5 : index
    %c0_16 = arith.constant 0 : index
    %c0_17 = arith.constant 0 : index
    %28 = vector.load %arg9[%c5, %c0_16, %c0_17] : memref<8x216x8xbf16, #tpu.memory_space<vmem>>, vector<1x216x8xbf16>
    %29 = vector.shape_cast %28 : vector<1x216x8xbf16> to vector<216x8xbf16>
    %30 = vector.shape_cast %27 : vector<216x8xbf16> to vector<1x216x8xbf16>
    tpu.vector_store %arg9[%c5, %c0_16, %c0_17], %30 {strides = array<i32>} : memref<8x216x8xbf16, #tpu.memory_space<vmem>>, vector<1x216x8xbf16>,
    %31 = vector.extract_strided_slice %6 {offsets = [0, 48], sizes = [216, 8], strides = [1, 1]} : vector<216x64xbf16> to vector<216x8xbf16>
    %c6 = arith.constant 6 : index
    %c0_18 = arith.constant 0 : index
    %c0_19 = arith.constant 0 : index
    %32 = vector.load %arg9[%c6, %c0_18, %c0_19] : memref<8x216x8xbf16, #tpu.memory_space<vmem>>, vector<1x216x8xbf16>
    %33 = vector.shape_cast %32 : vector<1x216x8xbf16> to vector<216x8xbf16>
    %34 = vector.shape_cast %31 : vector<216x8xbf16> to vector<1x216x8xbf16>
    tpu.vector_store %arg9[%c6, %c0_18, %c0_19], %34 {strides = array<i32>} : memref<8x216x8xbf16, #tpu.memory_space<vmem>>, vector<1x216x8xbf16>,
    %35 = vector.extract_strided_slice %6 {offsets = [0, 56], sizes = [216, 8], strides = [1, 1]} : vector<216x64xbf16> to vector<216x8xbf16>
    %c7 = arith.constant 7 : index
    %c0_20 = arith.constant 0 : index
    %c0_21 = arith.constant 0 : index
    %36 = vector.load %arg9[%c7, %c0_20, %c0_21] : memref<8x216x8xbf16, #tpu.memory_space<vmem>>, vector<1x216x8xbf16>
    %37 = vector.shape_cast %36 : vector<1x216x8xbf16> to vector<216x8xbf16>
    %38 = vector.shape_cast %35 : vector<216x8xbf16> to vector<1x216x8xbf16>
    tpu.vector_store %arg9[%c7, %c0_20, %c0_21], %38 {strides = array<i32>} : memref<8x216x8xbf16, #tpu.memory_space<vmem>>, vector<1x216x8xbf16>,
    %c0_22 = arith.constant 0 : index
    %c0_23 = arith.constant 0 : index
    %c0_24 = arith.constant 0 : index
    %c0_25 = arith.constant 0 : index
    %39 = vector.load %arg4[%c0_22, %c0_23, %c0_24, %c0_25] : memref<1x8x108x8xbf16, #tpu.memory_space<vmem>>, vector<1x8x108x8xbf16>
    %40 = vector.shape_cast %39 : vector<1x8x108x8xbf16> to vector<8x108x8xbf16>
    %c0_26 = arith.constant 0 : index
    %c0_27 = arith.constant 0 : index
    %c0_28 = arith.constant 0 : index
    %c0_29 = arith.constant 0 : index
    %41 = vector.load %arg5[%c0_26, %c0_27, %c0_28, %c0_29] : memref<1x8x108x8xbf16, #tpu.memory_space<vmem>>, vector<1x8x108x8xbf16>
    %42 = vector.shape_cast %41 : vector<1x8x108x8xbf16> to vector<8x108x8xbf16>
    %c0_30 = arith.constant 0 : index
    %c0_31 = arith.constant 0 : index
    %c0_32 = arith.constant 0 : index
    %43 = vector.load %arg9[%c0_30, %c0_31, %c0_32] : memref<8x216x8xbf16, #tpu.memory_space<vmem>>, vector<8x216x8xbf16>
    "tpu.trace_start"() <{level = 10 : i32, message = "hqd,hkd->hqk"}> : () -> ()
    %cst_33 = arith.constant dense<0.000000e+00> : vector<8x216x108xf32>
    %44 = tpu.matmul %43, %40, %cst_33 {dimension_numbers = #tpu.dot_dimension_numbers<[2], [2], [1], [1], [0, 0, 0, 1, 1, 1], [0], [0]>} : vector<8x216x8xbf16>, vector<8x108x8xbf16>, vector<8x216x108xf32> -> vector<8x216x108xf32>
    "tpu.trace_stop"() : () -> ()
    %cst_34 = arith.constant dense<0xFF800000> : vector<8x216xf32>
    %45 = vector.multi_reduction <maximumf>, %44, %cst_34 [2] : vector<8x216x108xf32> to vector<8x216xf32>
    %46 = vector.shape_cast %45 : vector<8x216xf32> to vector<8x216x1xf32>
    %47 = vector.broadcast %46 : vector<8x216x1xf32> to vector<8x216x108xf32>
    %48 = arith.subf %44, %47 : vector<8x216x108xf32>
    %49 = math.exp %48 : vector<8x216x108xf32>
    %cst_35 = arith.constant dense<0.000000e+00> : vector<8x216xf32>
    %50 = vector.multi_reduction <add>, %49, %cst_35 [2] : vector<8x216x108xf32> to vector<8x216xf32>
    %51 = vector.shape_cast %50 : vector<8x216xf32> to vector<8x216x1xf32>
    %52 = arith.truncf %49 : vector<8x216x108xf32> to vector<8x216x108xbf16>
    "tpu.trace_start"() <{level = 10 : i32, message = "hqk,hkd->hqd"}> : () -> ()
    %cst_36 = arith.constant dense<0.000000e+00> : vector<8x216x8xf32>
    %53 = tpu.matmul %52, %42, %cst_36 {dimension_numbers = #tpu.dot_dimension_numbers<[2], [1], [1], [2], [0, 0, 0, 1, 1, 2], [0], [0]>} : vector<8x216x108xbf16>, vector<8x108x8xbf16>, vector<8x216x8xf32> -> vector<8x216x8xf32>
    "tpu.trace_stop"() : () -> ()
    %54 = tpu.reciprocal %51 {approx = true} : vector<8x216x1xf32> -> vector<8x216x1xf32>
    %55 = vector.broadcast %54 : vector<8x216x1xf32> to vector<8x216x8xf32>
    %56 = arith.mulf %53, %55 : vector<8x216x8xf32>
    %57 = vector.extract_strided_slice %56 {offsets = [0, 0, 0], sizes = [1, 216, 8], strides = [1, 1, 1]} : vector<8x216x8xf32> to vector<1x216x8xf32>
    %58 = vector.shape_cast %57 : vector<1x216x8xf32> to vector<216x8xf32>
    %c0_37 = arith.constant 0 : index
    %c0_38 = arith.constant 0 : index
    %59 = vector.load %arg10[%c0_37, %c0_38] : memref<216x64xf32, #tpu.memory_space<vmem>>, vector<216x8xf32>
    tpu.vector_store %arg10[%c0_37, %c0_38], %58 {strides = array<i32>} : memref<216x64xf32, #tpu.memory_space<vmem>>, vector<216x8xf32>,
    %60 = vector.extract_strided_slice %56 {offsets = [1, 0, 0], sizes = [1, 216, 8], strides = [1, 1, 1]} : vector<8x216x8xf32> to vector<1x216x8xf32>
    %61 = vector.shape_cast %60 : vector<1x216x8xf32> to vector<216x8xf32>
    %c0_39 = arith.constant 0 : index
    %c8 = arith.constant 8 : index
    %62 = vector.load %arg10[%c0_39, %c8] : memref<216x64xf32, #tpu.memory_space<vmem>>, vector<216x8xf32>
    tpu.vector_store %arg10[%c0_39, %c8], %61 {strides = array<i32>} : memref<216x64xf32, #tpu.memory_space<vmem>>, vector<216x8xf32>,
    %63 = vector.extract_strided_slice %56 {offsets = [2, 0, 0], sizes = [1, 216, 8], strides = [1, 1, 1]} : vector<8x216x8xf32> to vector<1x216x8xf32>
    %64 = vector.shape_cast %63 : vector<1x216x8xf32> to vector<216x8xf32>
    %c0_40 = arith.constant 0 : index
    %c16 = arith.constant 16 : index
    %65 = vector.load %arg10[%c0_40, %c16] : memref<216x64xf32, #tpu.memory_space<vmem>>, vector<216x8xf32>
    tpu.vector_store %arg10[%c0_40, %c16], %64 {strides = array<i32>} : memref<216x64xf32, #tpu.memory_space<vmem>>, vector<216x8xf32>,
    %66 = vector.extract_strided_slice %56 {offsets = [3, 0, 0], sizes = [1, 216, 8], strides = [1, 1, 1]} : vector<8x216x8xf32> to vector<1x216x8xf32>
    %67 = vector.shape_cast %66 : vector<1x216x8xf32> to vector<216x8xf32>
    %c0_41 = arith.constant 0 : index
    %c24 = arith.constant 24 : index
    %68 = vector.load %arg10[%c0_41, %c24] : memref<216x64xf32, #tpu.memory_space<vmem>>, vector<216x8xf32>
    tpu.vector_store %arg10[%c0_41, %c24], %67 {strides = array<i32>} : memref<216x64xf32, #tpu.memory_space<vmem>>, vector<216x8xf32>,
    %69 = vector.extract_strided_slice %56 {offsets = [4, 0, 0], sizes = [1, 216, 8], strides = [1, 1, 1]} : vector<8x216x8xf32> to vector<1x216x8xf32>
    %70 = vector.shape_cast %69 : vector<1x216x8xf32> to vector<216x8xf32>
    %c0_42 = arith.constant 0 : index
    %c32 = arith.constant 32 : index
    %71 = vector.load %arg10[%c0_42, %c32] : memref<216x64xf32, #tpu.memory_space<vmem>>, vector<216x8xf32>
    tpu.vector_store %arg10[%c0_42, %c32], %70 {strides = array<i32>} : memref<216x64xf32, #tpu.memory_space<vmem>>, vector<216x8xf32>,
    %72 = vector.extract_strided_slice %56 {offsets = [5, 0, 0], sizes = [1, 216, 8], strides = [1, 1, 1]} : vector<8x216x8xf32> to vector<1x216x8xf32>
    %73 = vector.shape_cast %72 : vector<1x216x8xf32> to vector<216x8xf32>
    %c0_43 = arith.constant 0 : index
    %c40 = arith.constant 40 : index
    %74 = vector.load %arg10[%c0_43, %c40] : memref<216x64xf32, #tpu.memory_space<vmem>>, vector<216x8xf32>
    tpu.vector_store %arg10[%c0_43, %c40], %73 {strides = array<i32>} : memref<216x64xf32, #tpu.memory_space<vmem>>, vector<216x8xf32>,
    %75 = vector.extract_strided_slice %56 {offsets = [6, 0, 0], sizes = [1, 216, 8], strides = [1, 1, 1]} : vector<8x216x8xf32> to vector<1x216x8xf32>
    %76 = vector.shape_cast %75 : vector<1x216x8xf32> to vector<216x8xf32>
    %c0_44 = arith.constant 0 : index
    %c48 = arith.constant 48 : index
    %77 = vector.load %arg10[%c0_44, %c48] : memref<216x64xf32, #tpu.memory_space<vmem>>, vector<216x8xf32>
    tpu.vector_store %arg10[%c0_44, %c48], %76 {strides = array<i32>} : memref<216x64xf32, #tpu.memory_space<vmem>>, vector<216x8xf32>,
    %78 = vector.extract_strided_slice %56 {offsets = [7, 0, 0], sizes = [1, 216, 8], strides = [1, 1, 1]} : vector<8x216x8xf32> to vector<1x216x8xf32>
    %79 = vector.shape_cast %78 : vector<1x216x8xf32> to vector<216x8xf32>
    %c0_45 = arith.constant 0 : index
    %c56 = arith.constant 56 : index
    %80 = vector.load %arg10[%c0_45, %c56] : memref<216x64xf32, #tpu.memory_space<vmem>>, vector<216x8xf32>
    tpu.vector_store %arg10[%c0_45, %c56], %79 {strides = array<i32>} : memref<216x64xf32, #tpu.memory_space<vmem>>, vector<216x8xf32>,
    %c0_46 = arith.constant 0 : index
    %c0_47 = arith.constant 0 : index
    %81 = vector.load %arg10[%c0_46, %c0_47] : memref<216x64xf32, #tpu.memory_space<vmem>>, vector<216x64xf32>
    %82 = arith.truncf %81 : vector<216x64xf32> to vector<216x64xbf16>
    %c0_48 = arith.constant 0 : index
    %c0_49 = arith.constant 0 : index
    %83 = vector.load %arg6[%c0_48, %c0_49] : memref<64x128xbf16, #tpu.memory_space<vmem>>, vector<64x128xbf16>
    %cst_50 = arith.constant dense<0.000000e+00> : vector<216x128xf32>
    %84 = tpu.matmul %82, %83, %cst_50 {dimension_numbers = #tpu.dot_dimension_numbers<[1], [0], [0], [1], [0, 0, 1, 1], [], []>} : vector<216x64xbf16>, vector<64x128xbf16>, vector<216x128xf32> -> vector<216x128xf32>
    %c0_51 = arith.constant 0 : index
    %c0_52 = arith.constant 0 : index
    %85 = vector.load %arg7[%c0_51, %c0_52] : memref<1x128xf32, #tpu.memory_space<vmem>>, vector<1x128xf32>
    %86 = vector.broadcast %85 : vector<1x128xf32> to vector<216x128xf32>
    %87 = arith.addf %84, %86 : vector<216x128xf32>
    %88 = arith.truncf %87 : vector<216x128xf32> to vector<216x128xbf16>
    %c0_53 = arith.constant 0 : index
    %c0_54 = arith.constant 0 : index
    %c0_55 = arith.constant 0 : index
    %89 = vector.load %arg8[%c0_53, %c0_54, %c0_55] : memref<1x216x128xbf16, #tpu.memory_space<vmem>>, vector<1x216x128xbf16>
    %90 = vector.shape_cast %89 : vector<1x216x128xbf16> to vector<216x128xbf16>
    %91 = vector.shape_cast %88 : vector<216x128xbf16> to vector<1x216x128xbf16>
    tpu.vector_store %arg8[%c0_53, %c0_54, %c0_55], %91 {strides = array<i32>} : memref<1x216x128xbf16, #tpu.memory_space<vmem>>, vector<1x216x128xbf16>,
    return
  }
  func.func @transform_0(%arg0: i32, %arg1: i32) -> (i32, i32, i32) {
    %c0_i32 = arith.constant 0 : i32
    %c0_i32_0 = arith.constant 0 : i32
    return %arg0, %arg1, %c0_i32 : i32, i32, i32
  }
  func.func @transform_1(%arg0: i32, %arg1: i32) -> (i32, i32) {
    %c0_i32 = arith.constant 0 : i32
    %c0_i32_0 = arith.constant 0 : i32
    %c0_i32_1 = arith.constant 0 : i32
    return %c0_i32, %c0_i32_0 : i32, i32
  }
  func.func @transform_2(%arg0: i32, %arg1: i32) -> (i32, i32, i32, i32) {
    %c0_i32 = arith.constant 0 : i32
    %c0_i32_0 = arith.constant 0 : i32
    %c0_i32_1 = arith.constant 0 : i32
    %c0_i32_2 = arith.constant 0 : i32
    return %arg0, %c0_i32, %c0_i32_0, %c0_i32_1 : i32, i32, i32, i32
  }
  func.func @transform_3(%arg0: i32, %arg1: i32) -> (i32, i32, i32, i32) {
    %c0_i32 = arith.constant 0 : i32
    %c0_i32_0 = arith.constant 0 : i32
    %c0_i32_1 = arith.constant 0 : i32
    %c0_i32_2 = arith.constant 0 : i32
    return %arg0, %c0_i32, %c0_i32_0, %c0_i32_1 : i32, i32, i32, i32
  }
  func.func @transform_4(%arg0: i32, %arg1: i32) -> (i32, i32) {
    %c0_i32 = arith.constant 0 : i32
    %c0_i32_0 = arith.constant 0 : i32
    %c0_i32_1 = arith.constant 0 : i32
    return %c0_i32, %c0_i32_0 : i32, i32
  }
  func.func @transform_5(%arg0: i32, %arg1: i32) -> (i32, i32) {
    %c0_i32 = arith.constant 0 : i32
    %c0_i32_0 = arith.constant 0 : i32
    %c0_i32_1 = arith.constant 0 : i32
    return %c0_i32, %c0_i32_0 : i32, i32
  }
  func.func @transform_6(%arg0: i32, %arg1: i32) -> (i32, i32, i32) {
    %c0_i32 = arith.constant 0 : i32
    %c0_i32_0 = arith.constant 0 : i32
    return %arg0, %arg1, %c0_i32 : i32, i32, i32
  }
}

</mosaic_0001>

<llo_original>
// kernel: sra_attention_forward.2
$region0: #{sra_attention_forward.2}
  #allocation0 [shape = 'u32[]', space=smem, size = 0x4, offset = 0x4, fixed_abs, tag = 'smem constant byte address 0x4 - core index']
  #allocation1 [shape = 'u32[144,128]{1,0:T(1,128)}', space=vmem, size = 0x12000, scoped, tag = 'internal scratch']
  %s0 = inlined_call_operand.vmem [shape: bf16[216,512], index: 0, kind: input, shape index: {}]
  %s1 = inlined_call_operand.vmem [shape: bf16[512,64], index: 1, kind: input, shape index: {}]
  %s2 = inlined_call_operand.vmem [shape: f32[1,64], index: 2, kind: input, shape index: {}]
  %s3 = inlined_call_operand.vmem [shape: f32[1,64], index: 3, kind: input, shape index: {}]
  %s4 = inlined_call_operand.vmem [shape: f32[1,64], index: 4, kind: input, shape index: {}]
  %s5 = inlined_call_operand.vmem [shape: bf16[64,128], index: 5, kind: input, shape index: {}]
  %s6 = inlined_call_operand.vmem [shape: bf16[216,128], index: 6, kind: output, shape index: {}]
  %s7 = sld [smem:[#allocation0]]
  $region57: #{sra_attention_forward.2} parent=0
    _
  %s9 = ssub.s32 1, %s7
  %s10 = scalar_select 0, %s9, %s7
  loop: start=0, step=1, limit=5
  $region2: #{sra_attention_forward.2} parent=0 // loop_pre_header
    _
  $region3: #{sra_attention_forward.2} parent=0 // loop_header
    %s12 = sphi 0, %s16
    %p13 = scmp.ge.s32.totalorder %s12, 5
    %s22 = sphi 0, %s24
    %s25 = sphi 0, %s22
    %s26 = sphi 0, %s25
    %s42 = sphi 0, %s26
    %s46 = sphi 0, %s46
    %s48 = sphi 0, %s46
    %s49 = sphi 0, %s48
    %s63 = sphi 0, %s49
    %s67 = sphi 0, %s67
    %s69 = sphi 0, %s67
    %s70 = sphi 0, %s69
    %s84 = sphi 0, %s70
    %s88 = sphi 0, %s88
    %s90 = sphi 0, %s88
    %s91 = sphi 0, %s90
    %s105 = sphi 0, %s91
    %s109 = sphi 0, %s109
    %s111 = sphi 0, %s109
    %s112 = sphi 0, %s111
    %s126 = sphi 0, %s112
    %s130 = sphi 0, %s130
    %s132 = sphi 0, %s130
    %s133 = sphi 0, %s132
    %s147 = sphi 0, %s133
    %s153 = sphi 0, %s155
    %s156 = sphi 0, %s153
    %s157 = sphi 0, %s156
    %s173 = sphi 0, %s157
  $region4: #{sra_attention_forward.2} parent=0 // loop_header_branch
    %15 = sbr.rel (%p13) target = $region8
  $region5: #{sra_attention_forward.2} parent=0 // loop_body
    %s17 = ssub.s32 %s12, 1
    %s18 = ssub.s32 %s12, 2
    %s19 = sadd.s32 %s12, 1
    %s20 = ssub.s32 %s12, %s19
    %p21 = scmp.eq.s32.totalorder %s20, 0
    %s23 = sadd.s32 %s22, 1
    %s24 = scalar_select %p21, %s22, %s23
    %p27 = pneg %p21
    %p28 = scmp.eq.s32.totalorder %s12, 2
    %p29 = por %p27, %p28
    %p30 = scmp.ne.s32.totalorder %s22, %s25
    %p31 = scmp.eq.s32.totalorder %s12, 0
    %p32 = por %p30, %p31
    %p33 = scmp.ne.s32.totalorder %s22, %s25
    %p34 = scmp.eq.s32.totalorder %s17, 2
    %p35 = por %p33, %p34
    %p36 = scmp.ne.s32.totalorder %s25, %s26
    %p37 = scmp.eq.s32.totalorder %s17, 0
    %p38 = por %p36, %p37
    %p39 = scmp.ne.s32.totalorder %s25, %s26
    %p40 = scmp.eq.s32.totalorder %s18, 2
    %p41 = por %p39, %p40
    %p43 = scmp.ne.s32.totalorder %s26, %s42
    %p44 = scmp.eq.s32.totalorder %s18, 0
    %p45 = por %p43, %p44
    %s47 = sadd.s32 %s46, 1
    %p50 = scmp.eq.s32.totalorder %s12, 2
    %p51 = scmp.ne.s32.totalorder %s46, %s48
    %p52 = scmp.eq.s32.totalorder %s12, 0
    %p53 = por %p51, %p52
    %p54 = scmp.ne.s32.totalorder %s46, %s48
    %p55 = scmp.eq.s32.totalorder %s17, 2
    %p56 = por %p54, %p55
    %p57 = scmp.ne.s32.totalorder %s48, %s49
    %p58 = scmp.eq.s32.totalorder %s17, 0
    %p59 = por %p57, %p58
    %p60 = scmp.ne.s32.totalorder %s48, %s49
    %p61 = scmp.eq.s32.totalorder %s18, 2
    %p62 = por %p60, %p61
    %p64 = scmp.ne.s32.totalorder %s49, %s63
    %p65 = scmp.eq.s32.totalorder %s18, 0
    %p66 = por %p64, %p65
    %s68 = sadd.s32 %s67, 1
    %p71 = scmp.eq.s32.totalorder %s12, 2
    %p72 = scmp.ne.s32.totalorder %s67, %s69
    %p73 = scmp.eq.s32.totalorder %s12, 0
    %p74 = por %p72, %p73
    %p75 = scmp.ne.s32.totalorder %s67, %s69
    %p76 = scmp.eq.s32.totalorder %s17, 2
    %p77 = por %p75, %p76
    %p78 = scmp.ne.s32.totalorder %s69, %s70
    %p79 = scmp.eq.s32.totalorder %s17, 0
    %p80 = por %p78, %p79
    %p81 = scmp.ne.s32.totalorder %s69, %s70
    %p82 = scmp.eq.s32.totalorder %s18, 2
    %p83 = por %p81, %p82
    %p85 = scmp.ne.s32.totalorder %s70, %s84
    %p86 = scmp.eq.s32.totalorder %s18, 0
    %p87 = por %p85, %p86
    %s89 = sadd.s32 %s88, 1
    %p92 = scmp.eq.s32.totalorder %s12, 2
    %p93 = scmp.ne.s32.totalorder %s88, %s90
    %p94 = scmp.eq.s32.totalorder %s12, 0
    %p95 = por %p93, %p94
    %p96 = scmp.ne.s32.totalorder %s88, %s90
    %p97 = scmp.eq.s32.totalorder %s17, 2
    %p98 = por %p96, %p97
    %p99 = scmp.ne.s32.totalorder %s90, %s91
    %p100 = scmp.eq.s32.totalorder %s17, 0
    %p101 = por %p99, %p100
    %p102 = scmp.ne.s32.totalorder %s90, %s91
    %p103 = scmp.eq.s32.totalorder %s18, 2
    %p104 = por %p102, %p103
    %p106 = scmp.ne.s32.totalorder %s91, %s105
    %p107 = scmp.eq.s32.totalorder %s18, 0
    %p108 = por %p106, %p107
    %s110 = sadd.s32 %s109, 1
    %p113 = scmp.eq.s32.totalorder %s12, 2
    %p114 = scmp.ne.s32.totalorder %s109, %s111
    %p115 = scmp.eq.s32.totalorder %s12, 0
    %p116 = por %p114, %p115
    %p117 = scmp.ne.s32.totalorder %s109, %s111
    %p118 = scmp.eq.s32.totalorder %s17, 2
    %p119 = por %p117, %p118
    %p120 = scmp.ne.s32.totalorder %s111, %s112
    %p121 = scmp.eq.s32.totalorder %s17, 0
    %p122 = por %p120, %p121
    %p123 = scmp.ne.s32.totalorder %s111, %s112
    %p124 = scmp.eq.s32.totalorder %s18, 2
    %p125 = por %p123, %p124
    %p127 = scmp.ne.s32.totalorder %s112, %s126
    %p128 = scmp.eq.s32.totalorder %s18, 0
    %p129 = por %p127, %p128
    %s131 = sadd.s32 %s130, 1
    %p134 = scmp.eq.s32.totalorder %s12, 2
    %p135 = scmp.ne.s32.totalorder %s130, %s132
    %p136 = scmp.eq.s32.totalorder %s12, 0
    %p137 = por %p135, %p136
    %p138 = scmp.ne.s32.totalorder %s130, %s132
    %p139 = scmp.eq.s32.totalorder %s17, 2
    %p140 = por %p138, %p139
    %p141 = scmp.ne.s32.totalorder %s132, %s133
    %p142 = scmp.eq.s32.totalorder %s17, 0
    %p143 = por %p141, %p142
    %p144 = scmp.ne.s32.totalorder %s132, %s133
    %p145 = scmp.eq.s32.totalorder %s18, 2
    %p146 = por %p144, %p145
    %p148 = scmp.ne.s32.totalorder %s133, %s147
    %p149 = scmp.eq.s32.totalorder %s18, 0
    %p150 = por %p148, %p149
    %s151 = ssub.s32 %s12, %s19
    %p152 = scmp.eq.s32.totalorder %s151, 0
    %s154 = sadd.s32 %s153, 1
    %s155 = scalar_select %p152, %s153, %s154
    %p158 = pneg %p152
    %p159 = scmp.eq.s32.totalorder %s12, 2
    %p160 = por %p158, %p159
    %p161 = scmp.ne.s32.totalorder %s153, %s156
    %p162 = scmp.eq.s32.totalorder %s12, 0
    %p163 = por %p161, %p162
    %p164 = scmp.ne.s32.totalorder %s153, %s156
    %p165 = scmp.eq.s32.totalorder %s17, 2
    %p166 = por %p164, %p165
    %p167 = scmp.ne.s32.totalorder %s156, %s157
    %p168 = scmp.eq.s32.totalorder %s17, 0
    %p169 = por %p167, %p168
    %p170 = scmp.ne.s32.totalorder %s156, %s157
    %p171 = scmp.eq.s32.totalorder %s18, 2
    %p172 = por %p170, %p171
    %p174 = scmp.ne.s32.totalorder %s157, %s173
    %p175 = scmp.eq.s32.totalorder %s18, 0
    %p176 = por %p174, %p175
    %p177 = scmp.le.s32.totalorder 1, %s12
    %p178 = scmp.lt.s32.totalorder %s12, 4
    %p179 = pnand %p177, %p178
    %p180 = pneg %p179
    // Predicated region
    $region9: #{sra_attention_forward.2} parent=5 // pred_check
      _
    $region10: #{sra_attention_forward.2} parent=5 // pred_check_branch
      %182 = sbr.rel (%p179) target = $region12
    $region11: #{sra_attention_forward.2} parent=5 // pred_region
      %s183 = ssub.s32 %s12, 1
      // Predicated region
      $region13: #{sra_attention_forward.2} parent=11 // pred_check
        %p184 = pneg %p59
      $region14: #{sra_attention_forward.2} parent=11 // pred_check_branch
        %186 = sbr.rel (%p184) target = $region16
      $region15: #{sra_attention_forward.2} parent=11 // pred_region
        _
      $region16: #{sra_attention_forward.2} parent=11 // pred_fallthru
        _
      // Predicated region
      $region17: #{sra_attention_forward.2} parent=11 // pred_check
        %p187 = pneg %p80
      $region18: #{sra_attention_forward.2} parent=11 // pred_check_branch
        %189 = sbr.rel (%p187) target = $region20
      $region19: #{sra_attention_forward.2} parent=11 // pred_region
        _
      $region20: #{sra_attention_forward.2} parent=11 // pred_fallthru
        _
      // Predicated region
      $region21: #{sra_attention_forward.2} parent=11 // pred_check
        %p190 = pneg %p101
      $region22: #{sra_attention_forward.2} parent=11 // pred_check_branch
        %192 = sbr.rel (%p190) target = $region24
      $region23: #{sra_attention_forward.2} parent=11 // pred_region
        _
      $region24: #{sra_attention_forward.2} parent=11 // pred_fallthru
        _
      // Predicated region
      $region25: #{sra_attention_forward.2} parent=11 // pred_check
        %p193 = pneg %p122
      $region26: #{sra_attention_forward.2} parent=11 // pred_check_branch
        %195 = sbr.rel (%p193) target = $region28
      $region27: #{sra_attention_forward.2} parent=11 // pred_region
        _
      $region28: #{sra_attention_forward.2} parent=11 // pred_fallthru
        _
      // Predicated region
      $region29: #{sra_attention_forward.2} parent=11 // pred_check
        %p196 = pneg %p143
      $region30: #{sra_attention_forward.2} parent=11 // pred_check_branch
        %198 = sbr.rel (%p196) target = $region32
      $region31: #{sra_attention_forward.2} parent=11 // pred_region
        _
      $region32: #{sra_attention_forward.2} parent=11 // pred_fallthru
        _
    $region12: #{sra_attention_forward.2} parent=5 // pred_fallthru
      _
    %p199 = scmp.lt.s32.totalorder %s12, 3
    // Predicated region
    $region33: #{sra_attention_forward.2} parent=5 // pred_check
      %p200 = pneg %p199
    $region34: #{sra_attention_forward.2} parent=5 // pred_check_branch
      %202 = sbr.rel (%p200) target = $region36
    $region35: #{sra_attention_forward.2} parent=5 // pred_region
      // Predicated region
      $region37: #{sra_attention_forward.2} parent=35 // pred_check
        %p203 = pneg %p32
      $region38: #{sra_attention_forward.2} parent=35 // pred_check_branch
        %205 = sbr.rel (%p203) target = $region40
      $region39: #{sra_attention_forward.2} parent=35 // pred_region
        %s206 = smul.u32 9, %s12
        %p207 = scmp.lt.s32.totalorder %s206, 26
        %s208 = scalar_select %p207, %s206, 26
        %s209 = smul.addr %s208, 4
        %s210 = smul.addr %s209, 4
        %s211 = scalar_lea.vmem %s0, %s210
        %s212 = smul.u32 9, %s12
      $region40: #{sra_attention_forward.2} parent=35 // pred_fallthru
        _
    $region36: #{sra_attention_forward.2} parent=5 // pred_fallthru
      _
    %p213 = scmp.le.s32.totalorder 1, %s12
    %p214 = scmp.lt.s32.totalorder %s12, 4
    %p215 = pnand %p213, %p214
    %p216 = pneg %p215
    // Predicated region
    $region41: #{sra_attention_forward.2} parent=5 // pred_check
      _
    $region42: #{sra_attention_forward.2} parent=5 // pred_check_branch
      %218 = sbr.rel (%p215) target = $region44
    $region43: #{sra_attention_forward.2} parent=5 // pred_region
      %s219 = ssub.s32 %s12, 1
      %s220 = smul.u32 9, %s17
      %p221 = scmp.lt.s32.totalorder %s220, 26
      %s222 = scalar_select %p221, %s220, 26
      %s223 = smul.addr %s222, 4
      %s224 = smul.addr %s223, 4
      %s225 = scalar_lea.vmem %s0, %s224
      %p226 = pneg %p38
      %p227 = pneg %p35
      %p228 = pneg %p59
      %p229 = pneg %p56
      %p230 = pneg %p80
      %p231 = pneg %p77
      %p232 = pneg %p101
      %p233 = pneg %p98
      %p234 = pneg %p122
      %p235 = pneg %p119
      %p236 = pneg %p143
      %p237 = pneg %p140
      %p238 = pneg %p169
      %p239 = pneg %p166
      %s240 = smul.u32 9, %s17
      %p241 = scmp.lt.s32.totalorder %s240, 26
      %s242 = scalar_select %p241, %s240, 26
      %s243 = smul.addr %s242, 4
      %s244 = scalar_lea.vmem %s6, %s243
      %s245 = smul.u32 9, %s17
      %p246 = scmp.lt.s32.totalorder %s245, 26
      %s247 = scalar_select %p246, %s245, 26
      %s248 = smul.addr %s247, 4
      %s249 = smul.addr %s248, 4
      %s250 = scalar_lea.vmem %s0, %s249
      %s251 = smul.u32 9, %s17
      %s252 = smul.u32 9, %s17
      %p253 = scmp.lt.s32.totalorder %s252, 26
      %s254 = scalar_select %p253, %s252, 26
      %s255 = smul.addr %s254, 4
      %s256 = scalar_lea.vmem %s6, %s255
      %s257 = smul.u32 9, %s17
      %v259 = vld [vmem:[%s250] sm:$0xff]
      %v260 = vld [vmem:[%s250 + $0x8] sm:$0xff]
      %v261 = vld [vmem:[%s250 + $0x10] sm:$0xff]
      %v262 = vld [vmem:[%s250 + $0x18] sm:$0xff]
      %v263 = vld [vmem:[%s250 + $0x20] sm:$0xff]
      %v264 = vld [vmem:[%s250 + $0x28] sm:$0xff]
      %v265 = vld [vmem:[%s250 + $0x30] sm:$0xff]
      %v266 = vld [vmem:[%s250 + $0x38] sm:$0xff]
      %v267 = vld [vmem:[%s250 + $0x40] sm:$0xff]
      %v268 = vld [vmem:[%s250 + $0x48] sm:$0xff]
      %v269 = vld [vmem:[%s250 + $0x50] sm:$0xff]
      %v270 = vld [vmem:[%s250 + $0x58] sm:$0xff]
      %v271 = vld [vmem:[%s250 + $0x60] sm:$0xff]
      %v272 = vld [vmem:[%s250 + $0x68] sm:$0xff]
      %v273 = vld [vmem:[%s250 + $0x70] sm:$0xff]
      %v274 = vld [vmem:[%s250 + $0x78] sm:$0xff]
      %v275 = vld [vmem:[%s250 + $0x80] sm:$0xff]
      %v276 = vld [vmem:[%s250 + $0x88] sm:$0xff]
      %v277 = vld [vmem:[%s1] sm:$0xf]
      %v278 = vld [vmem:[%s1 + $0x4] sm:$0xf]
      %v279 = vld [vmem:[%s1 + $0x8] sm:$0xf]
      %v280 = vld [vmem:[%s1 + $0xc] sm:$0xf]
      %v281 = vld [vmem:[%s1 + $0x10] sm:$0xf]
      %v282 = vld [vmem:[%s1 + $0x14] sm:$0xf]
      %v283 = vld [vmem:[%s1 + $0x18] sm:$0xf]
      %v284 = vld [vmem:[%s1 + $0x1c] sm:$0xf]
      %v285 = vld [vmem:[%s1 + $0x20] sm:$0xf]
      %v286 = vld [vmem:[%s1 + $0x24] sm:$0xf]
      %v287 = vld [vmem:[%s1 + $0x28] sm:$0xf]
      %v288 = vld [vmem:[%s1 + $0x2c] sm:$0xf]
      %v289 = vld [vmem:[%s1 + $0x30] sm:$0xf]
      %v290 = vld [vmem:[%s1 + $0x34] sm:$0xf]
      %v291 = vld [vmem:[%s1 + $0x38] sm:$0xf]
      %v292 = vld [vmem:[%s1 + $0x3c] sm:$0xf]
      %v293 = vld [vmem:[%s1 + $0x40] sm:$0xf]
      %v294 = vld [vmem:[%s1 + $0x44] sm:$0xf]
      %v295 = vld [vmem:[%s1 + $0x48] sm:$0xf]
      %v296 = vld [vmem:[%s1 + $0x4c] sm:$0xf]
      %v297 = vld [vmem:[%s1 + $0x50] sm:$0xf]
      %v298 = vld [vmem:[%s1 + $0x54] sm:$0xf]
      %v299 = vld [vmem:[%s1 + $0x58] sm:$0xf]
      %v300 = vld [vmem:[%s1 + $0x5c] sm:$0xf]
      %v301 = vld [vmem:[%s1 + $0x60] sm:$0xf]
      %v302 = vld [vmem:[%s1 + $0x64] sm:$0xf]
      %v303 = vld [vmem:[%s1 + $0x68] sm:$0xf]
      %v304 = vld [vmem:[%s1 + $0x6c] sm:$0xf]
      %v305 = vld [vmem:[%s1 + $0x70] sm:$0xf]
      %v306 = vld [vmem:[%s1 + $0x74] sm:$0xf]
      %v307 = vld [vmem:[%s1 + $0x78] sm:$0xf]
      %v308 = vld [vmem:[%s1 + $0x7c] sm:$0xf]
      %v309 = vld [vmem:[%s1 + $0x80] sm:$0xf]
      %v310 = vld [vmem:[%s1 + $0x84] sm:$0xf]
      %v311 = vld [vmem:[%s1 + $0x88] sm:$0xf]
      %v312 = vld [vmem:[%s1 + $0x8c] sm:$0xf]
      %v313 = vld [vmem:[%s1 + $0x90] sm:$0xf]
      %v314 = vld [vmem:[%s1 + $0x94] sm:$0xf]
      %v315 = vld [vmem:[%s1 + $0x98] sm:$0xf]
      %v316 = vld [vmem:[%s1 + $0x9c] sm:$0xf]
      %v317 = vld [vmem:[%s1 + $0xa0] sm:$0xf]
      %v318 = vld [vmem:[%s1 + $0xa4] sm:$0xf]
      %v319 = vld [vmem:[%s1 + $0xa8] sm:$0xf]
      %v320 = vld [vmem:[%s1 + $0xac] sm:$0xf]
      %v321 = vld [vmem:[%s1 + $0xb0] sm:$0xf]
      %v322 = vld [vmem:[%s1 + $0xb4] sm:$0xf]
      %v323 = vld [vmem:[%s1 + $0xb8] sm:$0xf]
      %v324 = vld [vmem:[%s1 + $0xbc] sm:$0xf]
      %v325 = vld [vmem:[%s1 + $0xc0] sm:$0xf]
      %v326 = vld [vmem:[%s1 + $0xc4] sm:$0xf]
      %v327 = vld [vmem:[%s1 + $0xc8] sm:$0xf]
      %v328 = vld [vmem:[%s1 + $0xcc] sm:$0xf]
      %v329 = vld [vmem:[%s1 + $0xd0] sm:$0xf]
      %v330 = vld [vmem:[%s1 + $0xd4] sm:$0xf]
      %v331 = vld [vmem:[%s1 + $0xd8] sm:$0xf]
      %v332 = vld [vmem:[%s1 + $0xdc] sm:$0xf]
      %v333 = vld [vmem:[%s1 + $0xe0] sm:$0xf]
      %v334 = vld [vmem:[%s1 + $0xe4] sm:$0xf]
      %v335 = vld [vmem:[%s1 + $0xe8] sm:$0xf]
      %v336 = vld [vmem:[%s1 + $0xec] sm:$0xf]
      %v337 = vld [vmem:[%s1 + $0xf0] sm:$0xf]
      %v338 = vld [vmem:[%s1 + $0xf4] sm:$0xf]
      %v339 = vld [vmem:[%s1 + $0xf8] sm:$0xf]
      %v340 = vld [vmem:[%s1 + $0xfc] sm:$0xf]
      %v341 = vld [vmem:[%s2] sm:$0x1]
      %v343 = vlaneseq
      %v344 = vshrl.u32 %v343, 7
      %v345 = vsub.s32 0, %v344
      %v346 = vrot.slane %v341, %v345
      %v366 = vunpack.c.l.b16 %v259
      %v367 = vunpack.c.h.b16 %v259
      %v368 = vunpack.c.l.b16 %v260
      %v369 = vunpack.c.h.b16 %v260
      %v370 = vunpack.c.l.b16 %v261
      %v371 = vunpack.c.h.b16 %v261
      %v372 = vunpack.c.l.b16 %v262
      %v373 = vunpack.c.h.b16 %v262
      %v374 = vunpack.c.l.b16 %v263
      %v375 = vunpack.c.h.b16 %v263
      %v376 = vunpack.c.l.b16 %v264
      %v377 = vunpack.c.h.b16 %v264
      %v378 = vunpack.c.l.b16 %v265
      %v379 = vunpack.c.h.b16 %v265
      %v380 = vunpack.c.l.b16 %v266
      %v381 = vunpack.c.h.b16 %v266
      %v382 = vunpack.c.l.b16 %v267
      %v383 = vunpack.c.h.b16 %v267
      %v384 = vunpack.c.l.b16 %v268
      %v385 = vunpack.c.h.b16 %v268
      %v386 = vunpack.c.l.b16 %v269
      %v387 = vunpack.c.h.b16 %v269
      %v388 = vunpack.c.l.b16 %v270
      %v389 = vunpack.c.h.b16 %v270
      %v390 = vunpack.c.l.b16 %v271
      %v391 = vunpack.c.h.b16 %v271
      %v392 = vunpack.c.l.b16 %v272
      %v393 = vunpack.c.h.b16 %v272
      %v394 = vunpack.c.l.b16 %v273
      %v395 = vunpack.c.h.b16 %v273
      %v396 = vunpack.c.l.b16 %v274
      %v397 = vunpack.c.h.b16 %v274
      %v398 = vunpack.c.l.b16 %v275
      %v399 = vunpack.c.h.b16 %v275
      %v400 = vunpack.c.l.b16 %v276
      %v401 = vunpack.c.h.b16 %v276
      %v402 = vpack.c.b16 %v370, %v366
      %v403 = vpack.c.b16 %v371, %v367
      %v404 = vpack.c.b16 %v372, %v368
      %v405 = vpack.c.b16 %v373, %v369
      %v406 = vpack.c.b16 %v378, %v374
      %v407 = vpack.c.b16 %v379, %v375
      %v408 = vpack.c.b16 %v380, %v376
      %v409 = vpack.c.b16 %v381, %v377
      %v410 = vpack.c.b16 %v386, %v382
      %v411 = vpack.c.b16 %v387, %v383
      %v412 = vpack.c.b16 %v388, %v384
      %v413 = vpack.c.b16 %v389, %v385
      %v414 = vpack.c.b16 %v394, %v390
      %v415 = vpack.c.b16 %v395, %v391
      %v416 = vpack.c.b16 %v396, %v392
      %v417 = vpack.c.b16 %v397, %v393
      %v418 = vpack.c.b16 %v398, %v398
      %v419 = vpack.c.b16 %v399, %v399
      %v420 = vpack.c.b16 %v400, %v400
      %v421 = vpack.c.b16 %v401, %v401
      %v506 = vunpack.c.l.b16 %v277
      %v507 = vunpack.c.l.b16 %v278
      %v508 = vunpack.c.l.b16 %v279
      %v509 = vunpack.c.l.b16 %v280
      %v510 = vunpack.c.l.b16 %v281
      %v511 = vunpack.c.l.b16 %v282
      %v512 = vunpack.c.l.b16 %v283
      %v513 = vunpack.c.l.b16 %v284
      %v514 = vunpack.c.l.b16 %v285
      %v515 = vunpack.c.l.b16 %v286
      %v516 = vunpack.c.l.b16 %v287
      %v517 = vunpack.c.l.b16 %v288
      %v518 = vunpack.c.l.b16 %v289
      %v519 = vunpack.c.l.b16 %v290
      %v520 = vunpack.c.l.b16 %v291
      %v521 = vunpack.c.l.b16 %v292
      %v522 = vunpack.c.l.b16 %v293
      %v523 = vunpack.c.l.b16 %v294
      %v524 = vunpack.c.l.b16 %v295
      %v525 = vunpack.c.l.b16 %v296
      %v526 = vunpack.c.l.b16 %v297
      %v527 = vunpack.c.l.b16 %v298
      %v528 = vunpack.c.l.b16 %v299
      %v529 = vunpack.c.l.b16 %v300
      %v530 = vunpack.c.l.b16 %v301
      %v531 = vunpack.c.l.b16 %v302
      %v532 = vunpack.c.l.b16 %v303
      %v533 = vunpack.c.l.b16 %v304
      %v534 = vunpack.c.l.b16 %v305
      %v535 = vunpack.c.l.b16 %v306
      %v536 = vunpack.c.l.b16 %v307
      %v537 = vunpack.c.l.b16 %v308
      %v538 = vunpack.c.l.b16 %v309
      %v539 = vunpack.c.l.b16 %v310
      %v540 = vunpack.c.l.b16 %v311
      %v541 = vunpack.c.l.b16 %v312
      %v542 = vunpack.c.l.b16 %v313
      %v543 = vunpack.c.l.b16 %v314
      %v544 = vunpack.c.l.b16 %v315
      %v545 = vunpack.c.l.b16 %v316
      %v546 = vunpack.c.l.b16 %v317
      %v547 = vunpack.c.l.b16 %v318
      %v548 = vunpack.c.l.b16 %v319
      %v549 = vunpack.c.l.b16 %v320
      %v550 = vunpack.c.l.b16 %v321
      %v551 = vunpack.c.l.b16 %v322
      %v552 = vunpack.c.l.b16 %v323
      %v553 = vunpack.c.l.b16 %v324
      %v554 = vunpack.c.l.b16 %v325
      %v555 = vunpack.c.l.b16 %v326
      %v556 = vunpack.c.l.b16 %v327
      %v557 = vunpack.c.l.b16 %v328
      %v558 = vunpack.c.l.b16 %v329
      %v559 = vunpack.c.l.b16 %v330
      %v560 = vunpack.c.l.b16 %v331
      %v561 = vunpack.c.l.b16 %v332
      %v562 = vunpack.c.l.b16 %v333
      %v563 = vunpack.c.l.b16 %v334
      %v564 = vunpack.c.l.b16 %v335
      %v565 = vunpack.c.l.b16 %v336
      %v566 = vunpack.c.l.b16 %v337
      %v567 = vunpack.c.l.b16 %v338
      %v568 = vunpack.c.l.b16 %v339
      %v569 = vunpack.c.l.b16 %v340
      %v570 = vpack.c.b16 %v507, %v506
      %v571 = vpack.c.b16 %v509, %v508
      %v572 = vpack.c.b16 %v511, %v510
      %v573 = vpack.c.b16 %v513, %v512
      %v574 = vpack.c.b16 %v515, %v514
      %v575 = vpack.c.b16 %v517, %v516
      %v576 = vpack.c.b16 %v519, %v518
      %v577 = vpack.c.b16 %v521, %v520
      %v578 = vpack.c.b16 %v523, %v522
      %v579 = vpack.c.b16 %v525, %v524
      %v580 = vpack.c.b16 %v527, %v526
      %v581 = vpack.c.b16 %v529, %v528
      %v582 = vpack.c.b16 %v531, %v530
      %v583 = vpack.c.b16 %v533, %v532
      %v584 = vpack.c.b16 %v535, %v534
      %v585 = vpack.c.b16 %v537, %v536
      %v586 = vpack.c.b16 %v539, %v538
      %v587 = vpack.c.b16 %v541, %v540
      %v588 = vpack.c.b16 %v543, %v542
      %v589 = vpack.c.b16 %v545, %v544
      %v590 = vpack.c.b16 %v547, %v546
      %v591 = vpack.c.b16 %v549, %v548
      %v592 = vpack.c.b16 %v551, %v550
      %v593 = vpack.c.b16 %v553, %v552
      %v594 = vpack.c.b16 %v555, %v554
      %v595 = vpack.c.b16 %v557, %v556
      %v596 = vpack.c.b16 %v559, %v558
      %v597 = vpack.c.b16 %v561, %v560
      %v598 = vpack.c.b16 %v563, %v562
      %v599 = vpack.c.b16 %v565, %v564
      %v600 = vpack.c.b16 %v567, %v566
      %v601 = vpack.c.b16 %v569, %v568
      %634 = vmatprep.subr.bf16.mxu0 0
      %635 = vmatpush1.bf16.msra.mxu0 %v570
      %636 = vmatprep.subr.bf16.mxu0 0
      %637 = vmatpush1.bf16.msra.mxu0 %v571
      %638 = vmatprep.subr.bf16.mxu0 0
      %639 = vmatpush1.bf16.msra.mxu0 %v572
      %640 = vmatprep.subr.bf16.mxu0 0
      %641 = vmatpush1.bf16.msra.mxu0 %v573
      %642 = vmatprep.subr.bf16.mxu0 0
      %643 = vmatpush1.bf16.msra.mxu0 %v574
      %644 = vmatprep.subr.bf16.mxu0 0
      %645 = vmatpush1.bf16.msra.mxu0 %v575
      %646 = vmatprep.subr.bf16.mxu0 0
      %647 = vmatpush1.bf16.msra.mxu0 %v576
      %648 = vmatprep.subr.bf16.mxu0 0
      %649 = vmatpush1.bf16.msra.mxu0 %v577
      %650 = vmatprep.subr.bf16.mxu0 0
      %651 = vmatpush1.bf16.msra.mxu0 %v578
      %652 = vmatprep.subr.bf16.mxu0 0
      %653 = vmatpush1.bf16.msra.mxu0 %v579
      %654 = vmatprep.subr.bf16.mxu0 0
      %655 = vmatpush1.bf16.msra.mxu0 %v580
      %656 = vmatprep.subr.bf16.mxu0 0
      %657 = vmatpush1.bf16.msra.mxu0 %v581
      %658 = vmatprep.subr.bf16.mxu0 0
      %659 = vmatpush1.bf16.msra.mxu0 %v582
      %660 = vmatprep.subr.bf16.mxu0 0
      %661 = vmatpush1.bf16.msra.mxu0 %v583
      %662 = vmatprep.subr.bf16.mxu0 0
      %663 = vmatpush1.bf16.msra.mxu0 %v584
      %664 = vmatprep.subr.bf16.mxu0 0
      %665 = vmatpush1.bf16.msra.mxu0 %v585
      %666 = vmatprep.mubr.bf16.mxu0 %v403
      %667 = vmatmul.mubr.bf16.gmra.mrb[0].mxu0 %v402
      %v668 = vpop.f32.mrb[0].mxu0
      %v669 = vadd.f32 %v346, %v668
      %v670 = vpop.f32.mrb[0].mxu0
      %v671 = vpop.f32.mrb[0].mxu0
      %v672 = vadd.f32 %v346, %v671
      %v673 = vpop.f32.mrb[0].mxu0
      %674 = vmatprep.mubr.bf16.mxu0 %v407
      %675 = vmatmul.mubr.bf16.gmra.mrb[0].mxu0 %v406
      %v676 = vpop.f32.mrb[0].mxu0
      %v677 = vadd.f32 %v346, %v676
      %v678 = vpop.f32.mrb[0].mxu0
      %v679 = vpop.f32.mrb[0].mxu0
      %v680 = vadd.f32 %v346, %v679
      %v681 = vpop.f32.mrb[0].mxu0
      %682 = vmatprep.mubr.bf16.mxu0 %v411
      %683 = vmatmul.mubr.bf16.gmra.mrb[0].mxu0 %v410
      %v684 = vpop.f32.mrb[0].mxu0
      %v685 = vadd.f32 %v346, %v684
      %v686 = vpop.f32.mrb[0].mxu0
      %v687 = vpop.f32.mrb[0].mxu0
      %v688 = vadd.f32 %v346, %v687
      %v689 = vpop.f32.mrb[0].mxu0
      %690 = vmatprep.mubr.bf16.mxu0 %v415
      %691 = vmatmul.mubr.bf16.gmra.mrb[0].mxu0 %v414
      %v692 = vpop.f32.mrb[0].mxu0
      %v693 = vadd.f32 %v346, %v692
      %v694 = vpop.f32.mrb[0].mxu0
      %v695 = vpop.f32.mrb[0].mxu0
      %v696 = vadd.f32 %v346, %v695
      %v697 = vpop.f32.mrb[0].mxu0
      %698 = vmatprep.mubr.bf16.mxu0 %v419
      %699 = vmatmul.mubr.bf16.gmra.mrb[0].mxu0 %v418
      %v700 = vpop.f32.mrb[0].mxu0
      %v701 = vadd.f32 %v346, %v700
      %v702 = vpop.f32.mrb[0].mxu0
      %v703 = vpop.f32.mrb[0].mxu0
      %v704 = vpop.f32.mrb[0].mxu0
      %705 = vdwg.mxu0
      %706 = vmatprep.subr.bf16.mxu0 0
      %707 = vmatpush1.bf16.msra.mxu0 %v586
      %708 = vmatprep.subr.bf16.mxu0 0
      %709 = vmatpush1.bf16.msra.mxu0 %v587
      %710 = vmatprep.subr.bf16.mxu0 0
      %711 = vmatpush1.bf16.msra.mxu0 %v588
      %712 = vmatprep.subr.bf16.mxu0 0
      %713 = vmatpush1.bf16.msra.mxu0 %v589
      %714 = vmatprep.subr.bf16.mxu0 0
      %715 = vmatpush1.bf16.msra.mxu0 %v590
      %716 = vmatprep.subr.bf16.mxu0 0
      %717 = vmatpush1.bf16.msra.mxu0 %v591
      %718 = vmatprep.subr.bf16.mxu0 0
      %719 = vmatpush1.bf16.msra.mxu0 %v592
      %720 = vmatprep.subr.bf16.mxu0 0
      %721 = vmatpush1.bf16.msra.mxu0 %v593
      %722 = vmatprep.subr.bf16.mxu0 0
      %723 = vmatpush1.bf16.msra.mxu0 %v594
      %724 = vmatprep.subr.bf16.mxu0 0
      %725 = vmatpush1.bf16.msra.mxu0 %v595
      %726 = vmatprep.subr.bf16.mxu0 0
      %727 = vmatpush1.bf16.msra.mxu0 %v596
      %728 = vmatprep.subr.bf16.mxu0 0
      %729 = vmatpush1.bf16.msra.mxu0 %v597
      %730 = vmatprep.subr.bf16.mxu0 0
      %731 = vmatpush1.bf16.msra.mxu0 %v598
      %732 = vmatprep.subr.bf16.mxu0 0
      %733 = vmatpush1.bf16.msra.mxu0 %v599
      %734 = vmatprep.subr.bf16.mxu0 0
      %735 = vmatpush1.bf16.msra.mxu0 %v600
      %736 = vmatprep.subr.bf16.mxu0 0
      %737 = vmatpush1.bf16.msra.mxu0 %v601
      %738 = vmatprep.mubr.bf16.mxu0 %v405
      %739 = vmatmul.mubr.bf16.gmra.mrb[0].mxu0 %v404
      %v740 = vpop.f32.mrb[0].mxu0
      %v741 = vadd.f32 %v669, %v740
      %v742 = vpop.f32.mrb[0].mxu0
      %v743 = vpop.f32.mrb[0].mxu0
      %v744 = vadd.f32 %v672, %v743
      %v745 = vpop.f32.mrb[0].mxu0
      %746 = vmatprep.mubr.bf16.mxu0 %v409
      %747 = vmatmul.mubr.bf16.gmra.mrb[0].mxu0 %v408
      %v748 = vpop.f32.mrb[0].mxu0
      %v749 = vadd.f32 %v677, %v748
      %v750 = vpop.f32.mrb[0].mxu0
      %v751 = vpop.f32.mrb[0].mxu0
      %v752 = vadd.f32 %v680, %v751
      %v753 = vpop.f32.mrb[0].mxu0
      %754 = vmatprep.mubr.bf16.mxu0 %v413
      %755 = vmatmul.mubr.bf16.gmra.mrb[0].mxu0 %v412
      %v756 = vpop.f32.mrb[0].mxu0
      %v757 = vadd.f32 %v685, %v756
      %v758 = vpop.f32.mrb[0].mxu0
      %v759 = vpop.f32.mrb[0].mxu0
      %v760 = vadd.f32 %v688, %v759
      %v761 = vpop.f32.mrb[0].mxu0
      %762 = vmatprep.mubr.bf16.mxu0 %v417
      %763 = vmatmul.mubr.bf16.gmra.mrb[0].mxu0 %v416
      %v764 = vpop.f32.mrb[0].mxu0
      %v765 = vadd.f32 %v693, %v764
      %v766 = vpop.f32.mrb[0].mxu0
      %v767 = vpop.f32.mrb[0].mxu0
      %v768 = vadd.f32 %v696, %v767
      %v769 = vpop.f32.mrb[0].mxu0
      %770 = vmatprep.mubr.bf16.mxu0 %v421
      %771 = vmatmul.mubr.bf16.gmra.mrb[0].mxu0 %v420
      %v772 = vpop.f32.mrb[0].mxu0
      %v773 = vadd.f32 %v701, %v772
      %v774 = vpop.f32.mrb[0].mxu0
      %v775 = vpop.f32.mrb[0].mxu0
      %v776 = vpop.f32.mrb[0].mxu0
      %777 = vdwg.mxu0
      %vm778 = vcmask 523264
      %v779 = vsel %vm778, %v741, 0.0
      %780 = vadd.xlane.f32.xlu0 %v779
      %v781 = vpop.xlane.xlu0 %780
      %v782 = vsel %vm778, %v744, 0.0
      %783 = vadd.xlane.f32.xlu0 %v782
      %v784 = vpop.xlane.xlu0 %783
      %v785 = vsel %vm778, %v749, 0.0
      %786 = vadd.xlane.f32.xlu0 %v785
      %v787 = vpop.xlane.xlu0 %786
      %v788 = vsel %vm778, %v752, 0.0
      %789 = vadd.xlane.f32.xlu0 %v788
      %v790 = vpop.xlane.xlu0 %789
      %v791 = vsel %vm778, %v757, 0.0
      %792 = vadd.xlane.f32.xlu0 %v791
      %v793 = vpop.xlane.xlu0 %792
      %v794 = vsel %vm778, %v760, 0.0
      %795 = vadd.xlane.f32.xlu0 %v794
      %v796 = vpop.xlane.xlu0 %795
      %v797 = vsel %vm778, %v765, 0.0
      %798 = vadd.xlane.f32.xlu0 %v797
      %v799 = vpop.xlane.xlu0 %798
      %v800 = vsel %vm778, %v768, 0.0
      %801 = vadd.xlane.f32.xlu0 %v800
      %v802 = vpop.xlane.xlu0 %801
      %v803 = vsel %vm778, %v773, 0.0
      %804 = vadd.xlane.f32.xlu0 %v803
      %v805 = vpop.xlane.xlu0 %804
      %v806 = vrcp.pop 64.0
      %v807 = vmul.f32 %v781, %v806
      %v808 = vmul.f32 %v784, %v806
      %v809 = vmul.f32 %v787, %v806
      %v810 = vmul.f32 %v790, %v806
      %v811 = vmul.f32 %v793, %v806
      %v812 = vmul.f32 %v796, %v806
      %v813 = vmul.f32 %v799, %v806
      %v814 = vmul.f32 %v802, %v806
      %v815 = vmul.f32 %v805, %v806
      %v816 = vsub.f32 %v741, %v807
      %v817 = vsub.f32 %v744, %v808
      %v818 = vsub.f32 %v749, %v809
      %v819 = vsub.f32 %v752, %v810
      %v820 = vsub.f32 %v757, %v811
      %v821 = vsub.f32 %v760, %v812
      %v822 = vsub.f32 %v765, %v813
      %v823 = vsub.f32 %v768, %v814
      %v824 = vsub.f32 %v773, %v815
      %v825 = vmul.f32 %v816, %v816
      %v826 = vmul.f32 %v817, %v817
      %v827 = vmul.f32 %v818, %v818
      %v828 = vmul.f32 %v819, %v819
      %v829 = vmul.f32 %v820, %v820
      %v830 = vmul.f32 %v821, %v821
      %v831 = vmul.f32 %v822, %v822
      %v832 = vmul.f32 %v823, %v823
      %v833 = vmul.f32 %v824, %v824
      %v834 = vsel %vm778, %v825, 0.0
      %835 = vadd.xlane.f32.xlu0 %v834
      %v836 = vpop.xlane.xlu0 %835
      %v837 = vsel %vm778, %v826, 0.0
      %838 = vadd.xlane.f32.xlu0 %v837
      %v839 = vpop.xlane.xlu0 %838
      %v840 = vsel %vm778, %v827, 0.0
      %841 = vadd.xlane.f32.xlu0 %v840
      %v842 = vpop.xlane.xlu0 %841
      %v843 = vsel %vm778, %v828, 0.0
      %844 = vadd.xlane.f32.xlu0 %v843
      %v845 = vpop.xlane.xlu0 %844
      %v846 = vsel %vm778, %v829, 0.0
      %847 = vadd.xlane.f32.xlu0 %v846
      %v848 = vpop.xlane.xlu0 %847
      %v849 = vsel %vm778, %v830, 0.0
      %850 = vadd.xlane.f32.xlu0 %v849
      %v851 = vpop.xlane.xlu0 %850
      %v852 = vsel %vm778, %v831, 0.0
      %853 = vadd.xlane.f32.xlu0 %v852
      %v854 = vpop.xlane.xlu0 %853
      %v855 = vsel %vm778, %v832, 0.0
      %856 = vadd.xlane.f32.xlu0 %v855
      %v857 = vpop.xlane.xlu0 %856
      %v858 = vsel %vm778, %v833, 0.0
      %859 = vadd.xlane.f32.xlu0 %v858
      %v860 = vpop.xlane.xlu0 %859
      %v861 = vmul.f32 %v836, %v806
      %v862 = vmul.f32 %v839, %v806
      %v863 = vmul.f32 %v842, %v806
      %v864 = vmul.f32 %v845, %v806
      %v865 = vmul.f32 %v848, %v806
      %v866 = vmul.f32 %v851, %v806
      %v867 = vmul.f32 %v854, %v806
      %v868 = vmul.f32 %v857, %v806
      %v869 = vmul.f32 %v860, %v806
      %v870 = vadd.f32 %v861, 1e-05
      %v871 = vadd.f32 %v862, 1e-05
      %v872 = vadd.f32 %v863, 1e-05
      %v873 = vadd.f32 %v864, 1e-05
      %v874 = vadd.f32 %v865, 1e-05
      %v875 = vadd.f32 %v866, 1e-05
      %v876 = vadd.f32 %v867, 1e-05
      %v877 = vadd.f32 %v868, 1e-05
      %v878 = vadd.f32 %v869, 1e-05
      %v879 = vrsqrt.pop %v870
      %v880 = vrsqrt.pop %v871
      %v881 = vrsqrt.pop %v872
      %v882 = vrsqrt.pop %v873
      %v883 = vrsqrt.pop %v874
      %v884 = vrsqrt.pop %v875
      %v885 = vrsqrt.pop %v876
      %v886 = vrsqrt.pop %v877
      %v887 = vrsqrt.pop %v878
      %v888 = vmul.f32 %v816, %v879
      %v889 = vmul.f32 %v817, %v880
      %v890 = vmul.f32 %v818, %v881
      %v891 = vmul.f32 %v819, %v882
      %v892 = vmul.f32 %v820, %v883
      %v893 = vmul.f32 %v821, %v884
      %v894 = vmul.f32 %v822, %v885
      %v895 = vmul.f32 %v823, %v886
      %v896 = vmul.f32 %v824, %v887
      %v897 = vld [vmem:[%s3] sm:$0x1]
      %v899 = vlaneseq
      %v900 = vshrl.u32 %v899, 7
      %v901 = vsub.s32 0, %v900
      %v902 = vrot.slane %v897, %v901
      %v904 = vmul.f32 %v888, %v902
      %v905 = vmul.f32 %v889, %v902
      %v906 = vmul.f32 %v890, %v902
      %v907 = vmul.f32 %v891, %v902
      %v908 = vmul.f32 %v892, %v902
      %v909 = vmul.f32 %v893, %v902
      %v910 = vmul.f32 %v894, %v902
      %v911 = vmul.f32 %v895, %v902
      %v912 = vmul.f32 %v896, %v902
      %v913 = vld [vmem:[%s4] sm:$0x1]
      %v915 = vlaneseq
      %v916 = vshrl.u32 %v915, 7
      %v917 = vsub.s32 0, %v916
      %v918 = vrot.slane %v913, %v917
      %v920 = vadd.f32 %v904, %v918
      %v921 = vadd.f32 %v905, %v918
      %v922 = vadd.f32 %v906, %v918
      %v923 = vadd.f32 %v907, %v918
      %v924 = vadd.f32 %v908, %v918
      %v925 = vadd.f32 %v909, %v918
      %v926 = vadd.f32 %v910, %v918
      %v927 = vadd.f32 %v911, %v918
      %v928 = vadd.f32 %v912, %v918
      %v929 = vpack.c.bf16 %v921, %v920
      %v930 = vpack.c.bf16 %v923, %v922
      %v931 = vpack.c.bf16 %v925, %v924
      %v932 = vpack.c.bf16 %v927, %v926
      %v933 = vpack.c.bf16 %v928, %v928
      %v934 = vld [vmem:[%s5] sm:$0xf]
      %v935 = vld [vmem:[%s5 + $0x4] sm:$0xf]
      %v936 = vld [vmem:[%s5 + $0x8] sm:$0xf]
      %v937 = vld [vmem:[%s5 + $0xc] sm:$0xf]
      %v938 = vld [vmem:[%s5 + $0x10] sm:$0xf]
      %v939 = vld [vmem:[%s5 + $0x14] sm:$0xf]
      %v940 = vld [vmem:[%s5 + $0x18] sm:$0xf]
      %v941 = vld [vmem:[%s5 + $0x1c] sm:$0xf]
      %v950 = vunpack.c.l.b16 %v934
      %v951 = vunpack.c.l.b16 %v935
      %v952 = vunpack.c.l.b16 %v936
      %v953 = vunpack.c.l.b16 %v937
      %v954 = vunpack.c.l.b16 %v938
      %v955 = vunpack.c.l.b16 %v939
      %v956 = vunpack.c.l.b16 %v940
      %v957 = vunpack.c.l.b16 %v941
      %v958 = vpack.c.b16 %v951, %v950
      %v959 = vpack.c.b16 %v953, %v952
      %v960 = vpack.c.b16 %v955, %v954
      %v961 = vpack.c.b16 %v957, %v956
      %v967 = vsel %vm778, %v929, 0
      %v970 = vsel %vm778, %v930, 0
      %v973 = vsel %vm778, %v931, 0
      %v976 = vsel %vm778, %v932, 0
      %v979 = vsel %vm778, %v933, 0
      %981 = vmatprep.subr.bf16.mxu0 0
      %982 = vmatpush1.bf16.msra.mxu0 %v958
      %983 = vmatprep.subr.bf16.mxu0 0
      %984 = vmatpush1.bf16.msra.mxu0 %v959
      %985 = vmatprep.subr.bf16.mxu0 0
      %986 = vmatpush1.bf16.msra.mxu0 %v960
      %987 = vmatprep.subr.bf16.mxu0 0
      %988 = vmatpush1.bf16.msra.mxu0 %v961
      %989 = vmatprep.subr.bf16.mxu0 0
      %990 = vmatpush1.bf16.msra.mxu0 0
      %991 = vmatprep.subr.bf16.mxu0 0
      %992 = vmatpush1.bf16.msra.mxu0 0
      %993 = vmatprep.subr.bf16.mxu0 0
      %994 = vmatpush1.bf16.msra.mxu0 0
      %995 = vmatprep.subr.bf16.mxu0 0
      %996 = vmatpush1.bf16.msra.mxu0 0
      %997 = vmatprep.subr.bf16.mxu0 0
      %998 = vmatpush1.bf16.msra.mxu0 0
      %999 = vmatprep.subr.bf16.mxu0 0
      %1000 = vmatpush1.bf16.msra.mxu0 0
      %1001 = vmatprep.subr.bf16.mxu0 0
      %1002 = vmatpush1.bf16.msra.mxu0 0
      %1003 = vmatprep.subr.bf16.mxu0 0
      %1004 = vmatpush1.bf16.msra.mxu0 0
      %1005 = vmatprep.subr.bf16.mxu0 0
      %1006 = vmatpush1.bf16.msra.mxu0 0
      %1007 = vmatprep.subr.bf16.mxu0 0
      %1008 = vmatpush1.bf16.msra.mxu0 0
      %1009 = vmatprep.subr.bf16.mxu0 0
      %1010 = vmatpush1.bf16.msra.mxu0 0
      %1011 = vmatprep.subr.bf16.mxu0 0
      %1012 = vmatpush1.bf16.msra.mxu0 0
      %1013 = vmatprep.mubr.bf16.mxu0 0
      %1014 = vmatmul.mubr.bf16.gmra.mrb[0].mxu0 %v967
      %v1015 = vpop.f32.mrb[0].mxu0
      %v1016 = vadd.f32 0.0, %v1015
      %v1017 = vpop.f32.mrb[0].mxu0
      %v1018 = vpop.f32.mrb[0].mxu0
      %v1019 = vadd.f32 0.0, %v1018
      %v1020 = vpop.f32.mrb[0].mxu0
      %1021 = vmatprep.mubr.bf16.mxu0 0
      %1022 = vmatmul.mubr.bf16.gmra.mrb[0].mxu0 %v970
      %v1023 = vpop.f32.mrb[0].mxu0
      %v1024 = vadd.f32 0.0, %v1023
      %v1025 = vpop.f32.mrb[0].mxu0
      %v1026 = vpop.f32.mrb[0].mxu0
      %v1027 = vadd.f32 0.0, %v1026
      %v1028 = vpop.f32.mrb[0].mxu0
      %1029 = vmatprep.mubr.bf16.mxu0 0
      %1030 = vmatmul.mubr.bf16.gmra.mrb[0].mxu0 %v973
      %v1031 = vpop.f32.mrb[0].mxu0
      %v1032 = vadd.f32 0.0, %v1031
      %v1033 = vpop.f32.mrb[0].mxu0
      %v1034 = vpop.f32.mrb[0].mxu0
      %v1035 = vadd.f32 0.0, %v1034
      %v1036 = vpop.f32.mrb[0].mxu0
      %1037 = vmatprep.mubr.bf16.mxu0 0
      %1038 = vmatmul.mubr.bf16.gmra.mrb[0].mxu0 %v976
      %v1039 = vpop.f32.mrb[0].mxu0
      %v1040 = vadd.f32 0.0, %v1039
      %v1041 = vpop.f32.mrb[0].mxu0
      %v1042 = vpop.f32.mrb[0].mxu0
      %v1043 = vadd.f32 0.0, %v1042
      %v1044 = vpop.f32.mrb[0].mxu0
      %1045 = vmatprep.mubr.bf16.mxu0 0
      %1046 = vmatmul.mubr.bf16.gmra.mrb[0].mxu0 %v979
      %v1047 = vpop.f32.mrb[0].mxu0
      %v1048 = vadd.f32 0.0, %v1047
      %v1049 = vpop.f32.mrb[0].mxu0
      %v1050 = vpop.f32.mrb[0].mxu0
      %v1051 = vpop.f32.mrb[0].mxu0
      %1052 = vdwg.mxu0
      %v1053 = vpack.c.bf16 %v1019, %v1016
      %v1054 = vpack.c.bf16 %v1027, %v1024
      %v1055 = vpack.c.bf16 %v1035, %v1032
      %v1056 = vpack.c.bf16 %v1043, %v1040
      %v1057 = vpack.c.bf16 %v1048, %v1048
      %v1063 = vunpack.c.l.b16 %v1053
      %v1064 = vunpack.c.h.b16 %v1053
      %v1065 = vunpack.c.l.b16 %v1054
      %v1066 = vunpack.c.h.b16 %v1054
      %v1067 = vunpack.c.l.b16 %v1055
      %v1068 = vunpack.c.h.b16 %v1055
      %v1069 = vunpack.c.l.b16 %v1056
      %v1070 = vunpack.c.h.b16 %v1056
      %v1071 = vunpack.c.l.b16 %v1057
      %v1072 = vpack.c.b16 %v1063, %v1063
      %v1073 = vpack.c.b16 %v1064, %v1064
      %v1074 = vpack.c.b16 %v1065, %v1065
      %v1075 = vpack.c.b16 %v1066, %v1066
      %v1076 = vpack.c.b16 %v1067, %v1067
      %v1077 = vpack.c.b16 %v1068, %v1068
      %v1078 = vpack.c.b16 %v1069, %v1069
      %v1079 = vpack.c.b16 %v1070, %v1070
      %v1080 = vpack.c.b16 %v1071, %v1071
      %1090 = vst [vmem:[%s256] sm:$0xf] %v1072
      %1091 = vst [vmem:[%s256 + $0x4] sm:$0xf] %v1073
      %1092 = vst [vmem:[%s256 + $0x8] sm:$0xf] %v1074
      %1093 = vst [vmem:[%s256 + $0xc] sm:$0xf] %v1075
      %1094 = vst [vmem:[%s256 + $0x10] sm:$0xf] %v1076
      %1095 = vst [vmem:[%s256 + $0x14] sm:$0xf] %v1077
      %1096 = vst [vmem:[%s256 + $0x18] sm:$0xf] %v1078
      %1097 = vst [vmem:[%s256 + $0x1c] sm:$0xf] %v1079
      %1098 = vst [vmem:[%s256 + $0x20] sm:$0xf] %v1080
      %s1099 = smul.u32 9, %s17
      %p1100 = scmp.lt.s32.totalorder %s1099, 26
      %s1101 = scalar_select %p1100, %s1099, 26
      %s1102 = smul.addr %s1101, 4
      %s1103 = scalar_lea.vmem %s6, %s1102
      // Predicated region
      $region45: #{sra_attention_forward.2} parent=43 // pred_check
        %p1104 = pneg %p166
      $region46: #{sra_attention_forward.2} parent=43 // pred_check_branch
        %1106 = sbr.rel (%p1104) target = $region48
      $region47: #{sra_attention_forward.2} parent=43 // pred_region
        %s1107 = smul.u32 9, %s17
      $region48: #{sra_attention_forward.2} parent=43 // pred_fallthru
        _
    $region44: #{sra_attention_forward.2} parent=5 // pred_fallthru
      _
    %p1108 = scmp.le.s32.totalorder 2, %s12
    // Predicated region
    $region49: #{sra_attention_forward.2} parent=5 // pred_check
      %p1109 = pneg %p1108
    $region50: #{sra_attention_forward.2} parent=5 // pred_check_branch
      %1111 = sbr.rel (%p1109) target = $region52
    $region51: #{sra_attention_forward.2} parent=5 // pred_region
      %s1112 = ssub.s32 %s12, 2
      // Predicated region
      $region53: #{sra_attention_forward.2} parent=51 // pred_check
        %p1113 = pneg %p172
      $region54: #{sra_attention_forward.2} parent=51 // pred_check_branch
        %1115 = sbr.rel (%p1113) target = $region56
      $region55: #{sra_attention_forward.2} parent=51 // pred_region
        %s1116 = smul.u32 9, %s18
        %p1117 = scmp.lt.s32.totalorder %s1116, 26
        %s1118 = scalar_select %p1117, %s1116, 26
        %s1119 = smul.addr %s1118, 4
        %s1120 = scalar_lea.vmem %s6, %s1119
      $region56: #{sra_attention_forward.2} parent=51 // pred_fallthru
        _
    $region52: #{sra_attention_forward.2} parent=5 // pred_fallthru
      _
  $region6: #{sra_attention_forward.2} parent=0 // loop_footer
    %s16 = sadd.s32 1, %s12
  $region7: #{sra_attention_forward.2} parent=0 // loop_footer_branch
    %11 = sbr.rel target = $region3
  $region8: #{sra_attention_forward.2} parent=0 // loop_exit
    _

// kernel: sra_attention_forward.3
$region0: #{sra_attention_forward.3}
  #allocation0 [shape = 'u32[]', space=smem, size = 0x4, offset = 0x4, fixed_abs, tag = 'smem constant byte address 0x4 - core index']
  #allocation1 [shape = 'u32[144,128]{1,0:T(1,128)}', space=vmem, size = 0x12000, scoped, tag = 'internal scratch']
  #allocation2 [shape = 'bf16[8,216,8]{2,1,0:T(8,128)(2,1)}', space=vmem, size = 0x6c000, scoped, tag = 'scratch operand']
  #allocation3 [shape = 'f32[216,64]{1,0:T(8,128)}', space=vmem, size = 0x1b000, scoped, tag = 'scratch operand']
  %s0 = inlined_call_operand.vmem [shape: bf16[2,864,64], index: 0, kind: input, shape index: {}]
  %s1 = inlined_call_operand.vmem [shape: bf16[64,64], index: 1, kind: input, shape index: {}]
  %s2 = inlined_call_operand.vmem [shape: bf16[2,8,108,8], index: 2, kind: input, shape index: {}]
  %s3 = inlined_call_operand.vmem [shape: bf16[2,8,108,8], index: 3, kind: input, shape index: {}]
  %s4 = inlined_call_operand.vmem [shape: bf16[64,128], index: 4, kind: input, shape index: {}]
  %s5 = inlined_call_operand.vmem [shape: f32[1,128], index: 5, kind: input, shape index: {}]
  %s6 = inlined_call_operand.vmem [shape: bf16[2,864,128], index: 6, kind: output, shape index: {}]
  %s7 = sld [smem:[#allocation0]]
  $region57: #{sra_attention_forward.3} parent=0
    _
  %s9 = ssub.s32 1, %s7
  %s10 = scalar_select 0, %s9, %s7
  loop: start=0, step=1, limit=10
  $region2: #{sra_attention_forward.3} parent=0 // loop_pre_header
    _
  $region3: #{sra_attention_forward.3} parent=0 // loop_header
    %s12 = sphi 0, %s16
    %p13 = scmp.ge.s32.totalorder %s12, 10
    %s19 = sphi 0, %s31
    %s20 = sphi 0, %s27
    %s21 = sphi 0, %s19
    %s22 = sphi 0, %s20
    %s23 = sphi 0, %s21
    %s24 = sphi 0, %s22
    %s36 = sphi 0, %s38
    %s39 = sphi 0, %s36
    %s40 = sphi 0, %s39
    %s56 = sphi 0, %s40
    %s60 = sphi 0, %s60
    %s62 = sphi 0, %s60
    %s63 = sphi 0, %s62
    %s77 = sphi 0, %s63
    %s83 = sphi 0, %s85
    %s86 = sphi 0, %s83
    %s87 = sphi 0, %s86
    %s103 = sphi 0, %s87
    %s109 = sphi 0, %s111
    %s112 = sphi 0, %s109
    %s113 = sphi 0, %s112
    %s129 = sphi 0, %s113
    %s133 = sphi 0, %s133
    %s135 = sphi 0, %s133
    %s136 = sphi 0, %s135
    %s150 = sphi 0, %s136
    %s154 = sphi 0, %s154
    %s156 = sphi 0, %s154
    %s157 = sphi 0, %s156
    %s171 = sphi 0, %s157
    %s179 = sphi 0, %s181
    %s182 = sphi 0, %s179
    %s183 = sphi 0, %s182
    %s199 = sphi 0, %s183
  $region4: #{sra_attention_forward.3} parent=0 // loop_header_branch
    %15 = sbr.rel (%p13) target = $region8
  $region5: #{sra_attention_forward.3} parent=0 // loop_body
    %s17 = ssub.s32 %s12, 1
    %s18 = ssub.s32 %s12, 2
    %s25 = sadd.s32 1, %s20
    %p26 = scmp.ge.s32.totalorder %s25, 4
    %s27 = scalar_select %p26, 0, %s25
    %s28 = sadd.s32 1, %s19
    %s29 = scalar_select %p26, %s28, %s19
    %p30 = scmp.ge.s32.totalorder %s29, 2
    %s31 = scalar_select %p30, 0, %s29
    %s32 = ssub.s32 %s19, %s31
    %s33 = ssub.s32 %s20, %s27
    %s34 = sor.u32 %s32, %s33
    %p35 = scmp.eq.s32.totalorder %s34, 0
    %s37 = sadd.s32 %s36, 1
    %s38 = scalar_select %p35, %s36, %s37
    %p41 = pneg %p35
    %p42 = scmp.eq.s32.totalorder %s12, 7
    %p43 = por %p41, %p42
    %p44 = scmp.ne.s32.totalorder %s36, %s39
    %p45 = scmp.eq.s32.totalorder %s12, 0
    %p46 = por %p44, %p45
    %p47 = scmp.ne.s32.totalorder %s36, %s39
    %p48 = scmp.eq.s32.totalorder %s17, 7
    %p49 = por %p47, %p48
    %p50 = scmp.ne.s32.totalorder %s39, %s40
    %p51 = scmp.eq.s32.totalorder %s17, 0
    %p52 = por %p50, %p51
    %p53 = scmp.ne.s32.totalorder %s39, %s40
    %p54 = scmp.eq.s32.totalorder %s18, 7
    %p55 = por %p53, %p54
    %p57 = scmp.ne.s32.totalorder %s40, %s56
    %p58 = scmp.eq.s32.totalorder %s18, 0
    %p59 = por %p57, %p58
    %s61 = sadd.s32 %s60, 1
    %p64 = scmp.eq.s32.totalorder %s12, 7
    %p65 = scmp.ne.s32.totalorder %s60, %s62
    %p66 = scmp.eq.s32.totalorder %s12, 0
    %p67 = por %p65, %p66
    %p68 = scmp.ne.s32.totalorder %s60, %s62
    %p69 = scmp.eq.s32.totalorder %s17, 7
    %p70 = por %p68, %p69
    %p71 = scmp.ne.s32.totalorder %s62, %s63
    %p72 = scmp.eq.s32.totalorder %s17, 0
    %p73 = por %p71, %p72
    %p74 = scmp.ne.s32.totalorder %s62, %s63
    %p75 = scmp.eq.s32.totalorder %s18, 7
    %p76 = por %p74, %p75
    %p78 = scmp.ne.s32.totalorder %s63, %s77
    %p79 = scmp.eq.s32.totalorder %s18, 0
    %p80 = por %p78, %p79
    %s81 = ssub.s32 %s19, %s31
    %p82 = scmp.eq.s32.totalorder %s81, 0
    %s84 = sadd.s32 %s83, 1
    %s85 = scalar_select %p82, %s83, %s84
    %p88 = pneg %p82
    %p89 = scmp.eq.s32.totalorder %s12, 7
    %p90 = por %p88, %p89
    %p91 = scmp.ne.s32.totalorder %s83, %s86
    %p92 = scmp.eq.s32.totalorder %s12, 0
    %p93 = por %p91, %p92
    %p94 = scmp.ne.s32.totalorder %s83, %s86
    %p95 = scmp.eq.s32.totalorder %s17, 7
    %p96 = por %p94, %p95
    %p97 = scmp.ne.s32.totalorder %s86, %s87
    %p98 = scmp.eq.s32.totalorder %s17, 0
    %p99 = por %p97, %p98
    %p100 = scmp.ne.s32.totalorder %s86, %s87
    %p101 = scmp.eq.s32.totalorder %s18, 7
    %p102 = por %p100, %p101
    %p104 = scmp.ne.s32.totalorder %s87, %s103
    %p105 = scmp.eq.s32.totalorder %s18, 0
    %p106 = por %p104, %p105
    %s107 = ssub.s32 %s19, %s31
    %p108 = scmp.eq.s32.totalorder %s107, 0
    %s110 = sadd.s32 %s109, 1
    %s111 = scalar_select %p108, %s109, %s110
    %p114 = pneg %p108
    %p115 = scmp.eq.s32.totalorder %s12, 7
    %p116 = por %p114, %p115
    %p117 = scmp.ne.s32.totalorder %s109, %s112
    %p118 = scmp.eq.s32.totalorder %s12, 0
    %p119 = por %p117, %p118
    %p120 = scmp.ne.s32.totalorder %s109, %s112
    %p121 = scmp.eq.s32.totalorder %s17, 7
    %p122 = por %p120, %p121
    %p123 = scmp.ne.s32.totalorder %s112, %s113
    %p124 = scmp.eq.s32.totalorder %s17, 0
    %p125 = por %p123, %p124
    %p126 = scmp.ne.s32.totalorder %s112, %s113
    %p127 = scmp.eq.s32.totalorder %s18, 7
    %p128 = por %p126, %p127
    %p130 = scmp.ne.s32.totalorder %s113, %s129
    %p131 = scmp.eq.s32.totalorder %s18, 0
    %p132 = por %p130, %p131
    %s134 = sadd.s32 %s133, 1
    %p137 = scmp.eq.s32.totalorder %s12, 7
    %p138 = scmp.ne.s32.totalorder %s133, %s135
    %p139 = scmp.eq.s32.totalorder %s12, 0
    %p140 = por %p138, %p139
    %p141 = scmp.ne.s32.totalorder %s133, %s135
    %p142 = scmp.eq.s32.totalorder %s17, 7
    %p143 = por %p141, %p142
    %p144 = scmp.ne.s32.totalorder %s135, %s136
    %p145 = scmp.eq.s32.totalorder %s17, 0
    %p146 = por %p144, %p145
    %p147 = scmp.ne.s32.totalorder %s135, %s136
    %p148 = scmp.eq.s32.totalorder %s18, 7
    %p149 = por %p147, %p148
    %p151 = scmp.ne.s32.totalorder %s136, %s150
    %p152 = scmp.eq.s32.totalorder %s18, 0
    %p153 = por %p151, %p152
    %s155 = sadd.s32 %s154, 1
    %p158 = scmp.eq.s32.totalorder %s12, 7
    %p159 = scmp.ne.s32.totalorder %s154, %s156
    %p160 = scmp.eq.s32.totalorder %s12, 0
    %p161 = por %p159, %p160
    %p162 = scmp.ne.s32.totalorder %s154, %s156
    %p163 = scmp.eq.s32.totalorder %s17, 7
    %p164 = por %p162, %p163
    %p165 = scmp.ne.s32.totalorder %s156, %s157
    %p166 = scmp.eq.s32.totalorder %s17, 0
    %p167 = por %p165, %p166
    %p168 = scmp.ne.s32.totalorder %s156, %s157
    %p169 = scmp.eq.s32.totalorder %s18, 7
    %p170 = por %p168, %p169
    %p172 = scmp.ne.s32.totalorder %s157, %s171
    %p173 = scmp.eq.s32.totalorder %s18, 0
    %p174 = por %p172, %p173
    %s175 = ssub.s32 %s19, %s31
    %s176 = ssub.s32 %s20, %s27
    %s177 = sor.u32 %s175, %s176
    %p178 = scmp.eq.s32.totalorder %s177, 0
    %s180 = sadd.s32 %s179, 1
    %s181 = scalar_select %p178, %s179, %s180
    %p184 = pneg %p178
    %p185 = scmp.eq.s32.totalorder %s12, 7
    %p186 = por %p184, %p185
    %p187 = scmp.ne.s32.totalorder %s179, %s182
    %p188 = scmp.eq.s32.totalorder %s12, 0
    %p189 = por %p187, %p188
    %p190 = scmp.ne.s32.totalorder %s179, %s182
    %p191 = scmp.eq.s32.totalorder %s17, 7
    %p192 = por %p190, %p191
    %p193 = scmp.ne.s32.totalorder %s182, %s183
    %p194 = scmp.eq.s32.totalorder %s17, 0
    %p195 = por %p193, %p194
    %p196 = scmp.ne.s32.totalorder %s182, %s183
    %p197 = scmp.eq.s32.totalorder %s18, 7
    %p198 = por %p196, %p197
    %p200 = scmp.ne.s32.totalorder %s183, %s199
    %p201 = scmp.eq.s32.totalorder %s18, 0
    %p202 = por %p200, %p201
    %p203 = scmp.le.s32.totalorder 1, %s12
    %p204 = scmp.lt.s32.totalorder %s12, 9
    %p205 = pnand %p203, %p204
    %p206 = pneg %p205
    // Predicated region
    $region9: #{sra_attention_forward.3} parent=5 // pred_check
      _
    $region10: #{sra_attention_forward.3} parent=5 // pred_check_branch
      %208 = sbr.rel (%p205) target = $region12
    $region11: #{sra_attention_forward.3} parent=5 // pred_region
      %s209 = ssub.s32 %s12, 1
      // Predicated region
      $region13: #{sra_attention_forward.3} parent=11 // pred_check
        %p210 = pneg %p73
      $region14: #{sra_attention_forward.3} parent=11 // pred_check_branch
        %212 = sbr.rel (%p210) target = $region16
      $region15: #{sra_attention_forward.3} parent=11 // pred_region
        _
      $region16: #{sra_attention_forward.3} parent=11 // pred_fallthru
        _
      // Predicated region
      $region17: #{sra_attention_forward.3} parent=11 // pred_check
        %p213 = pneg %p146
      $region18: #{sra_attention_forward.3} parent=11 // pred_check_branch
        %215 = sbr.rel (%p213) target = $region20
      $region19: #{sra_attention_forward.3} parent=11 // pred_region
        _
      $region20: #{sra_attention_forward.3} parent=11 // pred_fallthru
        _
      // Predicated region
      $region21: #{sra_attention_forward.3} parent=11 // pred_check
        %p216 = pneg %p167
      $region22: #{sra_attention_forward.3} parent=11 // pred_check_branch
        %218 = sbr.rel (%p216) target = $region24
      $region23: #{sra_attention_forward.3} parent=11 // pred_region
        _
      $region24: #{sra_attention_forward.3} parent=11 // pred_fallthru
        _
    $region12: #{sra_attention_forward.3} parent=5 // pred_fallthru
      _
    %p219 = scmp.lt.s32.totalorder %s12, 8
    // Predicated region
    $region25: #{sra_attention_forward.3} parent=5 // pred_check
      %p220 = pneg %p219
    $region26: #{sra_attention_forward.3} parent=5 // pred_check_branch
      %222 = sbr.rel (%p220) target = $region28
    $region27: #{sra_attention_forward.3} parent=5 // pred_region
      // Predicated region
      $region29: #{sra_attention_forward.3} parent=27 // pred_check
        %p223 = pneg %p46
      $region30: #{sra_attention_forward.3} parent=27 // pred_check_branch
        %225 = sbr.rel (%p223) target = $region32
      $region31: #{sra_attention_forward.3} parent=27 // pred_region
        %s226 = smul.u32 27, %s20
        %p227 = scmp.lt.s32.totalorder %s19, 1
        %s228 = scalar_select %p227, %s19, 1
        %p229 = scmp.lt.s32.totalorder %s226, 107
        %s230 = scalar_select %p229, %s226, 107
        %s231 = smul.addr %s228, 108
        %s232 = sadd.s32 %s230, %s231
        %s233 = smul.addr %s232, 4
        %s234 = scalar_lea.vmem %s0, %s233
        %s235 = smul.u32 27, %s20
      $region32: #{sra_attention_forward.3} parent=27 // pred_fallthru
        _
      // Predicated region
      $region33: #{sra_attention_forward.3} parent=27 // pred_check
        %p236 = pneg %p93
      $region34: #{sra_attention_forward.3} parent=27 // pred_check_branch
        %238 = sbr.rel (%p236) target = $region36
      $region35: #{sra_attention_forward.3} parent=27 // pred_region
        %p239 = scmp.lt.s32.totalorder %s19, 1
        %s240 = scalar_select %p239, %s19, 1
        %s241 = smul.addr %s240, 112
        %s242 = smul.addr %s241, 4
        %s243 = scalar_lea.vmem %s2, %s242
      $region36: #{sra_attention_forward.3} parent=27 // pred_fallthru
        _
      // Predicated region
      $region37: #{sra_attention_forward.3} parent=27 // pred_check
        %p244 = pneg %p119
      $region38: #{sra_attention_forward.3} parent=27 // pred_check_branch
        %246 = sbr.rel (%p244) target = $region40
      $region39: #{sra_attention_forward.3} parent=27 // pred_region
        %p247 = scmp.lt.s32.totalorder %s19, 1
        %s248 = scalar_select %p247, %s19, 1
        %s249 = smul.addr %s248, 112
        %s250 = smul.addr %s249, 4
        %s251 = scalar_lea.vmem %s3, %s250
      $region40: #{sra_attention_forward.3} parent=27 // pred_fallthru
        _
    $region28: #{sra_attention_forward.3} parent=5 // pred_fallthru
      _
    %p252 = scmp.le.s32.totalorder 1, %s12
    %p253 = scmp.lt.s32.totalorder %s12, 9
    %p254 = pnand %p252, %p253
    %p255 = pneg %p254
    // Predicated region
    $region41: #{sra_attention_forward.3} parent=5 // pred_check
      _
    $region42: #{sra_attention_forward.3} parent=5 // pred_check_branch
      %257 = sbr.rel (%p254) target = $region44
    $region43: #{sra_attention_forward.3} parent=5 // pred_region
      %s258 = ssub.s32 %s12, 1
      %s259 = smul.u32 27, %s22
      %p260 = scmp.lt.s32.totalorder %s21, 1
      %s261 = scalar_select %p260, %s21, 1
      %p262 = scmp.lt.s32.totalorder %s259, 107
      %s263 = scalar_select %p262, %s259, 107
      %s264 = smul.addr %s261, 108
      %s265 = sadd.s32 %s263, %s264
      %s266 = smul.addr %s265, 4
      %s267 = scalar_lea.vmem %s0, %s266
      %p268 = pneg %p52
      %p269 = pneg %p49
      %p270 = pneg %p73
      %p271 = pneg %p70
      %p272 = scmp.lt.s32.totalorder %s21, 1
      %s273 = scalar_select %p272, %s21, 1
      %s274 = smul.addr %s273, 112
      %s275 = smul.addr %s274, 4
      %s276 = scalar_lea.vmem %s2, %s275
      %p277 = pneg %p99
      %p278 = pneg %p96
      %p279 = scmp.lt.s32.totalorder %s21, 1
      %s280 = scalar_select %p279, %s21, 1
      %s281 = smul.addr %s280, 112
      %s282 = smul.addr %s281, 4
      %s283 = scalar_lea.vmem %s3, %s282
      %p284 = pneg %p125
      %p285 = pneg %p122
      %p286 = pneg %p146
      %p287 = pneg %p143
      %p288 = pneg %p167
      %p289 = pneg %p164
      %p290 = pneg %p195
      %p291 = pneg %p192
      %s292 = smul.u32 27, %s22
      %p293 = scmp.lt.s32.totalorder %s21, 1
      %s294 = scalar_select %p293, %s21, 1
      %p295 = scmp.lt.s32.totalorder %s292, 107
      %s296 = scalar_select %p295, %s292, 107
      %s297 = smul.addr %s294, 108
      %s298 = sadd.s32 %s296, %s297
      %s299 = smul.addr %s298, 4
      %s300 = scalar_lea.vmem %s6, %s299
      %s301 = smul.u32 27, %s22
      %p302 = scmp.lt.s32.totalorder %s21, 1
      %s303 = scalar_select %p302, %s21, 1
      %p304 = scmp.lt.s32.totalorder %s301, 107
      %s305 = scalar_select %p304, %s301, 107
      %s306 = smul.addr %s303, 108
      %s307 = sadd.s32 %s305, %s306
      %s308 = smul.addr %s307, 4
      %s309 = scalar_lea.vmem %s0, %s308
      %s310 = smul.u32 27, %s22
      %p311 = scmp.lt.s32.totalorder %s21, 1
      %s312 = scalar_select %p311, %s21, 1
      %s313 = smul.addr %s312, 112
      %s314 = smul.addr %s313, 4
      %s315 = scalar_lea.vmem %s2, %s314
      %p316 = scmp.lt.s32.totalorder %s21, 1
      %s317 = scalar_select %p316, %s21, 1
      %s318 = smul.addr %s317, 112
      %s319 = smul.addr %s318, 4
      %s320 = scalar_lea.vmem %s3, %s319
      %s321 = smul.u32 27, %s22
      %p322 = scmp.lt.s32.totalorder %s21, 1
      %s323 = scalar_select %p322, %s21, 1
      %p324 = scmp.lt.s32.totalorder %s321, 107
      %s325 = scalar_select %p324, %s321, 107
      %s326 = smul.addr %s323, 108
      %s327 = sadd.s32 %s325, %s326
      %s328 = smul.addr %s327, 4
      %s329 = scalar_lea.vmem %s6, %s328
      %s330 = smul.u32 27, %s22
      %v332 = vld [vmem:[%s309] sm:$0xf]
      %v333 = vld [vmem:[%s309 + $0x4] sm:$0xf]
      %v334 = vld [vmem:[%s309 + $0x8] sm:$0xf]
      %v335 = vld [vmem:[%s309 + $0xc] sm:$0xf]
      %v336 = vld [vmem:[%s309 + $0x10] sm:$0xf]
      %v337 = vld [vmem:[%s309 + $0x14] sm:$0xf]
      %v338 = vld [vmem:[%s309 + $0x18] sm:$0xf]
      %v339 = vld [vmem:[%s309 + $0x1c] sm:$0xf]
      %v340 = vld [vmem:[%s309 + $0x20] sm:$0xf]
      %v341 = vld [vmem:[%s309 + $0x24] sm:$0xf]
      %v342 = vld [vmem:[%s309 + $0x28] sm:$0xf]
      %v343 = vld [vmem:[%s309 + $0x2c] sm:$0xf]
      %v344 = vld [vmem:[%s309 + $0x30] sm:$0xf]
      %v345 = vld [vmem:[%s309 + $0x34] sm:$0xf]
      %v346 = vld [vmem:[%s309 + $0x38] sm:$0xf]
      %v347 = vld [vmem:[%s309 + $0x3c] sm:$0xf]
      %v348 = vld [vmem:[%s309 + $0x40] sm:$0xf]
      %v349 = vld [vmem:[%s309 + $0x44] sm:$0xf]
      %v350 = vld [vmem:[%s309 + $0x48] sm:$0xf]
      %v351 = vld [vmem:[%s309 + $0x4c] sm:$0xf]
      %v352 = vld [vmem:[%s309 + $0x50] sm:$0xf]
      %v353 = vld [vmem:[%s309 + $0x54] sm:$0xf]
      %v354 = vld [vmem:[%s309 + $0x58] sm:$0xf]
      %v355 = vld [vmem:[%s309 + $0x5c] sm:$0xf]
      %v356 = vld [vmem:[%s309 + $0x60] sm:$0xf]
      %v357 = vld [vmem:[%s309 + $0x64] sm:$0xf]
      %v358 = vld [vmem:[%s309 + $0x68] sm:$0xf]
      %v359 = vld [vmem:[%s1] sm:$0xf]
      %v360 = vld [vmem:[%s1 + $0x4] sm:$0xf]
      %v361 = vld [vmem:[%s1 + $0x8] sm:$0xf]
      %v362 = vld [vmem:[%s1 + $0xc] sm:$0xf]
      %v363 = vld [vmem:[%s1 + $0x10] sm:$0xf]
      %v364 = vld [vmem:[%s1 + $0x14] sm:$0xf]
      %v365 = vld [vmem:[%s1 + $0x18] sm:$0xf]
      %v366 = vld [vmem:[%s1 + $0x1c] sm:$0xf]
      %v394 = vunpack.c.l.b16 %v332
      %v395 = vunpack.c.l.b16 %v333
      %v396 = vunpack.c.l.b16 %v334
      %v397 = vunpack.c.l.b16 %v335
      %v398 = vunpack.c.l.b16 %v336
      %v399 = vunpack.c.l.b16 %v337
      %v400 = vunpack.c.l.b16 %v338
      %v401 = vunpack.c.l.b16 %v339
      %v402 = vunpack.c.l.b16 %v340
      %v403 = vunpack.c.l.b16 %v341
      %v404 = vunpack.c.l.b16 %v342
      %v405 = vunpack.c.l.b16 %v343
      %v406 = vunpack.c.l.b16 %v344
      %v407 = vunpack.c.l.b16 %v345
      %v408 = vunpack.c.l.b16 %v346
      %v409 = vunpack.c.l.b16 %v347
      %v410 = vunpack.c.l.b16 %v348
      %v411 = vunpack.c.l.b16 %v349
      %v412 = vunpack.c.l.b16 %v350
      %v413 = vunpack.c.l.b16 %v351
      %v414 = vunpack.c.l.b16 %v352
      %v415 = vunpack.c.l.b16 %v353
      %v416 = vunpack.c.l.b16 %v354
      %v417 = vunpack.c.l.b16 %v355
      %v418 = vunpack.c.l.b16 %v356
      %v419 = vunpack.c.l.b16 %v357
      %v420 = vunpack.c.l.b16 %v358
      %v421 = vpack.c.b16 %v395, %v394
      %v422 = vpack.c.b16 %v397, %v396
      %v423 = vpack.c.b16 %v399, %v398
      %v424 = vpack.c.b16 %v401, %v400
      %v425 = vpack.c.b16 %v403, %v402
      %v426 = vpack.c.b16 %v405, %v404
      %v427 = vpack.c.b16 %v407, %v406
      %v428 = vpack.c.b16 %v409, %v408
      %v429 = vpack.c.b16 %v411, %v410
      %v430 = vpack.c.b16 %v413, %v412
      %v431 = vpack.c.b16 %v415, %v414
      %v432 = vpack.c.b16 %v417, %v416
      %v433 = vpack.c.b16 %v419, %v418
      %v434 = vpack.c.b16 %v420, %v420
      %v443 = vunpack.c.l.b16 %v359
      %v444 = vunpack.c.l.b16 %v360
      %v445 = vunpack.c.l.b16 %v361
      %v446 = vunpack.c.l.b16 %v362
      %v447 = vunpack.c.l.b16 %v363
      %v448 = vunpack.c.l.b16 %v364
      %v449 = vunpack.c.l.b16 %v365
      %v450 = vunpack.c.l.b16 %v366
      %v451 = vpack.c.b16 %v444, %v443
      %v452 = vpack.c.b16 %v446, %v445
      %v453 = vpack.c.b16 %v448, %v447
      %v454 = vpack.c.b16 %v450, %v449
      %vm459 = vcmask 523264
      %v461 = vsel %vm459, %v421, 0
      %v464 = vsel %vm459, %v422, 0
      %v467 = vsel %vm459, %v423, 0
      %v470 = vsel %vm459, %v424, 0
      %v473 = vsel %vm459, %v425, 0
      %v476 = vsel %vm459, %v426, 0
      %v479 = vsel %vm459, %v427, 0
      %v482 = vsel %vm459, %v428, 0
      %v485 = vsel %vm459, %v429, 0
      %v488 = vsel %vm459, %v430, 0
      %v491 = vsel %vm459, %v431, 0
      %v494 = vsel %vm459, %v432, 0
      %v497 = vsel %vm459, %v433, 0
      %v500 = vsel %vm459, %v434, 0
      %502 = vmatprep.subr.bf16.mxu0 0
      %503 = vmatpush1.bf16.msra.mxu0 %v451
      %504 = vmatprep.subr.bf16.mxu0 0
      %505 = vmatpush1.bf16.msra.mxu0 %v452
      %506 = vmatprep.subr.bf16.mxu0 0
      %507 = vmatpush1.bf16.msra.mxu0 %v453
      %508 = vmatprep.subr.bf16.mxu0 0
      %509 = vmatpush1.bf16.msra.mxu0 %v454
      %510 = vmatprep.subr.bf16.mxu0 0
      %511 = vmatpush1.bf16.msra.mxu0 0
      %512 = vmatprep.subr.bf16.mxu0 0
      %513 = vmatpush1.bf16.msra.mxu0 0
      %514 = vmatprep.subr.bf16.mxu0 0
      %515 = vmatpush1.bf16.msra.mxu0 0
      %516 = vmatprep.subr.bf16.mxu0 0
      %517 = vmatpush1.bf16.msra.mxu0 0
      %518 = vmatprep.subr.bf16.mxu0 0
      %519 = vmatpush1.bf16.msra.mxu0 0
      %520 = vmatprep.subr.bf16.mxu0 0
      %521 = vmatpush1.bf16.msra.mxu0 0
      %522 = vmatprep.subr.bf16.mxu0 0
      %523 = vmatpush1.bf16.msra.mxu0 0
      %524 = vmatprep.subr.bf16.mxu0 0
      %525 = vmatpush1.bf16.msra.mxu0 0
      %526 = vmatprep.subr.bf16.mxu0 0
      %527 = vmatpush1.bf16.msra.mxu0 0
      %528 = vmatprep.subr.bf16.mxu0 0
      %529 = vmatpush1.bf16.msra.mxu0 0
      %530 = vmatprep.subr.bf16.mxu0 0
      %531 = vmatpush1.bf16.msra.mxu0 0
      %532 = vmatprep.subr.bf16.mxu0 0
      %533 = vmatpush1.bf16.msra.mxu0 0
      %534 = vmatprep.mubr.bf16.mxu0 0
      %535 = vmatmul.mubr.bf16.gmra.mrb[0].mxu0 %v461
      %v536 = vpop.f32.mrb[0].mxu0
      %v537 = vadd.f32 0.0, %v536
      %v538 = vpop.f32.mrb[0].mxu0
      %v539 = vpop.f32.mrb[0].mxu0
      %v540 = vadd.f32 0.0, %v539
      %v541 = vpop.f32.mrb[0].mxu0
      %542 = vmatprep.mubr.bf16.mxu0 0
      %543 = vmatmul.mubr.bf16.gmra.mrb[0].mxu0 %v464
      %v544 = vpop.f32.mrb[0].mxu0
      %v545 = vadd.f32 0.0, %v544
      %v546 = vpop.f32.mrb[0].mxu0
      %v547 = vpop.f32.mrb[0].mxu0
      %v548 = vadd.f32 0.0, %v547
      %v549 = vpop.f32.mrb[0].mxu0
      %550 = vmatprep.mubr.bf16.mxu0 0
      %551 = vmatmul.mubr.bf16.gmra.mrb[0].mxu0 %v467
      %v552 = vpop.f32.mrb[0].mxu0
      %v553 = vadd.f32 0.0, %v552
      %v554 = vpop.f32.mrb[0].mxu0
      %v555 = vpop.f32.mrb[0].mxu0
      %v556 = vadd.f32 0.0, %v555
      %v557 = vpop.f32.mrb[0].mxu0
      %558 = vmatprep.mubr.bf16.mxu0 0
      %559 = vmatmul.mubr.bf16.gmra.mrb[0].mxu0 %v470
      %v560 = vpop.f32.mrb[0].mxu0
      %v561 = vadd.f32 0.0, %v560
      %v562 = vpop.f32.mrb[0].mxu0
      %v563 = vpop.f32.mrb[0].mxu0
      %v564 = vadd.f32 0.0, %v563
      %v565 = vpop.f32.mrb[0].mxu0
      %566 = vmatprep.mubr.bf16.mxu0 0
      %567 = vmatmul.mubr.bf16.gmra.mrb[0].mxu0 %v473
      %v568 = vpop.f32.mrb[0].mxu0
      %v569 = vadd.f32 0.0, %v568
      %v570 = vpop.f32.mrb[0].mxu0
      %v571 = vpop.f32.mrb[0].mxu0
      %v572 = vadd.f32 0.0, %v571
      %v573 = vpop.f32.mrb[0].mxu0
      %574 = vmatprep.mubr.bf16.mxu0 0
      %575 = vmatmul.mubr.bf16.gmra.mrb[0].mxu0 %v476
      %v576 = vpop.f32.mrb[0].mxu0
      %v577 = vadd.f32 0.0, %v576
      %v578 = vpop.f32.mrb[0].mxu0
      %v579 = vpop.f32.mrb[0].mxu0
      %v580 = vadd.f32 0.0, %v579
      %v581 = vpop.f32.mrb[0].mxu0
      %582 = vmatprep.mubr.bf16.mxu0 0
      %583 = vmatmul.mubr.bf16.gmra.mrb[0].mxu0 %v479
      %v584 = vpop.f32.mrb[0].mxu0
      %v585 = vadd.f32 0.0, %v584
      %v586 = vpop.f32.mrb[0].mxu0
      %v587 = vpop.f32.mrb[0].mxu0
      %v588 = vadd.f32 0.0, %v587
      %v589 = vpop.f32.mrb[0].mxu0
      %590 = vmatprep.mubr.bf16.mxu0 0
      %591 = vmatmul.mubr.bf16.gmra.mrb[0].mxu0 %v482
      %v592 = vpop.f32.mrb[0].mxu0
      %v593 = vadd.f32 0.0, %v592
      %v594 = vpop.f32.mrb[0].mxu0
      %v595 = vpop.f32.mrb[0].mxu0
      %v596 = vadd.f32 0.0, %v595
      %v597 = vpop.f32.mrb[0].mxu0
      %598 = vmatprep.mubr.bf16.mxu0 0
      %599 = vmatmul.mubr.bf16.gmra.mrb[0].mxu0 %v485
      %v600 = vpop.f32.mrb[0].mxu0
      %v601 = vadd.f32 0.0, %v600
      %v602 = vpop.f32.mrb[0].mxu0
      %v603 = vpop.f32.mrb[0].mxu0
      %v604 = vadd.f32 0.0, %v603
      %v605 = vpop.f32.mrb[0].mxu0
      %606 = vmatprep.mubr.bf16.mxu0 0
      %607 = vmatmul.mubr.bf16.gmra.mrb[0].mxu0 %v488
      %v608 = vpop.f32.mrb[0].mxu0
      %v609 = vadd.f32 0.0, %v608
      %v610 = vpop.f32.mrb[0].mxu0
      %v611 = vpop.f32.mrb[0].mxu0
      %v612 = vadd.f32 0.0, %v611
      %v613 = vpop.f32.mrb[0].mxu0
      %614 = vmatprep.mubr.bf16.mxu0 0
      %615 = vmatmul.mubr.bf16.gmra.mrb[0].mxu0 %v491
      %v616 = vpop.f32.mrb[0].mxu0
      %v617 = vadd.f32 0.0, %v616
      %v618 = vpop.f32.mrb[0].mxu0
      %v619 = vpop.f32.mrb[0].mxu0
      %v620 = vadd.f32 0.0, %v619
      %v621 = vpop.f32.mrb[0].mxu0
      %622 = vmatprep.mubr.bf16.mxu0 0
      %623 = vmatmul.mubr.bf16.gmra.mrb[0].mxu0 %v494
      %v624 = vpop.f32.mrb[0].mxu0
      %v625 = vadd.f32 0.0, %v624
      %v626 = vpop.f32.mrb[0].mxu0
      %v627 = vpop.f32.mrb[0].mxu0
      %v628 = vadd.f32 0.0, %v627
      %v629 = vpop.f32.mrb[0].mxu0
      %630 = vmatprep.mubr.bf16.mxu0 0
      %631 = vmatmul.mubr.bf16.gmra.mrb[0].mxu0 %v497
      %v632 = vpop.f32.mrb[0].mxu0
      %v633 = vadd.f32 0.0, %v632
      %v634 = vpop.f32.mrb[0].mxu0
      %v635 = vpop.f32.mrb[0].mxu0
      %v636 = vadd.f32 0.0, %v635
      %v637 = vpop.f32.mrb[0].mxu0
      %638 = vmatprep.mubr.bf16.mxu0 0
      %639 = vmatmul.mubr.bf16.gmra.mrb[0].mxu0 %v500
      %v640 = vpop.f32.mrb[0].mxu0
      %v641 = vadd.f32 0.0, %v640
      %v642 = vpop.f32.mrb[0].mxu0
      %v643 = vpop.f32.mrb[0].mxu0
      %v644 = vpop.f32.mrb[0].mxu0
      %645 = vdwg.mxu0
      %v646 = vmul.f32 %v537, 0.35355338
      %v647 = vmul.f32 %v540, 0.35355338
      %v648 = vmul.f32 %v545, 0.35355338
      %v649 = vmul.f32 %v548, 0.35355338
      %v650 = vmul.f32 %v553, 0.35355338
      %v651 = vmul.f32 %v556, 0.35355338
      %v652 = vmul.f32 %v561, 0.35355338
      %v653 = vmul.f32 %v564, 0.35355338
      %v654 = vmul.f32 %v569, 0.35355338
      %v655 = vmul.f32 %v572, 0.35355338
      %v656 = vmul.f32 %v577, 0.35355338
      %v657 = vmul.f32 %v580, 0.35355338
      %v658 = vmul.f32 %v585, 0.35355338
      %v659 = vmul.f32 %v588, 0.35355338
      %v660 = vmul.f32 %v593, 0.35355338
      %v661 = vmul.f32 %v596, 0.35355338
      %v662 = vmul.f32 %v601, 0.35355338
      %v663 = vmul.f32 %v604, 0.35355338
      %v664 = vmul.f32 %v609, 0.35355338
      %v665 = vmul.f32 %v612, 0.35355338
      %v666 = vmul.f32 %v617, 0.35355338
      %v667 = vmul.f32 %v620, 0.35355338
      %v668 = vmul.f32 %v625, 0.35355338
      %v669 = vmul.f32 %v628, 0.35355338
      %v670 = vmul.f32 %v633, 0.35355338
      %v671 = vmul.f32 %v636, 0.35355338
      %v672 = vmul.f32 %v641, 0.35355338
      %v673 = vpack.c.bf16 %v647, %v646
      %v674 = vpack.c.bf16 %v649, %v648
      %v675 = vpack.c.bf16 %v651, %v650
      %v676 = vpack.c.bf16 %v653, %v652
      %v677 = vpack.c.bf16 %v655, %v654
      %v678 = vpack.c.bf16 %v657, %v656
      %v679 = vpack.c.bf16 %v659, %v658
      %v680 = vpack.c.bf16 %v661, %v660
      %v681 = vpack.c.bf16 %v663, %v662
      %v682 = vpack.c.bf16 %v665, %v664
      %v683 = vpack.c.bf16 %v667, %v666
      %v684 = vpack.c.bf16 %v669, %v668
      %v685 = vpack.c.bf16 %v671, %v670
      %v686 = vpack.c.bf16 %v672, %v672
      %v701 = vunpack.c.l.b16 %v673
      %v702 = vunpack.c.h.b16 %v673
      %v703 = vunpack.c.l.b16 %v674
      %v704 = vunpack.c.h.b16 %v674
      %v705 = vunpack.c.l.b16 %v675
      %v706 = vunpack.c.h.b16 %v675
      %v707 = vunpack.c.l.b16 %v676
      %v708 = vunpack.c.h.b16 %v676
      %v709 = vunpack.c.l.b16 %v677
      %v710 = vunpack.c.h.b16 %v677
      %v711 = vunpack.c.l.b16 %v678
      %v712 = vunpack.c.h.b16 %v678
      %v713 = vunpack.c.l.b16 %v679
      %v714 = vunpack.c.h.b16 %v679
      %v715 = vunpack.c.l.b16 %v680
      %v716 = vunpack.c.h.b16 %v680
      %v717 = vunpack.c.l.b16 %v681
      %v718 = vunpack.c.h.b16 %v681
      %v719 = vunpack.c.l.b16 %v682
      %v720 = vunpack.c.h.b16 %v682
      %v721 = vunpack.c.l.b16 %v683
      %v722 = vunpack.c.h.b16 %v683
      %v723 = vunpack.c.l.b16 %v684
      %v724 = vunpack.c.h.b16 %v684
      %v725 = vunpack.c.l.b16 %v685
      %v726 = vunpack.c.h.b16 %v685
      %v727 = vunpack.c.l.b16 %v686
      %v728 = vpack.c.b16 %v701, %v701
      %v729 = vpack.c.b16 %v702, %v702
      %v730 = vpack.c.b16 %v703, %v703
      %v731 = vpack.c.b16 %v704, %v704
      %v732 = vpack.c.b16 %v705, %v705
      %v733 = vpack.c.b16 %v706, %v706
      %v734 = vpack.c.b16 %v707, %v707
      %v735 = vpack.c.b16 %v708, %v708
      %v736 = vpack.c.b16 %v709, %v709
      %v737 = vpack.c.b16 %v710, %v710
      %v738 = vpack.c.b16 %v711, %v711
      %v739 = vpack.c.b16 %v712, %v712
      %v740 = vpack.c.b16 %v713, %v713
      %v741 = vpack.c.b16 %v714, %v714
      %v742 = vpack.c.b16 %v715, %v715
      %v743 = vpack.c.b16 %v716, %v716
      %v744 = vpack.c.b16 %v717, %v717
      %v745 = vpack.c.b16 %v718, %v718
      %v746 = vpack.c.b16 %v719, %v719
      %v747 = vpack.c.b16 %v720, %v720
      %v748 = vpack.c.b16 %v721, %v721
      %v749 = vpack.c.b16 %v722, %v722
      %v750 = vpack.c.b16 %v723, %v723
      %v751 = vpack.c.b16 %v724, %v724
      %v752 = vpack.c.b16 %v725, %v725
      %v753 = vpack.c.b16 %v726, %v726
      %v754 = vpack.c.b16 %v727, %v727
      %vm782 = vcmask 60416
      %783 = vst.msk [vmem:[#allocation2] sm:$0xf] %vm782, %v728
      %784 = vst.msk [vmem:[#allocation2 + $0x4] sm:$0xf] %vm782, %v729
      %785 = vst.msk [vmem:[#allocation2 + $0x8] sm:$0xf] %vm782, %v730
      %786 = vst.msk [vmem:[#allocation2 + $0xc] sm:$0xf] %vm782, %v731
      %787 = vst.msk [vmem:[#allocation2 + $0x10] sm:$0xf] %vm782, %v732
      %788 = vst.msk [vmem:[#allocation2 + $0x14] sm:$0xf] %vm782, %v733
      %789 = vst.msk [vmem:[#allocation2 + $0x18] sm:$0xf] %vm782, %v734
      %790 = vst.msk [vmem:[#allocation2 + $0x1c] sm:$0xf] %vm782, %v735
      %791 = vst.msk [vmem:[#allocation2 + $0x20] sm:$0xf] %vm782, %v736
      %792 = vst.msk [vmem:[#allocation2 + $0x24] sm:$0xf] %vm782, %v737
      %793 = vst.msk [vmem:[#allocation2 + $0x28] sm:$0xf] %vm782, %v738
      %794 = vst.msk [vmem:[#allocation2 + $0x2c] sm:$0xf] %vm782, %v739
      %795 = vst.msk [vmem:[#allocation2 + $0x30] sm:$0xf] %vm782, %v740
      %796 = vst.msk [vmem:[#allocation2 + $0x34] sm:$0xf] %vm782, %v741
      %797 = vst.msk [vmem:[#allocation2 + $0x38] sm:$0xf] %vm782, %v742
      %798 = vst.msk [vmem:[#allocation2 + $0x3c] sm:$0xf] %vm782, %v743
      %799 = vst.msk [vmem:[#allocation2 + $0x40] sm:$0xf] %vm782, %v744
      %800 = vst.msk [vmem:[#allocation2 + $0x44] sm:$0xf] %vm782, %v745
      %801 = vst.msk [vmem:[#allocation2 + $0x48] sm:$0xf] %vm782, %v746
      %802 = vst.msk [vmem:[#allocation2 + $0x4c] sm:$0xf] %vm782, %v747
      %803 = vst.msk [vmem:[#allocation2 + $0x50] sm:$0xf] %vm782, %v748
      %804 = vst.msk [vmem:[#allocation2 + $0x54] sm:$0xf] %vm782, %v749
      %805 = vst.msk [vmem:[#allocation2 + $0x58] sm:$0xf] %vm782, %v750
      %806 = vst.msk [vmem:[#allocation2 + $0x5c] sm:$0xf] %vm782, %v751
      %807 = vst.msk [vmem:[#allocation2 + $0x60] sm:$0xf] %vm782, %v752
      %808 = vst.msk [vmem:[#allocation2 + $0x64] sm:$0xf] %vm782, %v753
      %809 = vst.msk [vmem:[#allocation2 + $0x68] sm:$0xf] %vm782, %v754
      %810 = vrot.lane.b32.xlu0 %v728, 120
      %v811 = vpop.permute.xlu0 %810
      %812 = vrot.lane.b32.xlu0 %v729, 120
      %v813 = vpop.permute.xlu0 %812
      %814 = vrot.lane.b32.xlu0 %v730, 120
      %v815 = vpop.permute.xlu0 %814
      %816 = vrot.lane.b32.xlu0 %v731, 120
      %v817 = vpop.permute.xlu0 %816
      %818 = vrot.lane.b32.xlu0 %v732, 120
      %v819 = vpop.permute.xlu0 %818
      %820 = vrot.lane.b32.xlu0 %v733, 120
      %v821 = vpop.permute.xlu0 %820
      %822 = vrot.lane.b32.xlu0 %v734, 120
      %v823 = vpop.permute.xlu0 %822
      %824 = vrot.lane.b32.xlu0 %v735, 120
      %v825 = vpop.permute.xlu0 %824
      %826 = vrot.lane.b32.xlu0 %v736, 120
      %v827 = vpop.permute.xlu0 %826
      %828 = vrot.lane.b32.xlu0 %v737, 120
      %v829 = vpop.permute.xlu0 %828
      %830 = vrot.lane.b32.xlu0 %v738, 120
      %v831 = vpop.permute.xlu0 %830
      %832 = vrot.lane.b32.xlu0 %v739, 120
      %v833 = vpop.permute.xlu0 %832
      %834 = vrot.lane.b32.xlu0 %v740, 120
      %v835 = vpop.permute.xlu0 %834
      %836 = vrot.lane.b32.xlu0 %v741, 120
      %v837 = vpop.permute.xlu0 %836
      %838 = vrot.lane.b32.xlu0 %v742, 120
      %v839 = vpop.permute.xlu0 %838
      %840 = vrot.lane.b32.xlu0 %v743, 120
      %v841 = vpop.permute.xlu0 %840
      %842 = vrot.lane.b32.xlu0 %v744, 120
      %v843 = vpop.permute.xlu0 %842
      %844 = vrot.lane.b32.xlu0 %v745, 120
      %v845 = vpop.permute.xlu0 %844
      %846 = vrot.lane.b32.xlu0 %v746, 120
      %v847 = vpop.permute.xlu0 %846
      %848 = vrot.lane.b32.xlu0 %v747, 120
      %v849 = vpop.permute.xlu0 %848
      %850 = vrot.lane.b32.xlu0 %v748, 120
      %v851 = vpop.permute.xlu0 %850
      %852 = vrot.lane.b32.xlu0 %v749, 120
      %v853 = vpop.permute.xlu0 %852
      %854 = vrot.lane.b32.xlu0 %v750, 120
      %v855 = vpop.permute.xlu0 %854
      %856 = vrot.lane.b32.xlu0 %v751, 120
      %v857 = vpop.permute.xlu0 %856
      %858 = vrot.lane.b32.xlu0 %v752, 120
      %v859 = vpop.permute.xlu0 %858
      %860 = vrot.lane.b32.xlu0 %v753, 120
      %v861 = vpop.permute.xlu0 %860
      %862 = vrot.lane.b32.xlu0 %v754, 120
      %v863 = vpop.permute.xlu0 %862
      %s891 = scalar_lea.vmem [#allocation2], 108
      %892 = vst.msk [vmem:[%s891] sm:$0xf] %vm782, %v811
      %893 = vst.msk [vmem:[%s891 + $0x4] sm:$0xf] %vm782, %v813
      %894 = vst.msk [vmem:[%s891 + $0x8] sm:$0xf] %vm782, %v815
      %895 = vst.msk [vmem:[%s891 + $0xc] sm:$0xf] %vm782, %v817
      %896 = vst.msk [vmem:[%s891 + $0x10] sm:$0xf] %vm782, %v819
      %897 = vst.msk [vmem:[%s891 + $0x14] sm:$0xf] %vm782, %v821
      %898 = vst.msk [vmem:[%s891 + $0x18] sm:$0xf] %vm782, %v823
      %899 = vst.msk [vmem:[%s891 + $0x1c] sm:$0xf] %vm782, %v825
      %900 = vst.msk [vmem:[%s891 + $0x20] sm:$0xf] %vm782, %v827
      %901 = vst.msk [vmem:[%s891 + $0x24] sm:$0xf] %vm782, %v829
      %902 = vst.msk [vmem:[%s891 + $0x28] sm:$0xf] %vm782, %v831
      %903 = vst.msk [vmem:[%s891 + $0x2c] sm:$0xf] %vm782, %v833
      %904 = vst.msk [vmem:[%s891 + $0x30] sm:$0xf] %vm782, %v835
      %905 = vst.msk [vmem:[%s891 + $0x34] sm:$0xf] %vm782, %v837
      %906 = vst.msk [vmem:[%s891 + $0x38] sm:$0xf] %vm782, %v839
      %907 = vst.msk [vmem:[%s891 + $0x3c] sm:$0xf] %vm782, %v841
      %908 = vst.msk [vmem:[%s891 + $0x40] sm:$0xf] %vm782, %v843
      %909 = vst.msk [vmem:[%s891 + $0x44] sm:$0xf] %vm782, %v845
      %910 = vst.msk [vmem:[%s891 + $0x48] sm:$0xf] %vm782, %v847
      %911 = vst.msk [vmem:[%s891 + $0x4c] sm:$0xf] %vm782, %v849
      %912 = vst.msk [vmem:[%s891 + $0x50] sm:$0xf] %vm782, %v851
      %913 = vst.msk [vmem:[%s891 + $0x54] sm:$0xf] %vm782, %v853
      %914 = vst.msk [vmem:[%s891 + $0x58] sm:$0xf] %vm782, %v855
      %915 = vst.msk [vmem:[%s891 + $0x5c] sm:$0xf] %vm782, %v857
      %916 = vst.msk [vmem:[%s891 + $0x60] sm:$0xf] %vm782, %v859
      %917 = vst.msk [vmem:[%s891 + $0x64] sm:$0xf] %vm782, %v861
      %918 = vst.msk [vmem:[%s891 + $0x68] sm:$0xf] %vm782, %v863
      %919 = vrot.lane.b32.xlu0 %v728, 112
      %v920 = vpop.permute.xlu0 %919
      %921 = vrot.lane.b32.xlu0 %v729, 112
      %v922 = vpop.permute.xlu0 %921
      %923 = vrot.lane.b32.xlu0 %v730, 112
      %v924 = vpop.permute.xlu0 %923
      %925 = vrot.lane.b32.xlu0 %v731, 112
      %v926 = vpop.permute.xlu0 %925
      %927 = vrot.lane.b32.xlu0 %v732, 112
      %v928 = vpop.permute.xlu0 %927
      %929 = vrot.lane.b32.xlu0 %v733, 112
      %v930 = vpop.permute.xlu0 %929
      %931 = vrot.lane.b32.xlu0 %v734, 112
      %v932 = vpop.permute.xlu0 %931
      %933 = vrot.lane.b32.xlu0 %v735, 112
      %v934 = vpop.permute.xlu0 %933
      %935 = vrot.lane.b32.xlu0 %v736, 112
      %v936 = vpop.permute.xlu0 %935
      %937 = vrot.lane.b32.xlu0 %v737, 112
      %v938 = vpop.permute.xlu0 %937
      %939 = vrot.lane.b32.xlu0 %v738, 112
      %v940 = vpop.permute.xlu0 %939
      %941 = vrot.lane.b32.xlu0 %v739, 112
      %v942 = vpop.permute.xlu0 %941
      %943 = vrot.lane.b32.xlu0 %v740, 112
      %v944 = vpop.permute.xlu0 %943
      %945 = vrot.lane.b32.xlu0 %v741, 112
      %v946 = vpop.permute.xlu0 %945
      %947 = vrot.lane.b32.xlu0 %v742, 112
      %v948 = vpop.permute.xlu0 %947
      %949 = vrot.lane.b32.xlu0 %v743, 112
      %v950 = vpop.permute.xlu0 %949
      %951 = vrot.lane.b32.xlu0 %v744, 112
      %v952 = vpop.permute.xlu0 %951
      %953 = vrot.lane.b32.xlu0 %v745, 112
      %v954 = vpop.permute.xlu0 %953
      %955 = vrot.lane.b32.xlu0 %v746, 112
      %v956 = vpop.permute.xlu0 %955
      %957 = vrot.lane.b32.xlu0 %v747, 112
      %v958 = vpop.permute.xlu0 %957
      %959 = vrot.lane.b32.xlu0 %v748, 112
      %v960 = vpop.permute.xlu0 %959
      %961 = vrot.lane.b32.xlu0 %v749, 112
      %v962 = vpop.permute.xlu0 %961
      %963 = vrot.lane.b32.xlu0 %v750, 112
      %v964 = vpop.permute.xlu0 %963
      %965 = vrot.lane.b32.xlu0 %v751, 112
      %v966 = vpop.permute.xlu0 %965
      %967 = vrot.lane.b32.xlu0 %v752, 112
      %v968 = vpop.permute.xlu0 %967
      %969 = vrot.lane.b32.xlu0 %v753, 112
      %v970 = vpop.permute.xlu0 %969
      %971 = vrot.lane.b32.xlu0 %v754, 112
      %v972 = vpop.permute.xlu0 %971
      %s1000 = scalar_lea.vmem [#allocation2], 216
      %1001 = vst.msk [vmem:[%s1000] sm:$0xf] %vm782, %v920
      %1002 = vst.msk [vmem:[%s1000 + $0x4] sm:$0xf] %vm782, %v922
      %1003 = vst.msk [vmem:[%s1000 + $0x8] sm:$0xf] %vm782, %v924
      %1004 = vst.msk [vmem:[%s1000 + $0xc] sm:$0xf] %vm782, %v926
      %1005 = vst.msk [vmem:[%s1000 + $0x10] sm:$0xf] %vm782, %v928
      %1006 = vst.msk [vmem:[%s1000 + $0x14] sm:$0xf] %vm782, %v930
      %1007 = vst.msk [vmem:[%s1000 + $0x18] sm:$0xf] %vm782, %v932
      %1008 = vst.msk [vmem:[%s1000 + $0x1c] sm:$0xf] %vm782, %v934
      %1009 = vst.msk [vmem:[%s1000 + $0x20] sm:$0xf] %vm782, %v936
      %1010 = vst.msk [vmem:[%s1000 + $0x24] sm:$0xf] %vm782, %v938
      %1011 = vst.msk [vmem:[%s1000 + $0x28] sm:$0xf] %vm782, %v940
      %1012 = vst.msk [vmem:[%s1000 + $0x2c] sm:$0xf] %vm782, %v942
      %1013 = vst.msk [vmem:[%s1000 + $0x30] sm:$0xf] %vm782, %v944
      %1014 = vst.msk [vmem:[%s1000 + $0x34] sm:$0xf] %vm782, %v946
      %1015 = vst.msk [vmem:[%s1000 + $0x38] sm:$0xf] %vm782, %v948
      %1016 = vst.msk [vmem:[%s1000 + $0x3c] sm:$0xf] %vm782, %v950
      %1017 = vst.msk [vmem:[%s1000 + $0x40] sm:$0xf] %vm782, %v952
      %1018 = vst.msk [vmem:[%s1000 + $0x44] sm:$0xf] %vm782, %v954
      %1019 = vst.msk [vmem:[%s1000 + $0x48] sm:$0xf] %vm782, %v956
      %1020 = vst.msk [vmem:[%s1000 + $0x4c] sm:$0xf] %vm782, %v958
      %1021 = vst.msk [vmem:[%s1000 + $0x50] sm:$0xf] %vm782, %v960
      %1022 = vst.msk [vmem:[%s1000 + $0x54] sm:$0xf] %vm782, %v962
      %1023 = vst.msk [vmem:[%s1000 + $0x58] sm:$0xf] %vm782, %v964
      %1024 = vst.msk [vmem:[%s1000 + $0x5c] sm:$0xf] %vm782, %v966
      %1025 = vst.msk [vmem:[%s1000 + $0x60] sm:$0xf] %vm782, %v968
      %1026 = vst.msk [vmem:[%s1000 + $0x64] sm:$0xf] %vm782, %v970
      %1027 = vst.msk [vmem:[%s1000 + $0x68] sm:$0xf] %vm782, %v972
      %1028 = vrot.lane.b32.xlu0 %v728, 104
      %v1029 = vpop.permute.xlu0 %1028
      %1030 = vrot.lane.b32.xlu0 %v729, 104
      %v1031 = vpop.permute.xlu0 %1030
      %1032 = vrot.lane.b32.xlu0 %v730, 104
      %v1033 = vpop.permute.xlu0 %1032
      %1034 = vrot.lane.b32.xlu0 %v731, 104
      %v1035 = vpop.permute.xlu0 %1034
      %1036 = vrot.lane.b32.xlu0 %v732, 104
      %v1037 = vpop.permute.xlu0 %1036
      %1038 = vrot.lane.b32.xlu0 %v733, 104
      %v1039 = vpop.permute.xlu0 %1038
      %1040 = vrot.lane.b32.xlu0 %v734, 104
      %v1041 = vpop.permute.xlu0 %1040
      %1042 = vrot.lane.b32.xlu0 %v735, 104
      %v1043 = vpop.permute.xlu0 %1042
      %1044 = vrot.lane.b32.xlu0 %v736, 104
      %v1045 = vpop.permute.xlu0 %1044
      %1046 = vrot.lane.b32.xlu0 %v737, 104
      %v1047 = vpop.permute.xlu0 %1046
      %1048 = vrot.lane.b32.xlu0 %v738, 104
      %v1049 = vpop.permute.xlu0 %1048
      %1050 = vrot.lane.b32.xlu0 %v739, 104
      %v1051 = vpop.permute.xlu0 %1050
      %1052 = vrot.lane.b32.xlu0 %v740, 104
      %v1053 = vpop.permute.xlu0 %1052
      %1054 = vrot.lane.b32.xlu0 %v741, 104
      %v1055 = vpop.permute.xlu0 %1054
      %1056 = vrot.lane.b32.xlu0 %v742, 104
      %v1057 = vpop.permute.xlu0 %1056
      %1058 = vrot.lane.b32.xlu0 %v743, 104
      %v1059 = vpop.permute.xlu0 %1058
      %1060 = vrot.lane.b32.xlu0 %v744, 104
      %v1061 = vpop.permute.xlu0 %1060
      %1062 = vrot.lane.b32.xlu0 %v745, 104
      %v1063 = vpop.permute.xlu0 %1062
      %1064 = vrot.lane.b32.xlu0 %v746, 104
      %v1065 = vpop.permute.xlu0 %1064
      %1066 = vrot.lane.b32.xlu0 %v747, 104
      %v1067 = vpop.permute.xlu0 %1066
      %1068 = vrot.lane.b32.xlu0 %v748, 104
      %v1069 = vpop.permute.xlu0 %1068
      %1070 = vrot.lane.b32.xlu0 %v749, 104
      %v1071 = vpop.permute.xlu0 %1070
      %1072 = vrot.lane.b32.xlu0 %v750, 104
      %v1073 = vpop.permute.xlu0 %1072
      %1074 = vrot.lane.b32.xlu0 %v751, 104
      %v1075 = vpop.permute.xlu0 %1074
      %1076 = vrot.lane.b32.xlu0 %v752, 104
      %v1077 = vpop.permute.xlu0 %1076
      %1078 = vrot.lane.b32.xlu0 %v753, 104
      %v1079 = vpop.permute.xlu0 %1078
      %1080 = vrot.lane.b32.xlu0 %v754, 104
      %v1081 = vpop.permute.xlu0 %1080
      %s1109 = scalar_lea.vmem [#allocation2], 324
      %1110 = vst.msk [vmem:[%s1109] sm:$0xf] %vm782, %v1029
      %1111 = vst.msk [vmem:[%s1109 + $0x4] sm:$0xf] %vm782, %v1031
      %1112 = vst.msk [vmem:[%s1109 + $0x8] sm:$0xf] %vm782, %v1033
      %1113 = vst.msk [vmem:[%s1109 + $0xc] sm:$0xf] %vm782, %v1035
      %1114 = vst.msk [vmem:[%s1109 + $0x10] sm:$0xf] %vm782, %v1037
      %1115 = vst.msk [vmem:[%s1109 + $0x14] sm:$0xf] %vm782, %v1039
      %1116 = vst.msk [vmem:[%s1109 + $0x18] sm:$0xf] %vm782, %v1041
      %1117 = vst.msk [vmem:[%s1109 + $0x1c] sm:$0xf] %vm782, %v1043
      %1118 = vst.msk [vmem:[%s1109 + $0x20] sm:$0xf] %vm782, %v1045
      %1119 = vst.msk [vmem:[%s1109 + $0x24] sm:$0xf] %vm782, %v1047
      %1120 = vst.msk [vmem:[%s1109 + $0x28] sm:$0xf] %vm782, %v1049
      %1121 = vst.msk [vmem:[%s1109 + $0x2c] sm:$0xf] %vm782, %v1051
      %1122 = vst.msk [vmem:[%s1109 + $0x30] sm:$0xf] %vm782, %v1053
      %1123 = vst.msk [vmem:[%s1109 + $0x34] sm:$0xf] %vm782, %v1055
      %1124 = vst.msk [vmem:[%s1109 + $0x38] sm:$0xf] %vm782, %v1057
      %1125 = vst.msk [vmem:[%s1109 + $0x3c] sm:$0xf] %vm782, %v1059
      %1126 = vst.msk [vmem:[%s1109 + $0x40] sm:$0xf] %vm782, %v1061
      %1127 = vst.msk [vmem:[%s1109 + $0x44] sm:$0xf] %vm782, %v1063
      %1128 = vst.msk [vmem:[%s1109 + $0x48] sm:$0xf] %vm782, %v1065
      %1129 = vst.msk [vmem:[%s1109 + $0x4c] sm:$0xf] %vm782, %v1067
      %1130 = vst.msk [vmem:[%s1109 + $0x50] sm:$0xf] %vm782, %v1069
      %1131 = vst.msk [vmem:[%s1109 + $0x54] sm:$0xf] %vm782, %v1071
      %1132 = vst.msk [vmem:[%s1109 + $0x58] sm:$0xf] %vm782, %v1073
      %1133 = vst.msk [vmem:[%s1109 + $0x5c] sm:$0xf] %vm782, %v1075
      %1134 = vst.msk [vmem:[%s1109 + $0x60] sm:$0xf] %vm782, %v1077
      %1135 = vst.msk [vmem:[%s1109 + $0x64] sm:$0xf] %vm782, %v1079
      %1136 = vst.msk [vmem:[%s1109 + $0x68] sm:$0xf] %vm782, %v1081
      %1137 = vrot.lane.b32.xlu0 %v728, 96
      %v1138 = vpop.permute.xlu0 %1137
      %1139 = vrot.lane.b32.xlu0 %v729, 96
      %v1140 = vpop.permute.xlu0 %1139
      %1141 = vrot.lane.b32.xlu0 %v730, 96
      %v1142 = vpop.permute.xlu0 %1141
      %1143 = vrot.lane.b32.xlu0 %v731, 96
      %v1144 = vpop.permute.xlu0 %1143
      %1145 = vrot.lane.b32.xlu0 %v732, 96
      %v1146 = vpop.permute.xlu0 %1145
      %1147 = vrot.lane.b32.xlu0 %v733, 96
      %v1148 = vpop.permute.xlu0 %1147
      %1149 = vrot.lane.b32.xlu0 %v734, 96
      %v1150 = vpop.permute.xlu0 %1149
      %1151 = vrot.lane.b32.xlu0 %v735, 96
      %v1152 = vpop.permute.xlu0 %1151
      %1153 = vrot.lane.b32.xlu0 %v736, 96
      %v1154 = vpop.permute.xlu0 %1153
      %1155 = vrot.lane.b32.xlu0 %v737, 96
      %v1156 = vpop.permute.xlu0 %1155
      %1157 = vrot.lane.b32.xlu0 %v738, 96
      %v1158 = vpop.permute.xlu0 %1157
      %1159 = vrot.lane.b32.xlu0 %v739, 96
      %v1160 = vpop.permute.xlu0 %1159
      %1161 = vrot.lane.b32.xlu0 %v740, 96
      %v1162 = vpop.permute.xlu0 %1161
      %1163 = vrot.lane.b32.xlu0 %v741, 96
      %v1164 = vpop.permute.xlu0 %1163
      %1165 = vrot.lane.b32.xlu0 %v742, 96
      %v1166 = vpop.permute.xlu0 %1165
      %1167 = vrot.lane.b32.xlu0 %v743, 96
      %v1168 = vpop.permute.xlu0 %1167
      %1169 = vrot.lane.b32.xlu0 %v744, 96
      %v1170 = vpop.permute.xlu0 %1169
      %1171 = vrot.lane.b32.xlu0 %v745, 96
      %v1172 = vpop.permute.xlu0 %1171
      %1173 = vrot.lane.b32.xlu0 %v746, 96
      %v1174 = vpop.permute.xlu0 %1173
      %1175 = vrot.lane.b32.xlu0 %v747, 96
      %v1176 = vpop.permute.xlu0 %1175
      %1177 = vrot.lane.b32.xlu0 %v748, 96
      %v1178 = vpop.permute.xlu0 %1177
      %1179 = vrot.lane.b32.xlu0 %v749, 96
      %v1180 = vpop.permute.xlu0 %1179
      %1181 = vrot.lane.b32.xlu0 %v750, 96
      %v1182 = vpop.permute.xlu0 %1181
      %1183 = vrot.lane.b32.xlu0 %v751, 96
      %v1184 = vpop.permute.xlu0 %1183
      %1185 = vrot.lane.b32.xlu0 %v752, 96
      %v1186 = vpop.permute.xlu0 %1185
      %1187 = vrot.lane.b32.xlu0 %v753, 96
      %v1188 = vpop.permute.xlu0 %1187
      %1189 = vrot.lane.b32.xlu0 %v754, 96
      %v1190 = vpop.permute.xlu0 %1189
      %s1218 = scalar_lea.vmem [#allocation2], 432
      %1219 = vst.msk [vmem:[%s1218] sm:$0xf] %vm782, %v1138
      %1220 = vst.msk [vmem:[%s1218 + $0x4] sm:$0xf] %vm782, %v1140
      %1221 = vst.msk [vmem:[%s1218 + $0x8] sm:$0xf] %vm782, %v1142
      %1222 = vst.msk [vmem:[%s1218 + $0xc] sm:$0xf] %vm782, %v1144
      %1223 = vst.msk [vmem:[%s1218 + $0x10] sm:$0xf] %vm782, %v1146
      %1224 = vst.msk [vmem:[%s1218 + $0x14] sm:$0xf] %vm782, %v1148
      %1225 = vst.msk [vmem:[%s1218 + $0x18] sm:$0xf] %vm782, %v1150
      %1226 = vst.msk [vmem:[%s1218 + $0x1c] sm:$0xf] %vm782, %v1152
      %1227 = vst.msk [vmem:[%s1218 + $0x20] sm:$0xf] %vm782, %v1154
      %1228 = vst.msk [vmem:[%s1218 + $0x24] sm:$0xf] %vm782, %v1156
      %1229 = vst.msk [vmem:[%s1218 + $0x28] sm:$0xf] %vm782, %v1158
      %1230 = vst.msk [vmem:[%s1218 + $0x2c] sm:$0xf] %vm782, %v1160
      %1231 = vst.msk [vmem:[%s1218 + $0x30] sm:$0xf] %vm782, %v1162
      %1232 = vst.msk [vmem:[%s1218 + $0x34] sm:$0xf] %vm782, %v1164
      %1233 = vst.msk [vmem:[%s1218 + $0x38] sm:$0xf] %vm782, %v1166
      %1234 = vst.msk [vmem:[%s1218 + $0x3c] sm:$0xf] %vm782, %v1168
      %1235 = vst.msk [vmem:[%s1218 + $0x40] sm:$0xf] %vm782, %v1170
      %1236 = vst.msk [vmem:[%s1218 + $0x44] sm:$0xf] %vm782, %v1172
      %1237 = vst.msk [vmem:[%s1218 + $0x48] sm:$0xf] %vm782, %v1174
      %1238 = vst.msk [vmem:[%s1218 + $0x4c] sm:$0xf] %vm782, %v1176
      %1239 = vst.msk [vmem:[%s1218 + $0x50] sm:$0xf] %vm782, %v1178
      %1240 = vst.msk [vmem:[%s1218 + $0x54] sm:$0xf] %vm782, %v1180
      %1241 = vst.msk [vmem:[%s1218 + $0x58] sm:$0xf] %vm782, %v1182
      %1242 = vst.msk [vmem:[%s1218 + $0x5c] sm:$0xf] %vm782, %v1184
      %1243 = vst.msk [vmem:[%s1218 + $0x60] sm:$0xf] %vm782, %v1186
      %1244 = vst.msk [vmem:[%s1218 + $0x64] sm:$0xf] %vm782, %v1188
      %1245 = vst.msk [vmem:[%s1218 + $0x68] sm:$0xf] %vm782, %v1190
      %1246 = vrot.lane.b32.xlu0 %v728, 88
      %v1247 = vpop.permute.xlu0 %1246
      %1248 = vrot.lane.b32.xlu0 %v729, 88
      %v1249 = vpop.permute.xlu0 %1248
      %1250 = vrot.lane.b32.xlu0 %v730, 88
      %v1251 = vpop.permute.xlu0 %1250
      %1252 = vrot.lane.b32.xlu0 %v731, 88
      %v1253 = vpop.permute.xlu0 %1252
      %1254 = vrot.lane.b32.xlu0 %v732, 88
      %v1255 = vpop.permute.xlu0 %1254
      %1256 = vrot.lane.b32.xlu0 %v733, 88
      %v1257 = vpop.permute.xlu0 %1256
      %1258 = vrot.lane.b32.xlu0 %v734, 88
      %v1259 = vpop.permute.xlu0 %1258
      %1260 = vrot.lane.b32.xlu0 %v735, 88
      %v1261 = vpop.permute.xlu0 %1260
      %1262 = vrot.lane.b32.xlu0 %v736, 88
      %v1263 = vpop.permute.xlu0 %1262
      %1264 = vrot.lane.b32.xlu0 %v737, 88
      %v1265 = vpop.permute.xlu0 %1264
      %1266 = vrot.lane.b32.xlu0 %v738, 88
      %v1267 = vpop.permute.xlu0 %1266
      %1268 = vrot.lane.b32.xlu0 %v739, 88
      %v1269 = vpop.permute.xlu0 %1268
      %1270 = vrot.lane.b32.xlu0 %v740, 88
      %v1271 = vpop.permute.xlu0 %1270
      %1272 = vrot.lane.b32.xlu0 %v741, 88
      %v1273 = vpop.permute.xlu0 %1272
      %1274 = vrot.lane.b32.xlu0 %v742, 88
      %v1275 = vpop.permute.xlu0 %1274
      %1276 = vrot.lane.b32.xlu0 %v743, 88
      %v1277 = vpop.permute.xlu0 %1276
      %1278 = vrot.lane.b32.xlu0 %v744, 88
      %v1279 = vpop.permute.xlu0 %1278
      %1280 = vrot.lane.b32.xlu0 %v745, 88
      %v1281 = vpop.permute.xlu0 %1280
      %1282 = vrot.lane.b32.xlu0 %v746, 88
      %v1283 = vpop.permute.xlu0 %1282
      %1284 = vrot.lane.b32.xlu0 %v747, 88
      %v1285 = vpop.permute.xlu0 %1284
      %1286 = vrot.lane.b32.xlu0 %v748, 88
      %v1287 = vpop.permute.xlu0 %1286
      %1288 = vrot.lane.b32.xlu0 %v749, 88
      %v1289 = vpop.permute.xlu0 %1288
      %1290 = vrot.lane.b32.xlu0 %v750, 88
      %v1291 = vpop.permute.xlu0 %1290
      %1292 = vrot.lane.b32.xlu0 %v751, 88
      %v1293 = vpop.permute.xlu0 %1292
      %1294 = vrot.lane.b32.xlu0 %v752, 88
      %v1295 = vpop.permute.xlu0 %1294
      %1296 = vrot.lane.b32.xlu0 %v753, 88
      %v1297 = vpop.permute.xlu0 %1296
      %1298 = vrot.lane.b32.xlu0 %v754, 88
      %v1299 = vpop.permute.xlu0 %1298
      %s1327 = scalar_lea.vmem [#allocation2], 540
      %1328 = vst.msk [vmem:[%s1327] sm:$0xf] %vm782, %v1247
      %1329 = vst.msk [vmem:[%s1327 + $0x4] sm:$0xf] %vm782, %v1249
      %1330 = vst.msk [vmem:[%s1327 + $0x8] sm:$0xf] %vm782, %v1251
      %1331 = vst.msk [vmem:[%s1327 + $0xc] sm:$0xf] %vm782, %v1253
      %1332 = vst.msk [vmem:[%s1327 + $0x10] sm:$0xf] %vm782, %v1255
      %1333 = vst.msk [vmem:[%s1327 + $0x14] sm:$0xf] %vm782, %v1257
      %1334 = vst.msk [vmem:[%s1327 + $0x18] sm:$0xf] %vm782, %v1259
      %1335 = vst.msk [vmem:[%s1327 + $0x1c] sm:$0xf] %vm782, %v1261
      %1336 = vst.msk [vmem:[%s1327 + $0x20] sm:$0xf] %vm782, %v1263
      %1337 = vst.msk [vmem:[%s1327 + $0x24] sm:$0xf] %vm782, %v1265
      %1338 = vst.msk [vmem:[%s1327 + $0x28] sm:$0xf] %vm782, %v1267
      %1339 = vst.msk [vmem:[%s1327 + $0x2c] sm:$0xf] %vm782, %v1269
      %1340 = vst.msk [vmem:[%s1327 + $0x30] sm:$0xf] %vm782, %v1271
      %1341 = vst.msk [vmem:[%s1327 + $0x34] sm:$0xf] %vm782, %v1273
      %1342 = vst.msk [vmem:[%s1327 + $0x38] sm:$0xf] %vm782, %v1275
      %1343 = vst.msk [vmem:[%s1327 + $0x3c] sm:$0xf] %vm782, %v1277
      %1344 = vst.msk [vmem:[%s1327 + $0x40] sm:$0xf] %vm782, %v1279
      %1345 = vst.msk [vmem:[%s1327 + $0x44] sm:$0xf] %vm782, %v1281
      %1346 = vst.msk [vmem:[%s1327 + $0x48] sm:$0xf] %vm782, %v1283
      %1347 = vst.msk [vmem:[%s1327 + $0x4c] sm:$0xf] %vm782, %v1285
      %1348 = vst.msk [vmem:[%s1327 + $0x50] sm:$0xf] %vm782, %v1287
      %1349 = vst.msk [vmem:[%s1327 + $0x54] sm:$0xf] %vm782, %v1289
      %1350 = vst.msk [vmem:[%s1327 + $0x58] sm:$0xf] %vm782, %v1291
      %1351 = vst.msk [vmem:[%s1327 + $0x5c] sm:$0xf] %vm782, %v1293
      %1352 = vst.msk [vmem:[%s1327 + $0x60] sm:$0xf] %vm782, %v1295
      %1353 = vst.msk [vmem:[%s1327 + $0x64] sm:$0xf] %vm782, %v1297
      %1354 = vst.msk [vmem:[%s1327 + $0x68] sm:$0xf] %vm782, %v1299
      %1355 = vrot.lane.b32.xlu0 %v728, 80
      %v1356 = vpop.permute.xlu0 %1355
      %1357 = vrot.lane.b32.xlu0 %v729, 80
      %v1358 = vpop.permute.xlu0 %1357
      %1359 = vrot.lane.b32.xlu0 %v730, 80
      %v1360 = vpop.permute.xlu0 %1359
      %1361 = vrot.lane.b32.xlu0 %v731, 80
      %v1362 = vpop.permute.xlu0 %1361
      %1363 = vrot.lane.b32.xlu0 %v732, 80
      %v1364 = vpop.permute.xlu0 %1363
      %1365 = vrot.lane.b32.xlu0 %v733, 80
      %v1366 = vpop.permute.xlu0 %1365
      %1367 = vrot.lane.b32.xlu0 %v734, 80
      %v1368 = vpop.permute.xlu0 %1367
      %1369 = vrot.lane.b32.xlu0 %v735, 80
      %v1370 = vpop.permute.xlu0 %1369
      %1371 = vrot.lane.b32.xlu0 %v736, 80
      %v1372 = vpop.permute.xlu0 %1371
      %1373 = vrot.lane.b32.xlu0 %v737, 80
      %v1374 = vpop.permute.xlu0 %1373
      %1375 = vrot.lane.b32.xlu0 %v738, 80
      %v1376 = vpop.permute.xlu0 %1375
      %1377 = vrot.lane.b32.xlu0 %v739, 80
      %v1378 = vpop.permute.xlu0 %1377
      %1379 = vrot.lane.b32.xlu0 %v740, 80
      %v1380 = vpop.permute.xlu0 %1379
      %1381 = vrot.lane.b32.xlu0 %v741, 80
      %v1382 = vpop.permute.xlu0 %1381
      %1383 = vrot.lane.b32.xlu0 %v742, 80
      %v1384 = vpop.permute.xlu0 %1383
      %1385 = vrot.lane.b32.xlu0 %v743, 80
      %v1386 = vpop.permute.xlu0 %1385
      %1387 = vrot.lane.b32.xlu0 %v744, 80
      %v1388 = vpop.permute.xlu0 %1387
      %1389 = vrot.lane.b32.xlu0 %v745, 80
      %v1390 = vpop.permute.xlu0 %1389
      %1391 = vrot.lane.b32.xlu0 %v746, 80
      %v1392 = vpop.permute.xlu0 %1391
      %1393 = vrot.lane.b32.xlu0 %v747, 80
      %v1394 = vpop.permute.xlu0 %1393
      %1395 = vrot.lane.b32.xlu0 %v748, 80
      %v1396 = vpop.permute.xlu0 %1395
      %1397 = vrot.lane.b32.xlu0 %v749, 80
      %v1398 = vpop.permute.xlu0 %1397
      %1399 = vrot.lane.b32.xlu0 %v750, 80
      %v1400 = vpop.permute.xlu0 %1399
      %1401 = vrot.lane.b32.xlu0 %v751, 80
      %v1402 = vpop.permute.xlu0 %1401
      %1403 = vrot.lane.b32.xlu0 %v752, 80
      %v1404 = vpop.permute.xlu0 %1403
      %1405 = vrot.lane.b32.xlu0 %v753, 80
      %v1406 = vpop.permute.xlu0 %1405
      %1407 = vrot.lane.b32.xlu0 %v754, 80
      %v1408 = vpop.permute.xlu0 %1407
      %s1436 = scalar_lea.vmem [#allocation2], 648
      %1437 = vst.msk [vmem:[%s1436] sm:$0xf] %vm782, %v1356
      %1438 = vst.msk [vmem:[%s1436 + $0x4] sm:$0xf] %vm782, %v1358
      %1439 = vst.msk [vmem:[%s1436 + $0x8] sm:$0xf] %vm782, %v1360
      %1440 = vst.msk [vmem:[%s1436 + $0xc] sm:$0xf] %vm782, %v1362
      %1441 = vst.msk [vmem:[%s1436 + $0x10] sm:$0xf] %vm782, %v1364
      %1442 = vst.msk [vmem:[%s1436 + $0x14] sm:$0xf] %vm782, %v1366
      %1443 = vst.msk [vmem:[%s1436 + $0x18] sm:$0xf] %vm782, %v1368
      %1444 = vst.msk [vmem:[%s1436 + $0x1c] sm:$0xf] %vm782, %v1370
      %1445 = vst.msk [vmem:[%s1436 + $0x20] sm:$0xf] %vm782, %v1372
      %1446 = vst.msk [vmem:[%s1436 + $0x24] sm:$0xf] %vm782, %v1374
      %1447 = vst.msk [vmem:[%s1436 + $0x28] sm:$0xf] %vm782, %v1376
      %1448 = vst.msk [vmem:[%s1436 + $0x2c] sm:$0xf] %vm782, %v1378
      %1449 = vst.msk [vmem:[%s1436 + $0x30] sm:$0xf] %vm782, %v1380
      %1450 = vst.msk [vmem:[%s1436 + $0x34] sm:$0xf] %vm782, %v1382
      %1451 = vst.msk [vmem:[%s1436 + $0x38] sm:$0xf] %vm782, %v1384
      %1452 = vst.msk [vmem:[%s1436 + $0x3c] sm:$0xf] %vm782, %v1386
      %1453 = vst.msk [vmem:[%s1436 + $0x40] sm:$0xf] %vm782, %v1388
      %1454 = vst.msk [vmem:[%s1436 + $0x44] sm:$0xf] %vm782, %v1390
      %1455 = vst.msk [vmem:[%s1436 + $0x48] sm:$0xf] %vm782, %v1392
      %1456 = vst.msk [vmem:[%s1436 + $0x4c] sm:$0xf] %vm782, %v1394
      %1457 = vst.msk [vmem:[%s1436 + $0x50] sm:$0xf] %vm782, %v1396
      %1458 = vst.msk [vmem:[%s1436 + $0x54] sm:$0xf] %vm782, %v1398
      %1459 = vst.msk [vmem:[%s1436 + $0x58] sm:$0xf] %vm782, %v1400
      %1460 = vst.msk [vmem:[%s1436 + $0x5c] sm:$0xf] %vm782, %v1402
      %1461 = vst.msk [vmem:[%s1436 + $0x60] sm:$0xf] %vm782, %v1404
      %1462 = vst.msk [vmem:[%s1436 + $0x64] sm:$0xf] %vm782, %v1406
      %1463 = vst.msk [vmem:[%s1436 + $0x68] sm:$0xf] %vm782, %v1408
      %1464 = vrot.lane.b32.xlu0 %v728, 72
      %v1465 = vpop.permute.xlu0 %1464
      %1466 = vrot.lane.b32.xlu0 %v729, 72
      %v1467 = vpop.permute.xlu0 %1466
      %1468 = vrot.lane.b32.xlu0 %v730, 72
      %v1469 = vpop.permute.xlu0 %1468
      %1470 = vrot.lane.b32.xlu0 %v731, 72
      %v1471 = vpop.permute.xlu0 %1470
      %1472 = vrot.lane.b32.xlu0 %v732, 72
      %v1473 = vpop.permute.xlu0 %1472
      %1474 = vrot.lane.b32.xlu0 %v733, 72
      %v1475 = vpop.permute.xlu0 %1474
      %1476 = vrot.lane.b32.xlu0 %v734, 72
      %v1477 = vpop.permute.xlu0 %1476
      %1478 = vrot.lane.b32.xlu0 %v735, 72
      %v1479 = vpop.permute.xlu0 %1478
      %1480 = vrot.lane.b32.xlu0 %v736, 72
      %v1481 = vpop.permute.xlu0 %1480
      %1482 = vrot.lane.b32.xlu0 %v737, 72
      %v1483 = vpop.permute.xlu0 %1482
      %1484 = vrot.lane.b32.xlu0 %v738, 72
      %v1485 = vpop.permute.xlu0 %1484
      %1486 = vrot.lane.b32.xlu0 %v739, 72
      %v1487 = vpop.permute.xlu0 %1486
      %1488 = vrot.lane.b32.xlu0 %v740, 72
      %v1489 = vpop.permute.xlu0 %1488
      %1490 = vrot.lane.b32.xlu0 %v741, 72
      %v1491 = vpop.permute.xlu0 %1490
      %1492 = vrot.lane.b32.xlu0 %v742, 72
      %v1493 = vpop.permute.xlu0 %1492
      %1494 = vrot.lane.b32.xlu0 %v743, 72
      %v1495 = vpop.permute.xlu0 %1494
      %1496 = vrot.lane.b32.xlu0 %v744, 72
      %v1497 = vpop.permute.xlu0 %1496
      %1498 = vrot.lane.b32.xlu0 %v745, 72
      %v1499 = vpop.permute.xlu0 %1498
      %1500 = vrot.lane.b32.xlu0 %v746, 72
      %v1501 = vpop.permute.xlu0 %1500
      %1502 = vrot.lane.b32.xlu0 %v747, 72
      %v1503 = vpop.permute.xlu0 %1502
      %1504 = vrot.lane.b32.xlu0 %v748, 72
      %v1505 = vpop.permute.xlu0 %1504
      %1506 = vrot.lane.b32.xlu0 %v749, 72
      %v1507 = vpop.permute.xlu0 %1506
      %1508 = vrot.lane.b32.xlu0 %v750, 72
      %v1509 = vpop.permute.xlu0 %1508
      %1510 = vrot.lane.b32.xlu0 %v751, 72
      %v1511 = vpop.permute.xlu0 %1510
      %1512 = vrot.lane.b32.xlu0 %v752, 72
      %v1513 = vpop.permute.xlu0 %1512
      %1514 = vrot.lane.b32.xlu0 %v753, 72
      %v1515 = vpop.permute.xlu0 %1514
      %1516 = vrot.lane.b32.xlu0 %v754, 72
      %v1517 = vpop.permute.xlu0 %1516
      %s1545 = scalar_lea.vmem [#allocation2], 756
      %1546 = vst.msk [vmem:[%s1545] sm:$0xf] %vm782, %v1465
      %1547 = vst.msk [vmem:[%s1545 + $0x4] sm:$0xf] %vm782, %v1467
      %1548 = vst.msk [vmem:[%s1545 + $0x8] sm:$0xf] %vm782, %v1469
      %1549 = vst.msk [vmem:[%s1545 + $0xc] sm:$0xf] %vm782, %v1471
      %1550 = vst.msk [vmem:[%s1545 + $0x10] sm:$0xf] %vm782, %v1473
      %1551 = vst.msk [vmem:[%s1545 + $0x14] sm:$0xf] %vm782, %v1475
      %1552 = vst.msk [vmem:[%s1545 + $0x18] sm:$0xf] %vm782, %v1477
      %1553 = vst.msk [vmem:[%s1545 + $0x1c] sm:$0xf] %vm782, %v1479
      %1554 = vst.msk [vmem:[%s1545 + $0x20] sm:$0xf] %vm782, %v1481
      %1555 = vst.msk [vmem:[%s1545 + $0x24] sm:$0xf] %vm782, %v1483
      %1556 = vst.msk [vmem:[%s1545 + $0x28] sm:$0xf] %vm782, %v1485
      %1557 = vst.msk [vmem:[%s1545 + $0x2c] sm:$0xf] %vm782, %v1487
      %1558 = vst.msk [vmem:[%s1545 + $0x30] sm:$0xf] %vm782, %v1489
      %1559 = vst.msk [vmem:[%s1545 + $0x34] sm:$0xf] %vm782, %v1491
      %1560 = vst.msk [vmem:[%s1545 + $0x38] sm:$0xf] %vm782, %v1493
      %1561 = vst.msk [vmem:[%s1545 + $0x3c] sm:$0xf] %vm782, %v1495
      %1562 = vst.msk [vmem:[%s1545 + $0x40] sm:$0xf] %vm782, %v1497
      %1563 = vst.msk [vmem:[%s1545 + $0x44] sm:$0xf] %vm782, %v1499
      %1564 = vst.msk [vmem:[%s1545 + $0x48] sm:$0xf] %vm782, %v1501
      %1565 = vst.msk [vmem:[%s1545 + $0x4c] sm:$0xf] %vm782, %v1503
      %1566 = vst.msk [vmem:[%s1545 + $0x50] sm:$0xf] %vm782, %v1505
      %1567 = vst.msk [vmem:[%s1545 + $0x54] sm:$0xf] %vm782, %v1507
      %1568 = vst.msk [vmem:[%s1545 + $0x58] sm:$0xf] %vm782, %v1509
      %1569 = vst.msk [vmem:[%s1545 + $0x5c] sm:$0xf] %vm782, %v1511
      %1570 = vst.msk [vmem:[%s1545 + $0x60] sm:$0xf] %vm782, %v1513
      %1571 = vst.msk [vmem:[%s1545 + $0x64] sm:$0xf] %vm782, %v1515
      %1572 = vst.msk [vmem:[%s1545 + $0x68] sm:$0xf] %vm782, %v1517
      %v1573 = vld [vmem:[%s315] sm:$0xf]
      %v1574 = vld [vmem:[%s315 + $0x4] sm:$0xf]
      %v1575 = vld [vmem:[%s315 + $0x8] sm:$0xf]
      %v1576 = vld [vmem:[%s315 + $0xc] sm:$0xf]
      %v1577 = vld [vmem:[%s315 + $0x10] sm:$0xf]
      %v1578 = vld [vmem:[%s315 + $0x14] sm:$0xf]
      %v1579 = vld [vmem:[%s315 + $0x18] sm:$0xf]
      %v1580 = vld [vmem:[%s315 + $0x1c] sm:$0xf]
      %v1581 = vld [vmem:[%s315 + $0x20] sm:$0xf]
      %v1582 = vld [vmem:[%s315 + $0x24] sm:$0xf]
      %v1583 = vld [vmem:[%s315 + $0x28] sm:$0xf]
      %v1584 = vld [vmem:[%s315 + $0x2c] sm:$0xf]
      %v1585 = vld [vmem:[%s315 + $0x30] sm:$0xf]
      %v1586 = vld [vmem:[%s315 + $0x34] sm:$0x3]
      %v1587 = vld [vmem:[%s315 + $0x38] sm:$0xf]
      %v1588 = vld [vmem:[%s315 + $0x3c] sm:$0xf]
      %v1589 = vld [vmem:[%s315 + $0x40] sm:$0xf]
      %v1590 = vld [vmem:[%s315 + $0x44] sm:$0xf]
      %v1591 = vld [vmem:[%s315 + $0x48] sm:$0xf]
      %v1592 = vld [vmem:[%s315 + $0x4c] sm:$0xf]
      %v1593 = vld [vmem:[%s315 + $0x50] sm:$0xf]
      %v1594 = vld [vmem:[%s315 + $0x54] sm:$0xf]
      %v1595 = vld [vmem:[%s315 + $0x58] sm:$0xf]
      %v1596 = vld [vmem:[%s315 + $0x5c] sm:$0xf]
      %v1597 = vld [vmem:[%s315 + $0x60] sm:$0xf]
      %v1598 = vld [vmem:[%s315 + $0x64] sm:$0xf]
      %v1599 = vld [vmem:[%s315 + $0x68] sm:$0xf]
      %v1600 = vld [vmem:[%s315 + $0x6c] sm:$0x3]
      %v1601 = vld [vmem:[%s315 + $0x70] sm:$0xf]
      %v1602 = vld [vmem:[%s315 + $0x74] sm:$0xf]
      %v1603 = vld [vmem:[%s315 + $0x78] sm:$0xf]
      %v1604 = vld [vmem:[%s315 + $0x7c] sm:$0xf]
      %v1605 = vld [vmem:[%s315 + $0x80] sm:$0xf]
      %v1606 = vld [vmem:[%s315 + $0x84] sm:$0xf]
      %v1607 = vld [vmem:[%s315 + $0x88] sm:$0xf]
      %v1608 = vld [vmem:[%s315 + $0x8c] sm:$0xf]
      %v1609 = vld [vmem:[%s315 + $0x90] sm:$0xf]
      %v1610 = vld [vmem:[%s315 + $0x94] sm:$0xf]
      %v1611 = vld [vmem:[%s315 + $0x98] sm:$0xf]
      %v1612 = vld [vmem:[%s315 + $0x9c] sm:$0xf]
      %v1613 = vld [vmem:[%s315 + $0xa0] sm:$0xf]
      %v1614 = vld [vmem:[%s315 + $0xa4] sm:$0x3]
      %v1615 = vld [vmem:[%s315 + $0xa8] sm:$0xf]
      %v1616 = vld [vmem:[%s315 + $0xac] sm:$0xf]
      %v1617 = vld [vmem:[%s315 + $0xb0] sm:$0xf]
      %v1618 = vld [vmem:[%s315 + $0xb4] sm:$0xf]
      %v1619 = vld [vmem:[%s315 + $0xb8] sm:$0xf]
      %v1620 = vld [vmem:[%s315 + $0xbc] sm:$0xf]
      %v1621 = vld [vmem:[%s315 + $0xc0] sm:$0xf]
      %v1622 = vld [vmem:[%s315 + $0xc4] sm:$0xf]
      %v1623 = vld [vmem:[%s315 + $0xc8] sm:$0xf]
      %v1624 = vld [vmem:[%s315 + $0xcc] sm:$0xf]
      %v1625 = vld [vmem:[%s315 + $0xd0] sm:$0xf]
      %v1626 = vld [vmem:[%s315 + $0xd4] sm:$0xf]
      %v1627 = vld [vmem:[%s315 + $0xd8] sm:$0xf]
      %v1628 = vld [vmem:[%s315 + $0xdc] sm:$0x3]
      %v1629 = vld [vmem:[%s315 + $0xe0] sm:$0xf]
      %v1630 = vld [vmem:[%s315 + $0xe4] sm:$0xf]
      %v1631 = vld [vmem:[%s315 + $0xe8] sm:$0xf]
      %v1632 = vld [vmem:[%s315 + $0xec] sm:$0xf]
      %v1633 = vld [vmem:[%s315 + $0xf0] sm:$0xf]
      %v1634 = vld [vmem:[%s315 + $0xf4] sm:$0xf]
      %v1635 = vld [vmem:[%s315 + $0xf8] sm:$0xf]
      %v1636 = vld [vmem:[%s315 + $0xfc] sm:$0xf]
      %v1637 = vld [vmem:[%s315 + $0x100] sm:$0xf]
      %v1638 = vld [vmem:[%s315 + $0x104] sm:$0xf]
      %v1639 = vld [vmem:[%s315 + $0x108] sm:$0xf]
      %v1640 = vld [vmem:[%s315 + $0x10c] sm:$0xf]
      %v1641 = vld [vmem:[%s315 + $0x110] sm:$0xf]
      %v1642 = vld [vmem:[%s315 + $0x114] sm:$0x3]
      %v1643 = vld [vmem:[%s315 + $0x118] sm:$0xf]
      %v1644 = vld [vmem:[%s315 + $0x11c] sm:$0xf]
      %v1645 = vld [vmem:[%s315 + $0x120] sm:$0xf]
      %v1646 = vld [vmem:[%s315 + $0x124] sm:$0xf]
      %v1647 = vld [vmem:[%s315 + $0x128] sm:$0xf]
      %v1648 = vld [vmem:[%s315 + $0x12c] sm:$0xf]
      %v1649 = vld [vmem:[%s315 + $0x130] sm:$0xf]
      %v1650 = vld [vmem:[%s315 + $0x134] sm:$0xf]
      %v1651 = vld [vmem:[%s315 + $0x138] sm:$0xf]
      %v1652 = vld [vmem:[%s315 + $0x13c] sm:$0xf]
      %v1653 = vld [vmem:[%s315 + $0x140] sm:$0xf]
      %v1654 = vld [vmem:[%s315 + $0x144] sm:$0xf]
      %v1655 = vld [vmem:[%s315 + $0x148] sm:$0xf]
      %v1656 = vld [vmem:[%s315 + $0x14c] sm:$0x3]
      %v1657 = vld [vmem:[%s315 + $0x150] sm:$0xf]
      %v1658 = vld [vmem:[%s315 + $0x154] sm:$0xf]
      %v1659 = vld [vmem:[%s315 + $0x158] sm:$0xf]
      %v1660 = vld [vmem:[%s315 + $0x15c] sm:$0xf]
      %v1661 = vld [vmem:[%s315 + $0x160] sm:$0xf]
      %v1662 = vld [vmem:[%s315 + $0x164] sm:$0xf]
      %v1663 = vld [vmem:[%s315 + $0x168] sm:$0xf]
      %v1664 = vld [vmem:[%s315 + $0x16c] sm:$0xf]
      %v1665 = vld [vmem:[%s315 + $0x170] sm:$0xf]
      %v1666 = vld [vmem:[%s315 + $0x174] sm:$0xf]
      %v1667 = vld [vmem:[%s315 + $0x178] sm:$0xf]
      %v1668 = vld [vmem:[%s315 + $0x17c] sm:$0xf]
      %v1669 = vld [vmem:[%s315 + $0x180] sm:$0xf]
      %v1670 = vld [vmem:[%s315 + $0x184] sm:$0x3]
      %v1671 = vld [vmem:[%s315 + $0x188] sm:$0xf]
      %v1672 = vld [vmem:[%s315 + $0x18c] sm:$0xf]
      %v1673 = vld [vmem:[%s315 + $0x190] sm:$0xf]
      %v1674 = vld [vmem:[%s315 + $0x194] sm:$0xf]
      %v1675 = vld [vmem:[%s315 + $0x198] sm:$0xf]
      %v1676 = vld [vmem:[%s315 + $0x19c] sm:$0xf]
      %v1677 = vld [vmem:[%s315 + $0x1a0] sm:$0xf]
      %v1678 = vld [vmem:[%s315 + $0x1a4] sm:$0xf]
      %v1679 = vld [vmem:[%s315 + $0x1a8] sm:$0xf]
      %v1680 = vld [vmem:[%s315 + $0x1ac] sm:$0xf]
      %v1681 = vld [vmem:[%s315 + $0x1b0] sm:$0xf]
      %v1682 = vld [vmem:[%s315 + $0x1b4] sm:$0xf]
      %v1683 = vld [vmem:[%s315 + $0x1b8] sm:$0xf]
      %v1684 = vld [vmem:[%s315 + $0x1bc] sm:$0x3]
      %v1685 = vld [vmem:[%s320] sm:$0xf]
      %v1686 = vld [vmem:[%s320 + $0x4] sm:$0xf]
      %v1687 = vld [vmem:[%s320 + $0x8] sm:$0xf]
      %v1688 = vld [vmem:[%s320 + $0xc] sm:$0xf]
      %v1689 = vld [vmem:[%s320 + $0x10] sm:$0xf]
      %v1690 = vld [vmem:[%s320 + $0x14] sm:$0xf]
      %v1691 = vld [vmem:[%s320 + $0x18] sm:$0xf]
      %v1692 = vld [vmem:[%s320 + $0x1c] sm:$0xf]
      %v1693 = vld [vmem:[%s320 + $0x20] sm:$0xf]
      %v1694 = vld [vmem:[%s320 + $0x24] sm:$0xf]
      %v1695 = vld [vmem:[%s320 + $0x28] sm:$0xf]
      %v1696 = vld [vmem:[%s320 + $0x2c] sm:$0xf]
      %v1697 = vld [vmem:[%s320 + $0x30] sm:$0xf]
      %v1698 = vld [vmem:[%s320 + $0x34] sm:$0x3]
      %v1699 = vld [vmem:[%s320 + $0x38] sm:$0xf]
      %v1700 = vld [vmem:[%s320 + $0x3c] sm:$0xf]
      %v1701 = vld [vmem:[%s320 + $0x40] sm:$0xf]
      %v1702 = vld [vmem:[%s320 + $0x44] sm:$0xf]
      %v1703 = vld [vmem:[%s320 + $0x48] sm:$0xf]
      %v1704 = vld [vmem:[%s320 + $0x4c] sm:$0xf]
      %v1705 = vld [vmem:[%s320 + $0x50] sm:$0xf]
      %v1706 = vld [vmem:[%s320 + $0x54] sm:$0xf]
      %v1707 = vld [vmem:[%s320 + $0x58] sm:$0xf]
      %v1708 = vld [vmem:[%s320 + $0x5c] sm:$0xf]
      %v1709 = vld [vmem:[%s320 + $0x60] sm:$0xf]
      %v1710 = vld [vmem:[%s320 + $0x64] sm:$0xf]
      %v1711 = vld [vmem:[%s320 + $0x68] sm:$0xf]
      %v1712 = vld [vmem:[%s320 + $0x6c] sm:$0x3]
      %v1713 = vld [vmem:[%s320 + $0x70] sm:$0xf]
      %v1714 = vld [vmem:[%s320 + $0x74] sm:$0xf]
      %v1715 = vld [vmem:[%s320 + $0x78] sm:$0xf]
      %v1716 = vld [vmem:[%s320 + $0x7c] sm:$0xf]
      %v1717 = vld [vmem:[%s320 + $0x80] sm:$0xf]
      %v1718 = vld [vmem:[%s320 + $0x84] sm:$0xf]
      %v1719 = vld [vmem:[%s320 + $0x88] sm:$0xf]
      %v1720 = vld [vmem:[%s320 + $0x8c] sm:$0xf]
      %v1721 = vld [vmem:[%s320 + $0x90] sm:$0xf]
      %v1722 = vld [vmem:[%s320 + $0x94] sm:$0xf]
      %v1723 = vld [vmem:[%s320 + $0x98] sm:$0xf]
      %v1724 = vld [vmem:[%s320 + $0x9c] sm:$0xf]
      %v1725 = vld [vmem:[%s320 + $0xa0] sm:$0xf]
      %v1726 = vld [vmem:[%s320 + $0xa4] sm:$0x3]
      %v1727 = vld [vmem:[%s320 + $0xa8] sm:$0xf]
      %v1728 = vld [vmem:[%s320 + $0xac] sm:$0xf]
      %v1729 = vld [vmem:[%s320 + $0xb0] sm:$0xf]
      %v1730 = vld [vmem:[%s320 + $0xb4] sm:$0xf]
      %v1731 = vld [vmem:[%s320 + $0xb8] sm:$0xf]
      %v1732 = vld [vmem:[%s320 + $0xbc] sm:$0xf]
      %v1733 = vld [vmem:[%s320 + $0xc0] sm:$0xf]
      %v1734 = vld [vmem:[%s320 + $0xc4] sm:$0xf]
      %v1735 = vld [vmem:[%s320 + $0xc8] sm:$0xf]
      %v1736 = vld [vmem:[%s320 + $0xcc] sm:$0xf]
      %v1737 = vld [vmem:[%s320 + $0xd0] sm:$0xf]
      %v1738 = vld [vmem:[%s320 + $0xd4] sm:$0xf]
      %v1739 = vld [vmem:[%s320 + $0xd8] sm:$0xf]
      %v1740 = vld [vmem:[%s320 + $0xdc] sm:$0x3]
      %v1741 = vld [vmem:[%s320 + $0xe0] sm:$0xf]
      %v1742 = vld [vmem:[%s320 + $0xe4] sm:$0xf]
      %v1743 = vld [vmem:[%s320 + $0xe8] sm:$0xf]
      %v1744 = vld [vmem:[%s320 + $0xec] sm:$0xf]
      %v1745 = vld [vmem:[%s320 + $0xf0] sm:$0xf]
      %v1746 = vld [vmem:[%s320 + $0xf4] sm:$0xf]
      %v1747 = vld [vmem:[%s320 + $0xf8] sm:$0xf]
      %v1748 = vld [vmem:[%s320 + $0xfc] sm:$0xf]
      %v1749 = vld [vmem:[%s320 + $0x100] sm:$0xf]
      %v1750 = vld [vmem:[%s320 + $0x104] sm:$0xf]
      %v1751 = vld [vmem:[%s320 + $0x108] sm:$0xf]
      %v1752 = vld [vmem:[%s320 + $0x10c] sm:$0xf]
      %v1753 = vld [vmem:[%s320 + $0x110] sm:$0xf]
      %v1754 = vld [vmem:[%s320 + $0x114] sm:$0x3]
      %v1755 = vld [vmem:[%s320 + $0x118] sm:$0xf]
      %v1756 = vld [vmem:[%s320 + $0x11c] sm:$0xf]
      %v1757 = vld [vmem:[%s320 + $0x120] sm:$0xf]
      %v1758 = vld [vmem:[%s320 + $0x124] sm:$0xf]
      %v1759 = vld [vmem:[%s320 + $0x128] sm:$0xf]
      %v1760 = vld [vmem:[%s320 + $0x12c] sm:$0xf]
      %v1761 = vld [vmem:[%s320 + $0x130] sm:$0xf]
      %v1762 = vld [vmem:[%s320 + $0x134] sm:$0xf]
      %v1763 = vld [vmem:[%s320 + $0x138] sm:$0xf]
      %v1764 = vld [vmem:[%s320 + $0x13c] sm:$0xf]
      %v1765 = vld [vmem:[%s320 + $0x140] sm:$0xf]
      %v1766 = vld [vmem:[%s320 + $0x144] sm:$0xf]
      %v1767 = vld [vmem:[%s320 + $0x148] sm:$0xf]
      %v1768 = vld [vmem:[%s320 + $0x14c] sm:$0x3]
      %v1769 = vld [vmem:[%s320 + $0x150] sm:$0xf]
      %v1770 = vld [vmem:[%s320 + $0x154] sm:$0xf]
      %v1771 = vld [vmem:[%s320 + $0x158] sm:$0xf]
      %v1772 = vld [vmem:[%s320 + $0x15c] sm:$0xf]
      %v1773 = vld [vmem:[%s320 + $0x160] sm:$0xf]
      %v1774 = vld [vmem:[%s320 + $0x164] sm:$0xf]
      %v1775 = vld [vmem:[%s320 + $0x168] sm:$0xf]
      %v1776 = vld [vmem:[%s320 + $0x16c] sm:$0xf]
      %v1777 = vld [vmem:[%s320 + $0x170] sm:$0xf]
      %v1778 = vld [vmem:[%s320 + $0x174] sm:$0xf]
      %v1779 = vld [vmem:[%s320 + $0x178] sm:$0xf]
      %v1780 = vld [vmem:[%s320 + $0x17c] sm:$0xf]
      %v1781 = vld [vmem:[%s320 + $0x180] sm:$0xf]
      %v1782 = vld [vmem:[%s320 + $0x184] sm:$0x3]
      %v1783 = vld [vmem:[%s320 + $0x188] sm:$0xf]
      %v1784 = vld [vmem:[%s320 + $0x18c] sm:$0xf]
      %v1785 = vld [vmem:[%s320 + $0x190] sm:$0xf]
      %v1786 = vld [vmem:[%s320 + $0x194] sm:$0xf]
      %v1787 = vld [vmem:[%s320 + $0x198] sm:$0xf]
      %v1788 = vld [vmem:[%s320 + $0x19c] sm:$0xf]
      %v1789 = vld [vmem:[%s320 + $0x1a0] sm:$0xf]
      %v1790 = vld [vmem:[%s320 + $0x1a4] sm:$0xf]
      %v1791 = vld [vmem:[%s320 + $0x1a8] sm:$0xf]
      %v1792 = vld [vmem:[%s320 + $0x1ac] sm:$0xf]
      %v1793 = vld [vmem:[%s320 + $0x1b0] sm:$0xf]
      %v1794 = vld [vmem:[%s320 + $0x1b4] sm:$0xf]
      %v1795 = vld [vmem:[%s320 + $0x1b8] sm:$0xf]
      %v1796 = vld [vmem:[%s320 + $0x1bc] sm:$0x3]
      %v1797 = vld [vmem:[#allocation2] sm:$0xf]
      %v1798 = vld [vmem:[#allocation2 + $0x4] sm:$0xf]
      %v1799 = vld [vmem:[#allocation2 + $0x8] sm:$0xf]
      %v1800 = vld [vmem:[#allocation2 + $0xc] sm:$0xf]
      %v1801 = vld [vmem:[#allocation2 + $0x10] sm:$0xf]
      %v1802 = vld [vmem:[#allocation2 + $0x14] sm:$0xf]
      %v1803 = vld [vmem:[#allocation2 + $0x18] sm:$0xf]
      %v1804 = vld [vmem:[#allocation2 + $0x1c] sm:$0xf]
      %v1805 = vld [vmem:[#allocation2 + $0x20] sm:$0xf]
      %v1806 = vld [vmem:[#allocation2 + $0x24] sm:$0xf]
      %v1807 = vld [vmem:[#allocation2 + $0x28] sm:$0xf]
      %v1808 = vld [vmem:[#allocation2 + $0x2c] sm:$0xf]
      %v1809 = vld [vmem:[#allocation2 + $0x30] sm:$0xf]
      %v1810 = vld [vmem:[#allocation2 + $0x34] sm:$0xf]
      %v1811 = vld [vmem:[#allocation2 + $0x38] sm:$0xf]
      %v1812 = vld [vmem:[#allocation2 + $0x3c] sm:$0xf]
      %v1813 = vld [vmem:[#allocation2 + $0x40] sm:$0xf]
      %v1814 = vld [vmem:[#allocation2 + $0x44] sm:$0xf]
      %v1815 = vld [vmem:[#allocation2 + $0x48] sm:$0xf]
      %v1816 = vld [vmem:[#allocation2 + $0x4c] sm:$0xf]
      %v1817 = vld [vmem:[#allocation2 + $0x50] sm:$0xf]
      %v1818 = vld [vmem:[#allocation2 + $0x54] sm:$0xf]
      %v1819 = vld [vmem:[#allocation2 + $0x58] sm:$0xf]
      %v1820 = vld [vmem:[#allocation2 + $0x5c] sm:$0xf]
      %v1821 = vld [vmem:[#allocation2 + $0x60] sm:$0xf]
      %v1822 = vld [vmem:[#allocation2 + $0x64] sm:$0xf]
      %v1823 = vld [vmem:[#allocation2 + $0x68] sm:$0xf]
      %v1824 = vld [vmem:[#allocation2 + $0x6c] sm:$0xf]
      %v1825 = vld [vmem:[#allocation2 + $0x70] sm:$0xf]
      %v1826 = vld [vmem:[#allocation2 + $0x74] sm:$0xf]
      %v1827 = vld [vmem:[#allocation2 + $0x78] sm:$0xf]
      %v1828 = vld [vmem:[#allocation2 + $0x7c] sm:$0xf]
      %v1829 = vld [vmem:[#allocation2 + $0x80] sm:$0xf]
      %v1830 = vld [vmem:[#allocation2 + $0x84] sm:$0xf]
      %v1831 = vld [vmem:[#allocation2 + $0x88] sm:$0xf]
      %v1832 = vld [vmem:[#allocation2 + $0x8c] sm:$0xf]
      %v1833 = vld [vmem:[#allocation2 + $0x90] sm:$0xf]
      %v1834 = vld [vmem:[#allocation2 + $0x94] sm:$0xf]
      %v1835 = vld [vmem:[#allocation2 + $0x98] sm:$0xf]
      %v1836 = vld [vmem:[#allocation2 + $0x9c] sm:$0xf]
      %v1837 = vld [vmem:[#allocation2 + $0xa0] sm:$0xf]
      %v1838 = vld [vmem:[#allocation2 + $0xa4] sm:$0xf]
      %v1839 = vld [vmem:[#allocation2 + $0xa8] sm:$0xf]
      %v1840 = vld [vmem:[#allocation2 + $0xac] sm:$0xf]
      %v1841 = vld [vmem:[#allocation2 + $0xb0] sm:$0xf]
      %v1842 = vld [vmem:[#allocation2 + $0xb4] sm:$0xf]
      %v1843 = vld [vmem:[#allocation2 + $0xb8] sm:$0xf]
      %v1844 = vld [vmem:[#allocation2 + $0xbc] sm:$0xf]
      %v1845 = vld [vmem:[#allocation2 + $0xc0] sm:$0xf]
      %v1846 = vld [vmem:[#allocation2 + $0xc4] sm:$0xf]
      %v1847 = vld [vmem:[#allocation2 + $0xc8] sm:$0xf]
      %v1848 = vld [vmem:[#allocation2 + $0xcc] sm:$0xf]
      %v1849 = vld [vmem:[#allocation2 + $0xd0] sm:$0xf]
      %v1850 = vld [vmem:[#allocation2 + $0xd4] sm:$0xf]
      %v1851 = vld [vmem:[#allocation2 + $0xd8] sm:$0xf]
      %v1852 = vld [vmem:[#allocation2 + $0xdc] sm:$0xf]
      %v1853 = vld [vmem:[#allocation2 + $0xe0] sm:$0xf]
      %v1854 = vld [vmem:[#allocation2 + $0xe4] sm:$0xf]
      %v1855 = vld [vmem:[#allocation2 + $0xe8] sm:$0xf]
      %v1856 = vld [vmem:[#allocation2 + $0xec] sm:$0xf]
      %v1857 = vld [vmem:[#allocation2 + $0xf0] sm:$0xf]
      %v1858 = vld [vmem:[#allocation2 + $0xf4] sm:$0xf]
      %v1859 = vld [vmem:[#allocation2 + $0xf8] sm:$0xf]
      %v1860 = vld [vmem:[#allocation2 + $0xfc] sm:$0xf]
      %v1861 = vld [vmem:[#allocation2 + $0x100] sm:$0xf]
      %v1862 = vld [vmem:[#allocation2 + $0x104] sm:$0xf]
      %v1863 = vld [vmem:[#allocation2 + $0x108] sm:$0xf]
      %v1864 = vld [vmem:[#allocation2 + $0x10c] sm:$0xf]
      %v1865 = vld [vmem:[#allocation2 + $0x110] sm:$0xf]
      %v1866 = vld [vmem:[#allocation2 + $0x114] sm:$0xf]
      %v1867 = vld [vmem:[#allocation2 + $0x118] sm:$0xf]
      %v1868 = vld [vmem:[#allocation2 + $0x11c] sm:$0xf]
      %v1869 = vld [vmem:[#allocation2 + $0x120] sm:$0xf]
      %v1870 = vld [vmem:[#allocation2 + $0x124] sm:$0xf]
      %v1871 = vld [vmem:[#allocation2 + $0x128] sm:$0xf]
      %v1872 = vld [vmem:[#allocation2 + $0x12c] sm:$0xf]
      %v1873 = vld [vmem:[#allocation2 + $0x130] sm:$0xf]
      %v1874 = vld [vmem:[#allocation2 + $0x134] sm:$0xf]
      %v1875 = vld [vmem:[#allocation2 + $0x138] sm:$0xf]
      %v1876 = vld [vmem:[#allocation2 + $0x13c] sm:$0xf]
      %v1877 = vld [vmem:[#allocation2 + $0x140] sm:$0xf]
      %v1878 = vld [vmem:[#allocation2 + $0x144] sm:$0xf]
      %v1879 = vld [vmem:[#allocation2 + $0x148] sm:$0xf]
      %v1880 = vld [vmem:[#allocation2 + $0x14c] sm:$0xf]
      %v1881 = vld [vmem:[#allocation2 + $0x150] sm:$0xf]
      %v1882 = vld [vmem:[#allocation2 + $0x154] sm:$0xf]
      %v1883 = vld [vmem:[#allocation2 + $0x158] sm:$0xf]
      %v1884 = vld [vmem:[#allocation2 + $0x15c] sm:$0xf]
      %v1885 = vld [vmem:[#allocation2 + $0x160] sm:$0xf]
      %v1886 = vld [vmem:[#allocation2 + $0x164] sm:$0xf]
      %v1887 = vld [vmem:[#allocation2 + $0x168] sm:$0xf]
      %v1888 = vld [vmem:[#allocation2 + $0x16c] sm:$0xf]
      %v1889 = vld [vmem:[#allocation2 + $0x170] sm:$0xf]
      %v1890 = vld [vmem:[#allocation2 + $0x174] sm:$0xf]
      %v1891 = vld [vmem:[#allocation2 + $0x178] sm:$0xf]
      %v1892 = vld [vmem:[#allocation2 + $0x17c] sm:$0xf]
      %v1893 = vld [vmem:[#allocation2 + $0x180] sm:$0xf]
      %v1894 = vld [vmem:[#allocation2 + $0x184] sm:$0xf]
      %v1895 = vld [vmem:[#allocation2 + $0x188] sm:$0xf]
      %v1896 = vld [vmem:[#allocation2 + $0x18c] sm:$0xf]
      %v1897 = vld [vmem:[#allocation2 + $0x190] sm:$0xf]
      %v1898 = vld [vmem:[#allocation2 + $0x194] sm:$0xf]
      %v1899 = vld [vmem:[#allocation2 + $0x198] sm:$0xf]
      %v1900 = vld [vmem:[#allocation2 + $0x19c] sm:$0xf]
      %v1901 = vld [vmem:[#allocation2 + $0x1a0] sm:$0xf]
      %v1902 = vld [vmem:[#allocation2 + $0x1a4] sm:$0xf]
      %v1903 = vld [vmem:[#allocation2 + $0x1a8] sm:$0xf]
      %v1904 = vld [vmem:[#allocation2 + $0x1ac] sm:$0xf]
      %v1905 = vld [vmem:[#allocation2 + $0x1b0] sm:$0xf]
      %v1906 = vld [vmem:[#allocation2 + $0x1b4] sm:$0xf]
      %v1907 = vld [vmem:[#allocation2 + $0x1b8] sm:$0xf]
      %v1908 = vld [vmem:[#allocation2 + $0x1bc] sm:$0xf]
      %v1909 = vld [vmem:[#allocation2 + $0x1c0] sm:$0xf]
      %v1910 = vld [vmem:[#allocation2 + $0x1c4] sm:$0xf]
      %v1911 = vld [vmem:[#allocation2 + $0x1c8] sm:$0xf]
      %v1912 = vld [vmem:[#allocation2 + $0x1cc] sm:$0xf]
      %v1913 = vld [vmem:[#allocation2 + $0x1d0] sm:$0xf]
      %v1914 = vld [vmem:[#allocation2 + $0x1d4] sm:$0xf]
      %v1915 = vld [vmem:[#allocation2 + $0x1d8] sm:$0xf]
      %v1916 = vld [vmem:[#allocation2 + $0x1dc] sm:$0xf]
      %v1917 = vld [vmem:[#allocation2 + $0x1e0] sm:$0xf]
      %v1918 = vld [vmem:[#allocation2 + $0x1e4] sm:$0xf]
      %v1919 = vld [vmem:[#allocation2 + $0x1e8] sm:$0xf]
      %v1920 = vld [vmem:[#allocation2 + $0x1ec] sm:$0xf]
      %v1921 = vld [vmem:[#allocation2 + $0x1f0] sm:$0xf]
      %v1922 = vld [vmem:[#allocation2 + $0x1f4] sm:$0xf]
      %v1923 = vld [vmem:[#allocation2 + $0x1f8] sm:$0xf]
      %v1924 = vld [vmem:[#allocation2 + $0x1fc] sm:$0xf]
      %v1925 = vld [vmem:[#allocation2 + $0x200] sm:$0xf]
      %v1926 = vld [vmem:[#allocation2 + $0x204] sm:$0xf]
      %v1927 = vld [vmem:[#allocation2 + $0x208] sm:$0xf]
      %v1928 = vld [vmem:[#allocation2 + $0x20c] sm:$0xf]
      %v1929 = vld [vmem:[#allocation2 + $0x210] sm:$0xf]
      %v1930 = vld [vmem:[#allocation2 + $0x214] sm:$0xf]
      %v1931 = vld [vmem:[#allocation2 + $0x218] sm:$0xf]
      %v1932 = vld [vmem:[#allocation2 + $0x21c] sm:$0xf]
      %v1933 = vld [vmem:[#allocation2 + $0x220] sm:$0xf]
      %v1934 = vld [vmem:[#allocation2 + $0x224] sm:$0xf]
      %v1935 = vld [vmem:[#allocation2 + $0x228] sm:$0xf]
      %v1936 = vld [vmem:[#allocation2 + $0x22c] sm:$0xf]
      %v1937 = vld [vmem:[#allocation2 + $0x230] sm:$0xf]
      %v1938 = vld [vmem:[#allocation2 + $0x234] sm:$0xf]
      %v1939 = vld [vmem:[#allocation2 + $0x238] sm:$0xf]
      %v1940 = vld [vmem:[#allocation2 + $0x23c] sm:$0xf]
      %v1941 = vld [vmem:[#allocation2 + $0x240] sm:$0xf]
      %v1942 = vld [vmem:[#allocation2 + $0x244] sm:$0xf]
      %v1943 = vld [vmem:[#allocation2 + $0x248] sm:$0xf]
      %v1944 = vld [vmem:[#allocation2 + $0x24c] sm:$0xf]
      %v1945 = vld [vmem:[#allocation2 + $0x250] sm:$0xf]
      %v1946 = vld [vmem:[#allocation2 + $0x254] sm:$0xf]
      %v1947 = vld [vmem:[#allocation2 + $0x258] sm:$0xf]
      %v1948 = vld [vmem:[#allocation2 + $0x25c] sm:$0xf]
      %v1949 = vld [vmem:[#allocation2 + $0x260] sm:$0xf]
      %v1950 = vld [vmem:[#allocation2 + $0x264] sm:$0xf]
      %v1951 = vld [vmem:[#allocation2 + $0x268] sm:$0xf]
      %v1952 = vld [vmem:[#allocation2 + $0x26c] sm:$0xf]
      %v1953 = vld [vmem:[#allocation2 + $0x270] sm:$0xf]
      %v1954 = vld [vmem:[#allocation2 + $0x274] sm:$0xf]
      %v1955 = vld [vmem:[#allocation2 + $0x278] sm:$0xf]
      %v1956 = vld [vmem:[#allocation2 + $0x27c] sm:$0xf]
      %v1957 = vld [vmem:[#allocation2 + $0x280] sm:$0xf]
      %v1958 = vld [vmem:[#allocation2 + $0x284] sm:$0xf]
      %v1959 = vld [vmem:[#allocation2 + $0x288] sm:$0xf]
      %v1960 = vld [vmem:[#allocation2 + $0x28c] sm:$0xf]
      %v1961 = vld [vmem:[#allocation2 + $0x290] sm:$0xf]
      %v1962 = vld [vmem:[#allocation2 + $0x294] sm:$0xf]
      %v1963 = vld [vmem:[#allocation2 + $0x298] sm:$0xf]
      %v1964 = vld [vmem:[#allocation2 + $0x29c] sm:$0xf]
      %v1965 = vld [vmem:[#allocation2 + $0x2a0] sm:$0xf]
      %v1966 = vld [vmem:[#allocation2 + $0x2a4] sm:$0xf]
      %v1967 = vld [vmem:[#allocation2 + $0x2a8] sm:$0xf]
      %v1968 = vld [vmem:[#allocation2 + $0x2ac] sm:$0xf]
      %v1969 = vld [vmem:[#allocation2 + $0x2b0] sm:$0xf]
      %v1970 = vld [vmem:[#allocation2 + $0x2b4] sm:$0xf]
      %v1971 = vld [vmem:[#allocation2 + $0x2b8] sm:$0xf]
      %v1972 = vld [vmem:[#allocation2 + $0x2bc] sm:$0xf]
      %v1973 = vld [vmem:[#allocation2 + $0x2c0] sm:$0xf]
      %v1974 = vld [vmem:[#allocation2 + $0x2c4] sm:$0xf]
      %v1975 = vld [vmem:[#allocation2 + $0x2c8] sm:$0xf]
      %v1976 = vld [vmem:[#allocation2 + $0x2cc] sm:$0xf]
      %v1977 = vld [vmem:[#allocation2 + $0x2d0] sm:$0xf]
      %v1978 = vld [vmem:[#allocation2 + $0x2d4] sm:$0xf]
      %v1979 = vld [vmem:[#allocation2 + $0x2d8] sm:$0xf]
      %v1980 = vld [vmem:[#allocation2 + $0x2dc] sm:$0xf]
      %v1981 = vld [vmem:[#allocation2 + $0x2e0] sm:$0xf]
      %v1982 = vld [vmem:[#allocation2 + $0x2e4] sm:$0xf]
      %v1983 = vld [vmem:[#allocation2 + $0x2e8] sm:$0xf]
      %v1984 = vld [vmem:[#allocation2 + $0x2ec] sm:$0xf]
      %v1985 = vld [vmem:[#allocation2 + $0x2f0] sm:$0xf]
      %v1986 = vld [vmem:[#allocation2 + $0x2f4] sm:$0xf]
      %v1987 = vld [vmem:[#allocation2 + $0x2f8] sm:$0xf]
      %v1988 = vld [vmem:[#allocation2 + $0x2fc] sm:$0xf]
      %v1989 = vld [vmem:[#allocation2 + $0x300] sm:$0xf]
      %v1990 = vld [vmem:[#allocation2 + $0x304] sm:$0xf]
      %v1991 = vld [vmem:[#allocation2 + $0x308] sm:$0xf]
      %v1992 = vld [vmem:[#allocation2 + $0x30c] sm:$0xf]
      %v1993 = vld [vmem:[#allocation2 + $0x310] sm:$0xf]
      %v1994 = vld [vmem:[#allocation2 + $0x314] sm:$0xf]
      %v1995 = vld [vmem:[#allocation2 + $0x318] sm:$0xf]
      %v1996 = vld [vmem:[#allocation2 + $0x31c] sm:$0xf]
      %v1997 = vld [vmem:[#allocation2 + $0x320] sm:$0xf]
      %v1998 = vld [vmem:[#allocation2 + $0x324] sm:$0xf]
      %v1999 = vld [vmem:[#allocation2 + $0x328] sm:$0xf]
      %v2000 = vld [vmem:[#allocation2 + $0x32c] sm:$0xf]
      %v2001 = vld [vmem:[#allocation2 + $0x330] sm:$0xf]
      %v2002 = vld [vmem:[#allocation2 + $0x334] sm:$0xf]
      %v2003 = vld [vmem:[#allocation2 + $0x338] sm:$0xf]
      %v2004 = vld [vmem:[#allocation2 + $0x33c] sm:$0xf]
      %v2005 = vld [vmem:[#allocation2 + $0x340] sm:$0xf]
      %v2006 = vld [vmem:[#allocation2 + $0x344] sm:$0xf]
      %v2007 = vld [vmem:[#allocation2 + $0x348] sm:$0xf]
      %v2008 = vld [vmem:[#allocation2 + $0x34c] sm:$0xf]
      %v2009 = vld [vmem:[#allocation2 + $0x350] sm:$0xf]
      %v2010 = vld [vmem:[#allocation2 + $0x354] sm:$0xf]
      %v2011 = vld [vmem:[#allocation2 + $0x358] sm:$0xf]
      %v2012 = vld [vmem:[#allocation2 + $0x35c] sm:$0xf]
      %v2040 = vunpack.c.l.b16 %v1797
      %v2041 = vunpack.c.l.b16 %v1798
      %v2042 = vunpack.c.l.b16 %v1799
      %v2043 = vunpack.c.l.b16 %v1800
      %v2044 = vunpack.c.l.b16 %v1801
      %v2045 = vunpack.c.l.b16 %v1802
      %v2046 = vunpack.c.l.b16 %v1803
      %v2047 = vunpack.c.l.b16 %v1804
      %v2048 = vunpack.c.l.b16 %v1805
      %v2049 = vunpack.c.l.b16 %v1806
      %v2050 = vunpack.c.l.b16 %v1807
      %v2051 = vunpack.c.l.b16 %v1808
      %v2052 = vunpack.c.l.b16 %v1809
      %v2053 = vunpack.c.l.b16 %v1810
      %v2054 = vunpack.c.l.b16 %v1811
      %v2055 = vunpack.c.l.b16 %v1812
      %v2056 = vunpack.c.l.b16 %v1813
      %v2057 = vunpack.c.l.b16 %v1814
      %v2058 = vunpack.c.l.b16 %v1815
      %v2059 = vunpack.c.l.b16 %v1816
      %v2060 = vunpack.c.l.b16 %v1817
      %v2061 = vunpack.c.l.b16 %v1818
      %v2062 = vunpack.c.l.b16 %v1819
      %v2063 = vunpack.c.l.b16 %v1820
      %v2064 = vunpack.c.l.b16 %v1821
      %v2065 = vunpack.c.l.b16 %v1822
      %v2066 = vunpack.c.l.b16 %v1823
      %v2067 = vpack.c.b16 %v2041, %v2040
      %v2068 = vpack.c.b16 %v2043, %v2042
      %v2069 = vpack.c.b16 %v2045, %v2044
      %v2070 = vpack.c.b16 %v2047, %v2046
      %v2071 = vpack.c.b16 %v2049, %v2048
      %v2072 = vpack.c.b16 %v2051, %v2050
      %v2073 = vpack.c.b16 %v2053, %v2052
      %v2074 = vpack.c.b16 %v2055, %v2054
      %v2075 = vpack.c.b16 %v2057, %v2056
      %v2076 = vpack.c.b16 %v2059, %v2058
      %v2077 = vpack.c.b16 %v2061, %v2060
      %v2078 = vpack.c.b16 %v2063, %v2062
      %v2079 = vpack.c.b16 %v2065, %v2064
      %v2080 = vpack.c.b16 %v2066, %v2066
      %v2095 = vunpack.c.l.b16 %v1573
      %v2096 = vunpack.c.l.b16 %v1574
      %v2097 = vunpack.c.l.b16 %v1575
      %v2098 = vunpack.c.l.b16 %v1576
      %v2099 = vunpack.c.l.b16 %v1577
      %v2100 = vunpack.c.l.b16 %v1578
      %v2101 = vunpack.c.l.b16 %v1579
      %v2102 = vunpack.c.l.b16 %v1580
      %v2103 = vunpack.c.l.b16 %v1581
      %v2104 = vunpack.c.l.b16 %v1582
      %v2105 = vunpack.c.l.b16 %v1583
      %v2106 = vunpack.c.l.b16 %v1584
      %v2107 = vunpack.c.l.b16 %v1585
      %v2108 = vunpack.c.l.b16 %v1586
      %v2109 = vpack.c.b16 %v2096, %v2095
      %v2110 = vpack.c.b16 %v2098, %v2097
      %v2111 = vpack.c.b16 %v2100, %v2099
      %v2112 = vpack.c.b16 %v2102, %v2101
      %v2113 = vpack.c.b16 %v2104, %v2103
      %v2114 = vpack.c.b16 %v2106, %v2105
      %v2115 = vpack.c.b16 %v2108, %v2107
      %vm2116 = vcmask 64512
      %v2118 = vsel %vm2116, %v2067, 0
      %v2121 = vsel %vm2116, %v2068, 0
      %v2124 = vsel %vm2116, %v2069, 0
      %v2127 = vsel %vm2116, %v2070, 0
      %v2130 = vsel %vm2116, %v2071, 0
      %v2133 = vsel %vm2116, %v2072, 0
      %v2136 = vsel %vm2116, %v2073, 0
      %v2139 = vsel %vm2116, %v2074, 0
      %v2142 = vsel %vm2116, %v2075, 0
      %v2145 = vsel %vm2116, %v2076, 0
      %v2148 = vsel %vm2116, %v2077, 0
      %v2151 = vsel %vm2116, %v2078, 0
      %v2154 = vsel %vm2116, %v2079, 0
      %v2157 = vsel %vm2116, %v2080, 0
      %v2160 = vsel %vm2116, %v2109, 0
      %v2163 = vsel %vm2116, %v2110, 0
      %v2166 = vsel %vm2116, %v2111, 0
      %v2169 = vsel %vm2116, %v2112, 0
      %v2172 = vsel %vm2116, %v2113, 0
      %v2175 = vsel %vm2116, %v2114, 0
      %v2178 = vsel %vm2116, %v2115, 0
      %2180 = vmatprep.subr.bf16.mxu0 0
      %2181 = vmatpush1.bf16.xpose.msra.mxu0 %v2160
      %2182 = vmatprep.subr.bf16.mxu0 0
      %2183 = vmatpush1.bf16.xpose.msra.mxu0 %v2163
      %2184 = vmatprep.subr.bf16.mxu0 0
      %2185 = vmatpush1.bf16.xpose.msra.mxu0 %v2166
      %2186 = vmatprep.subr.bf16.mxu0 0
      %2187 = vmatpush1.bf16.xpose.msra.mxu0 %v2169
      %2188 = vmatprep.subr.bf16.mxu0 0
      %2189 = vmatpush1.bf16.xpose.msra.mxu0 %v2172
      %2190 = vmatprep.subr.bf16.mxu0 0
      %2191 = vmatpush1.bf16.xpose.msra.mxu0 %v2175
      %2192 = vmatprep.subr.bf16.mxu0 0
      %2193 = vmatpush1.bf16.xpose.msra.mxu0 %v2178
      %2194 = vmatprep.subr.bf16.mxu0 0
      %2195 = vmatpush1.bf16.xpose.msra.mxu0 0
      %2196 = vmatprep.subr.bf16.mxu0 0
      %2197 = vmatpush1.bf16.xpose.msra.mxu0 0
      %2198 = vmatprep.subr.bf16.mxu0 0
      %2199 = vmatpush1.bf16.xpose.msra.mxu0 0
      %2200 = vmatprep.subr.bf16.mxu0 0
      %2201 = vmatpush1.bf16.xpose.msra.mxu0 0
      %2202 = vmatprep.subr.bf16.mxu0 0
      %2203 = vmatpush1.bf16.xpose.msra.mxu0 0
      %2204 = vmatprep.subr.bf16.mxu0 0
      %2205 = vmatpush1.bf16.xpose.msra.mxu0 0
      %2206 = vmatprep.subr.bf16.mxu0 0
      %2207 = vmatpush1.bf16.xpose.msra.mxu0 0
      %2208 = vmatprep.subr.bf16.mxu0 0
      %2209 = vmatpush1.bf16.xpose.msra.mxu0 0
      %2210 = vmatprep.subr.bf16.mxu0 0
      %2211 = vmatpush1.bf16.xpose.msra.mxu0 0
      %2212 = vmatprep.mubr.bf16.mxu0 0
      %2213 = vmatmul.mubr.bf16.gmra.mrb[0].mxu0 %v2118
      %v2214 = vpop.f32.mrb[0].mxu0
      %v2215 = vadd.f32 0.0, %v2214
      %v2216 = vpop.f32.mrb[0].mxu0
      %v2217 = vpop.f32.mrb[0].mxu0
      %v2218 = vadd.f32 0.0, %v2217
      %v2219 = vpop.f32.mrb[0].mxu0
      %2220 = vmatprep.mubr.bf16.mxu0 0
      %2221 = vmatmul.mubr.bf16.gmra.mrb[0].mxu0 %v2121
      %v2222 = vpop.f32.mrb[0].mxu0
      %v2223 = vadd.f32 0.0, %v2222
      %v2224 = vpop.f32.mrb[0].mxu0
      %v2225 = vpop.f32.mrb[0].mxu0
      %v2226 = vadd.f32 0.0, %v2225
      %v2227 = vpop.f32.mrb[0].mxu0
      %2228 = vmatprep.mubr.bf16.mxu0 0
      %2229 = vmatmul.mubr.bf16.gmra.mrb[0].mxu0 %v2124
      %v2230 = vpop.f32.mrb[0].mxu0
      %v2231 = vadd.f32 0.0, %v2230
      %v2232 = vpop.f32.mrb[0].mxu0
      %v2233 = vpop.f32.mrb[0].mxu0
      %v2234 = vadd.f32 0.0, %v2233
      %v2235 = vpop.f32.mrb[0].mxu0
      %2236 = vmatprep.mubr.bf16.mxu0 0
      %2237 = vmatmul.mubr.bf16.gmra.mrb[0].mxu0 %v2127
      %v2238 = vpop.f32.mrb[0].mxu0
      %v2239 = vadd.f32 0.0, %v2238
      %v2240 = vpop.f32.mrb[0].mxu0
      %v2241 = vpop.f32.mrb[0].mxu0
      %v2242 = vadd.f32 0.0, %v2241
      %v2243 = vpop.f32.mrb[0].mxu0
      %2244 = vmatprep.mubr.bf16.mxu0 0
      %2245 = vmatmul.mubr.bf16.gmra.mrb[0].mxu0 %v2130
      %v2246 = vpop.f32.mrb[0].mxu0
      %v2247 = vadd.f32 0.0, %v2246
      %v2248 = vpop.f32.mrb[0].mxu0
      %v2249 = vpop.f32.mrb[0].mxu0
      %v2250 = vadd.f32 0.0, %v2249
      %v2251 = vpop.f32.mrb[0].mxu0
      %2252 = vmatprep.mubr.bf16.mxu0 0
      %2253 = vmatmul.mubr.bf16.gmra.mrb[0].mxu0 %v2133
      %v2254 = vpop.f32.mrb[0].mxu0
      %v2255 = vadd.f32 0.0, %v2254
      %v2256 = vpop.f32.mrb[0].mxu0
      %v2257 = vpop.f32.mrb[0].mxu0
      %v2258 = vadd.f32 0.0, %v2257
      %v2259 = vpop.f32.mrb[0].mxu0
      %2260 = vmatprep.mubr.bf16.mxu0 0
      %2261 = vmatmul.mubr.bf16.gmra.mrb[0].mxu0 %v2136
      %v2262 = vpop.f32.mrb[0].mxu0
      %v2263 = vadd.f32 0.0, %v2262
      %v2264 = vpop.f32.mrb[0].mxu0
      %v2265 = vpop.f32.mrb[0].mxu0
      %v2266 = vadd.f32 0.0, %v2265
      %v2267 = vpop.f32.mrb[0].mxu0
      %2268 = vmatprep.mubr.bf16.mxu0 0
      %2269 = vmatmul.mubr.bf16.gmra.mrb[0].mxu0 %v2139
      %v2270 = vpop.f32.mrb[0].mxu0
      %v2271 = vadd.f32 0.0, %v2270
      %v2272 = vpop.f32.mrb[0].mxu0
      %v2273 = vpop.f32.mrb[0].mxu0
      %v2274 = vadd.f32 0.0, %v2273
      %v2275 = vpop.f32.mrb[0].mxu0
      %2276 = vmatprep.mubr.bf16.mxu0 0
      %2277 = vmatmul.mubr.bf16.gmra.mrb[0].mxu0 %v2142
      %v2278 = vpop.f32.mrb[0].mxu0
      %v2279 = vadd.f32 0.0, %v2278
      %v2280 = vpop.f32.mrb[0].mxu0
      %v2281 = vpop.f32.mrb[0].mxu0
      %v2282 = vadd.f32 0.0, %v2281
      %v2283 = vpop.f32.mrb[0].mxu0
      %2284 = vmatprep.mubr.bf16.mxu0 0
      %2285 = vmatmul.mubr.bf16.gmra.mrb[0].mxu0 %v2145
      %v2286 = vpop.f32.mrb[0].mxu0
      %v2287 = vadd.f32 0.0, %v2286
      %v2288 = vpop.f32.mrb[0].mxu0
      %v2289 = vpop.f32.mrb[0].mxu0
      %v2290 = vadd.f32 0.0, %v2289
      %v2291 = vpop.f32.mrb[0].mxu0
      %2292 = vmatprep.mubr.bf16.mxu0 0
      %2293 = vmatmul.mubr.bf16.gmra.mrb[0].mxu0 %v2148
      %v2294 = vpop.f32.mrb[0].mxu0
      %v2295 = vadd.f32 0.0, %v2294
      %v2296 = vpop.f32.mrb[0].mxu0
      %v2297 = vpop.f32.mrb[0].mxu0
      %v2298 = vadd.f32 0.0, %v2297
      %v2299 = vpop.f32.mrb[0].mxu0
      %2300 = vmatprep.mubr.bf16.mxu0 0
      %2301 = vmatmul.mubr.bf16.gmra.mrb[0].mxu0 %v2151
      %v2302 = vpop.f32.mrb[0].mxu0
      %v2303 = vadd.f32 0.0, %v2302
      %v2304 = vpop.f32.mrb[0].mxu0
      %v2305 = vpop.f32.mrb[0].mxu0
      %v2306 = vadd.f32 0.0, %v2305
      %v2307 = vpop.f32.mrb[0].mxu0
      %2308 = vmatprep.mubr.bf16.mxu0 0
      %2309 = vmatmul.mubr.bf16.gmra.mrb[0].mxu0 %v2154
      %v2310 = vpop.f32.mrb[0].mxu0
      %v2311 = vadd.f32 0.0, %v2310
      %v2312 = vpop.f32.mrb[0].mxu0
      %v2313 = vpop.f32.mrb[0].mxu0
      %v2314 = vadd.f32 0.0, %v2313
      %v2315 = vpop.f32.mrb[0].mxu0
      %2316 = vmatprep.mubr.bf16.mxu0 0
      %2317 = vmatmul.mubr.bf16.gmra.mrb[0].mxu0 %v2157
      %v2318 = vpop.f32.mrb[0].mxu0
      %v2319 = vadd.f32 0.0, %v2318
      %v2320 = vpop.f32.mrb[0].mxu0
      %v2321 = vpop.f32.mrb[0].mxu0
      %v2322 = vpop.f32.mrb[0].mxu0
      %2323 = vdwg.mxu0
      %v2351 = vunpack.c.l.b16 %v1824
      %v2352 = vunpack.c.l.b16 %v1825
      %v2353 = vunpack.c.l.b16 %v1826
      %v2354 = vunpack.c.l.b16 %v1827
      %v2355 = vunpack.c.l.b16 %v1828
      %v2356 = vunpack.c.l.b16 %v1829
      %v2357 = vunpack.c.l.b16 %v1830
      %v2358 = vunpack.c.l.b16 %v1831
      %v2359 = vunpack.c.l.b16 %v1832
      %v2360 = vunpack.c.l.b16 %v1833
      %v2361 = vunpack.c.l.b16 %v1834
      %v2362 = vunpack.c.l.b16 %v1835
      %v2363 = vunpack.c.l.b16 %v1836
      %v2364 = vunpack.c.l.b16 %v1837
      %v2365 = vunpack.c.l.b16 %v1838
      %v2366 = vunpack.c.l.b16 %v1839
      %v2367 = vunpack.c.l.b16 %v1840
      %v2368 = vunpack.c.l.b16 %v1841
      %v2369 = vunpack.c.l.b16 %v1842
      %v2370 = vunpack.c.l.b16 %v1843
      %v2371 = vunpack.c.l.b16 %v1844
      %v2372 = vunpack.c.l.b16 %v1845
      %v2373 = vunpack.c.l.b16 %v1846
      %v2374 = vunpack.c.l.b16 %v1847
      %v2375 = vunpack.c.l.b16 %v1848
      %v2376 = vunpack.c.l.b16 %v1849
      %v2377 = vunpack.c.l.b16 %v1850
      %v2378 = vpack.c.b16 %v2352, %v2351
      %v2379 = vpack.c.b16 %v2354, %v2353
      %v2380 = vpack.c.b16 %v2356, %v2355
      %v2381 = vpack.c.b16 %v2358, %v2357
      %v2382 = vpack.c.b16 %v2360, %v2359
      %v2383 = vpack.c.b16 %v2362, %v2361
      %v2384 = vpack.c.b16 %v2364, %v2363
      %v2385 = vpack.c.b16 %v2366, %v2365
      %v2386 = vpack.c.b16 %v2368, %v2367
      %v2387 = vpack.c.b16 %v2370, %v2369
      %v2388 = vpack.c.b16 %v2372, %v2371
      %v2389 = vpack.c.b16 %v2374, %v2373
      %v2390 = vpack.c.b16 %v2376, %v2375
      %v2391 = vpack.c.b16 %v2377, %v2377
      %v2406 = vunpack.c.l.b16 %v1587
      %v2407 = vunpack.c.l.b16 %v1588
      %v2408 = vunpack.c.l.b16 %v1589
      %v2409 = vunpack.c.l.b16 %v1590
      %v2410 = vunpack.c.l.b16 %v1591
      %v2411 = vunpack.c.l.b16 %v1592
      %v2412 = vunpack.c.l.b16 %v1593
      %v2413 = vunpack.c.l.b16 %v1594
      %v2414 = vunpack.c.l.b16 %v1595
      %v2415 = vunpack.c.l.b16 %v1596
      %v2416 = vunpack.c.l.b16 %v1597
      %v2417 = vunpack.c.l.b16 %v1598
      %v2418 = vunpack.c.l.b16 %v1599
      %v2419 = vunpack.c.l.b16 %v1600
      %v2420 = vpack.c.b16 %v2407, %v2406
      %v2421 = vpack.c.b16 %v2409, %v2408
      %v2422 = vpack.c.b16 %v2411, %v2410
      %v2423 = vpack.c.b16 %v2413, %v2412
      %v2424 = vpack.c.b16 %v2415, %v2414
      %v2425 = vpack.c.b16 %v2417, %v2416
      %v2426 = vpack.c.b16 %v2419, %v2418
      %v2428 = vsel %vm2116, %v2378, 0
      %v2431 = vsel %vm2116, %v2379, 0
      %v2434 = vsel %vm2116, %v2380, 0
      %v2437 = vsel %vm2116, %v2381, 0
      %v2440 = vsel %vm2116, %v2382, 0
      %v2443 = vsel %vm2116, %v2383, 0
      %v2446 = vsel %vm2116, %v2384, 0
      %v2449 = vsel %vm2116, %v2385, 0
      %v2452 = vsel %vm2116, %v2386, 0
      %v2455 = vsel %vm2116, %v2387, 0
      %v2458 = vsel %vm2116, %v2388, 0
      %v2461 = vsel %vm2116, %v2389, 0
      %v2464 = vsel %vm2116, %v2390, 0
      %v2467 = vsel %vm2116, %v2391, 0
      %v2470 = vsel %vm2116, %v2420, 0
      %v2473 = vsel %vm2116, %v2421, 0
      %v2476 = vsel %vm2116, %v2422, 0
      %v2479 = vsel %vm2116, %v2423, 0
      %v2482 = vsel %vm2116, %v2424, 0
      %v2485 = vsel %vm2116, %v2425, 0
      %v2488 = vsel %vm2116, %v2426, 0
      %2490 = vmatprep.subr.bf16.mxu0 0
      %2491 = vmatpush1.bf16.xpose.msra.mxu0 %v2470
      %2492 = vmatprep.subr.bf16.mxu0 0
      %2493 = vmatpush1.bf16.xpose.msra.mxu0 %v2473
      %2494 = vmatprep.subr.bf16.mxu0 0
      %2495 = vmatpush1.bf16.xpose.msra.mxu0 %v2476
      %2496 = vmatprep.subr.bf16.mxu0 0
      %2497 = vmatpush1.bf16.xpose.msra.mxu0 %v2479
      %2498 = vmatprep.subr.bf16.mxu0 0
      %2499 = vmatpush1.bf16.xpose.msra.mxu0 %v2482
      %2500 = vmatprep.subr.bf16.mxu0 0
      %2501 = vmatpush1.bf16.xpose.msra.mxu0 %v2485
      %2502 = vmatprep.subr.bf16.mxu0 0
      %2503 = vmatpush1.bf16.xpose.msra.mxu0 %v2488
      %2504 = vmatprep.subr.bf16.mxu0 0
      %2505 = vmatpush1.bf16.xpose.msra.mxu0 0
      %2506 = vmatprep.subr.bf16.mxu0 0
      %2507 = vmatpush1.bf16.xpose.msra.mxu0 0
      %2508 = vmatprep.subr.bf16.mxu0 0
      %2509 = vmatpush1.bf16.xpose.msra.mxu0 0
      %2510 = vmatprep.subr.bf16.mxu0 0
      %2511 = vmatpush1.bf16.xpose.msra.mxu0 0
      %2512 = vmatprep.subr.bf16.mxu0 0
      %2513 = vmatpush1.bf16.xpose.msra.mxu0 0
      %2514 = vmatprep.subr.bf16.mxu0 0
      %2515 = vmatpush1.bf16.xpose.msra.mxu0 0
      %2516 = vmatprep.subr.bf16.mxu0 0
      %2517 = vmatpush1.bf16.xpose.msra.mxu0 0
      %2518 = vmatprep.subr.bf16.mxu0 0
      %2519 = vmatpush1.bf16.xpose.msra.mxu0 0
      %2520 = vmatprep.subr.bf16.mxu0 0
      %2521 = vmatpush1.bf16.xpose.msra.mxu0 0
      %2522 = vmatprep.mubr.bf16.mxu0 0
      %2523 = vmatmul.mubr.bf16.gmra.mrb[0].mxu0 %v2428
      %v2524 = vpop.f32.mrb[0].mxu0
      %v2525 = vadd.f32 0.0, %v2524
      %v2526 = vpop.f32.mrb[0].mxu0
      %v2527 = vpop.f32.mrb[0].mxu0
      %v2528 = vadd.f32 0.0, %v2527
      %v2529 = vpop.f32.mrb[0].mxu0
      %2530 = vmatprep.mubr.bf16.mxu0 0
      %2531 = vmatmul.mubr.bf16.gmra.mrb[0].mxu0 %v2431
      %v2532 = vpop.f32.mrb[0].mxu0
      %v2533 = vadd.f32 0.0, %v2532
      %v2534 = vpop.f32.mrb[0].mxu0
      %v2535 = vpop.f32.mrb[0].mxu0
      %v2536 = vadd.f32 0.0, %v2535
      %v2537 = vpop.f32.mrb[0].mxu0
      %2538 = vmatprep.mubr.bf16.mxu0 0
      %2539 = vmatmul.mubr.bf16.gmra.mrb[0].mxu0 %v2434
      %v2540 = vpop.f32.mrb[0].mxu0
      %v2541 = vadd.f32 0.0, %v2540
      %v2542 = vpop.f32.mrb[0].mxu0
      %v2543 = vpop.f32.mrb[0].mxu0
      %v2544 = vadd.f32 0.0, %v2543
      %v2545 = vpop.f32.mrb[0].mxu0
      %2546 = vmatprep.mubr.bf16.mxu0 0
      %2547 = vmatmul.mubr.bf16.gmra.mrb[0].mxu0 %v2437
      %v2548 = vpop.f32.mrb[0].mxu0
      %v2549 = vadd.f32 0.0, %v2548
      %v2550 = vpop.f32.mrb[0].mxu0
      %v2551 = vpop.f32.mrb[0].mxu0
      %v2552 = vadd.f32 0.0, %v2551
      %v2553 = vpop.f32.mrb[0].mxu0
      %2554 = vmatprep.mubr.bf16.mxu0 0
      %2555 = vmatmul.mubr.bf16.gmra.mrb[0].mxu0 %v2440
      %v2556 = vpop.f32.mrb[0].mxu0
      %v2557 = vadd.f32 0.0, %v2556
      %v2558 = vpop.f32.mrb[0].mxu0
      %v2559 = vpop.f32.mrb[0].mxu0
      %v2560 = vadd.f32 0.0, %v2559
      %v2561 = vpop.f32.mrb[0].mxu0
      %2562 = vmatprep.mubr.bf16.mxu0 0
      %2563 = vmatmul.mubr.bf16.gmra.mrb[0].mxu0 %v2443
      %v2564 = vpop.f32.mrb[0].mxu0
      %v2565 = vadd.f32 0.0, %v2564
      %v2566 = vpop.f32.mrb[0].mxu0
      %v2567 = vpop.f32.mrb[0].mxu0
      %v2568 = vadd.f32 0.0, %v2567
      %v2569 = vpop.f32.mrb[0].mxu0
      %2570 = vmatprep.mubr.bf16.mxu0 0
      %2571 = vmatmul.mubr.bf16.gmra.mrb[0].mxu0 %v2446
      %v2572 = vpop.f32.mrb[0].mxu0
      %v2573 = vadd.f32 0.0, %v2572
      %v2574 = vpop.f32.mrb[0].mxu0
      %v2575 = vpop.f32.mrb[0].mxu0
      %v2576 = vadd.f32 0.0, %v2575
      %v2577 = vpop.f32.mrb[0].mxu0
      %2578 = vmatprep.mubr.bf16.mxu0 0
      %2579 = vmatmul.mubr.bf16.gmra.mrb[0].mxu0 %v2449
      %v2580 = vpop.f32.mrb[0].mxu0
      %v2581 = vadd.f32 0.0, %v2580
      %v2582 = vpop.f32.mrb[0].mxu0
      %v2583 = vpop.f32.mrb[0].mxu0
      %v2584 = vadd.f32 0.0, %v2583
      %v2585 = vpop.f32.mrb[0].mxu0
      %2586 = vmatprep.mubr.bf16.mxu0 0
      %2587 = vmatmul.mubr.bf16.gmra.mrb[0].mxu0 %v2452
      %v2588 = vpop.f32.mrb[0].mxu0
      %v2589 = vadd.f32 0.0, %v2588
      %v2590 = vpop.f32.mrb[0].mxu0
      %v2591 = vpop.f32.mrb[0].mxu0
      %v2592 = vadd.f32 0.0, %v2591
      %v2593 = vpop.f32.mrb[0].mxu0
      %2594 = vmatprep.mubr.bf16.mxu0 0
      %2595 = vmatmul.mubr.bf16.gmra.mrb[0].mxu0 %v2455
      %v2596 = vpop.f32.mrb[0].mxu0
      %v2597 = vadd.f32 0.0, %v2596
      %v2598 = vpop.f32.mrb[0].mxu0
      %v2599 = vpop.f32.mrb[0].mxu0
      %v2600 = vadd.f32 0.0, %v2599
      %v2601 = vpop.f32.mrb[0].mxu0
      %2602 = vmatprep.mubr.bf16.mxu0 0
      %2603 = vmatmul.mubr.bf16.gmra.mrb[0].mxu0 %v2458
      %v2604 = vpop.f32.mrb[0].mxu0
      %v2605 = vadd.f32 0.0, %v2604
      %v2606 = vpop.f32.mrb[0].mxu0
      %v2607 = vpop.f32.mrb[0].mxu0
      %v2608 = vadd.f32 0.0, %v2607
      %v2609 = vpop.f32.mrb[0].mxu0
      %2610 = vmatprep.mubr.bf16.mxu0 0
      %2611 = vmatmul.mubr.bf16.gmra.mrb[0].mxu0 %v2461
      %v2612 = vpop.f32.mrb[0].mxu0
      %v2613 = vadd.f32 0.0, %v2612
      %v2614 = vpop.f32.mrb[0].mxu0
      %v2615 = vpop.f32.mrb[0].mxu0
      %v2616 = vadd.f32 0.0, %v2615
      %v2617 = vpop.f32.mrb[0].mxu0
      %2618 = vmatprep.mubr.bf16.mxu0 0
      %2619 = vmatmul.mubr.bf16.gmra.mrb[0].mxu0 %v2464
      %v2620 = vpop.f32.mrb[0].mxu0
      %v2621 = vadd.f32 0.0, %v2620
      %v2622 = vpop.f32.mrb[0].mxu0
      %v2623 = vpop.f32.mrb[0].mxu0
      %v2624 = vadd.f32 0.0, %v2623
      %v2625 = vpop.f32.mrb[0].mxu0
      %2626 = vmatprep.mubr.bf16.mxu0 0
      %2627 = vmatmul.mubr.bf16.gmra.mrb[0].mxu0 %v2467
      %v2628 = vpop.f32.mrb[0].mxu0
      %v2629 = vadd.f32 0.0, %v2628
      %v2630 = vpop.f32.mrb[0].mxu0
      %v2631 = vpop.f32.mrb[0].mxu0
      %v2632 = vpop.f32.mrb[0].mxu0
      %2633 = vdwg.mxu0
      %v2661 = vunpack.c.l.b16 %v1851
      %v2662 = vunpack.c.l.b16 %v1852
      %v2663 = vunpack.c.l.b16 %v1853
      %v2664 = vunpack.c.l.b16 %v1854
      %v2665 = vunpack.c.l.b16 %v1855
      %v2666 = vunpack.c.l.b16 %v1856
      %v2667 = vunpack.c.l.b16 %v1857
      %v2668 = vunpack.c.l.b16 %v1858
      %v2669 = vunpack.c.l.b16 %v1859
      %v2670 = vunpack.c.l.b16 %v1860
      %v2671 = vunpack.c.l.b16 %v1861
      %v2672 = vunpack.c.l.b16 %v1862
      %v2673 = vunpack.c.l.b16 %v1863
      %v2674 = vunpack.c.l.b16 %v1864
      %v2675 = vunpack.c.l.b16 %v1865
      %v2676 = vunpack.c.l.b16 %v1866
      %v2677 = vunpack.c.l.b16 %v1867
      %v2678 = vunpack.c.l.b16 %v1868
      %v2679 = vunpack.c.l.b16 %v1869
      %v2680 = vunpack.c.l.b16 %v1870
      %v2681 = vunpack.c.l.b16 %v1871
      %v2682 = vunpack.c.l.b16 %v1872
      %v2683 = vunpack.c.l.b16 %v1873
      %v2684 = vunpack.c.l.b16 %v1874
      %v2685 = vunpack.c.l.b16 %v1875
      %v2686 = vunpack.c.l.b16 %v1876
      %v2687 = vunpack.c.l.b16 %v1877
      %v2688 = vpack.c.b16 %v2662, %v2661
      %v2689 = vpack.c.b16 %v2664, %v2663
      %v2690 = vpack.c.b16 %v2666, %v2665
      %v2691 = vpack.c.b16 %v2668, %v2667
      %v2692 = vpack.c.b16 %v2670, %v2669
      %v2693 = vpack.c.b16 %v2672, %v2671
      %v2694 = vpack.c.b16 %v2674, %v2673
      %v2695 = vpack.c.b16 %v2676, %v2675
      %v2696 = vpack.c.b16 %v2678, %v2677
      %v2697 = vpack.c.b16 %v2680, %v2679
      %v2698 = vpack.c.b16 %v2682, %v2681
      %v2699 = vpack.c.b16 %v2684, %v2683
      %v2700 = vpack.c.b16 %v2686, %v2685
      %v2701 = vpack.c.b16 %v2687, %v2687
      %v2716 = vunpack.c.l.b16 %v1601
      %v2717 = vunpack.c.l.b16 %v1602
      %v2718 = vunpack.c.l.b16 %v1603
      %v2719 = vunpack.c.l.b16 %v1604
      %v2720 = vunpack.c.l.b16 %v1605
      %v2721 = vunpack.c.l.b16 %v1606
      %v2722 = vunpack.c.l.b16 %v1607
      %v2723 = vunpack.c.l.b16 %v1608
      %v2724 = vunpack.c.l.b16 %v1609
      %v2725 = vunpack.c.l.b16 %v1610
      %v2726 = vunpack.c.l.b16 %v1611
      %v2727 = vunpack.c.l.b16 %v1612
      %v2728 = vunpack.c.l.b16 %v1613
      %v2729 = vunpack.c.l.b16 %v1614
      %v2730 = vpack.c.b16 %v2717, %v2716
      %v2731 = vpack.c.b16 %v2719, %v2718
      %v2732 = vpack.c.b16 %v2721, %v2720
      %v2733 = vpack.c.b16 %v2723, %v2722
      %v2734 = vpack.c.b16 %v2725, %v2724
      %v2735 = vpack.c.b16 %v2727, %v2726
      %v2736 = vpack.c.b16 %v2729, %v2728
      %v2738 = vsel %vm2116, %v2688, 0
      %v2741 = vsel %vm2116, %v2689, 0
      %v2744 = vsel %vm2116, %v2690, 0
      %v2747 = vsel %vm2116, %v2691, 0
      %v2750 = vsel %vm2116, %v2692, 0
      %v2753 = vsel %vm2116, %v2693, 0
      %v2756 = vsel %vm2116, %v2694, 0
      %v2759 = vsel %vm2116, %v2695, 0
      %v2762 = vsel %vm2116, %v2696, 0
      %v2765 = vsel %vm2116, %v2697, 0
      %v2768 = vsel %vm2116, %v2698, 0
      %v2771 = vsel %vm2116, %v2699, 0
      %v2774 = vsel %vm2116, %v2700, 0
      %v2777 = vsel %vm2116, %v2701, 0
      %v2780 = vsel %vm2116, %v2730, 0
      %v2783 = vsel %vm2116, %v2731, 0
      %v2786 = vsel %vm2116, %v2732, 0
      %v2789 = vsel %vm2116, %v2733, 0
      %v2792 = vsel %vm2116, %v2734, 0
      %v2795 = vsel %vm2116, %v2735, 0
      %v2798 = vsel %vm2116, %v2736, 0
      %2800 = vmatprep.subr.bf16.mxu0 0
      %2801 = vmatpush1.bf16.xpose.msra.mxu0 %v2780
      %2802 = vmatprep.subr.bf16.mxu0 0
      %2803 = vmatpush1.bf16.xpose.msra.mxu0 %v2783
      %2804 = vmatprep.subr.bf16.mxu0 0
      %2805 = vmatpush1.bf16.xpose.msra.mxu0 %v2786
      %2806 = vmatprep.subr.bf16.mxu0 0
      %2807 = vmatpush1.bf16.xpose.msra.mxu0 %v2789
      %2808 = vmatprep.subr.bf16.mxu0 0
      %2809 = vmatpush1.bf16.xpose.msra.mxu0 %v2792
      %2810 = vmatprep.subr.bf16.mxu0 0
      %2811 = vmatpush1.bf16.xpose.msra.mxu0 %v2795
      %2812 = vmatprep.subr.bf16.mxu0 0
      %2813 = vmatpush1.bf16.xpose.msra.mxu0 %v2798
      %2814 = vmatprep.subr.bf16.mxu0 0
      %2815 = vmatpush1.bf16.xpose.msra.mxu0 0
      %2816 = vmatprep.subr.bf16.mxu0 0
      %2817 = vmatpush1.bf16.xpose.msra.mxu0 0
      %2818 = vmatprep.subr.bf16.mxu0 0
      %2819 = vmatpush1.bf16.xpose.msra.mxu0 0
      %2820 = vmatprep.subr.bf16.mxu0 0
      %2821 = vmatpush1.bf16.xpose.msra.mxu0 0
      %2822 = vmatprep.subr.bf16.mxu0 0
      %2823 = vmatpush1.bf16.xpose.msra.mxu0 0
      %2824 = vmatprep.subr.bf16.mxu0 0
      %2825 = vmatpush1.bf16.xpose.msra.mxu0 0
      %2826 = vmatprep.subr.bf16.mxu0 0
      %2827 = vmatpush1.bf16.xpose.msra.mxu0 0
      %2828 = vmatprep.subr.bf16.mxu0 0
      %2829 = vmatpush1.bf16.xpose.msra.mxu0 0
      %2830 = vmatprep.subr.bf16.mxu0 0
      %2831 = vmatpush1.bf16.xpose.msra.mxu0 0
      %2832 = vmatprep.mubr.bf16.mxu0 0
      %2833 = vmatmul.mubr.bf16.gmra.mrb[0].mxu0 %v2738
      %v2834 = vpop.f32.mrb[0].mxu0
      %v2835 = vadd.f32 0.0, %v2834
      %v2836 = vpop.f32.mrb[0].mxu0
      %v2837 = vpop.f32.mrb[0].mxu0
      %v2838 = vadd.f32 0.0, %v2837
      %v2839 = vpop.f32.mrb[0].mxu0
      %2840 = vmatprep.mubr.bf16.mxu0 0
      %2841 = vmatmul.mubr.bf16.gmra.mrb[0].mxu0 %v2741
      %v2842 = vpop.f32.mrb[0].mxu0
      %v2843 = vadd.f32 0.0, %v2842
      %v2844 = vpop.f32.mrb[0].mxu0
      %v2845 = vpop.f32.mrb[0].mxu0
      %v2846 = vadd.f32 0.0, %v2845
      %v2847 = vpop.f32.mrb[0].mxu0
      %2848 = vmatprep.mubr.bf16.mxu0 0
      %2849 = vmatmul.mubr.bf16.gmra.mrb[0].mxu0 %v2744
      %v2850 = vpop.f32.mrb[0].mxu0
      %v2851 = vadd.f32 0.0, %v2850
      %v2852 = vpop.f32.mrb[0].mxu0
      %v2853 = vpop.f32.mrb[0].mxu0
      %v2854 = vadd.f32 0.0, %v2853
      %v2855 = vpop.f32.mrb[0].mxu0
      %2856 = vmatprep.mubr.bf16.mxu0 0
      %2857 = vmatmul.mubr.bf16.gmra.mrb[0].mxu0 %v2747
      %v2858 = vpop.f32.mrb[0].mxu0
      %v2859 = vadd.f32 0.0, %v2858
      %v2860 = vpop.f32.mrb[0].mxu0
      %v2861 = vpop.f32.mrb[0].mxu0
      %v2862 = vadd.f32 0.0, %v2861
      %v2863 = vpop.f32.mrb[0].mxu0
      %2864 = vmatprep.mubr.bf16.mxu0 0
      %2865 = vmatmul.mubr.bf16.gmra.mrb[0].mxu0 %v2750
      %v2866 = vpop.f32.mrb[0].mxu0
      %v2867 = vadd.f32 0.0, %v2866
      %v2868 = vpop.f32.mrb[0].mxu0
      %v2869 = vpop.f32.mrb[0].mxu0
      %v2870 = vadd.f32 0.0, %v2869
      %v2871 = vpop.f32.mrb[0].mxu0
      %2872 = vmatprep.mubr.bf16.mxu0 0
      %2873 = vmatmul.mubr.bf16.gmra.mrb[0].mxu0 %v2753
      %v2874 = vpop.f32.mrb[0].mxu0
      %v2875 = vadd.f32 0.0, %v2874
      %v2876 = vpop.f32.mrb[0].mxu0
      %v2877 = vpop.f32.mrb[0].mxu0
      %v2878 = vadd.f32 0.0, %v2877
      %v2879 = vpop.f32.mrb[0].mxu0
      %2880 = vmatprep.mubr.bf16.mxu0 0
      %2881 = vmatmul.mubr.bf16.gmra.mrb[0].mxu0 %v2756
      %v2882 = vpop.f32.mrb[0].mxu0
      %v2883 = vadd.f32 0.0, %v2882
      %v2884 = vpop.f32.mrb[0].mxu0
      %v2885 = vpop.f32.mrb[0].mxu0
      %v2886 = vadd.f32 0.0, %v2885
      %v2887 = vpop.f32.mrb[0].mxu0
      %2888 = vmatprep.mubr.bf16.mxu0 0
      %2889 = vmatmul.mubr.bf16.gmra.mrb[0].mxu0 %v2759
      %v2890 = vpop.f32.mrb[0].mxu0
      %v2891 = vadd.f32 0.0, %v2890
      %v2892 = vpop.f32.mrb[0].mxu0
      %v2893 = vpop.f32.mrb[0].mxu0
      %v2894 = vadd.f32 0.0, %v2893
      %v2895 = vpop.f32.mrb[0].mxu0
      %2896 = vmatprep.mubr.bf16.mxu0 0
      %2897 = vmatmul.mubr.bf16.gmra.mrb[0].mxu0 %v2762
      %v2898 = vpop.f32.mrb[0].mxu0
      %v2899 = vadd.f32 0.0, %v2898
      %v2900 = vpop.f32.mrb[0].mxu0
      %v2901 = vpop.f32.mrb[0].mxu0
      %v2902 = vadd.f32 0.0, %v2901
      %v2903 = vpop.f32.mrb[0].mxu0
      %2904 = vmatprep.mubr.bf16.mxu0 0
      %2905 = vmatmul.mubr.bf16.gmra.mrb[0].mxu0 %v2765
      %v2906 = vpop.f32.mrb[0].mxu0
      %v2907 = vadd.f32 0.0, %v2906
      %v2908 = vpop.f32.mrb[0].mxu0
      %v2909 = vpop.f32.mrb[0].mxu0
      %v2910 = vadd.f32 0.0, %v2909
      %v2911 = vpop.f32.mrb[0].mxu0
      %2912 = vmatprep.mubr.bf16.mxu0 0
      %2913 = vmatmul.mubr.bf16.gmra.mrb[0].mxu0 %v2768
      %v2914 = vpop.f32.mrb[0].mxu0
      %v2915 = vadd.f32 0.0, %v2914
      %v2916 = vpop.f32.mrb[0].mxu0
      %v2917 = vpop.f32.mrb[0].mxu0
      %v2918 = vadd.f32 0.0, %v2917
      %v2919 = vpop.f32.mrb[0].mxu0
      %2920 = vmatprep.mubr.bf16.mxu0 0
      %2921 = vmatmul.mubr.bf16.gmra.mrb[0].mxu0 %v2771
      %v2922 = vpop.f32.mrb[0].mxu0
      %v2923 = vadd.f32 0.0, %v2922
      %v2924 = vpop.f32.mrb[0].mxu0
      %v2925 = vpop.f32.mrb[0].mxu0
      %v2926 = vadd.f32 0.0, %v2925
      %v2927 = vpop.f32.mrb[0].mxu0
      %2928 = vmatprep.mubr.bf16.mxu0 0
      %2929 = vmatmul.mubr.bf16.gmra.mrb[0].mxu0 %v2774
      %v2930 = vpop.f32.mrb[0].mxu0
      %v2931 = vadd.f32 0.0, %v2930
      %v2932 = vpop.f32.mrb[0].mxu0
      %v2933 = vpop.f32.mrb[0].mxu0
      %v2934 = vadd.f32 0.0, %v2933
      %v2935 = vpop.f32.mrb[0].mxu0
      %2936 = vmatprep.mubr.bf16.mxu0 0
      %2937 = vmatmul.mubr.bf16.gmra.mrb[0].mxu0 %v2777
      %v2938 = vpop.f32.mrb[0].mxu0
      %v2939 = vadd.f32 0.0, %v2938
      %v2940 = vpop.f32.mrb[0].mxu0
      %v2941 = vpop.f32.mrb[0].mxu0
      %v2942 = vpop.f32.mrb[0].mxu0
      %2943 = vdwg.mxu0
      %v2971 = vunpack.c.l.b16 %v1878
      %v2972 = vunpack.c.l.b16 %v1879
      %v2973 = vunpack.c.l.b16 %v1880
      %v2974 = vunpack.c.l.b16 %v1881
      %v2975 = vunpack.c.l.b16 %v1882
      %v2976 = vunpack.c.l.b16 %v1883
      %v2977 = vunpack.c.l.b16 %v1884
      %v2978 = vunpack.c.l.b16 %v1885
      %v2979 = vunpack.c.l.b16 %v1886
      %v2980 = vunpack.c.l.b16 %v1887
      %v2981 = vunpack.c.l.b16 %v1888
      %v2982 = vunpack.c.l.b16 %v1889
      %v2983 = vunpack.c.l.b16 %v1890
      %v2984 = vunpack.c.l.b16 %v1891
      %v2985 = vunpack.c.l.b16 %v1892
      %v2986 = vunpack.c.l.b16 %v1893
      %v2987 = vunpack.c.l.b16 %v1894
      %v2988 = vunpack.c.l.b16 %v1895
      %v2989 = vunpack.c.l.b16 %v1896
      %v2990 = vunpack.c.l.b16 %v1897
      %v2991 = vunpack.c.l.b16 %v1898
      %v2992 = vunpack.c.l.b16 %v1899
      %v2993 = vunpack.c.l.b16 %v1900
      %v2994 = vunpack.c.l.b16 %v1901
      %v2995 = vunpack.c.l.b16 %v1902
      %v2996 = vunpack.c.l.b16 %v1903
      %v2997 = vunpack.c.l.b16 %v1904
      %v2998 = vpack.c.b16 %v2972, %v2971
      %v2999 = vpack.c.b16 %v2974, %v2973
      %v3000 = vpack.c.b16 %v2976, %v2975
      %v3001 = vpack.c.b16 %v2978, %v2977
      %v3002 = vpack.c.b16 %v2980, %v2979
      %v3003 = vpack.c.b16 %v2982, %v2981
      %v3004 = vpack.c.b16 %v2984, %v2983
      %v3005 = vpack.c.b16 %v2986, %v2985
      %v3006 = vpack.c.b16 %v2988, %v2987
      %v3007 = vpack.c.b16 %v2990, %v2989
      %v3008 = vpack.c.b16 %v2992, %v2991
      %v3009 = vpack.c.b16 %v2994, %v2993
      %v3010 = vpack.c.b16 %v2996, %v2995
      %v3011 = vpack.c.b16 %v2997, %v2997
      %v3026 = vunpack.c.l.b16 %v1615
      %v3027 = vunpack.c.l.b16 %v1616
      %v3028 = vunpack.c.l.b16 %v1617
      %v3029 = vunpack.c.l.b16 %v1618
      %v3030 = vunpack.c.l.b16 %v1619
      %v3031 = vunpack.c.l.b16 %v1620
      %v3032 = vunpack.c.l.b16 %v1621
      %v3033 = vunpack.c.l.b16 %v1622
      %v3034 = vunpack.c.l.b16 %v1623
      %v3035 = vunpack.c.l.b16 %v1624
      %v3036 = vunpack.c.l.b16 %v1625
      %v3037 = vunpack.c.l.b16 %v1626
      %v3038 = vunpack.c.l.b16 %v1627
      %v3039 = vunpack.c.l.b16 %v1628
      %v3040 = vpack.c.b16 %v3027, %v3026
      %v3041 = vpack.c.b16 %v3029, %v3028
      %v3042 = vpack.c.b16 %v3031, %v3030
      %v3043 = vpack.c.b16 %v3033, %v3032
      %v3044 = vpack.c.b16 %v3035, %v3034
      %v3045 = vpack.c.b16 %v3037, %v3036
      %v3046 = vpack.c.b16 %v3039, %v3038
      %v3048 = vsel %vm2116, %v2998, 0
      %v3051 = vsel %vm2116, %v2999, 0
      %v3054 = vsel %vm2116, %v3000, 0
      %v3057 = vsel %vm2116, %v3001, 0
      %v3060 = vsel %vm2116, %v3002, 0
      %v3063 = vsel %vm2116, %v3003, 0
      %v3066 = vsel %vm2116, %v3004, 0
      %v3069 = vsel %vm2116, %v3005, 0
      %v3072 = vsel %vm2116, %v3006, 0
      %v3075 = vsel %vm2116, %v3007, 0
      %v3078 = vsel %vm2116, %v3008, 0
      %v3081 = vsel %vm2116, %v3009, 0
      %v3084 = vsel %vm2116, %v3010, 0
      %v3087 = vsel %vm2116, %v3011, 0
      %v3090 = vsel %vm2116, %v3040, 0
      %v3093 = vsel %vm2116, %v3041, 0
      %v3096 = vsel %vm2116, %v3042, 0
      %v3099 = vsel %vm2116, %v3043, 0
      %v3102 = vsel %vm2116, %v3044, 0
      %v3105 = vsel %vm2116, %v3045, 0
      %v3108 = vsel %vm2116, %v3046, 0
      %3110 = vmatprep.subr.bf16.mxu0 0
      %3111 = vmatpush1.bf16.xpose.msra.mxu0 %v3090
      %3112 = vmatprep.subr.bf16.mxu0 0
      %3113 = vmatpush1.bf16.xpose.msra.mxu0 %v3093
      %3114 = vmatprep.subr.bf16.mxu0 0
      %3115 = vmatpush1.bf16.xpose.msra.mxu0 %v3096
      %3116 = vmatprep.subr.bf16.mxu0 0
      %3117 = vmatpush1.bf16.xpose.msra.mxu0 %v3099
      %3118 = vmatprep.subr.bf16.mxu0 0
      %3119 = vmatpush1.bf16.xpose.msra.mxu0 %v3102
      %3120 = vmatprep.subr.bf16.mxu0 0
      %3121 = vmatpush1.bf16.xpose.msra.mxu0 %v3105
      %3122 = vmatprep.subr.bf16.mxu0 0
      %3123 = vmatpush1.bf16.xpose.msra.mxu0 %v3108
      %3124 = vmatprep.subr.bf16.mxu0 0
      %3125 = vmatpush1.bf16.xpose.msra.mxu0 0
      %3126 = vmatprep.subr.bf16.mxu0 0
      %3127 = vmatpush1.bf16.xpose.msra.mxu0 0
      %3128 = vmatprep.subr.bf16.mxu0 0
      %3129 = vmatpush1.bf16.xpose.msra.mxu0 0
      %3130 = vmatprep.subr.bf16.mxu0 0
      %3131 = vmatpush1.bf16.xpose.msra.mxu0 0
      %3132 = vmatprep.subr.bf16.mxu0 0
      %3133 = vmatpush1.bf16.xpose.msra.mxu0 0
      %3134 = vmatprep.subr.bf16.mxu0 0
      %3135 = vmatpush1.bf16.xpose.msra.mxu0 0
      %3136 = vmatprep.subr.bf16.mxu0 0
      %3137 = vmatpush1.bf16.xpose.msra.mxu0 0
      %3138 = vmatprep.subr.bf16.mxu0 0
      %3139 = vmatpush1.bf16.xpose.msra.mxu0 0
      %3140 = vmatprep.subr.bf16.mxu0 0
      %3141 = vmatpush1.bf16.xpose.msra.mxu0 0
      %3142 = vmatprep.mubr.bf16.mxu0 0
      %3143 = vmatmul.mubr.bf16.gmra.mrb[0].mxu0 %v3048
      %v3144 = vpop.f32.mrb[0].mxu0
      %v3145 = vadd.f32 0.0, %v3144
      %v3146 = vpop.f32.mrb[0].mxu0
      %v3147 = vpop.f32.mrb[0].mxu0
      %v3148 = vadd.f32 0.0, %v3147
      %v3149 = vpop.f32.mrb[0].mxu0
      %3150 = vmatprep.mubr.bf16.mxu0 0
      %3151 = vmatmul.mubr.bf16.gmra.mrb[0].mxu0 %v3051
      %v3152 = vpop.f32.mrb[0].mxu0
      %v3153 = vadd.f32 0.0, %v3152
      %v3154 = vpop.f32.mrb[0].mxu0
      %v3155 = vpop.f32.mrb[0].mxu0
      %v3156 = vadd.f32 0.0, %v3155
      %v3157 = vpop.f32.mrb[0].mxu0
      %3158 = vmatprep.mubr.bf16.mxu0 0
      %3159 = vmatmul.mubr.bf16.gmra.mrb[0].mxu0 %v3054
      %v3160 = vpop.f32.mrb[0].mxu0
      %v3161 = vadd.f32 0.0, %v3160
      %v3162 = vpop.f32.mrb[0].mxu0
      %v3163 = vpop.f32.mrb[0].mxu0
      %v3164 = vadd.f32 0.0, %v3163
      %v3165 = vpop.f32.mrb[0].mxu0
      %3166 = vmatprep.mubr.bf16.mxu0 0
      %3167 = vmatmul.mubr.bf16.gmra.mrb[0].mxu0 %v3057
      %v3168 = vpop.f32.mrb[0].mxu0
      %v3169 = vadd.f32 0.0, %v3168
      %v3170 = vpop.f32.mrb[0].mxu0
      %v3171 = vpop.f32.mrb[0].mxu0
      %v3172 = vadd.f32 0.0, %v3171
      %v3173 = vpop.f32.mrb[0].mxu0
      %3174 = vmatprep.mubr.bf16.mxu0 0
      %3175 = vmatmul.mubr.bf16.gmra.mrb[0].mxu0 %v3060
      %v3176 = vpop.f32.mrb[0].mxu0
      %v3177 = vadd.f32 0.0, %v3176
      %v3178 = vpop.f32.mrb[0].mxu0
      %v3179 = vpop.f32.mrb[0].mxu0
      %v3180 = vadd.f32 0.0, %v3179
      %v3181 = vpop.f32.mrb[0].mxu0
      %3182 = vmatprep.mubr.bf16.mxu0 0
      %3183 = vmatmul.mubr.bf16.gmra.mrb[0].mxu0 %v3063
      %v3184 = vpop.f32.mrb[0].mxu0
      %v3185 = vadd.f32 0.0, %v3184
      %v3186 = vpop.f32.mrb[0].mxu0
      %v3187 = vpop.f32.mrb[0].mxu0
      %v3188 = vadd.f32 0.0, %v3187
      %v3189 = vpop.f32.mrb[0].mxu0
      %3190 = vmatprep.mubr.bf16.mxu0 0
      %3191 = vmatmul.mubr.bf16.gmra.mrb[0].mxu0 %v3066
      %v3192 = vpop.f32.mrb[0].mxu0
      %v3193 = vadd.f32 0.0, %v3192
      %v3194 = vpop.f32.mrb[0].mxu0
      %v3195 = vpop.f32.mrb[0].mxu0
      %v3196 = vadd.f32 0.0, %v3195
      %v3197 = vpop.f32.mrb[0].mxu0
      %3198 = vmatprep.mubr.bf16.mxu0 0
      %3199 = vmatmul.mubr.bf16.gmra.mrb[0].mxu0 %v3069
      %v3200 = vpop.f32.mrb[0].mxu0
      %v3201 = vadd.f32 0.0, %v3200
      %v3202 = vpop.f32.mrb[0].mxu0
      %v3203 = vpop.f32.mrb[0].mxu0
      %v3204 = vadd.f32 0.0, %v3203
      %v3205 = vpop.f32.mrb[0].mxu0
      %3206 = vmatprep.mubr.bf16.mxu0 0
      %3207 = vmatmul.mubr.bf16.gmra.mrb[0].mxu0 %v3072
      %v3208 = vpop.f32.mrb[0].mxu0
      %v3209 = vadd.f32 0.0, %v3208
      %v3210 = vpop.f32.mrb[0].mxu0
      %v3211 = vpop.f32.mrb[0].mxu0
      %v3212 = vadd.f32 0.0, %v3211
      %v3213 = vpop.f32.mrb[0].mxu0
      %3214 = vmatprep.mubr.bf16.mxu0 0
      %3215 = vmatmul.mubr.bf16.gmra.mrb[0].mxu0 %v3075
      %v3216 = vpop.f32.mrb[0].mxu0
      %v3217 = vadd.f32 0.0, %v3216
      %v3218 = vpop.f32.mrb[0].mxu0
      %v3219 = vpop.f32.mrb[0].mxu0
      %v3220 = vadd.f32 0.0, %v3219
      %v3221 = vpop.f32.mrb[0].mxu0
      %3222 = vmatprep.mubr.bf16.mxu0 0
      %3223 = vmatmul.mubr.bf16.gmra.mrb[0].mxu0 %v3078
      %v3224 = vpop.f32.mrb[0].mxu0
      %v3225 = vadd.f32 0.0, %v3224
      %v3226 = vpop.f32.mrb[0].mxu0
      %v3227 = vpop.f32.mrb[0].mxu0
      %v3228 = vadd.f32 0.0, %v3227
      %v3229 = vpop.f32.mrb[0].mxu0
      %3230 = vmatprep.mubr.bf16.mxu0 0
      %3231 = vmatmul.mubr.bf16.gmra.mrb[0].mxu0 %v3081
      %v3232 = vpop.f32.mrb[0].mxu0
      %v3233 = vadd.f32 0.0, %v3232
      %v3234 = vpop.f32.mrb[0].mxu0
      %v3235 = vpop.f32.mrb[0].mxu0
      %v3236 = vadd.f32 0.0, %v3235
      %v3237 = vpop.f32.mrb[0].mxu0
      %3238 = vmatprep.mubr.bf16.mxu0 0
      %3239 = vmatmul.mubr.bf16.gmra.mrb[0].mxu0 %v3084
      %v3240 = vpop.f32.mrb[0].mxu0
      %v3241 = vadd.f32 0.0, %v3240
      %v3242 = vpop.f32.mrb[0].mxu0
      %v3243 = vpop.f32.mrb[0].mxu0
      %v3244 = vadd.f32 0.0, %v3243
      %v3245 = vpop.f32.mrb[0].mxu0
      %3246 = vmatprep.mubr.bf16.mxu0 0
      %3247 = vmatmul.mubr.bf16.gmra.mrb[0].mxu0 %v3087
      %v3248 = vpop.f32.mrb[0].mxu0
      %v3249 = vadd.f32 0.0, %v3248
      %v3250 = vpop.f32.mrb[0].mxu0
      %v3251 = vpop.f32.mrb[0].mxu0
      %v3252 = vpop.f32.mrb[0].mxu0
      %3253 = vdwg.mxu0
      %v3281 = vunpack.c.l.b16 %v1905
      %v3282 = vunpack.c.l.b16 %v1906
      %v3283 = vunpack.c.l.b16 %v1907
      %v3284 = vunpack.c.l.b16 %v1908
      %v3285 = vunpack.c.l.b16 %v1909
      %v3286 = vunpack.c.l.b16 %v1910
      %v3287 = vunpack.c.l.b16 %v1911
      %v3288 = vunpack.c.l.b16 %v1912
      %v3289 = vunpack.c.l.b16 %v1913
      %v3290 = vunpack.c.l.b16 %v1914
      %v3291 = vunpack.c.l.b16 %v1915
      %v3292 = vunpack.c.l.b16 %v1916
      %v3293 = vunpack.c.l.b16 %v1917
      %v3294 = vunpack.c.l.b16 %v1918
      %v3295 = vunpack.c.l.b16 %v1919
      %v3296 = vunpack.c.l.b16 %v1920
      %v3297 = vunpack.c.l.b16 %v1921
      %v3298 = vunpack.c.l.b16 %v1922
      %v3299 = vunpack.c.l.b16 %v1923
      %v3300 = vunpack.c.l.b16 %v1924
      %v3301 = vunpack.c.l.b16 %v1925
      %v3302 = vunpack.c.l.b16 %v1926
      %v3303 = vunpack.c.l.b16 %v1927
      %v3304 = vunpack.c.l.b16 %v1928
      %v3305 = vunpack.c.l.b16 %v1929
      %v3306 = vunpack.c.l.b16 %v1930
      %v3307 = vunpack.c.l.b16 %v1931
      %v3308 = vpack.c.b16 %v3282, %v3281
      %v3309 = vpack.c.b16 %v3284, %v3283
      %v3310 = vpack.c.b16 %v3286, %v3285
      %v3311 = vpack.c.b16 %v3288, %v3287
      %v3312 = vpack.c.b16 %v3290, %v3289
      %v3313 = vpack.c.b16 %v3292, %v3291
      %v3314 = vpack.c.b16 %v3294, %v3293
      %v3315 = vpack.c.b16 %v3296, %v3295
      %v3316 = vpack.c.b16 %v3298, %v3297
      %v3317 = vpack.c.b16 %v3300, %v3299
      %v3318 = vpack.c.b16 %v3302, %v3301
      %v3319 = vpack.c.b16 %v3304, %v3303
      %v3320 = vpack.c.b16 %v3306, %v3305
      %v3321 = vpack.c.b16 %v3307, %v3307
      %v3336 = vunpack.c.l.b16 %v1629
      %v3337 = vunpack.c.l.b16 %v1630
      %v3338 = vunpack.c.l.b16 %v1631
      %v3339 = vunpack.c.l.b16 %v1632
      %v3340 = vunpack.c.l.b16 %v1633
      %v3341 = vunpack.c.l.b16 %v1634
      %v3342 = vunpack.c.l.b16 %v1635
      %v3343 = vunpack.c.l.b16 %v1636
      %v3344 = vunpack.c.l.b16 %v1637
      %v3345 = vunpack.c.l.b16 %v1638
      %v3346 = vunpack.c.l.b16 %v1639
      %v3347 = vunpack.c.l.b16 %v1640
      %v3348 = vunpack.c.l.b16 %v1641
      %v3349 = vunpack.c.l.b16 %v1642
      %v3350 = vpack.c.b16 %v3337, %v3336
      %v3351 = vpack.c.b16 %v3339, %v3338
      %v3352 = vpack.c.b16 %v3341, %v3340
      %v3353 = vpack.c.b16 %v3343, %v3342
      %v3354 = vpack.c.b16 %v3345, %v3344
      %v3355 = vpack.c.b16 %v3347, %v3346
      %v3356 = vpack.c.b16 %v3349, %v3348
      %v3358 = vsel %vm2116, %v3308, 0
      %v3361 = vsel %vm2116, %v3309, 0
      %v3364 = vsel %vm2116, %v3310, 0
      %v3367 = vsel %vm2116, %v3311, 0
      %v3370 = vsel %vm2116, %v3312, 0
      %v3373 = vsel %vm2116, %v3313, 0
      %v3376 = vsel %vm2116, %v3314, 0
      %v3379 = vsel %vm2116, %v3315, 0
      %v3382 = vsel %vm2116, %v3316, 0
      %v3385 = vsel %vm2116, %v3317, 0
      %v3388 = vsel %vm2116, %v3318, 0
      %v3391 = vsel %vm2116, %v3319, 0
      %v3394 = vsel %vm2116, %v3320, 0
      %v3397 = vsel %vm2116, %v3321, 0
      %v3400 = vsel %vm2116, %v3350, 0
      %v3403 = vsel %vm2116, %v3351, 0
      %v3406 = vsel %vm2116, %v3352, 0
      %v3409 = vsel %vm2116, %v3353, 0
      %v3412 = vsel %vm2116, %v3354, 0
      %v3415 = vsel %vm2116, %v3355, 0
      %v3418 = vsel %vm2116, %v3356, 0
      %3420 = vmatprep.subr.bf16.mxu0 0
      %3421 = vmatpush1.bf16.xpose.msra.mxu0 %v3400
      %3422 = vmatprep.subr.bf16.mxu0 0
      %3423 = vmatpush1.bf16.xpose.msra.mxu0 %v3403
      %3424 = vmatprep.subr.bf16.mxu0 0
      %3425 = vmatpush1.bf16.xpose.msra.mxu0 %v3406
      %3426 = vmatprep.subr.bf16.mxu0 0
      %3427 = vmatpush1.bf16.xpose.msra.mxu0 %v3409
      %3428 = vmatprep.subr.bf16.mxu0 0
      %3429 = vmatpush1.bf16.xpose.msra.mxu0 %v3412
      %3430 = vmatprep.subr.bf16.mxu0 0
      %3431 = vmatpush1.bf16.xpose.msra.mxu0 %v3415
      %3432 = vmatprep.subr.bf16.mxu0 0
      %3433 = vmatpush1.bf16.xpose.msra.mxu0 %v3418
      %3434 = vmatprep.subr.bf16.mxu0 0
      %3435 = vmatpush1.bf16.xpose.msra.mxu0 0
      %3436 = vmatprep.subr.bf16.mxu0 0
      %3437 = vmatpush1.bf16.xpose.msra.mxu0 0
      %3438 = vmatprep.subr.bf16.mxu0 0
      %3439 = vmatpush1.bf16.xpose.msra.mxu0 0
      %3440 = vmatprep.subr.bf16.mxu0 0
      %3441 = vmatpush1.bf16.xpose.msra.mxu0 0
      %3442 = vmatprep.subr.bf16.mxu0 0
      %3443 = vmatpush1.bf16.xpose.msra.mxu0 0
      %3444 = vmatprep.subr.bf16.mxu0 0
      %3445 = vmatpush1.bf16.xpose.msra.mxu0 0
      %3446 = vmatprep.subr.bf16.mxu0 0
      %3447 = vmatpush1.bf16.xpose.msra.mxu0 0
      %3448 = vmatprep.subr.bf16.mxu0 0
      %3449 = vmatpush1.bf16.xpose.msra.mxu0 0
      %3450 = vmatprep.subr.bf16.mxu0 0
      %3451 = vmatpush1.bf16.xpose.msra.mxu0 0
      %3452 = vmatprep.mubr.bf16.mxu0 0
      %3453 = vmatmul.mubr.bf16.gmra.mrb[0].mxu0 %v3358
      %v3454 = vpop.f32.mrb[0].mxu0
      %v3455 = vadd.f32 0.0, %v3454
      %v3456 = vpop.f32.mrb[0].mxu0
      %v3457 = vpop.f32.mrb[0].mxu0
      %v3458 = vadd.f32 0.0, %v3457
      %v3459 = vpop.f32.mrb[0].mxu0
      %3460 = vmatprep.mubr.bf16.mxu0 0
      %3461 = vmatmul.mubr.bf16.gmra.mrb[0].mxu0 %v3361
      %v3462 = vpop.f32.mrb[0].mxu0
      %v3463 = vadd.f32 0.0, %v3462
      %v3464 = vpop.f32.mrb[0].mxu0
      %v3465 = vpop.f32.mrb[0].mxu0
      %v3466 = vadd.f32 0.0, %v3465
      %v3467 = vpop.f32.mrb[0].mxu0
      %3468 = vmatprep.mubr.bf16.mxu0 0
      %3469 = vmatmul.mubr.bf16.gmra.mrb[0].mxu0 %v3364
      %v3470 = vpop.f32.mrb[0].mxu0
      %v3471 = vadd.f32 0.0, %v3470
      %v3472 = vpop.f32.mrb[0].mxu0
      %v3473 = vpop.f32.mrb[0].mxu0
      %v3474 = vadd.f32 0.0, %v3473
      %v3475 = vpop.f32.mrb[0].mxu0
      %3476 = vmatprep.mubr.bf16.mxu0 0
      %3477 = vmatmul.mubr.bf16.gmra.mrb[0].mxu0 %v3367
      %v3478 = vpop.f32.mrb[0].mxu0
      %v3479 = vadd.f32 0.0, %v3478
      %v3480 = vpop.f32.mrb[0].mxu0
      %v3481 = vpop.f32.mrb[0].mxu0
      %v3482 = vadd.f32 0.0, %v3481
      %v3483 = vpop.f32.mrb[0].mxu0
      %3484 = vmatprep.mubr.bf16.mxu0 0
      %3485 = vmatmul.mubr.bf16.gmra.mrb[0].mxu0 %v3370
      %v3486 = vpop.f32.mrb[0].mxu0
      %v3487 = vadd.f32 0.0, %v3486
      %v3488 = vpop.f32.mrb[0].mxu0
      %v3489 = vpop.f32.mrb[0].mxu0
      %v3490 = vadd.f32 0.0, %v3489
      %v3491 = vpop.f32.mrb[0].mxu0
      %3492 = vmatprep.mubr.bf16.mxu0 0
      %3493 = vmatmul.mubr.bf16.gmra.mrb[0].mxu0 %v3373
      %v3494 = vpop.f32.mrb[0].mxu0
      %v3495 = vadd.f32 0.0, %v3494
      %v3496 = vpop.f32.mrb[0].mxu0
      %v3497 = vpop.f32.mrb[0].mxu0
      %v3498 = vadd.f32 0.0, %v3497
      %v3499 = vpop.f32.mrb[0].mxu0
      %3500 = vmatprep.mubr.bf16.mxu0 0
      %3501 = vmatmul.mubr.bf16.gmra.mrb[0].mxu0 %v3376
      %v3502 = vpop.f32.mrb[0].mxu0
      %v3503 = vadd.f32 0.0, %v3502
      %v3504 = vpop.f32.mrb[0].mxu0
      %v3505 = vpop.f32.mrb[0].mxu0
      %v3506 = vadd.f32 0.0, %v3505
      %v3507 = vpop.f32.mrb[0].mxu0
      %3508 = vmatprep.mubr.bf16.mxu0 0
      %3509 = vmatmul.mubr.bf16.gmra.mrb[0].mxu0 %v3379
      %v3510 = vpop.f32.mrb[0].mxu0
      %v3511 = vadd.f32 0.0, %v3510
      %v3512 = vpop.f32.mrb[0].mxu0
      %v3513 = vpop.f32.mrb[0].mxu0
      %v3514 = vadd.f32 0.0, %v3513
      %v3515 = vpop.f32.mrb[0].mxu0
      %3516 = vmatprep.mubr.bf16.mxu0 0
      %3517 = vmatmul.mubr.bf16.gmra.mrb[0].mxu0 %v3382
      %v3518 = vpop.f32.mrb[0].mxu0
      %v3519 = vadd.f32 0.0, %v3518
      %v3520 = vpop.f32.mrb[0].mxu0
      %v3521 = vpop.f32.mrb[0].mxu0
      %v3522 = vadd.f32 0.0, %v3521
      %v3523 = vpop.f32.mrb[0].mxu0
      %3524 = vmatprep.mubr.bf16.mxu0 0
      %3525 = vmatmul.mubr.bf16.gmra.mrb[0].mxu0 %v3385
      %v3526 = vpop.f32.mrb[0].mxu0
      %v3527 = vadd.f32 0.0, %v3526
      %v3528 = vpop.f32.mrb[0].mxu0
      %v3529 = vpop.f32.mrb[0].mxu0
      %v3530 = vadd.f32 0.0, %v3529
      %v3531 = vpop.f32.mrb[0].mxu0
      %3532 = vmatprep.mubr.bf16.mxu0 0
      %3533 = vmatmul.mubr.bf16.gmra.mrb[0].mxu0 %v3388
      %v3534 = vpop.f32.mrb[0].mxu0
      %v3535 = vadd.f32 0.0, %v3534
      %v3536 = vpop.f32.mrb[0].mxu0
      %v3537 = vpop.f32.mrb[0].mxu0
      %v3538 = vadd.f32 0.0, %v3537
      %v3539 = vpop.f32.mrb[0].mxu0
      %3540 = vmatprep.mubr.bf16.mxu0 0
      %3541 = vmatmul.mubr.bf16.gmra.mrb[0].mxu0 %v3391
      %v3542 = vpop.f32.mrb[0].mxu0
      %v3543 = vadd.f32 0.0, %v3542
      %v3544 = vpop.f32.mrb[0].mxu0
      %v3545 = vpop.f32.mrb[0].mxu0
      %v3546 = vadd.f32 0.0, %v3545
      %v3547 = vpop.f32.mrb[0].mxu0
      %3548 = vmatprep.mubr.bf16.mxu0 0
      %3549 = vmatmul.mubr.bf16.gmra.mrb[0].mxu0 %v3394
      %v3550 = vpop.f32.mrb[0].mxu0
      %v3551 = vadd.f32 0.0, %v3550
      %v3552 = vpop.f32.mrb[0].mxu0
      %v3553 = vpop.f32.mrb[0].mxu0
      %v3554 = vadd.f32 0.0, %v3553
      %v3555 = vpop.f32.mrb[0].mxu0
      %3556 = vmatprep.mubr.bf16.mxu0 0
      %3557 = vmatmul.mubr.bf16.gmra.mrb[0].mxu0 %v3397
      %v3558 = vpop.f32.mrb[0].mxu0
      %v3559 = vadd.f32 0.0, %v3558
      %v3560 = vpop.f32.mrb[0].mxu0
      %v3561 = vpop.f32.mrb[0].mxu0
      %v3562 = vpop.f32.mrb[0].mxu0
      %3563 = vdwg.mxu0
      %v3591 = vunpack.c.l.b16 %v1932
      %v3592 = vunpack.c.l.b16 %v1933
      %v3593 = vunpack.c.l.b16 %v1934
      %v3594 = vunpack.c.l.b16 %v1935
      %v3595 = vunpack.c.l.b16 %v1936
      %v3596 = vunpack.c.l.b16 %v1937
      %v3597 = vunpack.c.l.b16 %v1938
      %v3598 = vunpack.c.l.b16 %v1939
      %v3599 = vunpack.c.l.b16 %v1940
      %v3600 = vunpack.c.l.b16 %v1941
      %v3601 = vunpack.c.l.b16 %v1942
      %v3602 = vunpack.c.l.b16 %v1943
      %v3603 = vunpack.c.l.b16 %v1944
      %v3604 = vunpack.c.l.b16 %v1945
      %v3605 = vunpack.c.l.b16 %v1946
      %v3606 = vunpack.c.l.b16 %v1947
      %v3607 = vunpack.c.l.b16 %v1948
      %v3608 = vunpack.c.l.b16 %v1949
      %v3609 = vunpack.c.l.b16 %v1950
      %v3610 = vunpack.c.l.b16 %v1951
      %v3611 = vunpack.c.l.b16 %v1952
      %v3612 = vunpack.c.l.b16 %v1953
      %v3613 = vunpack.c.l.b16 %v1954
      %v3614 = vunpack.c.l.b16 %v1955
      %v3615 = vunpack.c.l.b16 %v1956
      %v3616 = vunpack.c.l.b16 %v1957
      %v3617 = vunpack.c.l.b16 %v1958
      %v3618 = vpack.c.b16 %v3592, %v3591
      %v3619 = vpack.c.b16 %v3594, %v3593
      %v3620 = vpack.c.b16 %v3596, %v3595
      %v3621 = vpack.c.b16 %v3598, %v3597
      %v3622 = vpack.c.b16 %v3600, %v3599
      %v3623 = vpack.c.b16 %v3602, %v3601
      %v3624 = vpack.c.b16 %v3604, %v3603
      %v3625 = vpack.c.b16 %v3606, %v3605
      %v3626 = vpack.c.b16 %v3608, %v3607
      %v3627 = vpack.c.b16 %v3610, %v3609
      %v3628 = vpack.c.b16 %v3612, %v3611
      %v3629 = vpack.c.b16 %v3614, %v3613
      %v3630 = vpack.c.b16 %v3616, %v3615
      %v3631 = vpack.c.b16 %v3617, %v3617
      %v3646 = vunpack.c.l.b16 %v1643
      %v3647 = vunpack.c.l.b16 %v1644
      %v3648 = vunpack.c.l.b16 %v1645
      %v3649 = vunpack.c.l.b16 %v1646
      %v3650 = vunpack.c.l.b16 %v1647
      %v3651 = vunpack.c.l.b16 %v1648
      %v3652 = vunpack.c.l.b16 %v1649
      %v3653 = vunpack.c.l.b16 %v1650
      %v3654 = vunpack.c.l.b16 %v1651
      %v3655 = vunpack.c.l.b16 %v1652
      %v3656 = vunpack.c.l.b16 %v1653
      %v3657 = vunpack.c.l.b16 %v1654
      %v3658 = vunpack.c.l.b16 %v1655
      %v3659 = vunpack.c.l.b16 %v1656
      %v3660 = vpack.c.b16 %v3647, %v3646
      %v3661 = vpack.c.b16 %v3649, %v3648
      %v3662 = vpack.c.b16 %v3651, %v3650
      %v3663 = vpack.c.b16 %v3653, %v3652
      %v3664 = vpack.c.b16 %v3655, %v3654
      %v3665 = vpack.c.b16 %v3657, %v3656
      %v3666 = vpack.c.b16 %v3659, %v3658
      %v3668 = vsel %vm2116, %v3618, 0
      %v3671 = vsel %vm2116, %v3619, 0
      %v3674 = vsel %vm2116, %v3620, 0
      %v3677 = vsel %vm2116, %v3621, 0
      %v3680 = vsel %vm2116, %v3622, 0
      %v3683 = vsel %vm2116, %v3623, 0
      %v3686 = vsel %vm2116, %v3624, 0
      %v3689 = vsel %vm2116, %v3625, 0
      %v3692 = vsel %vm2116, %v3626, 0
      %v3695 = vsel %vm2116, %v3627, 0
      %v3698 = vsel %vm2116, %v3628, 0
      %v3701 = vsel %vm2116, %v3629, 0
      %v3704 = vsel %vm2116, %v3630, 0
      %v3707 = vsel %vm2116, %v3631, 0
      %v3710 = vsel %vm2116, %v3660, 0
      %v3713 = vsel %vm2116, %v3661, 0
      %v3716 = vsel %vm2116, %v3662, 0
      %v3719 = vsel %vm2116, %v3663, 0
      %v3722 = vsel %vm2116, %v3664, 0
      %v3725 = vsel %vm2116, %v3665, 0
      %v3728 = vsel %vm2116, %v3666, 0
      %3730 = vmatprep.subr.bf16.mxu0 0
      %3731 = vmatpush1.bf16.xpose.msra.mxu0 %v3710
      %3732 = vmatprep.subr.bf16.mxu0 0
      %3733 = vmatpush1.bf16.xpose.msra.mxu0 %v3713
      %3734 = vmatprep.subr.bf16.mxu0 0
      %3735 = vmatpush1.bf16.xpose.msra.mxu0 %v3716
      %3736 = vmatprep.subr.bf16.mxu0 0
      %3737 = vmatpush1.bf16.xpose.msra.mxu0 %v3719
      %3738 = vmatprep.subr.bf16.mxu0 0
      %3739 = vmatpush1.bf16.xpose.msra.mxu0 %v3722
      %3740 = vmatprep.subr.bf16.mxu0 0
      %3741 = vmatpush1.bf16.xpose.msra.mxu0 %v3725
      %3742 = vmatprep.subr.bf16.mxu0 0
      %3743 = vmatpush1.bf16.xpose.msra.mxu0 %v3728
      %3744 = vmatprep.subr.bf16.mxu0 0
      %3745 = vmatpush1.bf16.xpose.msra.mxu0 0
      %3746 = vmatprep.subr.bf16.mxu0 0
      %3747 = vmatpush1.bf16.xpose.msra.mxu0 0
      %3748 = vmatprep.subr.bf16.mxu0 0
      %3749 = vmatpush1.bf16.xpose.msra.mxu0 0
      %3750 = vmatprep.subr.bf16.mxu0 0
      %3751 = vmatpush1.bf16.xpose.msra.mxu0 0
      %3752 = vmatprep.subr.bf16.mxu0 0
      %3753 = vmatpush1.bf16.xpose.msra.mxu0 0
      %3754 = vmatprep.subr.bf16.mxu0 0
      %3755 = vmatpush1.bf16.xpose.msra.mxu0 0
      %3756 = vmatprep.subr.bf16.mxu0 0
      %3757 = vmatpush1.bf16.xpose.msra.mxu0 0
      %3758 = vmatprep.subr.bf16.mxu0 0
      %3759 = vmatpush1.bf16.xpose.msra.mxu0 0
      %3760 = vmatprep.subr.bf16.mxu0 0
      %3761 = vmatpush1.bf16.xpose.msra.mxu0 0
      %3762 = vmatprep.mubr.bf16.mxu0 0
      %3763 = vmatmul.mubr.bf16.gmra.mrb[0].mxu0 %v3668
      %v3764 = vpop.f32.mrb[0].mxu0
      %v3765 = vadd.f32 0.0, %v3764
      %v3766 = vpop.f32.mrb[0].mxu0
      %v3767 = vpop.f32.mrb[0].mxu0
      %v3768 = vadd.f32 0.0, %v3767
      %v3769 = vpop.f32.mrb[0].mxu0
      %3770 = vmatprep.mubr.bf16.mxu0 0
      %3771 = vmatmul.mubr.bf16.gmra.mrb[0].mxu0 %v3671
      %v3772 = vpop.f32.mrb[0].mxu0
      %v3773 = vadd.f32 0.0, %v3772
      %v3774 = vpop.f32.mrb[0].mxu0
      %v3775 = vpop.f32.mrb[0].mxu0
      %v3776 = vadd.f32 0.0, %v3775
      %v3777 = vpop.f32.mrb[0].mxu0
      %3778 = vmatprep.mubr.bf16.mxu0 0
      %3779 = vmatmul.mubr.bf16.gmra.mrb[0].mxu0 %v3674
      %v3780 = vpop.f32.mrb[0].mxu0
      %v3781 = vadd.f32 0.0, %v3780
      %v3782 = vpop.f32.mrb[0].mxu0
      %v3783 = vpop.f32.mrb[0].mxu0
      %v3784 = vadd.f32 0.0, %v3783
      %v3785 = vpop.f32.mrb[0].mxu0
      %3786 = vmatprep.mubr.bf16.mxu0 0
      %3787 = vmatmul.mubr.bf16.gmra.mrb[0].mxu0 %v3677
      %v3788 = vpop.f32.mrb[0].mxu0
      %v3789 = vadd.f32 0.0, %v3788
      %v3790 = vpop.f32.mrb[0].mxu0
      %v3791 = vpop.f32.mrb[0].mxu0
      %v3792 = vadd.f32 0.0, %v3791
      %v3793 = vpop.f32.mrb[0].mxu0
      %3794 = vmatprep.mubr.bf16.mxu0 0
      %3795 = vmatmul.mubr.bf16.gmra.mrb[0].mxu0 %v3680
      %v3796 = vpop.f32.mrb[0].mxu0
      %v3797 = vadd.f32 0.0, %v3796
      %v3798 = vpop.f32.mrb[0].mxu0
      %v3799 = vpop.f32.mrb[0].mxu0
      %v3800 = vadd.f32 0.0, %v3799
      %v3801 = vpop.f32.mrb[0].mxu0
      %3802 = vmatprep.mubr.bf16.mxu0 0
      %3803 = vmatmul.mubr.bf16.gmra.mrb[0].mxu0 %v3683
      %v3804 = vpop.f32.mrb[0].mxu0
      %v3805 = vadd.f32 0.0, %v3804
      %v3806 = vpop.f32.mrb[0].mxu0
      %v3807 = vpop.f32.mrb[0].mxu0
      %v3808 = vadd.f32 0.0, %v3807
      %v3809 = vpop.f32.mrb[0].mxu0
      %3810 = vmatprep.mubr.bf16.mxu0 0
      %3811 = vmatmul.mubr.bf16.gmra.mrb[0].mxu0 %v3686
      %v3812 = vpop.f32.mrb[0].mxu0
      %v3813 = vadd.f32 0.0, %v3812
      %v3814 = vpop.f32.mrb[0].mxu0
      %v3815 = vpop.f32.mrb[0].mxu0
      %v3816 = vadd.f32 0.0, %v3815
      %v3817 = vpop.f32.mrb[0].mxu0
      %3818 = vmatprep.mubr.bf16.mxu0 0
      %3819 = vmatmul.mubr.bf16.gmra.mrb[0].mxu0 %v3689
      %v3820 = vpop.f32.mrb[0].mxu0
      %v3821 = vadd.f32 0.0, %v3820
      %v3822 = vpop.f32.mrb[0].mxu0
      %v3823 = vpop.f32.mrb[0].mxu0
      %v3824 = vadd.f32 0.0, %v3823
      %v3825 = vpop.f32.mrb[0].mxu0
      %3826 = vmatprep.mubr.bf16.mxu0 0
      %3827 = vmatmul.mubr.bf16.gmra.mrb[0].mxu0 %v3692
      %v3828 = vpop.f32.mrb[0].mxu0
      %v3829 = vadd.f32 0.0, %v3828
      %v3830 = vpop.f32.mrb[0].mxu0
      %v3831 = vpop.f32.mrb[0].mxu0
      %v3832 = vadd.f32 0.0, %v3831
      %v3833 = vpop.f32.mrb[0].mxu0
      %3834 = vmatprep.mubr.bf16.mxu0 0
      %3835 = vmatmul.mubr.bf16.gmra.mrb[0].mxu0 %v3695
      %v3836 = vpop.f32.mrb[0].mxu0
      %v3837 = vadd.f32 0.0, %v3836
      %v3838 = vpop.f32.mrb[0].mxu0
      %v3839 = vpop.f32.mrb[0].mxu0
      %v3840 = vadd.f32 0.0, %v3839
      %v3841 = vpop.f32.mrb[0].mxu0
      %3842 = vmatprep.mubr.bf16.mxu0 0
      %3843 = vmatmul.mubr.bf16.gmra.mrb[0].mxu0 %v3698
      %v3844 = vpop.f32.mrb[0].mxu0
      %v3845 = vadd.f32 0.0, %v3844
      %v3846 = vpop.f32.mrb[0].mxu0
      %v3847 = vpop.f32.mrb[0].mxu0
      %v3848 = vadd.f32 0.0, %v3847
      %v3849 = vpop.f32.mrb[0].mxu0
      %3850 = vmatprep.mubr.bf16.mxu0 0
      %3851 = vmatmul.mubr.bf16.gmra.mrb[0].mxu0 %v3701
      %v3852 = vpop.f32.mrb[0].mxu0
      %v3853 = vadd.f32 0.0, %v3852
      %v3854 = vpop.f32.mrb[0].mxu0
      %v3855 = vpop.f32.mrb[0].mxu0
      %v3856 = vadd.f32 0.0, %v3855
      %v3857 = vpop.f32.mrb[0].mxu0
      %3858 = vmatprep.mubr.bf16.mxu0 0
      %3859 = vmatmul.mubr.bf16.gmra.mrb[0].mxu0 %v3704
      %v3860 = vpop.f32.mrb[0].mxu0
      %v3861 = vadd.f32 0.0, %v3860
      %v3862 = vpop.f32.mrb[0].mxu0
      %v3863 = vpop.f32.mrb[0].mxu0
      %v3864 = vadd.f32 0.0, %v3863
      %v3865 = vpop.f32.mrb[0].mxu0
      %3866 = vmatprep.mubr.bf16.mxu0 0
      %3867 = vmatmul.mubr.bf16.gmra.mrb[0].mxu0 %v3707
      %v3868 = vpop.f32.mrb[0].mxu0
      %v3869 = vadd.f32 0.0, %v3868
      %v3870 = vpop.f32.mrb[0].mxu0
      %v3871 = vpop.f32.mrb[0].mxu0
      %v3872 = vpop.f32.mrb[0].mxu0
      %3873 = vdwg.mxu0
      %v3901 = vunpack.c.l.b16 %v1959
      %v3902 = vunpack.c.l.b16 %v1960
      %v3903 = vunpack.c.l.b16 %v1961
      %v3904 = vunpack.c.l.b16 %v1962
      %v3905 = vunpack.c.l.b16 %v1963
      %v3906 = vunpack.c.l.b16 %v1964
      %v3907 = vunpack.c.l.b16 %v1965
      %v3908 = vunpack.c.l.b16 %v1966
      %v3909 = vunpack.c.l.b16 %v1967
      %v3910 = vunpack.c.l.b16 %v1968
      %v3911 = vunpack.c.l.b16 %v1969
      %v3912 = vunpack.c.l.b16 %v1970
      %v3913 = vunpack.c.l.b16 %v1971
      %v3914 = vunpack.c.l.b16 %v1972
      %v3915 = vunpack.c.l.b16 %v1973
      %v3916 = vunpack.c.l.b16 %v1974
      %v3917 = vunpack.c.l.b16 %v1975
      %v3918 = vunpack.c.l.b16 %v1976
      %v3919 = vunpack.c.l.b16 %v1977
      %v3920 = vunpack.c.l.b16 %v1978
      %v3921 = vunpack.c.l.b16 %v1979
      %v3922 = vunpack.c.l.b16 %v1980
      %v3923 = vunpack.c.l.b16 %v1981
      %v3924 = vunpack.c.l.b16 %v1982
      %v3925 = vunpack.c.l.b16 %v1983
      %v3926 = vunpack.c.l.b16 %v1984
      %v3927 = vunpack.c.l.b16 %v1985
      %v3928 = vpack.c.b16 %v3902, %v3901
      %v3929 = vpack.c.b16 %v3904, %v3903
      %v3930 = vpack.c.b16 %v3906, %v3905
      %v3931 = vpack.c.b16 %v3908, %v3907
      %v3932 = vpack.c.b16 %v3910, %v3909
      %v3933 = vpack.c.b16 %v3912, %v3911
      %v3934 = vpack.c.b16 %v3914, %v3913
      %v3935 = vpack.c.b16 %v3916, %v3915
      %v3936 = vpack.c.b16 %v3918, %v3917
      %v3937 = vpack.c.b16 %v3920, %v3919
      %v3938 = vpack.c.b16 %v3922, %v3921
      %v3939 = vpack.c.b16 %v3924, %v3923
      %v3940 = vpack.c.b16 %v3926, %v3925
      %v3941 = vpack.c.b16 %v3927, %v3927
      %v3956 = vunpack.c.l.b16 %v1657
      %v3957 = vunpack.c.l.b16 %v1658
      %v3958 = vunpack.c.l.b16 %v1659
      %v3959 = vunpack.c.l.b16 %v1660
      %v3960 = vunpack.c.l.b16 %v1661
      %v3961 = vunpack.c.l.b16 %v1662
      %v3962 = vunpack.c.l.b16 %v1663
      %v3963 = vunpack.c.l.b16 %v1664
      %v3964 = vunpack.c.l.b16 %v1665
      %v3965 = vunpack.c.l.b16 %v1666
      %v3966 = vunpack.c.l.b16 %v1667
      %v3967 = vunpack.c.l.b16 %v1668
      %v3968 = vunpack.c.l.b16 %v1669
      %v3969 = vunpack.c.l.b16 %v1670
      %v3970 = vpack.c.b16 %v3957, %v3956
      %v3971 = vpack.c.b16 %v3959, %v3958
      %v3972 = vpack.c.b16 %v3961, %v3960
      %v3973 = vpack.c.b16 %v3963, %v3962
      %v3974 = vpack.c.b16 %v3965, %v3964
      %v3975 = vpack.c.b16 %v3967, %v3966
      %v3976 = vpack.c.b16 %v3969, %v3968
      %v3978 = vsel %vm2116, %v3928, 0
      %v3981 = vsel %vm2116, %v3929, 0
      %v3984 = vsel %vm2116, %v3930, 0
      %v3987 = vsel %vm2116, %v3931, 0
      %v3990 = vsel %vm2116, %v3932, 0
      %v3993 = vsel %vm2116, %v3933, 0
      %v3996 = vsel %vm2116, %v3934, 0
      %v3999 = vsel %vm2116, %v3935, 0
      %v4002 = vsel %vm2116, %v3936, 0
      %v4005 = vsel %vm2116, %v3937, 0
      %v4008 = vsel %vm2116, %v3938, 0
      %v4011 = vsel %vm2116, %v3939, 0
      %v4014 = vsel %vm2116, %v3940, 0
      %v4017 = vsel %vm2116, %v3941, 0
      %v4020 = vsel %vm2116, %v3970, 0
      %v4023 = vsel %vm2116, %v3971, 0
      %v4026 = vsel %vm2116, %v3972, 0
      %v4029 = vsel %vm2116, %v3973, 0
      %v4032 = vsel %vm2116, %v3974, 0
      %v4035 = vsel %vm2116, %v3975, 0
      %v4038 = vsel %vm2116, %v3976, 0
      %4040 = vmatprep.subr.bf16.mxu0 0
      %4041 = vmatpush1.bf16.xpose.msra.mxu0 %v4020
      %4042 = vmatprep.subr.bf16.mxu0 0
      %4043 = vmatpush1.bf16.xpose.msra.mxu0 %v4023
      %4044 = vmatprep.subr.bf16.mxu0 0
      %4045 = vmatpush1.bf16.xpose.msra.mxu0 %v4026
      %4046 = vmatprep.subr.bf16.mxu0 0
      %4047 = vmatpush1.bf16.xpose.msra.mxu0 %v4029
      %4048 = vmatprep.subr.bf16.mxu0 0
      %4049 = vmatpush1.bf16.xpose.msra.mxu0 %v4032
      %4050 = vmatprep.subr.bf16.mxu0 0
      %4051 = vmatpush1.bf16.xpose.msra.mxu0 %v4035
      %4052 = vmatprep.subr.bf16.mxu0 0
      %4053 = vmatpush1.bf16.xpose.msra.mxu0 %v4038
      %4054 = vmatprep.subr.bf16.mxu0 0
      %4055 = vmatpush1.bf16.xpose.msra.mxu0 0
      %4056 = vmatprep.subr.bf16.mxu0 0
      %4057 = vmatpush1.bf16.xpose.msra.mxu0 0
      %4058 = vmatprep.subr.bf16.mxu0 0
      %4059 = vmatpush1.bf16.xpose.msra.mxu0 0
      %4060 = vmatprep.subr.bf16.mxu0 0
      %4061 = vmatpush1.bf16.xpose.msra.mxu0 0
      %4062 = vmatprep.subr.bf16.mxu0 0
      %4063 = vmatpush1.bf16.xpose.msra.mxu0 0
      %4064 = vmatprep.subr.bf16.mxu0 0
      %4065 = vmatpush1.bf16.xpose.msra.mxu0 0
      %4066 = vmatprep.subr.bf16.mxu0 0
      %4067 = vmatpush1.bf16.xpose.msra.mxu0 0
      %4068 = vmatprep.subr.bf16.mxu0 0
      %4069 = vmatpush1.bf16.xpose.msra.mxu0 0
      %4070 = vmatprep.subr.bf16.mxu0 0
      %4071 = vmatpush1.bf16.xpose.msra.mxu0 0
      %4072 = vmatprep.mubr.bf16.mxu0 0
      %4073 = vmatmul.mubr.bf16.gmra.mrb[0].mxu0 %v3978
      %v4074 = vpop.f32.mrb[0].mxu0
      %v4075 = vadd.f32 0.0, %v4074
      %v4076 = vpop.f32.mrb[0].mxu0
      %v4077 = vpop.f32.mrb[0].mxu0
      %v4078 = vadd.f32 0.0, %v4077
      %v4079 = vpop.f32.mrb[0].mxu0
      %4080 = vmatprep.mubr.bf16.mxu0 0
      %4081 = vmatmul.mubr.bf16.gmra.mrb[0].mxu0 %v3981
      %v4082 = vpop.f32.mrb[0].mxu0
      %v4083 = vadd.f32 0.0, %v4082
      %v4084 = vpop.f32.mrb[0].mxu0
      %v4085 = vpop.f32.mrb[0].mxu0
      %v4086 = vadd.f32 0.0, %v4085
      %v4087 = vpop.f32.mrb[0].mxu0
      %4088 = vmatprep.mubr.bf16.mxu0 0
      %4089 = vmatmul.mubr.bf16.gmra.mrb[0].mxu0 %v3984
      %v4090 = vpop.f32.mrb[0].mxu0
      %v4091 = vadd.f32 0.0, %v4090
      %v4092 = vpop.f32.mrb[0].mxu0
      %v4093 = vpop.f32.mrb[0].mxu0
      %v4094 = vadd.f32 0.0, %v4093
      %v4095 = vpop.f32.mrb[0].mxu0
      %4096 = vmatprep.mubr.bf16.mxu0 0
      %4097 = vmatmul.mubr.bf16.gmra.mrb[0].mxu0 %v3987
      %v4098 = vpop.f32.mrb[0].mxu0
      %v4099 = vadd.f32 0.0, %v4098
      %v4100 = vpop.f32.mrb[0].mxu0
      %v4101 = vpop.f32.mrb[0].mxu0
      %v4102 = vadd.f32 0.0, %v4101
      %v4103 = vpop.f32.mrb[0].mxu0
      %4104 = vmatprep.mubr.bf16.mxu0 0
      %4105 = vmatmul.mubr.bf16.gmra.mrb[0].mxu0 %v3990
      %v4106 = vpop.f32.mrb[0].mxu0
      %v4107 = vadd.f32 0.0, %v4106
      %v4108 = vpop.f32.mrb[0].mxu0
      %v4109 = vpop.f32.mrb[0].mxu0
      %v4110 = vadd.f32 0.0, %v4109
      %v4111 = vpop.f32.mrb[0].mxu0
      %4112 = vmatprep.mubr.bf16.mxu0 0
      %4113 = vmatmul.mubr.bf16.gmra.mrb[0].mxu0 %v3993
      %v4114 = vpop.f32.mrb[0].mxu0
      %v4115 = vadd.f32 0.0, %v4114
      %v4116 = vpop.f32.mrb[0].mxu0
      %v4117 = vpop.f32.mrb[0].mxu0
      %v4118 = vadd.f32 0.0, %v4117
      %v4119 = vpop.f32.mrb[0].mxu0
      %4120 = vmatprep.mubr.bf16.mxu0 0
      %4121 = vmatmul.mubr.bf16.gmra.mrb[0].mxu0 %v3996
      %v4122 = vpop.f32.mrb[0].mxu0
      %v4123 = vadd.f32 0.0, %v4122
      %v4124 = vpop.f32.mrb[0].mxu0
      %v4125 = vpop.f32.mrb[0].mxu0
      %v4126 = vadd.f32 0.0, %v4125
      %v4127 = vpop.f32.mrb[0].mxu0
      %4128 = vmatprep.mubr.bf16.mxu0 0
      %4129 = vmatmul.mubr.bf16.gmra.mrb[0].mxu0 %v3999
      %v4130 = vpop.f32.mrb[0].mxu0
      %v4131 = vadd.f32 0.0, %v4130
      %v4132 = vpop.f32.mrb[0].mxu0
      %v4133 = vpop.f32.mrb[0].mxu0
      %v4134 = vadd.f32 0.0, %v4133
      %v4135 = vpop.f32.mrb[0].mxu0
      %4136 = vmatprep.mubr.bf16.mxu0 0
      %4137 = vmatmul.mubr.bf16.gmra.mrb[0].mxu0 %v4002
      %v4138 = vpop.f32.mrb[0].mxu0
      %v4139 = vadd.f32 0.0, %v4138
      %v4140 = vpop.f32.mrb[0].mxu0
      %v4141 = vpop.f32.mrb[0].mxu0
      %v4142 = vadd.f32 0.0, %v4141
      %v4143 = vpop.f32.mrb[0].mxu0
      %4144 = vmatprep.mubr.bf16.mxu0 0
      %4145 = vmatmul.mubr.bf16.gmra.mrb[0].mxu0 %v4005
      %v4146 = vpop.f32.mrb[0].mxu0
      %v4147 = vadd.f32 0.0, %v4146
      %v4148 = vpop.f32.mrb[0].mxu0
      %v4149 = vpop.f32.mrb[0].mxu0
      %v4150 = vadd.f32 0.0, %v4149
      %v4151 = vpop.f32.mrb[0].mxu0
      %4152 = vmatprep.mubr.bf16.mxu0 0
      %4153 = vmatmul.mubr.bf16.gmra.mrb[0].mxu0 %v4008
      %v4154 = vpop.f32.mrb[0].mxu0
      %v4155 = vadd.f32 0.0, %v4154
      %v4156 = vpop.f32.mrb[0].mxu0
      %v4157 = vpop.f32.mrb[0].mxu0
      %v4158 = vadd.f32 0.0, %v4157
      %v4159 = vpop.f32.mrb[0].mxu0
      %4160 = vmatprep.mubr.bf16.mxu0 0
      %4161 = vmatmul.mubr.bf16.gmra.mrb[0].mxu0 %v4011
      %v4162 = vpop.f32.mrb[0].mxu0
      %v4163 = vadd.f32 0.0, %v4162
      %v4164 = vpop.f32.mrb[0].mxu0
      %v4165 = vpop.f32.mrb[0].mxu0
      %v4166 = vadd.f32 0.0, %v4165
      %v4167 = vpop.f32.mrb[0].mxu0
      %4168 = vmatprep.mubr.bf16.mxu0 0
      %4169 = vmatmul.mubr.bf16.gmra.mrb[0].mxu0 %v4014
      %v4170 = vpop.f32.mrb[0].mxu0
      %v4171 = vadd.f32 0.0, %v4170
      %v4172 = vpop.f32.mrb[0].mxu0
      %v4173 = vpop.f32.mrb[0].mxu0
      %v4174 = vadd.f32 0.0, %v4173
      %v4175 = vpop.f32.mrb[0].mxu0
      %4176 = vmatprep.mubr.bf16.mxu0 0
      %4177 = vmatmul.mubr.bf16.gmra.mrb[0].mxu0 %v4017
      %v4178 = vpop.f32.mrb[0].mxu0
      %v4179 = vadd.f32 0.0, %v4178
      %v4180 = vpop.f32.mrb[0].mxu0
      %v4181 = vpop.f32.mrb[0].mxu0
      %v4182 = vpop.f32.mrb[0].mxu0
      %4183 = vdwg.mxu0
      %v4211 = vunpack.c.l.b16 %v1986
      %v4212 = vunpack.c.l.b16 %v1987
      %v4213 = vunpack.c.l.b16 %v1988
      %v4214 = vunpack.c.l.b16 %v1989
      %v4215 = vunpack.c.l.b16 %v1990
      %v4216 = vunpack.c.l.b16 %v1991
      %v4217 = vunpack.c.l.b16 %v1992
      %v4218 = vunpack.c.l.b16 %v1993
      %v4219 = vunpack.c.l.b16 %v1994
      %v4220 = vunpack.c.l.b16 %v1995
      %v4221 = vunpack.c.l.b16 %v1996
      %v4222 = vunpack.c.l.b16 %v1997
      %v4223 = vunpack.c.l.b16 %v1998
      %v4224 = vunpack.c.l.b16 %v1999
      %v4225 = vunpack.c.l.b16 %v2000
      %v4226 = vunpack.c.l.b16 %v2001
      %v4227 = vunpack.c.l.b16 %v2002
      %v4228 = vunpack.c.l.b16 %v2003
      %v4229 = vunpack.c.l.b16 %v2004
      %v4230 = vunpack.c.l.b16 %v2005
      %v4231 = vunpack.c.l.b16 %v2006
      %v4232 = vunpack.c.l.b16 %v2007
      %v4233 = vunpack.c.l.b16 %v2008
      %v4234 = vunpack.c.l.b16 %v2009
      %v4235 = vunpack.c.l.b16 %v2010
      %v4236 = vunpack.c.l.b16 %v2011
      %v4237 = vunpack.c.l.b16 %v2012
      %v4238 = vpack.c.b16 %v4212, %v4211
      %v4239 = vpack.c.b16 %v4214, %v4213
      %v4240 = vpack.c.b16 %v4216, %v4215
      %v4241 = vpack.c.b16 %v4218, %v4217
      %v4242 = vpack.c.b16 %v4220, %v4219
      %v4243 = vpack.c.b16 %v4222, %v4221
      %v4244 = vpack.c.b16 %v4224, %v4223
      %v4245 = vpack.c.b16 %v4226, %v4225
      %v4246 = vpack.c.b16 %v4228, %v4227
      %v4247 = vpack.c.b16 %v4230, %v4229
      %v4248 = vpack.c.b16 %v4232, %v4231
      %v4249 = vpack.c.b16 %v4234, %v4233
      %v4250 = vpack.c.b16 %v4236, %v4235
      %v4251 = vpack.c.b16 %v4237, %v4237
      %v4266 = vunpack.c.l.b16 %v1671
      %v4267 = vunpack.c.l.b16 %v1672
      %v4268 = vunpack.c.l.b16 %v1673
      %v4269 = vunpack.c.l.b16 %v1674
      %v4270 = vunpack.c.l.b16 %v1675
      %v4271 = vunpack.c.l.b16 %v1676
      %v4272 = vunpack.c.l.b16 %v1677
      %v4273 = vunpack.c.l.b16 %v1678
      %v4274 = vunpack.c.l.b16 %v1679
      %v4275 = vunpack.c.l.b16 %v1680
      %v4276 = vunpack.c.l.b16 %v1681
      %v4277 = vunpack.c.l.b16 %v1682
      %v4278 = vunpack.c.l.b16 %v1683
      %v4279 = vunpack.c.l.b16 %v1684
      %v4280 = vpack.c.b16 %v4267, %v4266
      %v4281 = vpack.c.b16 %v4269, %v4268
      %v4282 = vpack.c.b16 %v4271, %v4270
      %v4283 = vpack.c.b16 %v4273, %v4272
      %v4284 = vpack.c.b16 %v4275, %v4274
      %v4285 = vpack.c.b16 %v4277, %v4276
      %v4286 = vpack.c.b16 %v4279, %v4278
      %v4288 = vsel %vm2116, %v4238, 0
      %v4291 = vsel %vm2116, %v4239, 0
      %v4294 = vsel %vm2116, %v4240, 0
      %v4297 = vsel %vm2116, %v4241, 0
      %v4300 = vsel %vm2116, %v4242, 0
      %v4303 = vsel %vm2116, %v4243, 0
      %v4306 = vsel %vm2116, %v4244, 0
      %v4309 = vsel %vm2116, %v4245, 0
      %v4312 = vsel %vm2116, %v4246, 0
      %v4315 = vsel %vm2116, %v4247, 0
      %v4318 = vsel %vm2116, %v4248, 0
      %v4321 = vsel %vm2116, %v4249, 0
      %v4324 = vsel %vm2116, %v4250, 0
      %v4327 = vsel %vm2116, %v4251, 0
      %v4330 = vsel %vm2116, %v4280, 0
      %v4333 = vsel %vm2116, %v4281, 0
      %v4336 = vsel %vm2116, %v4282, 0
      %v4339 = vsel %vm2116, %v4283, 0
      %v4342 = vsel %vm2116, %v4284, 0
      %v4345 = vsel %vm2116, %v4285, 0
      %v4348 = vsel %vm2116, %v4286, 0
      %4350 = vmatprep.subr.bf16.mxu0 0
      %4351 = vmatpush1.bf16.xpose.msra.mxu0 %v4330
      %4352 = vmatprep.subr.bf16.mxu0 0
      %4353 = vmatpush1.bf16.xpose.msra.mxu0 %v4333
      %4354 = vmatprep.subr.bf16.mxu0 0
      %4355 = vmatpush1.bf16.xpose.msra.mxu0 %v4336
      %4356 = vmatprep.subr.bf16.mxu0 0
      %4357 = vmatpush1.bf16.xpose.msra.mxu0 %v4339
      %4358 = vmatprep.subr.bf16.mxu0 0
      %4359 = vmatpush1.bf16.xpose.msra.mxu0 %v4342
      %4360 = vmatprep.subr.bf16.mxu0 0
      %4361 = vmatpush1.bf16.xpose.msra.mxu0 %v4345
      %4362 = vmatprep.subr.bf16.mxu0 0
      %4363 = vmatpush1.bf16.xpose.msra.mxu0 %v4348
      %4364 = vmatprep.subr.bf16.mxu0 0
      %4365 = vmatpush1.bf16.xpose.msra.mxu0 0
      %4366 = vmatprep.subr.bf16.mxu0 0
      %4367 = vmatpush1.bf16.xpose.msra.mxu0 0
      %4368 = vmatprep.subr.bf16.mxu0 0
      %4369 = vmatpush1.bf16.xpose.msra.mxu0 0
      %4370 = vmatprep.subr.bf16.mxu0 0
      %4371 = vmatpush1.bf16.xpose.msra.mxu0 0
      %4372 = vmatprep.subr.bf16.mxu0 0
      %4373 = vmatpush1.bf16.xpose.msra.mxu0 0
      %4374 = vmatprep.subr.bf16.mxu0 0
      %4375 = vmatpush1.bf16.xpose.msra.mxu0 0
      %4376 = vmatprep.subr.bf16.mxu0 0
      %4377 = vmatpush1.bf16.xpose.msra.mxu0 0
      %4378 = vmatprep.subr.bf16.mxu0 0
      %4379 = vmatpush1.bf16.xpose.msra.mxu0 0
      %4380 = vmatprep.subr.bf16.mxu0 0
      %4381 = vmatpush1.bf16.xpose.msra.mxu0 0
      %4382 = vmatprep.mubr.bf16.mxu0 0
      %4383 = vmatmul.mubr.bf16.gmra.mrb[0].mxu0 %v4288
      %v4384 = vpop.f32.mrb[0].mxu0
      %v4385 = vadd.f32 0.0, %v4384
      %v4386 = vpop.f32.mrb[0].mxu0
      %v4387 = vpop.f32.mrb[0].mxu0
      %v4388 = vadd.f32 0.0, %v4387
      %v4389 = vpop.f32.mrb[0].mxu0
      %4390 = vmatprep.mubr.bf16.mxu0 0
      %4391 = vmatmul.mubr.bf16.gmra.mrb[0].mxu0 %v4291
      %v4392 = vpop.f32.mrb[0].mxu0
      %v4393 = vadd.f32 0.0, %v4392
      %v4394 = vpop.f32.mrb[0].mxu0
      %v4395 = vpop.f32.mrb[0].mxu0
      %v4396 = vadd.f32 0.0, %v4395
      %v4397 = vpop.f32.mrb[0].mxu0
      %4398 = vmatprep.mubr.bf16.mxu0 0
      %4399 = vmatmul.mubr.bf16.gmra.mrb[0].mxu0 %v4294
      %v4400 = vpop.f32.mrb[0].mxu0
      %v4401 = vadd.f32 0.0, %v4400
      %v4402 = vpop.f32.mrb[0].mxu0
      %v4403 = vpop.f32.mrb[0].mxu0
      %v4404 = vadd.f32 0.0, %v4403
      %v4405 = vpop.f32.mrb[0].mxu0
      %4406 = vmatprep.mubr.bf16.mxu0 0
      %4407 = vmatmul.mubr.bf16.gmra.mrb[0].mxu0 %v4297
      %v4408 = vpop.f32.mrb[0].mxu0
      %v4409 = vadd.f32 0.0, %v4408
      %v4410 = vpop.f32.mrb[0].mxu0
      %v4411 = vpop.f32.mrb[0].mxu0
      %v4412 = vadd.f32 0.0, %v4411
      %v4413 = vpop.f32.mrb[0].mxu0
      %4414 = vmatprep.mubr.bf16.mxu0 0
      %4415 = vmatmul.mubr.bf16.gmra.mrb[0].mxu0 %v4300
      %v4416 = vpop.f32.mrb[0].mxu0
      %v4417 = vadd.f32 0.0, %v4416
      %v4418 = vpop.f32.mrb[0].mxu0
      %v4419 = vpop.f32.mrb[0].mxu0
      %v4420 = vadd.f32 0.0, %v4419
      %v4421 = vpop.f32.mrb[0].mxu0
      %4422 = vmatprep.mubr.bf16.mxu0 0
      %4423 = vmatmul.mubr.bf16.gmra.mrb[0].mxu0 %v4303
      %v4424 = vpop.f32.mrb[0].mxu0
      %v4425 = vadd.f32 0.0, %v4424
      %v4426 = vpop.f32.mrb[0].mxu0
      %v4427 = vpop.f32.mrb[0].mxu0
      %v4428 = vadd.f32 0.0, %v4427
      %v4429 = vpop.f32.mrb[0].mxu0
      %4430 = vmatprep.mubr.bf16.mxu0 0
      %4431 = vmatmul.mubr.bf16.gmra.mrb[0].mxu0 %v4306
      %v4432 = vpop.f32.mrb[0].mxu0
      %v4433 = vadd.f32 0.0, %v4432
      %v4434 = vpop.f32.mrb[0].mxu0
      %v4435 = vpop.f32.mrb[0].mxu0
      %v4436 = vadd.f32 0.0, %v4435
      %v4437 = vpop.f32.mrb[0].mxu0
      %4438 = vmatprep.mubr.bf16.mxu0 0
      %4439 = vmatmul.mubr.bf16.gmra.mrb[0].mxu0 %v4309
      %v4440 = vpop.f32.mrb[0].mxu0
      %v4441 = vadd.f32 0.0, %v4440
      %v4442 = vpop.f32.mrb[0].mxu0
      %v4443 = vpop.f32.mrb[0].mxu0
      %v4444 = vadd.f32 0.0, %v4443
      %v4445 = vpop.f32.mrb[0].mxu0
      %4446 = vmatprep.mubr.bf16.mxu0 0
      %4447 = vmatmul.mubr.bf16.gmra.mrb[0].mxu0 %v4312
      %v4448 = vpop.f32.mrb[0].mxu0
      %v4449 = vadd.f32 0.0, %v4448
      %v4450 = vpop.f32.mrb[0].mxu0
      %v4451 = vpop.f32.mrb[0].mxu0
      %v4452 = vadd.f32 0.0, %v4451
      %v4453 = vpop.f32.mrb[0].mxu0
      %4454 = vmatprep.mubr.bf16.mxu0 0
      %4455 = vmatmul.mubr.bf16.gmra.mrb[0].mxu0 %v4315
      %v4456 = vpop.f32.mrb[0].mxu0
      %v4457 = vadd.f32 0.0, %v4456
      %v4458 = vpop.f32.mrb[0].mxu0
      %v4459 = vpop.f32.mrb[0].mxu0
      %v4460 = vadd.f32 0.0, %v4459
      %v4461 = vpop.f32.mrb[0].mxu0
      %4462 = vmatprep.mubr.bf16.mxu0 0
      %4463 = vmatmul.mubr.bf16.gmra.mrb[0].mxu0 %v4318
      %v4464 = vpop.f32.mrb[0].mxu0
      %v4465 = vadd.f32 0.0, %v4464
      %v4466 = vpop.f32.mrb[0].mxu0
      %v4467 = vpop.f32.mrb[0].mxu0
      %v4468 = vadd.f32 0.0, %v4467
      %v4469 = vpop.f32.mrb[0].mxu0
      %4470 = vmatprep.mubr.bf16.mxu0 0
      %4471 = vmatmul.mubr.bf16.gmra.mrb[0].mxu0 %v4321
      %v4472 = vpop.f32.mrb[0].mxu0
      %v4473 = vadd.f32 0.0, %v4472
      %v4474 = vpop.f32.mrb[0].mxu0
      %v4475 = vpop.f32.mrb[0].mxu0
      %v4476 = vadd.f32 0.0, %v4475
      %v4477 = vpop.f32.mrb[0].mxu0
      %4478 = vmatprep.mubr.bf16.mxu0 0
      %4479 = vmatmul.mubr.bf16.gmra.mrb[0].mxu0 %v4324
      %v4480 = vpop.f32.mrb[0].mxu0
      %v4481 = vadd.f32 0.0, %v4480
      %v4482 = vpop.f32.mrb[0].mxu0
      %v4483 = vpop.f32.mrb[0].mxu0
      %v4484 = vadd.f32 0.0, %v4483
      %v4485 = vpop.f32.mrb[0].mxu0
      %4486 = vmatprep.mubr.bf16.mxu0 0
      %4487 = vmatmul.mubr.bf16.gmra.mrb[0].mxu0 %v4327
      %v4488 = vpop.f32.mrb[0].mxu0
      %v4489 = vadd.f32 0.0, %v4488
      %v4490 = vpop.f32.mrb[0].mxu0
      %v4491 = vpop.f32.mrb[0].mxu0
      %v4492 = vpop.f32.mrb[0].mxu0
      %4493 = vdwg.mxu0
      %vm4494 = vcmask 883712
      %v4495 = vsel %vm4494, %v2215, -inf
      %4496 = vmax.xlane.f32.xlu0 %v4495
      %v4497 = vpop.xlane.xlu0 %4496
      %v4498 = vsel %vm4494, %v2218, -inf
      %4499 = vmax.xlane.f32.xlu0 %v4498
      %v4500 = vpop.xlane.xlu0 %4499
      %v4501 = vsel %vm4494, %v2223, -inf
      %4502 = vmax.xlane.f32.xlu0 %v4501
      %v4503 = vpop.xlane.xlu0 %4502
      %v4504 = vsel %vm4494, %v2226, -inf
      %4505 = vmax.xlane.f32.xlu0 %v4504
      %v4506 = vpop.xlane.xlu0 %4505
      %v4507 = vsel %vm4494, %v2231, -inf
      %4508 = vmax.xlane.f32.xlu0 %v4507
      %v4509 = vpop.xlane.xlu0 %4508
      %v4510 = vsel %vm4494, %v2234, -inf
      %4511 = vmax.xlane.f32.xlu0 %v4510
      %v4512 = vpop.xlane.xlu0 %4511
      %v4513 = vsel %vm4494, %v2239, -inf
      %4514 = vmax.xlane.f32.xlu0 %v4513
      %v4515 = vpop.xlane.xlu0 %4514
      %v4516 = vsel %vm4494, %v2242, -inf
      %4517 = vmax.xlane.f32.xlu0 %v4516
      %v4518 = vpop.xlane.xlu0 %4517
      %v4519 = vsel %vm4494, %v2247, -inf
      %4520 = vmax.xlane.f32.xlu0 %v4519
      %v4521 = vpop.xlane.xlu0 %4520
      %v4522 = vsel %vm4494, %v2250, -inf
      %4523 = vmax.xlane.f32.xlu0 %v4522
      %v4524 = vpop.xlane.xlu0 %4523
      %v4525 = vsel %vm4494, %v2255, -inf
      %4526 = vmax.xlane.f32.xlu0 %v4525
      %v4527 = vpop.xlane.xlu0 %4526
      %v4528 = vsel %vm4494, %v2258, -inf
      %4529 = vmax.xlane.f32.xlu0 %v4528
      %v4530 = vpop.xlane.xlu0 %4529
      %v4531 = vsel %vm4494, %v2263, -inf
      %4532 = vmax.xlane.f32.xlu0 %v4531
      %v4533 = vpop.xlane.xlu0 %4532
      %v4534 = vsel %vm4494, %v2266, -inf
      %4535 = vmax.xlane.f32.xlu0 %v4534
      %v4536 = vpop.xlane.xlu0 %4535
      %v4537 = vsel %vm4494, %v2271, -inf
      %4538 = vmax.xlane.f32.xlu0 %v4537
      %v4539 = vpop.xlane.xlu0 %4538
      %v4540 = vsel %vm4494, %v2274, -inf
      %4541 = vmax.xlane.f32.xlu0 %v4540
      %v4542 = vpop.xlane.xlu0 %4541
      %v4543 = vsel %vm4494, %v2279, -inf
      %4544 = vmax.xlane.f32.xlu0 %v4543
      %v4545 = vpop.xlane.xlu0 %4544
      %v4546 = vsel %vm4494, %v2282, -inf
      %4547 = vmax.xlane.f32.xlu0 %v4546
      %v4548 = vpop.xlane.xlu0 %4547
      %v4549 = vsel %vm4494, %v2287, -inf
      %4550 = vmax.xlane.f32.xlu0 %v4549
      %v4551 = vpop.xlane.xlu0 %4550
      %v4552 = vsel %vm4494, %v2290, -inf
      %4553 = vmax.xlane.f32.xlu0 %v4552
      %v4554 = vpop.xlane.xlu0 %4553
      %v4555 = vsel %vm4494, %v2295, -inf
      %4556 = vmax.xlane.f32.xlu0 %v4555
      %v4557 = vpop.xlane.xlu0 %4556
      %v4558 = vsel %vm4494, %v2298, -inf
      %4559 = vmax.xlane.f32.xlu0 %v4558
      %v4560 = vpop.xlane.xlu0 %4559
      %v4561 = vsel %vm4494, %v2303, -inf
      %4562 = vmax.xlane.f32.xlu0 %v4561
      %v4563 = vpop.xlane.xlu0 %4562
      %v4564 = vsel %vm4494, %v2306, -inf
      %4565 = vmax.xlane.f32.xlu0 %v4564
      %v4566 = vpop.xlane.xlu0 %4565
      %v4567 = vsel %vm4494, %v2311, -inf
      %4568 = vmax.xlane.f32.xlu0 %v4567
      %v4569 = vpop.xlane.xlu0 %4568
      %v4570 = vsel %vm4494, %v2314, -inf
      %4571 = vmax.xlane.f32.xlu0 %v4570
      %v4572 = vpop.xlane.xlu0 %4571
      %v4573 = vsel %vm4494, %v2319, -inf
      %4574 = vmax.xlane.f32.xlu0 %v4573
      %v4575 = vpop.xlane.xlu0 %4574
      %v4576 = vsel %vm4494, %v2525, -inf
      %4577 = vmax.xlane.f32.xlu0 %v4576
      %v4578 = vpop.xlane.xlu0 %4577
      %v4579 = vsel %vm4494, %v2528, -inf
      %4580 = vmax.xlane.f32.xlu0 %v4579
      %v4581 = vpop.xlane.xlu0 %4580
      %v4582 = vsel %vm4494, %v2533, -inf
      %4583 = vmax.xlane.f32.xlu0 %v4582
      %v4584 = vpop.xlane.xlu0 %4583
      %v4585 = vsel %vm4494, %v2536, -inf
      %4586 = vmax.xlane.f32.xlu0 %v4585
      %v4587 = vpop.xlane.xlu0 %4586
      %v4588 = vsel %vm4494, %v2541, -inf
      %4589 = vmax.xlane.f32.xlu0 %v4588
      %v4590 = vpop.xlane.xlu0 %4589
      %v4591 = vsel %vm4494, %v2544, -inf
      %4592 = vmax.xlane.f32.xlu0 %v4591
      %v4593 = vpop.xlane.xlu0 %4592
      %v4594 = vsel %vm4494, %v2549, -inf
      %4595 = vmax.xlane.f32.xlu0 %v4594
      %v4596 = vpop.xlane.xlu0 %4595
      %v4597 = vsel %vm4494, %v2552, -inf
      %4598 = vmax.xlane.f32.xlu0 %v4597
      %v4599 = vpop.xlane.xlu0 %4598
      %v4600 = vsel %vm4494, %v2557, -inf
      %4601 = vmax.xlane.f32.xlu0 %v4600
      %v4602 = vpop.xlane.xlu0 %4601
      %v4603 = vsel %vm4494, %v2560, -inf
      %4604 = vmax.xlane.f32.xlu0 %v4603
      %v4605 = vpop.xlane.xlu0 %4604
      %v4606 = vsel %vm4494, %v2565, -inf
      %4607 = vmax.xlane.f32.xlu0 %v4606
      %v4608 = vpop.xlane.xlu0 %4607
      %v4609 = vsel %vm4494, %v2568, -inf
      %4610 = vmax.xlane.f32.xlu0 %v4609
      %v4611 = vpop.xlane.xlu0 %4610
      %v4612 = vsel %vm4494, %v2573, -inf
      %4613 = vmax.xlane.f32.xlu0 %v4612
      %v4614 = vpop.xlane.xlu0 %4613
      %v4615 = vsel %vm4494, %v2576, -inf
      %4616 = vmax.xlane.f32.xlu0 %v4615
      %v4617 = vpop.xlane.xlu0 %4616
      %v4618 = vsel %vm4494, %v2581, -inf
      %4619 = vmax.xlane.f32.xlu0 %v4618
      %v4620 = vpop.xlane.xlu0 %4619
      %v4621 = vsel %vm4494, %v2584, -inf
      %4622 = vmax.xlane.f32.xlu0 %v4621
      %v4623 = vpop.xlane.xlu0 %4622
      %v4624 = vsel %vm4494, %v2589, -inf
      %4625 = vmax.xlane.f32.xlu0 %v4624
      %v4626 = vpop.xlane.xlu0 %4625
      %v4627 = vsel %vm4494, %v2592, -inf
      %4628 = vmax.xlane.f32.xlu0 %v4627
      %v4629 = vpop.xlane.xlu0 %4628
      %v4630 = vsel %vm4494, %v2597, -inf
      %4631 = vmax.xlane.f32.xlu0 %v4630
      %v4632 = vpop.xlane.xlu0 %4631
      %v4633 = vsel %vm4494, %v2600, -inf
      %4634 = vmax.xlane.f32.xlu0 %v4633
      %v4635 = vpop.xlane.xlu0 %4634
      %v4636 = vsel %vm4494, %v2605, -inf
      %4637 = vmax.xlane.f32.xlu0 %v4636
      %v4638 = vpop.xlane.xlu0 %4637
      %v4639 = vsel %vm4494, %v2608, -inf
      %4640 = vmax.xlane.f32.xlu0 %v4639
      %v4641 = vpop.xlane.xlu0 %4640
      %v4642 = vsel %vm4494, %v2613, -inf
      %4643 = vmax.xlane.f32.xlu0 %v4642
      %v4644 = vpop.xlane.xlu0 %4643
      %v4645 = vsel %vm4494, %v2616, -inf
      %4646 = vmax.xlane.f32.xlu0 %v4645
      %v4647 = vpop.xlane.xlu0 %4646
      %v4648 = vsel %vm4494, %v2621, -inf
      %4649 = vmax.xlane.f32.xlu0 %v4648
      %v4650 = vpop.xlane.xlu0 %4649
      %v4651 = vsel %vm4494, %v2624, -inf
      %4652 = vmax.xlane.f32.xlu0 %v4651
      %v4653 = vpop.xlane.xlu0 %4652
      %v4654 = vsel %vm4494, %v2629, -inf
      %4655 = vmax.xlane.f32.xlu0 %v4654
      %v4656 = vpop.xlane.xlu0 %4655
      %v4657 = vsel %vm4494, %v2835, -inf
      %4658 = vmax.xlane.f32.xlu0 %v4657
      %v4659 = vpop.xlane.xlu0 %4658
      %v4660 = vsel %vm4494, %v2838, -inf
      %4661 = vmax.xlane.f32.xlu0 %v4660
      %v4662 = vpop.xlane.xlu0 %4661
      %v4663 = vsel %vm4494, %v2843, -inf
      %4664 = vmax.xlane.f32.xlu0 %v4663
      %v4665 = vpop.xlane.xlu0 %4664
      %v4666 = vsel %vm4494, %v2846, -inf
      %4667 = vmax.xlane.f32.xlu0 %v4666
      %v4668 = vpop.xlane.xlu0 %4667
      %v4669 = vsel %vm4494, %v2851, -inf
      %4670 = vmax.xlane.f32.xlu0 %v4669
      %v4671 = vpop.xlane.xlu0 %4670
      %v4672 = vsel %vm4494, %v2854, -inf
      %4673 = vmax.xlane.f32.xlu0 %v4672
      %v4674 = vpop.xlane.xlu0 %4673
      %v4675 = vsel %vm4494, %v2859, -inf
      %4676 = vmax.xlane.f32.xlu0 %v4675
      %v4677 = vpop.xlane.xlu0 %4676
      %v4678 = vsel %vm4494, %v2862, -inf
      %4679 = vmax.xlane.f32.xlu0 %v4678
      %v4680 = vpop.xlane.xlu0 %4679
      %v4681 = vsel %vm4494, %v2867, -inf
      %4682 = vmax.xlane.f32.xlu0 %v4681
      %v4683 = vpop.xlane.xlu0 %4682
      %v4684 = vsel %vm4494, %v2870, -inf
      %4685 = vmax.xlane.f32.xlu0 %v4684
      %v4686 = vpop.xlane.xlu0 %4685
      %v4687 = vsel %vm4494, %v2875, -inf
      %4688 = vmax.xlane.f32.xlu0 %v4687
      %v4689 = vpop.xlane.xlu0 %4688
      %v4690 = vsel %vm4494, %v2878, -inf
      %4691 = vmax.xlane.f32.xlu0 %v4690
      %v4692 = vpop.xlane.xlu0 %4691
      %v4693 = vsel %vm4494, %v2883, -inf
      %4694 = vmax.xlane.f32.xlu0 %v4693
      %v4695 = vpop.xlane.xlu0 %4694
      %v4696 = vsel %vm4494, %v2886, -inf
      %4697 = vmax.xlane.f32.xlu0 %v4696
      %v4698 = vpop.xlane.xlu0 %4697
      %v4699 = vsel %vm4494, %v2891, -inf
      %4700 = vmax.xlane.f32.xlu0 %v4699
      %v4701 = vpop.xlane.xlu0 %4700
      %v4702 = vsel %vm4494, %v2894, -inf
      %4703 = vmax.xlane.f32.xlu0 %v4702
      %v4704 = vpop.xlane.xlu0 %4703
      %v4705 = vsel %vm4494, %v2899, -inf
      %4706 = vmax.xlane.f32.xlu0 %v4705
      %v4707 = vpop.xlane.xlu0 %4706
      %v4708 = vsel %vm4494, %v2902, -inf
      %4709 = vmax.xlane.f32.xlu0 %v4708
      %v4710 = vpop.xlane.xlu0 %4709
      %v4711 = vsel %vm4494, %v2907, -inf
      %4712 = vmax.xlane.f32.xlu0 %v4711
      %v4713 = vpop.xlane.xlu0 %4712
      %v4714 = vsel %vm4494, %v2910, -inf
      %4715 = vmax.xlane.f32.xlu0 %v4714
      %v4716 = vpop.xlane.xlu0 %4715
      %v4717 = vsel %vm4494, %v2915, -inf
      %4718 = vmax.xlane.f32.xlu0 %v4717
      %v4719 = vpop.xlane.xlu0 %4718
      %v4720 = vsel %vm4494, %v2918, -inf
      %4721 = vmax.xlane.f32.xlu0 %v4720
      %v4722 = vpop.xlane.xlu0 %4721
      %v4723 = vsel %vm4494, %v2923, -inf
      %4724 = vmax.xlane.f32.xlu0 %v4723
      %v4725 = vpop.xlane.xlu0 %4724
      %v4726 = vsel %vm4494, %v2926, -inf
      %4727 = vmax.xlane.f32.xlu0 %v4726
      %v4728 = vpop.xlane.xlu0 %4727
      %v4729 = vsel %vm4494, %v2931, -inf
      %4730 = vmax.xlane.f32.xlu0 %v4729
      %v4731 = vpop.xlane.xlu0 %4730
      %v4732 = vsel %vm4494, %v2934, -inf
      %4733 = vmax.xlane.f32.xlu0 %v4732
      %v4734 = vpop.xlane.xlu0 %4733
      %v4735 = vsel %vm4494, %v2939, -inf
      %4736 = vmax.xlane.f32.xlu0 %v4735
      %v4737 = vpop.xlane.xlu0 %4736
      %v4738 = vsel %vm4494, %v3145, -inf
      %4739 = vmax.xlane.f32.xlu0 %v4738
      %v4740 = vpop.xlane.xlu0 %4739
      %v4741 = vsel %vm4494, %v3148, -inf
      %4742 = vmax.xlane.f32.xlu0 %v4741
      %v4743 = vpop.xlane.xlu0 %4742
      %v4744 = vsel %vm4494, %v3153, -inf
      %4745 = vmax.xlane.f32.xlu0 %v4744
      %v4746 = vpop.xlane.xlu0 %4745
      %v4747 = vsel %vm4494, %v3156, -inf
      %4748 = vmax.xlane.f32.xlu0 %v4747
      %v4749 = vpop.xlane.xlu0 %4748
      %v4750 = vsel %vm4494, %v3161, -inf
      %4751 = vmax.xlane.f32.xlu0 %v4750
      %v4752 = vpop.xlane.xlu0 %4751
      %v4753 = vsel %vm4494, %v3164, -inf
      %4754 = vmax.xlane.f32.xlu0 %v4753
      %v4755 = vpop.xlane.xlu0 %4754
      %v4756 = vsel %vm4494, %v3169, -inf
      %4757 = vmax.xlane.f32.xlu0 %v4756
      %v4758 = vpop.xlane.xlu0 %4757
      %v4759 = vsel %vm4494, %v3172, -inf
      %4760 = vmax.xlane.f32.xlu0 %v4759
      %v4761 = vpop.xlane.xlu0 %4760
      %v4762 = vsel %vm4494, %v3177, -inf
      %4763 = vmax.xlane.f32.xlu0 %v4762
      %v4764 = vpop.xlane.xlu0 %4763
      %v4765 = vsel %vm4494, %v3180, -inf
      %4766 = vmax.xlane.f32.xlu0 %v4765
      %v4767 = vpop.xlane.xlu0 %4766
      %v4768 = vsel %vm4494, %v3185, -inf
      %4769 = vmax.xlane.f32.xlu0 %v4768
      %v4770 = vpop.xlane.xlu0 %4769
      %v4771 = vsel %vm4494, %v3188, -inf
      %4772 = vmax.xlane.f32.xlu0 %v4771
      %v4773 = vpop.xlane.xlu0 %4772
      %v4774 = vsel %vm4494, %v3193, -inf
      %4775 = vmax.xlane.f32.xlu0 %v4774
      %v4776 = vpop.xlane.xlu0 %4775
      %v4777 = vsel %vm4494, %v3196, -inf
      %4778 = vmax.xlane.f32.xlu0 %v4777
      %v4779 = vpop.xlane.xlu0 %4778
      %v4780 = vsel %vm4494, %v3201, -inf
      %4781 = vmax.xlane.f32.xlu0 %v4780
      %v4782 = vpop.xlane.xlu0 %4781
      %v4783 = vsel %vm4494, %v3204, -inf
      %4784 = vmax.xlane.f32.xlu0 %v4783
      %v4785 = vpop.xlane.xlu0 %4784
      %v4786 = vsel %vm4494, %v3209, -inf
      %4787 = vmax.xlane.f32.xlu0 %v4786
      %v4788 = vpop.xlane.xlu0 %4787
      %v4789 = vsel %vm4494, %v3212, -inf
      %4790 = vmax.xlane.f32.xlu0 %v4789
      %v4791 = vpop.xlane.xlu0 %4790
      %v4792 = vsel %vm4494, %v3217, -inf
      %4793 = vmax.xlane.f32.xlu0 %v4792
      %v4794 = vpop.xlane.xlu0 %4793
      %v4795 = vsel %vm4494, %v3220, -inf
      %4796 = vmax.xlane.f32.xlu0 %v4795
      %v4797 = vpop.xlane.xlu0 %4796
      %v4798 = vsel %vm4494, %v3225, -inf
      %4799 = vmax.xlane.f32.xlu0 %v4798
      %v4800 = vpop.xlane.xlu0 %4799
      %v4801 = vsel %vm4494, %v3228, -inf
      %4802 = vmax.xlane.f32.xlu0 %v4801
      %v4803 = vpop.xlane.xlu0 %4802
      %v4804 = vsel %vm4494, %v3233, -inf
      %4805 = vmax.xlane.f32.xlu0 %v4804
      %v4806 = vpop.xlane.xlu0 %4805
      %v4807 = vsel %vm4494, %v3236, -inf
      %4808 = vmax.xlane.f32.xlu0 %v4807
      %v4809 = vpop.xlane.xlu0 %4808
      %v4810 = vsel %vm4494, %v3241, -inf
      %4811 = vmax.xlane.f32.xlu0 %v4810
      %v4812 = vpop.xlane.xlu0 %4811
      %v4813 = vsel %vm4494, %v3244, -inf
      %4814 = vmax.xlane.f32.xlu0 %v4813
      %v4815 = vpop.xlane.xlu0 %4814
      %v4816 = vsel %vm4494, %v3249, -inf
      %4817 = vmax.xlane.f32.xlu0 %v4816
      %v4818 = vpop.xlane.xlu0 %4817
      %v4819 = vsel %vm4494, %v3455, -inf
      %4820 = vmax.xlane.f32.xlu0 %v4819
      %v4821 = vpop.xlane.xlu0 %4820
      %v4822 = vsel %vm4494, %v3458, -inf
      %4823 = vmax.xlane.f32.xlu0 %v4822
      %v4824 = vpop.xlane.xlu0 %4823
      %v4825 = vsel %vm4494, %v3463, -inf
      %4826 = vmax.xlane.f32.xlu0 %v4825
      %v4827 = vpop.xlane.xlu0 %4826
      %v4828 = vsel %vm4494, %v3466, -inf
      %4829 = vmax.xlane.f32.xlu0 %v4828
      %v4830 = vpop.xlane.xlu0 %4829
      %v4831 = vsel %vm4494, %v3471, -inf
      %4832 = vmax.xlane.f32.xlu0 %v4831
      %v4833 = vpop.xlane.xlu0 %4832
      %v4834 = vsel %vm4494, %v3474, -inf
      %4835 = vmax.xlane.f32.xlu0 %v4834
      %v4836 = vpop.xlane.xlu0 %4835
      %v4837 = vsel %vm4494, %v3479, -inf
      %4838 = vmax.xlane.f32.xlu0 %v4837
      %v4839 = vpop.xlane.xlu0 %4838
      %v4840 = vsel %vm4494, %v3482, -inf
      %4841 = vmax.xlane.f32.xlu0 %v4840
      %v4842 = vpop.xlane.xlu0 %4841
      %v4843 = vsel %vm4494, %v3487, -inf
      %4844 = vmax.xlane.f32.xlu0 %v4843
      %v4845 = vpop.xlane.xlu0 %4844
      %v4846 = vsel %vm4494, %v3490, -inf
      %4847 = vmax.xlane.f32.xlu0 %v4846
      %v4848 = vpop.xlane.xlu0 %4847
      %v4849 = vsel %vm4494, %v3495, -inf
      %4850 = vmax.xlane.f32.xlu0 %v4849
      %v4851 = vpop.xlane.xlu0 %4850
      %v4852 = vsel %vm4494, %v3498, -inf
      %4853 = vmax.xlane.f32.xlu0 %v4852
      %v4854 = vpop.xlane.xlu0 %4853
      %v4855 = vsel %vm4494, %v3503, -inf
      %4856 = vmax.xlane.f32.xlu0 %v4855
      %v4857 = vpop.xlane.xlu0 %4856
      %v4858 = vsel %vm4494, %v3506, -inf
      %4859 = vmax.xlane.f32.xlu0 %v4858
      %v4860 = vpop.xlane.xlu0 %4859
      %v4861 = vsel %vm4494, %v3511, -inf
      %4862 = vmax.xlane.f32.xlu0 %v4861
      %v4863 = vpop.xlane.xlu0 %4862
      %v4864 = vsel %vm4494, %v3514, -inf
      %4865 = vmax.xlane.f32.xlu0 %v4864
      %v4866 = vpop.xlane.xlu0 %4865
      %v4867 = vsel %vm4494, %v3519, -inf
      %4868 = vmax.xlane.f32.xlu0 %v4867
      %v4869 = vpop.xlane.xlu0 %4868
      %v4870 = vsel %vm4494, %v3522, -inf
      %4871 = vmax.xlane.f32.xlu0 %v4870
      %v4872 = vpop.xlane.xlu0 %4871
      %v4873 = vsel %vm4494, %v3527, -inf
      %4874 = vmax.xlane.f32.xlu0 %v4873
      %v4875 = vpop.xlane.xlu0 %4874
      %v4876 = vsel %vm4494, %v3530, -inf
      %4877 = vmax.xlane.f32.xlu0 %v4876
      %v4878 = vpop.xlane.xlu0 %4877
      %v4879 = vsel %vm4494, %v3535, -inf
      %4880 = vmax.xlane.f32.xlu0 %v4879
      %v4881 = vpop.xlane.xlu0 %4880
      %v4882 = vsel %vm4494, %v3538, -inf
      %4883 = vmax.xlane.f32.xlu0 %v4882
      %v4884 = vpop.xlane.xlu0 %4883
      %v4885 = vsel %vm4494, %v3543, -inf
      %4886 = vmax.xlane.f32.xlu0 %v4885
      %v4887 = vpop.xlane.xlu0 %4886
      %v4888 = vsel %vm4494, %v3546, -inf
      %4889 = vmax.xlane.f32.xlu0 %v4888
      %v4890 = vpop.xlane.xlu0 %4889
      %v4891 = vsel %vm4494, %v3551, -inf
      %4892 = vmax.xlane.f32.xlu0 %v4891
      %v4893 = vpop.xlane.xlu0 %4892
      %v4894 = vsel %vm4494, %v3554, -inf
      %4895 = vmax.xlane.f32.xlu0 %v4894
      %v4896 = vpop.xlane.xlu0 %4895
      %v4897 = vsel %vm4494, %v3559, -inf
      %4898 = vmax.xlane.f32.xlu0 %v4897
      %v4899 = vpop.xlane.xlu0 %4898
      %v4900 = vsel %vm4494, %v3765, -inf
      %4901 = vmax.xlane.f32.xlu0 %v4900
      %v4902 = vpop.xlane.xlu0 %4901
      %v4903 = vsel %vm4494, %v3768, -inf
      %4904 = vmax.xlane.f32.xlu0 %v4903
      %v4905 = vpop.xlane.xlu0 %4904
      %v4906 = vsel %vm4494, %v3773, -inf
      %4907 = vmax.xlane.f32.xlu0 %v4906
      %v4908 = vpop.xlane.xlu0 %4907
      %v4909 = vsel %vm4494, %v3776, -inf
      %4910 = vmax.xlane.f32.xlu0 %v4909
      %v4911 = vpop.xlane.xlu0 %4910
      %v4912 = vsel %vm4494, %v3781, -inf
      %4913 = vmax.xlane.f32.xlu0 %v4912
      %v4914 = vpop.xlane.xlu0 %4913
      %v4915 = vsel %vm4494, %v3784, -inf
      %4916 = vmax.xlane.f32.xlu0 %v4915
      %v4917 = vpop.xlane.xlu0 %4916
      %v4918 = vsel %vm4494, %v3789, -inf
      %4919 = vmax.xlane.f32.xlu0 %v4918
      %v4920 = vpop.xlane.xlu0 %4919
      %v4921 = vsel %vm4494, %v3792, -inf
      %4922 = vmax.xlane.f32.xlu0 %v4921
      %v4923 = vpop.xlane.xlu0 %4922
      %v4924 = vsel %vm4494, %v3797, -inf
      %4925 = vmax.xlane.f32.xlu0 %v4924
      %v4926 = vpop.xlane.xlu0 %4925
      %v4927 = vsel %vm4494, %v3800, -inf
      %4928 = vmax.xlane.f32.xlu0 %v4927
      %v4929 = vpop.xlane.xlu0 %4928
      %v4930 = vsel %vm4494, %v3805, -inf
      %4931 = vmax.xlane.f32.xlu0 %v4930
      %v4932 = vpop.xlane.xlu0 %4931
      %v4933 = vsel %vm4494, %v3808, -inf
      %4934 = vmax.xlane.f32.xlu0 %v4933
      %v4935 = vpop.xlane.xlu0 %4934
      %v4936 = vsel %vm4494, %v3813, -inf
      %4937 = vmax.xlane.f32.xlu0 %v4936
      %v4938 = vpop.xlane.xlu0 %4937
      %v4939 = vsel %vm4494, %v3816, -inf
      %4940 = vmax.xlane.f32.xlu0 %v4939
      %v4941 = vpop.xlane.xlu0 %4940
      %v4942 = vsel %vm4494, %v3821, -inf
      %4943 = vmax.xlane.f32.xlu0 %v4942
      %v4944 = vpop.xlane.xlu0 %4943
      %v4945 = vsel %vm4494, %v3824, -inf
      %4946 = vmax.xlane.f32.xlu0 %v4945
      %v4947 = vpop.xlane.xlu0 %4946
      %v4948 = vsel %vm4494, %v3829, -inf
      %4949 = vmax.xlane.f32.xlu0 %v4948
      %v4950 = vpop.xlane.xlu0 %4949
      %v4951 = vsel %vm4494, %v3832, -inf
      %4952 = vmax.xlane.f32.xlu0 %v4951
      %v4953 = vpop.xlane.xlu0 %4952
      %v4954 = vsel %vm4494, %v3837, -inf
      %4955 = vmax.xlane.f32.xlu0 %v4954
      %v4956 = vpop.xlane.xlu0 %4955
      %v4957 = vsel %vm4494, %v3840, -inf
      %4958 = vmax.xlane.f32.xlu0 %v4957
      %v4959 = vpop.xlane.xlu0 %4958
      %v4960 = vsel %vm4494, %v3845, -inf
      %4961 = vmax.xlane.f32.xlu0 %v4960
      %v4962 = vpop.xlane.xlu0 %4961
      %v4963 = vsel %vm4494, %v3848, -inf
      %4964 = vmax.xlane.f32.xlu0 %v4963
      %v4965 = vpop.xlane.xlu0 %4964
      %v4966 = vsel %vm4494, %v3853, -inf
      %4967 = vmax.xlane.f32.xlu0 %v4966
      %v4968 = vpop.xlane.xlu0 %4967
      %v4969 = vsel %vm4494, %v3856, -inf
      %4970 = vmax.xlane.f32.xlu0 %v4969
      %v4971 = vpop.xlane.xlu0 %4970
      %v4972 = vsel %vm4494, %v3861, -inf
      %4973 = vmax.xlane.f32.xlu0 %v4972
      %v4974 = vpop.xlane.xlu0 %4973
      %v4975 = vsel %vm4494, %v3864, -inf
      %4976 = vmax.xlane.f32.xlu0 %v4975
      %v4977 = vpop.xlane.xlu0 %4976
      %v4978 = vsel %vm4494, %v3869, -inf
      %4979 = vmax.xlane.f32.xlu0 %v4978
      %v4980 = vpop.xlane.xlu0 %4979
      %v4981 = vsel %vm4494, %v4075, -inf
      %4982 = vmax.xlane.f32.xlu0 %v4981
      %v4983 = vpop.xlane.xlu0 %4982
      %v4984 = vsel %vm4494, %v4078, -inf
      %4985 = vmax.xlane.f32.xlu0 %v4984
      %v4986 = vpop.xlane.xlu0 %4985
      %v4987 = vsel %vm4494, %v4083, -inf
      %4988 = vmax.xlane.f32.xlu0 %v4987
      %v4989 = vpop.xlane.xlu0 %4988
      %v4990 = vsel %vm4494, %v4086, -inf
      %4991 = vmax.xlane.f32.xlu0 %v4990
      %v4992 = vpop.xlane.xlu0 %4991
      %v4993 = vsel %vm4494, %v4091, -inf
      %4994 = vmax.xlane.f32.xlu0 %v4993
      %v4995 = vpop.xlane.xlu0 %4994
      %v4996 = vsel %vm4494, %v4094, -inf
      %4997 = vmax.xlane.f32.xlu0 %v4996
      %v4998 = vpop.xlane.xlu0 %4997
      %v4999 = vsel %vm4494, %v4099, -inf
      %5000 = vmax.xlane.f32.xlu0 %v4999
      %v5001 = vpop.xlane.xlu0 %5000
      %v5002 = vsel %vm4494, %v4102, -inf
      %5003 = vmax.xlane.f32.xlu0 %v5002
      %v5004 = vpop.xlane.xlu0 %5003
      %v5005 = vsel %vm4494, %v4107, -inf
      %5006 = vmax.xlane.f32.xlu0 %v5005
      %v5007 = vpop.xlane.xlu0 %5006
      %v5008 = vsel %vm4494, %v4110, -inf
      %5009 = vmax.xlane.f32.xlu0 %v5008
      %v5010 = vpop.xlane.xlu0 %5009
      %v5011 = vsel %vm4494, %v4115, -inf
      %5012 = vmax.xlane.f32.xlu0 %v5011
      %v5013 = vpop.xlane.xlu0 %5012
      %v5014 = vsel %vm4494, %v4118, -inf
      %5015 = vmax.xlane.f32.xlu0 %v5014
      %v5016 = vpop.xlane.xlu0 %5015
      %v5017 = vsel %vm4494, %v4123, -inf
      %5018 = vmax.xlane.f32.xlu0 %v5017
      %v5019 = vpop.xlane.xlu0 %5018
      %v5020 = vsel %vm4494, %v4126, -inf
      %5021 = vmax.xlane.f32.xlu0 %v5020
      %v5022 = vpop.xlane.xlu0 %5021
      %v5023 = vsel %vm4494, %v4131, -inf
      %5024 = vmax.xlane.f32.xlu0 %v5023
      %v5025 = vpop.xlane.xlu0 %5024
      %v5026 = vsel %vm4494, %v4134, -inf
      %5027 = vmax.xlane.f32.xlu0 %v5026
      %v5028 = vpop.xlane.xlu0 %5027
      %v5029 = vsel %vm4494, %v4139, -inf
      %5030 = vmax.xlane.f32.xlu0 %v5029
      %v5031 = vpop.xlane.xlu0 %5030
      %v5032 = vsel %vm4494, %v4142, -inf
      %5033 = vmax.xlane.f32.xlu0 %v5032
      %v5034 = vpop.xlane.xlu0 %5033
      %v5035 = vsel %vm4494, %v4147, -inf
      %5036 = vmax.xlane.f32.xlu0 %v5035
      %v5037 = vpop.xlane.xlu0 %5036
      %v5038 = vsel %vm4494, %v4150, -inf
      %5039 = vmax.xlane.f32.xlu0 %v5038
      %v5040 = vpop.xlane.xlu0 %5039
      %v5041 = vsel %vm4494, %v4155, -inf
      %5042 = vmax.xlane.f32.xlu0 %v5041
      %v5043 = vpop.xlane.xlu0 %5042
      %v5044 = vsel %vm4494, %v4158, -inf
      %5045 = vmax.xlane.f32.xlu0 %v5044
      %v5046 = vpop.xlane.xlu0 %5045
      %v5047 = vsel %vm4494, %v4163, -inf
      %5048 = vmax.xlane.f32.xlu0 %v5047
      %v5049 = vpop.xlane.xlu0 %5048
      %v5050 = vsel %vm4494, %v4166, -inf
      %5051 = vmax.xlane.f32.xlu0 %v5050
      %v5052 = vpop.xlane.xlu0 %5051
      %v5053 = vsel %vm4494, %v4171, -inf
      %5054 = vmax.xlane.f32.xlu0 %v5053
      %v5055 = vpop.xlane.xlu0 %5054
      %v5056 = vsel %vm4494, %v4174, -inf
      %5057 = vmax.xlane.f32.xlu0 %v5056
      %v5058 = vpop.xlane.xlu0 %5057
      %v5059 = vsel %vm4494, %v4179, -inf
      %5060 = vmax.xlane.f32.xlu0 %v5059
      %v5061 = vpop.xlane.xlu0 %5060
      %v5062 = vsel %vm4494, %v4385, -inf
      %5063 = vmax.xlane.f32.xlu0 %v5062
      %v5064 = vpop.xlane.xlu0 %5063
      %v5065 = vsel %vm4494, %v4388, -inf
      %5066 = vmax.xlane.f32.xlu0 %v5065
      %v5067 = vpop.xlane.xlu0 %5066
      %v5068 = vsel %vm4494, %v4393, -inf
      %5069 = vmax.xlane.f32.xlu0 %v5068
      %v5070 = vpop.xlane.xlu0 %5069
      %v5071 = vsel %vm4494, %v4396, -inf
      %5072 = vmax.xlane.f32.xlu0 %v5071
      %v5073 = vpop.xlane.xlu0 %5072
      %v5074 = vsel %vm4494, %v4401, -inf
      %5075 = vmax.xlane.f32.xlu0 %v5074
      %v5076 = vpop.xlane.xlu0 %5075
      %v5077 = vsel %vm4494, %v4404, -inf
      %5078 = vmax.xlane.f32.xlu0 %v5077
      %v5079 = vpop.xlane.xlu0 %5078
      %v5080 = vsel %vm4494, %v4409, -inf
      %5081 = vmax.xlane.f32.xlu0 %v5080
      %v5082 = vpop.xlane.xlu0 %5081
      %v5083 = vsel %vm4494, %v4412, -inf
      %5084 = vmax.xlane.f32.xlu0 %v5083
      %v5085 = vpop.xlane.xlu0 %5084
      %v5086 = vsel %vm4494, %v4417, -inf
      %5087 = vmax.xlane.f32.xlu0 %v5086
      %v5088 = vpop.xlane.xlu0 %5087
      %v5089 = vsel %vm4494, %v4420, -inf
      %5090 = vmax.xlane.f32.xlu0 %v5089
      %v5091 = vpop.xlane.xlu0 %5090
      %v5092 = vsel %vm4494, %v4425, -inf
      %5093 = vmax.xlane.f32.xlu0 %v5092
      %v5094 = vpop.xlane.xlu0 %5093
      %v5095 = vsel %vm4494, %v4428, -inf
      %5096 = vmax.xlane.f32.xlu0 %v5095
      %v5097 = vpop.xlane.xlu0 %5096
      %v5098 = vsel %vm4494, %v4433, -inf
      %5099 = vmax.xlane.f32.xlu0 %v5098
      %v5100 = vpop.xlane.xlu0 %5099
      %v5101 = vsel %vm4494, %v4436, -inf
      %5102 = vmax.xlane.f32.xlu0 %v5101
      %v5103 = vpop.xlane.xlu0 %5102
      %v5104 = vsel %vm4494, %v4441, -inf
      %5105 = vmax.xlane.f32.xlu0 %v5104
      %v5106 = vpop.xlane.xlu0 %5105
      %v5107 = vsel %vm4494, %v4444, -inf
      %5108 = vmax.xlane.f32.xlu0 %v5107
      %v5109 = vpop.xlane.xlu0 %5108
      %v5110 = vsel %vm4494, %v4449, -inf
      %5111 = vmax.xlane.f32.xlu0 %v5110
      %v5112 = vpop.xlane.xlu0 %5111
      %v5113 = vsel %vm4494, %v4452, -inf
      %5114 = vmax.xlane.f32.xlu0 %v5113
      %v5115 = vpop.xlane.xlu0 %5114
      %v5116 = vsel %vm4494, %v4457, -inf
      %5117 = vmax.xlane.f32.xlu0 %v5116
      %v5118 = vpop.xlane.xlu0 %5117
      %v5119 = vsel %vm4494, %v4460, -inf
      %5120 = vmax.xlane.f32.xlu0 %v5119
      %v5121 = vpop.xlane.xlu0 %5120
      %v5122 = vsel %vm4494, %v4465, -inf
      %5123 = vmax.xlane.f32.xlu0 %v5122
      %v5124 = vpop.xlane.xlu0 %5123
      %v5125 = vsel %vm4494, %v4468, -inf
      %5126 = vmax.xlane.f32.xlu0 %v5125
      %v5127 = vpop.xlane.xlu0 %5126
      %v5128 = vsel %vm4494, %v4473, -inf
      %5129 = vmax.xlane.f32.xlu0 %v5128
      %v5130 = vpop.xlane.xlu0 %5129
      %v5131 = vsel %vm4494, %v4476, -inf
      %5132 = vmax.xlane.f32.xlu0 %v5131
      %v5133 = vpop.xlane.xlu0 %5132
      %v5134 = vsel %vm4494, %v4481, -inf
      %5135 = vmax.xlane.f32.xlu0 %v5134
      %v5136 = vpop.xlane.xlu0 %5135
      %v5137 = vsel %vm4494, %v4484, -inf
      %5138 = vmax.xlane.f32.xlu0 %v5137
      %v5139 = vpop.xlane.xlu0 %5138
      %v5140 = vsel %vm4494, %v4489, -inf
      %5141 = vmax.xlane.f32.xlu0 %v5140
      %v5142 = vpop.xlane.xlu0 %5141
      %v5143 = vsub.f32 %v2215, %v4497
      %v5144 = vsub.f32 %v2218, %v4500
      %v5145 = vsub.f32 %v2223, %v4503
      %v5146 = vsub.f32 %v2226, %v4506
      %v5147 = vsub.f32 %v2231, %v4509
      %v5148 = vsub.f32 %v2234, %v4512
      %v5149 = vsub.f32 %v2239, %v4515
      %v5150 = vsub.f32 %v2242, %v4518
      %v5151 = vsub.f32 %v2247, %v4521
      %v5152 = vsub.f32 %v2250, %v4524
      %v5153 = vsub.f32 %v2255, %v4527
      %v5154 = vsub.f32 %v2258, %v4530
      %v5155 = vsub.f32 %v2263, %v4533
      %v5156 = vsub.f32 %v2266, %v4536
      %v5157 = vsub.f32 %v2271, %v4539
      %v5158 = vsub.f32 %v2274, %v4542
      %v5159 = vsub.f32 %v2279, %v4545
      %v5160 = vsub.f32 %v2282, %v4548
      %v5161 = vsub.f32 %v2287, %v4551
      %v5162 = vsub.f32 %v2290, %v4554
      %v5163 = vsub.f32 %v2295, %v4557
      %v5164 = vsub.f32 %v2298, %v4560
      %v5165 = vsub.f32 %v2303, %v4563
      %v5166 = vsub.f32 %v2306, %v4566
      %v5167 = vsub.f32 %v2311, %v4569
      %v5168 = vsub.f32 %v2314, %v4572
      %v5169 = vsub.f32 %v2319, %v4575
      %v5170 = vsub.f32 %v2525, %v4578
      %v5171 = vsub.f32 %v2528, %v4581
      %v5172 = vsub.f32 %v2533, %v4584
      %v5173 = vsub.f32 %v2536, %v4587
      %v5174 = vsub.f32 %v2541, %v4590
      %v5175 = vsub.f32 %v2544, %v4593
      %v5176 = vsub.f32 %v2549, %v4596
      %v5177 = vsub.f32 %v2552, %v4599
      %v5178 = vsub.f32 %v2557, %v4602
      %v5179 = vsub.f32 %v2560, %v4605
      %v5180 = vsub.f32 %v2565, %v4608
      %v5181 = vsub.f32 %v2568, %v4611
      %v5182 = vsub.f32 %v2573, %v4614
      %v5183 = vsub.f32 %v2576, %v4617
      %v5184 = vsub.f32 %v2581, %v4620
      %v5185 = vsub.f32 %v2584, %v4623
      %v5186 = vsub.f32 %v2589, %v4626
      %v5187 = vsub.f32 %v2592, %v4629
      %v5188 = vsub.f32 %v2597, %v4632
      %v5189 = vsub.f32 %v2600, %v4635
      %v5190 = vsub.f32 %v2605, %v4638
      %v5191 = vsub.f32 %v2608, %v4641
      %v5192 = vsub.f32 %v2613, %v4644
      %v5193 = vsub.f32 %v2616, %v4647
      %v5194 = vsub.f32 %v2621, %v4650
      %v5195 = vsub.f32 %v2624, %v4653
      %v5196 = vsub.f32 %v2629, %v4656
      %v5197 = vsub.f32 %v2835, %v4659
      %v5198 = vsub.f32 %v2838, %v4662
      %v5199 = vsub.f32 %v2843, %v4665
      %v5200 = vsub.f32 %v2846, %v4668
      %v5201 = vsub.f32 %v2851, %v4671
      %v5202 = vsub.f32 %v2854, %v4674
      %v5203 = vsub.f32 %v2859, %v4677
      %v5204 = vsub.f32 %v2862, %v4680
      %v5205 = vsub.f32 %v2867, %v4683
      %v5206 = vsub.f32 %v2870, %v4686
      %v5207 = vsub.f32 %v2875, %v4689
      %v5208 = vsub.f32 %v2878, %v4692
      %v5209 = vsub.f32 %v2883, %v4695
      %v5210 = vsub.f32 %v2886, %v4698
      %v5211 = vsub.f32 %v2891, %v4701
      %v5212 = vsub.f32 %v2894, %v4704
      %v5213 = vsub.f32 %v2899, %v4707
      %v5214 = vsub.f32 %v2902, %v4710
      %v5215 = vsub.f32 %v2907, %v4713
      %v5216 = vsub.f32 %v2910, %v4716
      %v5217 = vsub.f32 %v2915, %v4719
      %v5218 = vsub.f32 %v2918, %v4722
      %v5219 = vsub.f32 %v2923, %v4725
      %v5220 = vsub.f32 %v2926, %v4728
      %v5221 = vsub.f32 %v2931, %v4731
      %v5222 = vsub.f32 %v2934, %v4734
      %v5223 = vsub.f32 %v2939, %v4737
      %v5224 = vsub.f32 %v3145, %v4740
      %v5225 = vsub.f32 %v3148, %v4743
      %v5226 = vsub.f32 %v3153, %v4746
      %v5227 = vsub.f32 %v3156, %v4749
      %v5228 = vsub.f32 %v3161, %v4752
      %v5229 = vsub.f32 %v3164, %v4755
      %v5230 = vsub.f32 %v3169, %v4758
      %v5231 = vsub.f32 %v3172, %v4761
      %v5232 = vsub.f32 %v3177, %v4764
      %v5233 = vsub.f32 %v3180, %v4767
      %v5234 = vsub.f32 %v3185, %v4770
      %v5235 = vsub.f32 %v3188, %v4773
      %v5236 = vsub.f32 %v3193, %v4776
      %v5237 = vsub.f32 %v3196, %v4779
      %v5238 = vsub.f32 %v3201, %v4782
      %v5239 = vsub.f32 %v3204, %v4785
      %v5240 = vsub.f32 %v3209, %v4788
      %v5241 = vsub.f32 %v3212, %v4791
      %v5242 = vsub.f32 %v3217, %v4794
      %v5243 = vsub.f32 %v3220, %v4797
      %v5244 = vsub.f32 %v3225, %v4800
      %v5245 = vsub.f32 %v3228, %v4803
      %v5246 = vsub.f32 %v3233, %v4806
      %v5247 = vsub.f32 %v3236, %v4809
      %v5248 = vsub.f32 %v3241, %v4812
      %v5249 = vsub.f32 %v3244, %v4815
      %v5250 = vsub.f32 %v3249, %v4818
      %v5251 = vsub.f32 %v3455, %v4821
      %v5252 = vsub.f32 %v3458, %v4824
      %v5253 = vsub.f32 %v3463, %v4827
      %v5254 = vsub.f32 %v3466, %v4830
      %v5255 = vsub.f32 %v3471, %v4833
      %v5256 = vsub.f32 %v3474, %v4836
      %v5257 = vsub.f32 %v3479, %v4839
      %v5258 = vsub.f32 %v3482, %v4842
      %v5259 = vsub.f32 %v3487, %v4845
      %v5260 = vsub.f32 %v3490, %v4848
      %v5261 = vsub.f32 %v3495, %v4851
      %v5262 = vsub.f32 %v3498, %v4854
      %v5263 = vsub.f32 %v3503, %v4857
      %v5264 = vsub.f32 %v3506, %v4860
      %v5265 = vsub.f32 %v3511, %v4863
      %v5266 = vsub.f32 %v3514, %v4866
      %v5267 = vsub.f32 %v3519, %v4869
      %v5268 = vsub.f32 %v3522, %v4872
      %v5269 = vsub.f32 %v3527, %v4875
      %v5270 = vsub.f32 %v3530, %v4878
      %v5271 = vsub.f32 %v3535, %v4881
      %v5272 = vsub.f32 %v3538, %v4884
      %v5273 = vsub.f32 %v3543, %v4887
      %v5274 = vsub.f32 %v3546, %v4890
      %v5275 = vsub.f32 %v3551, %v4893
      %v5276 = vsub.f32 %v3554, %v4896
      %v5277 = vsub.f32 %v3559, %v4899
      %v5278 = vsub.f32 %v3765, %v4902
      %v5279 = vsub.f32 %v3768, %v4905
      %v5280 = vsub.f32 %v3773, %v4908
      %v5281 = vsub.f32 %v3776, %v4911
      %v5282 = vsub.f32 %v3781, %v4914
      %v5283 = vsub.f32 %v3784, %v4917
      %v5284 = vsub.f32 %v3789, %v4920
      %v5285 = vsub.f32 %v3792, %v4923
      %v5286 = vsub.f32 %v3797, %v4926
      %v5287 = vsub.f32 %v3800, %v4929
      %v5288 = vsub.f32 %v3805, %v4932
      %v5289 = vsub.f32 %v3808, %v4935
      %v5290 = vsub.f32 %v3813, %v4938
      %v5291 = vsub.f32 %v3816, %v4941
      %v5292 = vsub.f32 %v3821, %v4944
      %v5293 = vsub.f32 %v3824, %v4947
      %v5294 = vsub.f32 %v3829, %v4950
      %v5295 = vsub.f32 %v3832, %v4953
      %v5296 = vsub.f32 %v3837, %v4956
      %v5297 = vsub.f32 %v3840, %v4959
      %v5298 = vsub.f32 %v3845, %v4962
      %v5299 = vsub.f32 %v3848, %v4965
      %v5300 = vsub.f32 %v3853, %v4968
      %v5301 = vsub.f32 %v3856, %v4971
      %v5302 = vsub.f32 %v3861, %v4974
      %v5303 = vsub.f32 %v3864, %v4977
      %v5304 = vsub.f32 %v3869, %v4980
      %v5305 = vsub.f32 %v4075, %v4983
      %v5306 = vsub.f32 %v4078, %v4986
      %v5307 = vsub.f32 %v4083, %v4989
      %v5308 = vsub.f32 %v4086, %v4992
      %v5309 = vsub.f32 %v4091, %v4995
      %v5310 = vsub.f32 %v4094, %v4998
      %v5311 = vsub.f32 %v4099, %v5001
      %v5312 = vsub.f32 %v4102, %v5004
      %v5313 = vsub.f32 %v4107, %v5007
      %v5314 = vsub.f32 %v4110, %v5010
      %v5315 = vsub.f32 %v4115, %v5013
      %v5316 = vsub.f32 %v4118, %v5016
      %v5317 = vsub.f32 %v4123, %v5019
      %v5318 = vsub.f32 %v4126, %v5022
      %v5319 = vsub.f32 %v4131, %v5025
      %v5320 = vsub.f32 %v4134, %v5028
      %v5321 = vsub.f32 %v4139, %v5031
      %v5322 = vsub.f32 %v4142, %v5034
      %v5323 = vsub.f32 %v4147, %v5037
      %v5324 = vsub.f32 %v4150, %v5040
      %v5325 = vsub.f32 %v4155, %v5043
      %v5326 = vsub.f32 %v4158, %v5046
      %v5327 = vsub.f32 %v4163, %v5049
      %v5328 = vsub.f32 %v4166, %v5052
      %v5329 = vsub.f32 %v4171, %v5055
      %v5330 = vsub.f32 %v4174, %v5058
      %v5331 = vsub.f32 %v4179, %v5061
      %v5332 = vsub.f32 %v4385, %v5064
      %v5333 = vsub.f32 %v4388, %v5067
      %v5334 = vsub.f32 %v4393, %v5070
      %v5335 = vsub.f32 %v4396, %v5073
      %v5336 = vsub.f32 %v4401, %v5076
      %v5337 = vsub.f32 %v4404, %v5079
      %v5338 = vsub.f32 %v4409, %v5082
      %v5339 = vsub.f32 %v4412, %v5085
      %v5340 = vsub.f32 %v4417, %v5088
      %v5341 = vsub.f32 %v4420, %v5091
      %v5342 = vsub.f32 %v4425, %v5094
      %v5343 = vsub.f32 %v4428, %v5097
      %v5344 = vsub.f32 %v4433, %v5100
      %v5345 = vsub.f32 %v4436, %v5103
      %v5346 = vsub.f32 %v4441, %v5106
      %v5347 = vsub.f32 %v4444, %v5109
      %v5348 = vsub.f32 %v4449, %v5112
      %v5349 = vsub.f32 %v4452, %v5115
      %v5350 = vsub.f32 %v4457, %v5118
      %v5351 = vsub.f32 %v4460, %v5121
      %v5352 = vsub.f32 %v4465, %v5124
      %v5353 = vsub.f32 %v4468, %v5127
      %v5354 = vsub.f32 %v4473, %v5130
      %v5355 = vsub.f32 %v4476, %v5133
      %v5356 = vsub.f32 %v4481, %v5136
      %v5357 = vsub.f32 %v4484, %v5139
      %v5358 = vsub.f32 %v4489, %v5142
      %v5359 = vmul.f32 %v5143, 1.442695
      %v5360 = vpow.pop %v5359
      %v5361 = vmul.f32 %v5144, 1.442695
      %v5362 = vpow.pop %v5361
      %v5363 = vmul.f32 %v5145, 1.442695
      %v5364 = vpow.pop %v5363
      %v5365 = vmul.f32 %v5146, 1.442695
      %v5366 = vpow.pop %v5365
      %v5367 = vmul.f32 %v5147, 1.442695
      %v5368 = vpow.pop %v5367
      %v5369 = vmul.f32 %v5148, 1.442695
      %v5370 = vpow.pop %v5369
      %v5371 = vmul.f32 %v5149, 1.442695
      %v5372 = vpow.pop %v5371
      %v5373 = vmul.f32 %v5150, 1.442695
      %v5374 = vpow.pop %v5373
      %v5375 = vmul.f32 %v5151, 1.442695
      %v5376 = vpow.pop %v5375
      %v5377 = vmul.f32 %v5152, 1.442695
      %v5378 = vpow.pop %v5377
      %v5379 = vmul.f32 %v5153, 1.442695
      %v5380 = vpow.pop %v5379
      %v5381 = vmul.f32 %v5154, 1.442695
      %v5382 = vpow.pop %v5381
      %v5383 = vmul.f32 %v5155, 1.442695
      %v5384 = vpow.pop %v5383
      %v5385 = vmul.f32 %v5156, 1.442695
      %v5386 = vpow.pop %v5385
      %v5387 = vmul.f32 %v5157, 1.442695
      %v5388 = vpow.pop %v5387
      %v5389 = vmul.f32 %v5158, 1.442695
      %v5390 = vpow.pop %v5389
      %v5391 = vmul.f32 %v5159, 1.442695
      %v5392 = vpow.pop %v5391
      %v5393 = vmul.f32 %v5160, 1.442695
      %v5394 = vpow.pop %v5393
      %v5395 = vmul.f32 %v5161, 1.442695
      %v5396 = vpow.pop %v5395
      %v5397 = vmul.f32 %v5162, 1.442695
      %v5398 = vpow.pop %v5397
      %v5399 = vmul.f32 %v5163, 1.442695
      %v5400 = vpow.pop %v5399
      %v5401 = vmul.f32 %v5164, 1.442695
      %v5402 = vpow.pop %v5401
      %v5403 = vmul.f32 %v5165, 1.442695
      %v5404 = vpow.pop %v5403
      %v5405 = vmul.f32 %v5166, 1.442695
      %v5406 = vpow.pop %v5405
      %v5407 = vmul.f32 %v5167, 1.442695
      %v5408 = vpow.pop %v5407
      %v5409 = vmul.f32 %v5168, 1.442695
      %v5410 = vpow.pop %v5409
      %v5411 = vmul.f32 %v5169, 1.442695
      %v5412 = vpow.pop %v5411
      %v5413 = vmul.f32 %v5170, 1.442695
      %v5414 = vpow.pop %v5413
      %v5415 = vmul.f32 %v5171, 1.442695
      %v5416 = vpow.pop %v5415
      %v5417 = vmul.f32 %v5172, 1.442695
      %v5418 = vpow.pop %v5417
      %v5419 = vmul.f32 %v5173, 1.442695
      %v5420 = vpow.pop %v5419
      %v5421 = vmul.f32 %v5174, 1.442695
      %v5422 = vpow.pop %v5421
      %v5423 = vmul.f32 %v5175, 1.442695
      %v5424 = vpow.pop %v5423
      %v5425 = vmul.f32 %v5176, 1.442695
      %v5426 = vpow.pop %v5425
      %v5427 = vmul.f32 %v5177, 1.442695
      %v5428 = vpow.pop %v5427
      %v5429 = vmul.f32 %v5178, 1.442695
      %v5430 = vpow.pop %v5429
      %v5431 = vmul.f32 %v5179, 1.442695
      %v5432 = vpow.pop %v5431
      %v5433 = vmul.f32 %v5180, 1.442695
      %v5434 = vpow.pop %v5433
      %v5435 = vmul.f32 %v5181, 1.442695
      %v5436 = vpow.pop %v5435
      %v5437 = vmul.f32 %v5182, 1.442695
      %v5438 = vpow.pop %v5437
      %v5439 = vmul.f32 %v5183, 1.442695
      %v5440 = vpow.pop %v5439
      %v5441 = vmul.f32 %v5184, 1.442695
      %v5442 = vpow.pop %v5441
      %v5443 = vmul.f32 %v5185, 1.442695
      %v5444 = vpow.pop %v5443
      %v5445 = vmul.f32 %v5186, 1.442695
      %v5446 = vpow.pop %v5445
      %v5447 = vmul.f32 %v5187, 1.442695
      %v5448 = vpow.pop %v5447
      %v5449 = vmul.f32 %v5188, 1.442695
      %v5450 = vpow.pop %v5449
      %v5451 = vmul.f32 %v5189, 1.442695
      %v5452 = vpow.pop %v5451
      %v5453 = vmul.f32 %v5190, 1.442695
      %v5454 = vpow.pop %v5453
      %v5455 = vmul.f32 %v5191, 1.442695
      %v5456 = vpow.pop %v5455
      %v5457 = vmul.f32 %v5192, 1.442695
      %v5458 = vpow.pop %v5457
      %v5459 = vmul.f32 %v5193, 1.442695
      %v5460 = vpow.pop %v5459
      %v5461 = vmul.f32 %v5194, 1.442695
      %v5462 = vpow.pop %v5461
      %v5463 = vmul.f32 %v5195, 1.442695
      %v5464 = vpow.pop %v5463
      %v5465 = vmul.f32 %v5196, 1.442695
      %v5466 = vpow.pop %v5465
      %v5467 = vmul.f32 %v5197, 1.442695
      %v5468 = vpow.pop %v5467
      %v5469 = vmul.f32 %v5198, 1.442695
      %v5470 = vpow.pop %v5469
      %v5471 = vmul.f32 %v5199, 1.442695
      %v5472 = vpow.pop %v5471
      %v5473 = vmul.f32 %v5200, 1.442695
      %v5474 = vpow.pop %v5473
      %v5475 = vmul.f32 %v5201, 1.442695
      %v5476 = vpow.pop %v5475
      %v5477 = vmul.f32 %v5202, 1.442695
      %v5478 = vpow.pop %v5477
      %v5479 = vmul.f32 %v5203, 1.442695
      %v5480 = vpow.pop %v5479
      %v5481 = vmul.f32 %v5204, 1.442695
      %v5482 = vpow.pop %v5481
      %v5483 = vmul.f32 %v5205, 1.442695
      %v5484 = vpow.pop %v5483
      %v5485 = vmul.f32 %v5206, 1.442695
      %v5486 = vpow.pop %v5485
      %v5487 = vmul.f32 %v5207, 1.442695
      %v5488 = vpow.pop %v5487
      %v5489 = vmul.f32 %v5208, 1.442695
      %v5490 = vpow.pop %v5489
      %v5491 = vmul.f32 %v5209, 1.442695
      %v5492 = vpow.pop %v5491
      %v5493 = vmul.f32 %v5210, 1.442695
      %v5494 = vpow.pop %v5493
      %v5495 = vmul.f32 %v5211, 1.442695
      %v5496 = vpow.pop %v5495
      %v5497 = vmul.f32 %v5212, 1.442695
      %v5498 = vpow.pop %v5497
      %v5499 = vmul.f32 %v5213, 1.442695
      %v5500 = vpow.pop %v5499
      %v5501 = vmul.f32 %v5214, 1.442695
      %v5502 = vpow.pop %v5501
      %v5503 = vmul.f32 %v5215, 1.442695
      %v5504 = vpow.pop %v5503
      %v5505 = vmul.f32 %v5216, 1.442695
      %v5506 = vpow.pop %v5505
      %v5507 = vmul.f32 %v5217, 1.442695
      %v5508 = vpow.pop %v5507
      %v5509 = vmul.f32 %v5218, 1.442695
      %v5510 = vpow.pop %v5509
      %v5511 = vmul.f32 %v5219, 1.442695
      %v5512 = vpow.pop %v5511
      %v5513 = vmul.f32 %v5220, 1.442695
      %v5514 = vpow.pop %v5513
      %v5515 = vmul.f32 %v5221, 1.442695
      %v5516 = vpow.pop %v5515
      %v5517 = vmul.f32 %v5222, 1.442695
      %v5518 = vpow.pop %v5517
      %v5519 = vmul.f32 %v5223, 1.442695
      %v5520 = vpow.pop %v5519
      %v5521 = vmul.f32 %v5224, 1.442695
      %v5522 = vpow.pop %v5521
      %v5523 = vmul.f32 %v5225, 1.442695
      %v5524 = vpow.pop %v5523
      %v5525 = vmul.f32 %v5226, 1.442695
      %v5526 = vpow.pop %v5525
      %v5527 = vmul.f32 %v5227, 1.442695
      %v5528 = vpow.pop %v5527
      %v5529 = vmul.f32 %v5228, 1.442695
      %v5530 = vpow.pop %v5529
      %v5531 = vmul.f32 %v5229, 1.442695
      %v5532 = vpow.pop %v5531
      %v5533 = vmul.f32 %v5230, 1.442695
      %v5534 = vpow.pop %v5533
      %v5535 = vmul.f32 %v5231, 1.442695
      %v5536 = vpow.pop %v5535
      %v5537 = vmul.f32 %v5232, 1.442695
      %v5538 = vpow.pop %v5537
      %v5539 = vmul.f32 %v5233, 1.442695
      %v5540 = vpow.pop %v5539
      %v5541 = vmul.f32 %v5234, 1.442695
      %v5542 = vpow.pop %v5541
      %v5543 = vmul.f32 %v5235, 1.442695
      %v5544 = vpow.pop %v5543
      %v5545 = vmul.f32 %v5236, 1.442695
      %v5546 = vpow.pop %v5545
      %v5547 = vmul.f32 %v5237, 1.442695
      %v5548 = vpow.pop %v5547
      %v5549 = vmul.f32 %v5238, 1.442695
      %v5550 = vpow.pop %v5549
      %v5551 = vmul.f32 %v5239, 1.442695
      %v5552 = vpow.pop %v5551
      %v5553 = vmul.f32 %v5240, 1.442695
      %v5554 = vpow.pop %v5553
      %v5555 = vmul.f32 %v5241, 1.442695
      %v5556 = vpow.pop %v5555
      %v5557 = vmul.f32 %v5242, 1.442695
      %v5558 = vpow.pop %v5557
      %v5559 = vmul.f32 %v5243, 1.442695
      %v5560 = vpow.pop %v5559
      %v5561 = vmul.f32 %v5244, 1.442695
      %v5562 = vpow.pop %v5561
      %v5563 = vmul.f32 %v5245, 1.442695
      %v5564 = vpow.pop %v5563
      %v5565 = vmul.f32 %v5246, 1.442695
      %v5566 = vpow.pop %v5565
      %v5567 = vmul.f32 %v5247, 1.442695
      %v5568 = vpow.pop %v5567
      %v5569 = vmul.f32 %v5248, 1.442695
      %v5570 = vpow.pop %v5569
      %v5571 = vmul.f32 %v5249, 1.442695
      %v5572 = vpow.pop %v5571
      %v5573 = vmul.f32 %v5250, 1.442695
      %v5574 = vpow.pop %v5573
      %v5575 = vmul.f32 %v5251, 1.442695
      %v5576 = vpow.pop %v5575
      %v5577 = vmul.f32 %v5252, 1.442695
      %v5578 = vpow.pop %v5577
      %v5579 = vmul.f32 %v5253, 1.442695
      %v5580 = vpow.pop %v5579
      %v5581 = vmul.f32 %v5254, 1.442695
      %v5582 = vpow.pop %v5581
      %v5583 = vmul.f32 %v5255, 1.442695
      %v5584 = vpow.pop %v5583
      %v5585 = vmul.f32 %v5256, 1.442695
      %v5586 = vpow.pop %v5585
      %v5587 = vmul.f32 %v5257, 1.442695
      %v5588 = vpow.pop %v5587
      %v5589 = vmul.f32 %v5258, 1.442695
      %v5590 = vpow.pop %v5589
      %v5591 = vmul.f32 %v5259, 1.442695
      %v5592 = vpow.pop %v5591
      %v5593 = vmul.f32 %v5260, 1.442695
      %v5594 = vpow.pop %v5593
      %v5595 = vmul.f32 %v5261, 1.442695
      %v5596 = vpow.pop %v5595
      %v5597 = vmul.f32 %v5262, 1.442695
      %v5598 = vpow.pop %v5597
      %v5599 = vmul.f32 %v5263, 1.442695
      %v5600 = vpow.pop %v5599
      %v5601 = vmul.f32 %v5264, 1.442695
      %v5602 = vpow.pop %v5601
      %v5603 = vmul.f32 %v5265, 1.442695
      %v5604 = vpow.pop %v5603
      %v5605 = vmul.f32 %v5266, 1.442695
      %v5606 = vpow.pop %v5605
      %v5607 = vmul.f32 %v5267, 1.442695
      %v5608 = vpow.pop %v5607
      %v5609 = vmul.f32 %v5268, 1.442695
      %v5610 = vpow.pop %v5609
      %v5611 = vmul.f32 %v5269, 1.442695
      %v5612 = vpow.pop %v5611
      %v5613 = vmul.f32 %v5270, 1.442695
      %v5614 = vpow.pop %v5613
      %v5615 = vmul.f32 %v5271, 1.442695
      %v5616 = vpow.pop %v5615
      %v5617 = vmul.f32 %v5272, 1.442695
      %v5618 = vpow.pop %v5617
      %v5619 = vmul.f32 %v5273, 1.442695
      %v5620 = vpow.pop %v5619
      %v5621 = vmul.f32 %v5274, 1.442695
      %v5622 = vpow.pop %v5621
      %v5623 = vmul.f32 %v5275, 1.442695
      %v5624 = vpow.pop %v5623
      %v5625 = vmul.f32 %v5276, 1.442695
      %v5626 = vpow.pop %v5625
      %v5627 = vmul.f32 %v5277, 1.442695
      %v5628 = vpow.pop %v5627
      %v5629 = vmul.f32 %v5278, 1.442695
      %v5630 = vpow.pop %v5629
      %v5631 = vmul.f32 %v5279, 1.442695
      %v5632 = vpow.pop %v5631
      %v5633 = vmul.f32 %v5280, 1.442695
      %v5634 = vpow.pop %v5633
      %v5635 = vmul.f32 %v5281, 1.442695
      %v5636 = vpow.pop %v5635
      %v5637 = vmul.f32 %v5282, 1.442695
      %v5638 = vpow.pop %v5637
      %v5639 = vmul.f32 %v5283, 1.442695
      %v5640 = vpow.pop %v5639
      %v5641 = vmul.f32 %v5284, 1.442695
      %v5642 = vpow.pop %v5641
      %v5643 = vmul.f32 %v5285, 1.442695
      %v5644 = vpow.pop %v5643
      %v5645 = vmul.f32 %v5286, 1.442695
      %v5646 = vpow.pop %v5645
      %v5647 = vmul.f32 %v5287, 1.442695
      %v5648 = vpow.pop %v5647
      %v5649 = vmul.f32 %v5288, 1.442695
      %v5650 = vpow.pop %v5649
      %v5651 = vmul.f32 %v5289, 1.442695
      %v5652 = vpow.pop %v5651
      %v5653 = vmul.f32 %v5290, 1.442695
      %v5654 = vpow.pop %v5653
      %v5655 = vmul.f32 %v5291, 1.442695
      %v5656 = vpow.pop %v5655
      %v5657 = vmul.f32 %v5292, 1.442695
      %v5658 = vpow.pop %v5657
      %v5659 = vmul.f32 %v5293, 1.442695
      %v5660 = vpow.pop %v5659
      %v5661 = vmul.f32 %v5294, 1.442695
      %v5662 = vpow.pop %v5661
      %v5663 = vmul.f32 %v5295, 1.442695
      %v5664 = vpow.pop %v5663
      %v5665 = vmul.f32 %v5296, 1.442695
      %v5666 = vpow.pop %v5665
      %v5667 = vmul.f32 %v5297, 1.442695
      %v5668 = vpow.pop %v5667
      %v5669 = vmul.f32 %v5298, 1.442695
      %v5670 = vpow.pop %v5669
      %v5671 = vmul.f32 %v5299, 1.442695
      %v5672 = vpow.pop %v5671
      %v5673 = vmul.f32 %v5300, 1.442695
      %v5674 = vpow.pop %v5673
      %v5675 = vmul.f32 %v5301, 1.442695
      %v5676 = vpow.pop %v5675
      %v5677 = vmul.f32 %v5302, 1.442695
      %v5678 = vpow.pop %v5677
      %v5679 = vmul.f32 %v5303, 1.442695
      %v5680 = vpow.pop %v5679
      %v5681 = vmul.f32 %v5304, 1.442695
      %v5682 = vpow.pop %v5681
      %v5683 = vmul.f32 %v5305, 1.442695
      %v5684 = vpow.pop %v5683
      %v5685 = vmul.f32 %v5306, 1.442695
      %v5686 = vpow.pop %v5685
      %v5687 = vmul.f32 %v5307, 1.442695
      %v5688 = vpow.pop %v5687
      %v5689 = vmul.f32 %v5308, 1.442695
      %v5690 = vpow.pop %v5689
      %v5691 = vmul.f32 %v5309, 1.442695
      %v5692 = vpow.pop %v5691
      %v5693 = vmul.f32 %v5310, 1.442695
      %v5694 = vpow.pop %v5693
      %v5695 = vmul.f32 %v5311, 1.442695
      %v5696 = vpow.pop %v5695
      %v5697 = vmul.f32 %v5312, 1.442695
      %v5698 = vpow.pop %v5697
      %v5699 = vmul.f32 %v5313, 1.442695
      %v5700 = vpow.pop %v5699
      %v5701 = vmul.f32 %v5314, 1.442695
      %v5702 = vpow.pop %v5701
      %v5703 = vmul.f32 %v5315, 1.442695
      %v5704 = vpow.pop %v5703
      %v5705 = vmul.f32 %v5316, 1.442695
      %v5706 = vpow.pop %v5705
      %v5707 = vmul.f32 %v5317, 1.442695
      %v5708 = vpow.pop %v5707
      %v5709 = vmul.f32 %v5318, 1.442695
      %v5710 = vpow.pop %v5709
      %v5711 = vmul.f32 %v5319, 1.442695
      %v5712 = vpow.pop %v5711
      %v5713 = vmul.f32 %v5320, 1.442695
      %v5714 = vpow.pop %v5713
      %v5715 = vmul.f32 %v5321, 1.442695
      %v5716 = vpow.pop %v5715
      %v5717 = vmul.f32 %v5322, 1.442695
      %v5718 = vpow.pop %v5717
      %v5719 = vmul.f32 %v5323, 1.442695
      %v5720 = vpow.pop %v5719
      %v5721 = vmul.f32 %v5324, 1.442695
      %v5722 = vpow.pop %v5721
      %v5723 = vmul.f32 %v5325, 1.442695
      %v5724 = vpow.pop %v5723
      %v5725 = vmul.f32 %v5326, 1.442695
      %v5726 = vpow.pop %v5725
      %v5727 = vmul.f32 %v5327, 1.442695
      %v5728 = vpow.pop %v5727
      %v5729 = vmul.f32 %v5328, 1.442695
      %v5730 = vpow.pop %v5729
      %v5731 = vmul.f32 %v5329, 1.442695
      %v5732 = vpow.pop %v5731
      %v5733 = vmul.f32 %v5330, 1.442695
      %v5734 = vpow.pop %v5733
      %v5735 = vmul.f32 %v5331, 1.442695
      %v5736 = vpow.pop %v5735
      %v5737 = vmul.f32 %v5332, 1.442695
      %v5738 = vpow.pop %v5737
      %v5739 = vmul.f32 %v5333, 1.442695
      %v5740 = vpow.pop %v5739
      %v5741 = vmul.f32 %v5334, 1.442695
      %v5742 = vpow.pop %v5741
      %v5743 = vmul.f32 %v5335, 1.442695
      %v5744 = vpow.pop %v5743
      %v5745 = vmul.f32 %v5336, 1.442695
      %v5746 = vpow.pop %v5745
      %v5747 = vmul.f32 %v5337, 1.442695
      %v5748 = vpow.pop %v5747
      %v5749 = vmul.f32 %v5338, 1.442695
      %v5750 = vpow.pop %v5749
      %v5751 = vmul.f32 %v5339, 1.442695
      %v5752 = vpow.pop %v5751
      %v5753 = vmul.f32 %v5340, 1.442695
      %v5754 = vpow.pop %v5753
      %v5755 = vmul.f32 %v5341, 1.442695
      %v5756 = vpow.pop %v5755
      %v5757 = vmul.f32 %v5342, 1.442695
      %v5758 = vpow.pop %v5757
      %v5759 = vmul.f32 %v5343, 1.442695
      %v5760 = vpow.pop %v5759
      %v5761 = vmul.f32 %v5344, 1.442695
      %v5762 = vpow.pop %v5761
      %v5763 = vmul.f32 %v5345, 1.442695
      %v5764 = vpow.pop %v5763
      %v5765 = vmul.f32 %v5346, 1.442695
      %v5766 = vpow.pop %v5765
      %v5767 = vmul.f32 %v5347, 1.442695
      %v5768 = vpow.pop %v5767
      %v5769 = vmul.f32 %v5348, 1.442695
      %v5770 = vpow.pop %v5769
      %v5771 = vmul.f32 %v5349, 1.442695
      %v5772 = vpow.pop %v5771
      %v5773 = vmul.f32 %v5350, 1.442695
      %v5774 = vpow.pop %v5773
      %v5775 = vmul.f32 %v5351, 1.442695
      %v5776 = vpow.pop %v5775
      %v5777 = vmul.f32 %v5352, 1.442695
      %v5778 = vpow.pop %v5777
      %v5779 = vmul.f32 %v5353, 1.442695
      %v5780 = vpow.pop %v5779
      %v5781 = vmul.f32 %v5354, 1.442695
      %v5782 = vpow.pop %v5781
      %v5783 = vmul.f32 %v5355, 1.442695
      %v5784 = vpow.pop %v5783
      %v5785 = vmul.f32 %v5356, 1.442695
      %v5786 = vpow.pop %v5785
      %v5787 = vmul.f32 %v5357, 1.442695
      %v5788 = vpow.pop %v5787
      %v5789 = vmul.f32 %v5358, 1.442695
      %v5790 = vpow.pop %v5789
      %v5791 = vsel %vm4494, %v5360, 0.0
      %5792 = vadd.xlane.f32.xlu0 %v5791
      %v5793 = vpop.xlane.xlu0 %5792
      %v5794 = vsel %vm4494, %v5362, 0.0
      %5795 = vadd.xlane.f32.xlu0 %v5794
      %v5796 = vpop.xlane.xlu0 %5795
      %v5797 = vsel %vm4494, %v5364, 0.0
      %5798 = vadd.xlane.f32.xlu0 %v5797
      %v5799 = vpop.xlane.xlu0 %5798
      %v5800 = vsel %vm4494, %v5366, 0.0
      %5801 = vadd.xlane.f32.xlu0 %v5800
      %v5802 = vpop.xlane.xlu0 %5801
      %v5803 = vsel %vm4494, %v5368, 0.0
      %5804 = vadd.xlane.f32.xlu0 %v5803
      %v5805 = vpop.xlane.xlu0 %5804
      %v5806 = vsel %vm4494, %v5370, 0.0
      %5807 = vadd.xlane.f32.xlu0 %v5806
      %v5808 = vpop.xlane.xlu0 %5807
      %v5809 = vsel %vm4494, %v5372, 0.0
      %5810 = vadd.xlane.f32.xlu0 %v5809
      %v5811 = vpop.xlane.xlu0 %5810
      %v5812 = vsel %vm4494, %v5374, 0.0
      %5813 = vadd.xlane.f32.xlu0 %v5812
      %v5814 = vpop.xlane.xlu0 %5813
      %v5815 = vsel %vm4494, %v5376, 0.0
      %5816 = vadd.xlane.f32.xlu0 %v5815
      %v5817 = vpop.xlane.xlu0 %5816
      %v5818 = vsel %vm4494, %v5378, 0.0
      %5819 = vadd.xlane.f32.xlu0 %v5818
      %v5820 = vpop.xlane.xlu0 %5819
      %v5821 = vsel %vm4494, %v5380, 0.0
      %5822 = vadd.xlane.f32.xlu0 %v5821
      %v5823 = vpop.xlane.xlu0 %5822
      %v5824 = vsel %vm4494, %v5382, 0.0
      %5825 = vadd.xlane.f32.xlu0 %v5824
      %v5826 = vpop.xlane.xlu0 %5825
      %v5827 = vsel %vm4494, %v5384, 0.0
      %5828 = vadd.xlane.f32.xlu0 %v5827
      %v5829 = vpop.xlane.xlu0 %5828
      %v5830 = vsel %vm4494, %v5386, 0.0
      %5831 = vadd.xlane.f32.xlu0 %v5830
      %v5832 = vpop.xlane.xlu0 %5831
      %v5833 = vsel %vm4494, %v5388, 0.0
      %5834 = vadd.xlane.f32.xlu0 %v5833
      %v5835 = vpop.xlane.xlu0 %5834
      %v5836 = vsel %vm4494, %v5390, 0.0
      %5837 = vadd.xlane.f32.xlu0 %v5836
      %v5838 = vpop.xlane.xlu0 %5837
      %v5839 = vsel %vm4494, %v5392, 0.0
      %5840 = vadd.xlane.f32.xlu0 %v5839
      %v5841 = vpop.xlane.xlu0 %5840
      %v5842 = vsel %vm4494, %v5394, 0.0
      %5843 = vadd.xlane.f32.xlu0 %v5842
      %v5844 = vpop.xlane.xlu0 %5843
      %v5845 = vsel %vm4494, %v5396, 0.0
      %5846 = vadd.xlane.f32.xlu0 %v5845
      %v5847 = vpop.xlane.xlu0 %5846
      %v5848 = vsel %vm4494, %v5398, 0.0
      %5849 = vadd.xlane.f32.xlu0 %v5848
      %v5850 = vpop.xlane.xlu0 %5849
      %v5851 = vsel %vm4494, %v5400, 0.0
      %5852 = vadd.xlane.f32.xlu0 %v5851
      %v5853 = vpop.xlane.xlu0 %5852
      %v5854 = vsel %vm4494, %v5402, 0.0
      %5855 = vadd.xlane.f32.xlu0 %v5854
      %v5856 = vpop.xlane.xlu0 %5855
      %v5857 = vsel %vm4494, %v5404, 0.0
      %5858 = vadd.xlane.f32.xlu0 %v5857
      %v5859 = vpop.xlane.xlu0 %5858
      %v5860 = vsel %vm4494, %v5406, 0.0
      %5861 = vadd.xlane.f32.xlu0 %v5860
      %v5862 = vpop.xlane.xlu0 %5861
      %v5863 = vsel %vm4494, %v5408, 0.0
      %5864 = vadd.xlane.f32.xlu0 %v5863
      %v5865 = vpop.xlane.xlu0 %5864
      %v5866 = vsel %vm4494, %v5410, 0.0
      %5867 = vadd.xlane.f32.xlu0 %v5866
      %v5868 = vpop.xlane.xlu0 %5867
      %v5869 = vsel %vm4494, %v5412, 0.0
      %5870 = vadd.xlane.f32.xlu0 %v5869
      %v5871 = vpop.xlane.xlu0 %5870
      %v5872 = vsel %vm4494, %v5414, 0.0
      %5873 = vadd.xlane.f32.xlu0 %v5872
      %v5874 = vpop.xlane.xlu0 %5873
      %v5875 = vsel %vm4494, %v5416, 0.0
      %5876 = vadd.xlane.f32.xlu0 %v5875
      %v5877 = vpop.xlane.xlu0 %5876
      %v5878 = vsel %vm4494, %v5418, 0.0
      %5879 = vadd.xlane.f32.xlu0 %v5878
      %v5880 = vpop.xlane.xlu0 %5879
      %v5881 = vsel %vm4494, %v5420, 0.0
      %5882 = vadd.xlane.f32.xlu0 %v5881
      %v5883 = vpop.xlane.xlu0 %5882
      %v5884 = vsel %vm4494, %v5422, 0.0
      %5885 = vadd.xlane.f32.xlu0 %v5884
      %v5886 = vpop.xlane.xlu0 %5885
      %v5887 = vsel %vm4494, %v5424, 0.0
      %5888 = vadd.xlane.f32.xlu0 %v5887
      %v5889 = vpop.xlane.xlu0 %5888
      %v5890 = vsel %vm4494, %v5426, 0.0
      %5891 = vadd.xlane.f32.xlu0 %v5890
      %v5892 = vpop.xlane.xlu0 %5891
      %v5893 = vsel %vm4494, %v5428, 0.0
      %5894 = vadd.xlane.f32.xlu0 %v5893
      %v5895 = vpop.xlane.xlu0 %5894
      %v5896 = vsel %vm4494, %v5430, 0.0
      %5897 = vadd.xlane.f32.xlu0 %v5896
      %v5898 = vpop.xlane.xlu0 %5897
      %v5899 = vsel %vm4494, %v5432, 0.0
      %5900 = vadd.xlane.f32.xlu0 %v5899
      %v5901 = vpop.xlane.xlu0 %5900
      %v5902 = vsel %vm4494, %v5434, 0.0
      %5903 = vadd.xlane.f32.xlu0 %v5902
      %v5904 = vpop.xlane.xlu0 %5903
      %v5905 = vsel %vm4494, %v5436, 0.0
      %5906 = vadd.xlane.f32.xlu0 %v5905
      %v5907 = vpop.xlane.xlu0 %5906
      %v5908 = vsel %vm4494, %v5438, 0.0
      %5909 = vadd.xlane.f32.xlu0 %v5908
      %v5910 = vpop.xlane.xlu0 %5909
      %v5911 = vsel %vm4494, %v5440, 0.0
      %5912 = vadd.xlane.f32.xlu0 %v5911
      %v5913 = vpop.xlane.xlu0 %5912
      %v5914 = vsel %vm4494, %v5442, 0.0
      %5915 = vadd.xlane.f32.xlu0 %v5914
      %v5916 = vpop.xlane.xlu0 %5915
      %v5917 = vsel %vm4494, %v5444, 0.0
      %5918 = vadd.xlane.f32.xlu0 %v5917
      %v5919 = vpop.xlane.xlu0 %5918
      %v5920 = vsel %vm4494, %v5446, 0.0
      %5921 = vadd.xlane.f32.xlu0 %v5920
      %v5922 = vpop.xlane.xlu0 %5921
      %v5923 = vsel %vm4494, %v5448, 0.0
      %5924 = vadd.xlane.f32.xlu0 %v5923
      %v5925 = vpop.xlane.xlu0 %5924
      %v5926 = vsel %vm4494, %v5450, 0.0
      %5927 = vadd.xlane.f32.xlu0 %v5926
      %v5928 = vpop.xlane.xlu0 %5927
      %v5929 = vsel %vm4494, %v5452, 0.0
      %5930 = vadd.xlane.f32.xlu0 %v5929
      %v5931 = vpop.xlane.xlu0 %5930
      %v5932 = vsel %vm4494, %v5454, 0.0
      %5933 = vadd.xlane.f32.xlu0 %v5932
      %v5934 = vpop.xlane.xlu0 %5933
      %v5935 = vsel %vm4494, %v5456, 0.0
      %5936 = vadd.xlane.f32.xlu0 %v5935
      %v5937 = vpop.xlane.xlu0 %5936
      %v5938 = vsel %vm4494, %v5458, 0.0
      %5939 = vadd.xlane.f32.xlu0 %v5938
      %v5940 = vpop.xlane.xlu0 %5939
      %v5941 = vsel %vm4494, %v5460, 0.0
      %5942 = vadd.xlane.f32.xlu0 %v5941
      %v5943 = vpop.xlane.xlu0 %5942
      %v5944 = vsel %vm4494, %v5462, 0.0
      %5945 = vadd.xlane.f32.xlu0 %v5944
      %v5946 = vpop.xlane.xlu0 %5945
      %v5947 = vsel %vm4494, %v5464, 0.0
      %5948 = vadd.xlane.f32.xlu0 %v5947
      %v5949 = vpop.xlane.xlu0 %5948
      %v5950 = vsel %vm4494, %v5466, 0.0
      %5951 = vadd.xlane.f32.xlu0 %v5950
      %v5952 = vpop.xlane.xlu0 %5951
      %v5953 = vsel %vm4494, %v5468, 0.0
      %5954 = vadd.xlane.f32.xlu0 %v5953
      %v5955 = vpop.xlane.xlu0 %5954
      %v5956 = vsel %vm4494, %v5470, 0.0
      %5957 = vadd.xlane.f32.xlu0 %v5956
      %v5958 = vpop.xlane.xlu0 %5957
      %v5959 = vsel %vm4494, %v5472, 0.0
      %5960 = vadd.xlane.f32.xlu0 %v5959
      %v5961 = vpop.xlane.xlu0 %5960
      %v5962 = vsel %vm4494, %v5474, 0.0
      %5963 = vadd.xlane.f32.xlu0 %v5962
      %v5964 = vpop.xlane.xlu0 %5963
      %v5965 = vsel %vm4494, %v5476, 0.0
      %5966 = vadd.xlane.f32.xlu0 %v5965
      %v5967 = vpop.xlane.xlu0 %5966
      %v5968 = vsel %vm4494, %v5478, 0.0
      %5969 = vadd.xlane.f32.xlu0 %v5968
      %v5970 = vpop.xlane.xlu0 %5969
      %v5971 = vsel %vm4494, %v5480, 0.0
      %5972 = vadd.xlane.f32.xlu0 %v5971
      %v5973 = vpop.xlane.xlu0 %5972
      %v5974 = vsel %vm4494, %v5482, 0.0
      %5975 = vadd.xlane.f32.xlu0 %v5974
      %v5976 = vpop.xlane.xlu0 %5975
      %v5977 = vsel %vm4494, %v5484, 0.0
      %5978 = vadd.xlane.f32.xlu0 %v5977
      %v5979 = vpop.xlane.xlu0 %5978
      %v5980 = vsel %vm4494, %v5486, 0.0
      %5981 = vadd.xlane.f32.xlu0 %v5980
      %v5982 = vpop.xlane.xlu0 %5981
      %v5983 = vsel %vm4494, %v5488, 0.0
      %5984 = vadd.xlane.f32.xlu0 %v5983
      %v5985 = vpop.xlane.xlu0 %5984
      %v5986 = vsel %vm4494, %v5490, 0.0
      %5987 = vadd.xlane.f32.xlu0 %v5986
      %v5988 = vpop.xlane.xlu0 %5987
      %v5989 = vsel %vm4494, %v5492, 0.0
      %5990 = vadd.xlane.f32.xlu0 %v5989
      %v5991 = vpop.xlane.xlu0 %5990
      %v5992 = vsel %vm4494, %v5494, 0.0
      %5993 = vadd.xlane.f32.xlu0 %v5992
      %v5994 = vpop.xlane.xlu0 %5993
      %v5995 = vsel %vm4494, %v5496, 0.0
      %5996 = vadd.xlane.f32.xlu0 %v5995
      %v5997 = vpop.xlane.xlu0 %5996
      %v5998 = vsel %vm4494, %v5498, 0.0
      %5999 = vadd.xlane.f32.xlu0 %v5998
      %v6000 = vpop.xlane.xlu0 %5999
      %v6001 = vsel %vm4494, %v5500, 0.0
      %6002 = vadd.xlane.f32.xlu0 %v6001
      %v6003 = vpop.xlane.xlu0 %6002
      %v6004 = vsel %vm4494, %v5502, 0.0
      %6005 = vadd.xlane.f32.xlu0 %v6004
      %v6006 = vpop.xlane.xlu0 %6005
      %v6007 = vsel %vm4494, %v5504, 0.0
      %6008 = vadd.xlane.f32.xlu0 %v6007
      %v6009 = vpop.xlane.xlu0 %6008
      %v6010 = vsel %vm4494, %v5506, 0.0
      %6011 = vadd.xlane.f32.xlu0 %v6010
      %v6012 = vpop.xlane.xlu0 %6011
      %v6013 = vsel %vm4494, %v5508, 0.0
      %6014 = vadd.xlane.f32.xlu0 %v6013
      %v6015 = vpop.xlane.xlu0 %6014
      %v6016 = vsel %vm4494, %v5510, 0.0
      %6017 = vadd.xlane.f32.xlu0 %v6016
      %v6018 = vpop.xlane.xlu0 %6017
      %v6019 = vsel %vm4494, %v5512, 0.0
      %6020 = vadd.xlane.f32.xlu0 %v6019
      %v6021 = vpop.xlane.xlu0 %6020
      %v6022 = vsel %vm4494, %v5514, 0.0
      %6023 = vadd.xlane.f32.xlu0 %v6022
      %v6024 = vpop.xlane.xlu0 %6023
      %v6025 = vsel %vm4494, %v5516, 0.0
      %6026 = vadd.xlane.f32.xlu0 %v6025
      %v6027 = vpop.xlane.xlu0 %6026
      %v6028 = vsel %vm4494, %v5518, 0.0
      %6029 = vadd.xlane.f32.xlu0 %v6028
      %v6030 = vpop.xlane.xlu0 %6029
      %v6031 = vsel %vm4494, %v5520, 0.0
      %6032 = vadd.xlane.f32.xlu0 %v6031
      %v6033 = vpop.xlane.xlu0 %6032
      %v6034 = vsel %vm4494, %v5522, 0.0
      %6035 = vadd.xlane.f32.xlu0 %v6034
      %v6036 = vpop.xlane.xlu0 %6035
      %v6037 = vsel %vm4494, %v5524, 0.0
      %6038 = vadd.xlane.f32.xlu0 %v6037
      %v6039 = vpop.xlane.xlu0 %6038
      %v6040 = vsel %vm4494, %v5526, 0.0
      %6041 = vadd.xlane.f32.xlu0 %v6040
      %v6042 = vpop.xlane.xlu0 %6041
      %v6043 = vsel %vm4494, %v5528, 0.0
      %6044 = vadd.xlane.f32.xlu0 %v6043
      %v6045 = vpop.xlane.xlu0 %6044
      %v6046 = vsel %vm4494, %v5530, 0.0
      %6047 = vadd.xlane.f32.xlu0 %v6046
      %v6048 = vpop.xlane.xlu0 %6047
      %v6049 = vsel %vm4494, %v5532, 0.0
      %6050 = vadd.xlane.f32.xlu0 %v6049
      %v6051 = vpop.xlane.xlu0 %6050
      %v6052 = vsel %vm4494, %v5534, 0.0
      %6053 = vadd.xlane.f32.xlu0 %v6052
      %v6054 = vpop.xlane.xlu0 %6053
      %v6055 = vsel %vm4494, %v5536, 0.0
      %6056 = vadd.xlane.f32.xlu0 %v6055
      %v6057 = vpop.xlane.xlu0 %6056
      %v6058 = vsel %vm4494, %v5538, 0.0
      %6059 = vadd.xlane.f32.xlu0 %v6058
      %v6060 = vpop.xlane.xlu0 %6059
      %v6061 = vsel %vm4494, %v5540, 0.0
      %6062 = vadd.xlane.f32.xlu0 %v6061
      %v6063 = vpop.xlane.xlu0 %6062
      %v6064 = vsel %vm4494, %v5542, 0.0
      %6065 = vadd.xlane.f32.xlu0 %v6064
      %v6066 = vpop.xlane.xlu0 %6065
      %v6067 = vsel %vm4494, %v5544, 0.0
      %6068 = vadd.xlane.f32.xlu0 %v6067
      %v6069 = vpop.xlane.xlu0 %6068
      %v6070 = vsel %vm4494, %v5546, 0.0
      %6071 = vadd.xlane.f32.xlu0 %v6070
      %v6072 = vpop.xlane.xlu0 %6071
      %v6073 = vsel %vm4494, %v5548, 0.0
      %6074 = vadd.xlane.f32.xlu0 %v6073
      %v6075 = vpop.xlane.xlu0 %6074
      %v6076 = vsel %vm4494, %v5550, 0.0
      %6077 = vadd.xlane.f32.xlu0 %v6076
      %v6078 = vpop.xlane.xlu0 %6077
      %v6079 = vsel %vm4494, %v5552, 0.0
      %6080 = vadd.xlane.f32.xlu0 %v6079
      %v6081 = vpop.xlane.xlu0 %6080
      %v6082 = vsel %vm4494, %v5554, 0.0
      %6083 = vadd.xlane.f32.xlu0 %v6082
      %v6084 = vpop.xlane.xlu0 %6083
      %v6085 = vsel %vm4494, %v5556, 0.0
      %6086 = vadd.xlane.f32.xlu0 %v6085
      %v6087 = vpop.xlane.xlu0 %6086
      %v6088 = vsel %vm4494, %v5558, 0.0
      %6089 = vadd.xlane.f32.xlu0 %v6088
      %v6090 = vpop.xlane.xlu0 %6089
      %v6091 = vsel %vm4494, %v5560, 0.0
      %6092 = vadd.xlane.f32.xlu0 %v6091
      %v6093 = vpop.xlane.xlu0 %6092
      %v6094 = vsel %vm4494, %v5562, 0.0
      %6095 = vadd.xlane.f32.xlu0 %v6094
      %v6096 = vpop.xlane.xlu0 %6095
      %v6097 = vsel %vm4494, %v5564, 0.0
      %6098 = vadd.xlane.f32.xlu0 %v6097
      %v6099 = vpop.xlane.xlu0 %6098
      %v6100 = vsel %vm4494, %v5566, 0.0
      %6101 = vadd.xlane.f32.xlu0 %v6100
      %v6102 = vpop.xlane.xlu0 %6101
      %v6103 = vsel %vm4494, %v5568, 0.0
      %6104 = vadd.xlane.f32.xlu0 %v6103
      %v6105 = vpop.xlane.xlu0 %6104
      %v6106 = vsel %vm4494, %v5570, 0.0
      %6107 = vadd.xlane.f32.xlu0 %v6106
      %v6108 = vpop.xlane.xlu0 %6107
      %v6109 = vsel %vm4494, %v5572, 0.0
      %6110 = vadd.xlane.f32.xlu0 %v6109
      %v6111 = vpop.xlane.xlu0 %6110
      %v6112 = vsel %vm4494, %v5574, 0.0
      %6113 = vadd.xlane.f32.xlu0 %v6112
      %v6114 = vpop.xlane.xlu0 %6113
      %v6115 = vsel %vm4494, %v5576, 0.0
      %6116 = vadd.xlane.f32.xlu0 %v6115
      %v6117 = vpop.xlane.xlu0 %6116
      %v6118 = vsel %vm4494, %v5578, 0.0
      %6119 = vadd.xlane.f32.xlu0 %v6118
      %v6120 = vpop.xlane.xlu0 %6119
      %v6121 = vsel %vm4494, %v5580, 0.0
      %6122 = vadd.xlane.f32.xlu0 %v6121
      %v6123 = vpop.xlane.xlu0 %6122
      %v6124 = vsel %vm4494, %v5582, 0.0
      %6125 = vadd.xlane.f32.xlu0 %v6124
      %v6126 = vpop.xlane.xlu0 %6125
      %v6127 = vsel %vm4494, %v5584, 0.0
      %6128 = vadd.xlane.f32.xlu0 %v6127
      %v6129 = vpop.xlane.xlu0 %6128
      %v6130 = vsel %vm4494, %v5586, 0.0
      %6131 = vadd.xlane.f32.xlu0 %v6130
      %v6132 = vpop.xlane.xlu0 %6131
      %v6133 = vsel %vm4494, %v5588, 0.0
      %6134 = vadd.xlane.f32.xlu0 %v6133
      %v6135 = vpop.xlane.xlu0 %6134
      %v6136 = vsel %vm4494, %v5590, 0.0
      %6137 = vadd.xlane.f32.xlu0 %v6136
      %v6138 = vpop.xlane.xlu0 %6137
      %v6139 = vsel %vm4494, %v5592, 0.0
      %6140 = vadd.xlane.f32.xlu0 %v6139
      %v6141 = vpop.xlane.xlu0 %6140
      %v6142 = vsel %vm4494, %v5594, 0.0
      %6143 = vadd.xlane.f32.xlu0 %v6142
      %v6144 = vpop.xlane.xlu0 %6143
      %v6145 = vsel %vm4494, %v5596, 0.0
      %6146 = vadd.xlane.f32.xlu0 %v6145
      %v6147 = vpop.xlane.xlu0 %6146
      %v6148 = vsel %vm4494, %v5598, 0.0
      %6149 = vadd.xlane.f32.xlu0 %v6148
      %v6150 = vpop.xlane.xlu0 %6149
      %v6151 = vsel %vm4494, %v5600, 0.0
      %6152 = vadd.xlane.f32.xlu0 %v6151
      %v6153 = vpop.xlane.xlu0 %6152
      %v6154 = vsel %vm4494, %v5602, 0.0
      %6155 = vadd.xlane.f32.xlu0 %v6154
      %v6156 = vpop.xlane.xlu0 %6155
      %v6157 = vsel %vm4494, %v5604, 0.0
      %6158 = vadd.xlane.f32.xlu0 %v6157
      %v6159 = vpop.xlane.xlu0 %6158
      %v6160 = vsel %vm4494, %v5606, 0.0
      %6161 = vadd.xlane.f32.xlu0 %v6160
      %v6162 = vpop.xlane.xlu0 %6161
      %v6163 = vsel %vm4494, %v5608, 0.0
      %6164 = vadd.xlane.f32.xlu0 %v6163
      %v6165 = vpop.xlane.xlu0 %6164
      %v6166 = vsel %vm4494, %v5610, 0.0
      %6167 = vadd.xlane.f32.xlu0 %v6166
      %v6168 = vpop.xlane.xlu0 %6167
      %v6169 = vsel %vm4494, %v5612, 0.0
      %6170 = vadd.xlane.f32.xlu0 %v6169
      %v6171 = vpop.xlane.xlu0 %6170
      %v6172 = vsel %vm4494, %v5614, 0.0
      %6173 = vadd.xlane.f32.xlu0 %v6172
      %v6174 = vpop.xlane.xlu0 %6173
      %v6175 = vsel %vm4494, %v5616, 0.0
      %6176 = vadd.xlane.f32.xlu0 %v6175
      %v6177 = vpop.xlane.xlu0 %6176
      %v6178 = vsel %vm4494, %v5618, 0.0
      %6179 = vadd.xlane.f32.xlu0 %v6178
      %v6180 = vpop.xlane.xlu0 %6179
      %v6181 = vsel %vm4494, %v5620, 0.0
      %6182 = vadd.xlane.f32.xlu0 %v6181
      %v6183 = vpop.xlane.xlu0 %6182
      %v6184 = vsel %vm4494, %v5622, 0.0
      %6185 = vadd.xlane.f32.xlu0 %v6184
      %v6186 = vpop.xlane.xlu0 %6185
      %v6187 = vsel %vm4494, %v5624, 0.0
      %6188 = vadd.xlane.f32.xlu0 %v6187
      %v6189 = vpop.xlane.xlu0 %6188
      %v6190 = vsel %vm4494, %v5626, 0.0
      %6191 = vadd.xlane.f32.xlu0 %v6190
      %v6192 = vpop.xlane.xlu0 %6191
      %v6193 = vsel %vm4494, %v5628, 0.0
      %6194 = vadd.xlane.f32.xlu0 %v6193
      %v6195 = vpop.xlane.xlu0 %6194
      %v6196 = vsel %vm4494, %v5630, 0.0
      %6197 = vadd.xlane.f32.xlu0 %v6196
      %v6198 = vpop.xlane.xlu0 %6197
      %v6199 = vsel %vm4494, %v5632, 0.0
      %6200 = vadd.xlane.f32.xlu0 %v6199
      %v6201 = vpop.xlane.xlu0 %6200
      %v6202 = vsel %vm4494, %v5634, 0.0
      %6203 = vadd.xlane.f32.xlu0 %v6202
      %v6204 = vpop.xlane.xlu0 %6203
      %v6205 = vsel %vm4494, %v5636, 0.0
      %6206 = vadd.xlane.f32.xlu0 %v6205
      %v6207 = vpop.xlane.xlu0 %6206
      %v6208 = vsel %vm4494, %v5638, 0.0
      %6209 = vadd.xlane.f32.xlu0 %v6208
      %v6210 = vpop.xlane.xlu0 %6209
      %v6211 = vsel %vm4494, %v5640, 0.0
      %6212 = vadd.xlane.f32.xlu0 %v6211
      %v6213 = vpop.xlane.xlu0 %6212
      %v6214 = vsel %vm4494, %v5642, 0.0
      %6215 = vadd.xlane.f32.xlu0 %v6214
      %v6216 = vpop.xlane.xlu0 %6215
      %v6217 = vsel %vm4494, %v5644, 0.0
      %6218 = vadd.xlane.f32.xlu0 %v6217
      %v6219 = vpop.xlane.xlu0 %6218
      %v6220 = vsel %vm4494, %v5646, 0.0
      %6221 = vadd.xlane.f32.xlu0 %v6220
      %v6222 = vpop.xlane.xlu0 %6221
      %v6223 = vsel %vm4494, %v5648, 0.0
      %6224 = vadd.xlane.f32.xlu0 %v6223
      %v6225 = vpop.xlane.xlu0 %6224
      %v6226 = vsel %vm4494, %v5650, 0.0
      %6227 = vadd.xlane.f32.xlu0 %v6226
      %v6228 = vpop.xlane.xlu0 %6227
      %v6229 = vsel %vm4494, %v5652, 0.0
      %6230 = vadd.xlane.f32.xlu0 %v6229
      %v6231 = vpop.xlane.xlu0 %6230
      %v6232 = vsel %vm4494, %v5654, 0.0
      %6233 = vadd.xlane.f32.xlu0 %v6232
      %v6234 = vpop.xlane.xlu0 %6233
      %v6235 = vsel %vm4494, %v5656, 0.0
      %6236 = vadd.xlane.f32.xlu0 %v6235
      %v6237 = vpop.xlane.xlu0 %6236
      %v6238 = vsel %vm4494, %v5658, 0.0
      %6239 = vadd.xlane.f32.xlu0 %v6238
      %v6240 = vpop.xlane.xlu0 %6239
      %v6241 = vsel %vm4494, %v5660, 0.0
      %6242 = vadd.xlane.f32.xlu0 %v6241
      %v6243 = vpop.xlane.xlu0 %6242
      %v6244 = vsel %vm4494, %v5662, 0.0
      %6245 = vadd.xlane.f32.xlu0 %v6244
      %v6246 = vpop.xlane.xlu0 %6245
      %v6247 = vsel %vm4494, %v5664, 0.0
      %6248 = vadd.xlane.f32.xlu0 %v6247
      %v6249 = vpop.xlane.xlu0 %6248
      %v6250 = vsel %vm4494, %v5666, 0.0
      %6251 = vadd.xlane.f32.xlu0 %v6250
      %v6252 = vpop.xlane.xlu0 %6251
      %v6253 = vsel %vm4494, %v5668, 0.0
      %6254 = vadd.xlane.f32.xlu0 %v6253
      %v6255 = vpop.xlane.xlu0 %6254
      %v6256 = vsel %vm4494, %v5670, 0.0
      %6257 = vadd.xlane.f32.xlu0 %v6256
      %v6258 = vpop.xlane.xlu0 %6257
      %v6259 = vsel %vm4494, %v5672, 0.0
      %6260 = vadd.xlane.f32.xlu0 %v6259
      %v6261 = vpop.xlane.xlu0 %6260
      %v6262 = vsel %vm4494, %v5674, 0.0
      %6263 = vadd.xlane.f32.xlu0 %v6262
      %v6264 = vpop.xlane.xlu0 %6263
      %v6265 = vsel %vm4494, %v5676, 0.0
      %6266 = vadd.xlane.f32.xlu0 %v6265
      %v6267 = vpop.xlane.xlu0 %6266
      %v6268 = vsel %vm4494, %v5678, 0.0
      %6269 = vadd.xlane.f32.xlu0 %v6268
      %v6270 = vpop.xlane.xlu0 %6269
      %v6271 = vsel %vm4494, %v5680, 0.0
      %6272 = vadd.xlane.f32.xlu0 %v6271
      %v6273 = vpop.xlane.xlu0 %6272
      %v6274 = vsel %vm4494, %v5682, 0.0
      %6275 = vadd.xlane.f32.xlu0 %v6274
      %v6276 = vpop.xlane.xlu0 %6275
      %v6277 = vsel %vm4494, %v5684, 0.0
      %6278 = vadd.xlane.f32.xlu0 %v6277
      %v6279 = vpop.xlane.xlu0 %6278
      %v6280 = vsel %vm4494, %v5686, 0.0
      %6281 = vadd.xlane.f32.xlu0 %v6280
      %v6282 = vpop.xlane.xlu0 %6281
      %v6283 = vsel %vm4494, %v5688, 0.0
      %6284 = vadd.xlane.f32.xlu0 %v6283
      %v6285 = vpop.xlane.xlu0 %6284
      %v6286 = vsel %vm4494, %v5690, 0.0
      %6287 = vadd.xlane.f32.xlu0 %v6286
      %v6288 = vpop.xlane.xlu0 %6287
      %v6289 = vsel %vm4494, %v5692, 0.0
      %6290 = vadd.xlane.f32.xlu0 %v6289
      %v6291 = vpop.xlane.xlu0 %6290
      %v6292 = vsel %vm4494, %v5694, 0.0
      %6293 = vadd.xlane.f32.xlu0 %v6292
      %v6294 = vpop.xlane.xlu0 %6293
      %v6295 = vsel %vm4494, %v5696, 0.0
      %6296 = vadd.xlane.f32.xlu0 %v6295
      %v6297 = vpop.xlane.xlu0 %6296
      %v6298 = vsel %vm4494, %v5698, 0.0
      %6299 = vadd.xlane.f32.xlu0 %v6298
      %v6300 = vpop.xlane.xlu0 %6299
      %v6301 = vsel %vm4494, %v5700, 0.0
      %6302 = vadd.xlane.f32.xlu0 %v6301
      %v6303 = vpop.xlane.xlu0 %6302
      %v6304 = vsel %vm4494, %v5702, 0.0
      %6305 = vadd.xlane.f32.xlu0 %v6304
      %v6306 = vpop.xlane.xlu0 %6305
      %v6307 = vsel %vm4494, %v5704, 0.0
      %6308 = vadd.xlane.f32.xlu0 %v6307
      %v6309 = vpop.xlane.xlu0 %6308
      %v6310 = vsel %vm4494, %v5706, 0.0
      %6311 = vadd.xlane.f32.xlu0 %v6310
      %v6312 = vpop.xlane.xlu0 %6311
      %v6313 = vsel %vm4494, %v5708, 0.0
      %6314 = vadd.xlane.f32.xlu0 %v6313
      %v6315 = vpop.xlane.xlu0 %6314
      %v6316 = vsel %vm4494, %v5710, 0.0
      %6317 = vadd.xlane.f32.xlu0 %v6316
      %v6318 = vpop.xlane.xlu0 %6317
      %v6319 = vsel %vm4494, %v5712, 0.0
      %6320 = vadd.xlane.f32.xlu0 %v6319
      %v6321 = vpop.xlane.xlu0 %6320
      %v6322 = vsel %vm4494, %v5714, 0.0
      %6323 = vadd.xlane.f32.xlu0 %v6322
      %v6324 = vpop.xlane.xlu0 %6323
      %v6325 = vsel %vm4494, %v5716, 0.0
      %6326 = vadd.xlane.f32.xlu0 %v6325
      %v6327 = vpop.xlane.xlu0 %6326
      %v6328 = vsel %vm4494, %v5718, 0.0
      %6329 = vadd.xlane.f32.xlu0 %v6328
      %v6330 = vpop.xlane.xlu0 %6329
      %v6331 = vsel %vm4494, %v5720, 0.0
      %6332 = vadd.xlane.f32.xlu0 %v6331
      %v6333 = vpop.xlane.xlu0 %6332
      %v6334 = vsel %vm4494, %v5722, 0.0
      %6335 = vadd.xlane.f32.xlu0 %v6334
      %v6336 = vpop.xlane.xlu0 %6335
      %v6337 = vsel %vm4494, %v5724, 0.0
      %6338 = vadd.xlane.f32.xlu0 %v6337
      %v6339 = vpop.xlane.xlu0 %6338
      %v6340 = vsel %vm4494, %v5726, 0.0
      %6341 = vadd.xlane.f32.xlu0 %v6340
      %v6342 = vpop.xlane.xlu0 %6341
      %v6343 = vsel %vm4494, %v5728, 0.0
      %6344 = vadd.xlane.f32.xlu0 %v6343
      %v6345 = vpop.xlane.xlu0 %6344
      %v6346 = vsel %vm4494, %v5730, 0.0
      %6347 = vadd.xlane.f32.xlu0 %v6346
      %v6348 = vpop.xlane.xlu0 %6347
      %v6349 = vsel %vm4494, %v5732, 0.0
      %6350 = vadd.xlane.f32.xlu0 %v6349
      %v6351 = vpop.xlane.xlu0 %6350
      %v6352 = vsel %vm4494, %v5734, 0.0
      %6353 = vadd.xlane.f32.xlu0 %v6352
      %v6354 = vpop.xlane.xlu0 %6353
      %v6355 = vsel %vm4494, %v5736, 0.0
      %6356 = vadd.xlane.f32.xlu0 %v6355
      %v6357 = vpop.xlane.xlu0 %6356
      %v6358 = vsel %vm4494, %v5738, 0.0
      %6359 = vadd.xlane.f32.xlu0 %v6358
      %v6360 = vpop.xlane.xlu0 %6359
      %v6361 = vsel %vm4494, %v5740, 0.0
      %6362 = vadd.xlane.f32.xlu0 %v6361
      %v6363 = vpop.xlane.xlu0 %6362
      %v6364 = vsel %vm4494, %v5742, 0.0
      %6365 = vadd.xlane.f32.xlu0 %v6364
      %v6366 = vpop.xlane.xlu0 %6365
      %v6367 = vsel %vm4494, %v5744, 0.0
      %6368 = vadd.xlane.f32.xlu0 %v6367
      %v6369 = vpop.xlane.xlu0 %6368
      %v6370 = vsel %vm4494, %v5746, 0.0
      %6371 = vadd.xlane.f32.xlu0 %v6370
      %v6372 = vpop.xlane.xlu0 %6371
      %v6373 = vsel %vm4494, %v5748, 0.0
      %6374 = vadd.xlane.f32.xlu0 %v6373
      %v6375 = vpop.xlane.xlu0 %6374
      %v6376 = vsel %vm4494, %v5750, 0.0
      %6377 = vadd.xlane.f32.xlu0 %v6376
      %v6378 = vpop.xlane.xlu0 %6377
      %v6379 = vsel %vm4494, %v5752, 0.0
      %6380 = vadd.xlane.f32.xlu0 %v6379
      %v6381 = vpop.xlane.xlu0 %6380
      %v6382 = vsel %vm4494, %v5754, 0.0
      %6383 = vadd.xlane.f32.xlu0 %v6382
      %v6384 = vpop.xlane.xlu0 %6383
      %v6385 = vsel %vm4494, %v5756, 0.0
      %6386 = vadd.xlane.f32.xlu0 %v6385
      %v6387 = vpop.xlane.xlu0 %6386
      %v6388 = vsel %vm4494, %v5758, 0.0
      %6389 = vadd.xlane.f32.xlu0 %v6388
      %v6390 = vpop.xlane.xlu0 %6389
      %v6391 = vsel %vm4494, %v5760, 0.0
      %6392 = vadd.xlane.f32.xlu0 %v6391
      %v6393 = vpop.xlane.xlu0 %6392
      %v6394 = vsel %vm4494, %v5762, 0.0
      %6395 = vadd.xlane.f32.xlu0 %v6394
      %v6396 = vpop.xlane.xlu0 %6395
      %v6397 = vsel %vm4494, %v5764, 0.0
      %6398 = vadd.xlane.f32.xlu0 %v6397
      %v6399 = vpop.xlane.xlu0 %6398
      %v6400 = vsel %vm4494, %v5766, 0.0
      %6401 = vadd.xlane.f32.xlu0 %v6400
      %v6402 = vpop.xlane.xlu0 %6401
      %v6403 = vsel %vm4494, %v5768, 0.0
      %6404 = vadd.xlane.f32.xlu0 %v6403
      %v6405 = vpop.xlane.xlu0 %6404
      %v6406 = vsel %vm4494, %v5770, 0.0
      %6407 = vadd.xlane.f32.xlu0 %v6406
      %v6408 = vpop.xlane.xlu0 %6407
      %v6409 = vsel %vm4494, %v5772, 0.0
      %6410 = vadd.xlane.f32.xlu0 %v6409
      %v6411 = vpop.xlane.xlu0 %6410
      %v6412 = vsel %vm4494, %v5774, 0.0
      %6413 = vadd.xlane.f32.xlu0 %v6412
      %v6414 = vpop.xlane.xlu0 %6413
      %v6415 = vsel %vm4494, %v5776, 0.0
      %6416 = vadd.xlane.f32.xlu0 %v6415
      %v6417 = vpop.xlane.xlu0 %6416
      %v6418 = vsel %vm4494, %v5778, 0.0
      %6419 = vadd.xlane.f32.xlu0 %v6418
      %v6420 = vpop.xlane.xlu0 %6419
      %v6421 = vsel %vm4494, %v5780, 0.0
      %6422 = vadd.xlane.f32.xlu0 %v6421
      %v6423 = vpop.xlane.xlu0 %6422
      %v6424 = vsel %vm4494, %v5782, 0.0
      %6425 = vadd.xlane.f32.xlu0 %v6424
      %v6426 = vpop.xlane.xlu0 %6425
      %v6427 = vsel %vm4494, %v5784, 0.0
      %6428 = vadd.xlane.f32.xlu0 %v6427
      %v6429 = vpop.xlane.xlu0 %6428
      %v6430 = vsel %vm4494, %v5786, 0.0
      %6431 = vadd.xlane.f32.xlu0 %v6430
      %v6432 = vpop.xlane.xlu0 %6431
      %v6433 = vsel %vm4494, %v5788, 0.0
      %6434 = vadd.xlane.f32.xlu0 %v6433
      %v6435 = vpop.xlane.xlu0 %6434
      %v6436 = vsel %vm4494, %v5790, 0.0
      %6437 = vadd.xlane.f32.xlu0 %v6436
      %v6438 = vpop.xlane.xlu0 %6437
      %v6439 = vpack.c.bf16 %v5362, %v5360
      %v6440 = vpack.c.bf16 %v5366, %v5364
      %v6441 = vpack.c.bf16 %v5370, %v5368
      %v6442 = vpack.c.bf16 %v5374, %v5372
      %v6443 = vpack.c.bf16 %v5378, %v5376
      %v6444 = vpack.c.bf16 %v5382, %v5380
      %v6445 = vpack.c.bf16 %v5386, %v5384
      %v6446 = vpack.c.bf16 %v5390, %v5388
      %v6447 = vpack.c.bf16 %v5394, %v5392
      %v6448 = vpack.c.bf16 %v5398, %v5396
      %v6449 = vpack.c.bf16 %v5402, %v5400
      %v6450 = vpack.c.bf16 %v5406, %v5404
      %v6451 = vpack.c.bf16 %v5410, %v5408
      %v6452 = vpack.c.bf16 %v5412, %v5412
      %v6453 = vpack.c.bf16 %v5416, %v5414
      %v6454 = vpack.c.bf16 %v5420, %v5418
      %v6455 = vpack.c.bf16 %v5424, %v5422
      %v6456 = vpack.c.bf16 %v5428, %v5426
      %v6457 = vpack.c.bf16 %v5432, %v5430
      %v6458 = vpack.c.bf16 %v5436, %v5434
      %v6459 = vpack.c.bf16 %v5440, %v5438
      %v6460 = vpack.c.bf16 %v5444, %v5442
      %v6461 = vpack.c.bf16 %v5448, %v5446
      %v6462 = vpack.c.bf16 %v5452, %v5450
      %v6463 = vpack.c.bf16 %v5456, %v5454
      %v6464 = vpack.c.bf16 %v5460, %v5458
      %v6465 = vpack.c.bf16 %v5464, %v5462
      %v6466 = vpack.c.bf16 %v5466, %v5466
      %v6467 = vpack.c.bf16 %v5470, %v5468
      %v6468 = vpack.c.bf16 %v5474, %v5472
      %v6469 = vpack.c.bf16 %v5478, %v5476
      %v6470 = vpack.c.bf16 %v5482, %v5480
      %v6471 = vpack.c.bf16 %v5486, %v5484
      %v6472 = vpack.c.bf16 %v5490, %v5488
      %v6473 = vpack.c.bf16 %v5494, %v5492
      %v6474 = vpack.c.bf16 %v5498, %v5496
      %v6475 = vpack.c.bf16 %v5502, %v5500
      %v6476 = vpack.c.bf16 %v5506, %v5504
      %v6477 = vpack.c.bf16 %v5510, %v5508
      %v6478 = vpack.c.bf16 %v5514, %v5512
      %v6479 = vpack.c.bf16 %v5518, %v5516
      %v6480 = vpack.c.bf16 %v5520, %v5520
      %v6481 = vpack.c.bf16 %v5524, %v5522
      %v6482 = vpack.c.bf16 %v5528, %v5526
      %v6483 = vpack.c.bf16 %v5532, %v5530
      %v6484 = vpack.c.bf16 %v5536, %v5534
      %v6485 = vpack.c.bf16 %v5540, %v5538
      %v6486 = vpack.c.bf16 %v5544, %v5542
      %v6487 = vpack.c.bf16 %v5548, %v5546
      %v6488 = vpack.c.bf16 %v5552, %v5550
      %v6489 = vpack.c.bf16 %v5556, %v5554
      %v6490 = vpack.c.bf16 %v5560, %v5558
      %v6491 = vpack.c.bf16 %v5564, %v5562
      %v6492 = vpack.c.bf16 %v5568, %v5566
      %v6493 = vpack.c.bf16 %v5572, %v5570
      %v6494 = vpack.c.bf16 %v5574, %v5574
      %v6495 = vpack.c.bf16 %v5578, %v5576
      %v6496 = vpack.c.bf16 %v5582, %v5580
      %v6497 = vpack.c.bf16 %v5586, %v5584
      %v6498 = vpack.c.bf16 %v5590, %v5588
      %v6499 = vpack.c.bf16 %v5594, %v5592
      %v6500 = vpack.c.bf16 %v5598, %v5596
      %v6501 = vpack.c.bf16 %v5602, %v5600
      %v6502 = vpack.c.bf16 %v5606, %v5604
      %v6503 = vpack.c.bf16 %v5610, %v5608
      %v6504 = vpack.c.bf16 %v5614, %v5612
      %v6505 = vpack.c.bf16 %v5618, %v5616
      %v6506 = vpack.c.bf16 %v5622, %v5620
      %v6507 = vpack.c.bf16 %v5626, %v5624
      %v6508 = vpack.c.bf16 %v5628, %v5628
      %v6509 = vpack.c.bf16 %v5632, %v5630
      %v6510 = vpack.c.bf16 %v5636, %v5634
      %v6511 = vpack.c.bf16 %v5640, %v5638
      %v6512 = vpack.c.bf16 %v5644, %v5642
      %v6513 = vpack.c.bf16 %v5648, %v5646
      %v6514 = vpack.c.bf16 %v5652, %v5650
      %v6515 = vpack.c.bf16 %v5656, %v5654
      %v6516 = vpack.c.bf16 %v5660, %v5658
      %v6517 = vpack.c.bf16 %v5664, %v5662
      %v6518 = vpack.c.bf16 %v5668, %v5666
      %v6519 = vpack.c.bf16 %v5672, %v5670
      %v6520 = vpack.c.bf16 %v5676, %v5674
      %v6521 = vpack.c.bf16 %v5680, %v5678
      %v6522 = vpack.c.bf16 %v5682, %v5682
      %v6523 = vpack.c.bf16 %v5686, %v5684
      %v6524 = vpack.c.bf16 %v5690, %v5688
      %v6525 = vpack.c.bf16 %v5694, %v5692
      %v6526 = vpack.c.bf16 %v5698, %v5696
      %v6527 = vpack.c.bf16 %v5702, %v5700
      %v6528 = vpack.c.bf16 %v5706, %v5704
      %v6529 = vpack.c.bf16 %v5710, %v5708
      %v6530 = vpack.c.bf16 %v5714, %v5712
      %v6531 = vpack.c.bf16 %v5718, %v5716
      %v6532 = vpack.c.bf16 %v5722, %v5720
      %v6533 = vpack.c.bf16 %v5726, %v5724
      %v6534 = vpack.c.bf16 %v5730, %v5728
      %v6535 = vpack.c.bf16 %v5734, %v5732
      %v6536 = vpack.c.bf16 %v5736, %v5736
      %v6537 = vpack.c.bf16 %v5740, %v5738
      %v6538 = vpack.c.bf16 %v5744, %v5742
      %v6539 = vpack.c.bf16 %v5748, %v5746
      %v6540 = vpack.c.bf16 %v5752, %v5750
      %v6541 = vpack.c.bf16 %v5756, %v5754
      %v6542 = vpack.c.bf16 %v5760, %v5758
      %v6543 = vpack.c.bf16 %v5764, %v5762
      %v6544 = vpack.c.bf16 %v5768, %v5766
      %v6545 = vpack.c.bf16 %v5772, %v5770
      %v6546 = vpack.c.bf16 %v5776, %v5774
      %v6547 = vpack.c.bf16 %v5780, %v5778
      %v6548 = vpack.c.bf16 %v5784, %v5782
      %v6549 = vpack.c.bf16 %v5788, %v5786
      %v6550 = vpack.c.bf16 %v5790, %v5790
      %v6565 = vunpack.c.l.b16 %v1685
      %v6566 = vunpack.c.l.b16 %v1686
      %v6567 = vunpack.c.l.b16 %v1687
      %v6568 = vunpack.c.l.b16 %v1688
      %v6569 = vunpack.c.l.b16 %v1689
      %v6570 = vunpack.c.l.b16 %v1690
      %v6571 = vunpack.c.l.b16 %v1691
      %v6572 = vunpack.c.l.b16 %v1692
      %v6573 = vunpack.c.l.b16 %v1693
      %v6574 = vunpack.c.l.b16 %v1694
      %v6575 = vunpack.c.l.b16 %v1695
      %v6576 = vunpack.c.l.b16 %v1696
      %v6577 = vunpack.c.l.b16 %v1697
      %v6578 = vunpack.c.l.b16 %v1698
      %v6579 = vpack.c.b16 %v6566, %v6565
      %v6580 = vpack.c.b16 %v6568, %v6567
      %v6581 = vpack.c.b16 %v6570, %v6569
      %v6582 = vpack.c.b16 %v6572, %v6571
      %v6583 = vpack.c.b16 %v6574, %v6573
      %v6584 = vpack.c.b16 %v6576, %v6575
      %v6585 = vpack.c.b16 %v6578, %v6577
      %v6593 = vsel %vm4494, %v6439, 0
      %v6596 = vsel %vm4494, %v6440, 0
      %v6599 = vsel %vm4494, %v6441, 0
      %v6602 = vsel %vm4494, %v6442, 0
      %v6605 = vsel %vm4494, %v6443, 0
      %v6608 = vsel %vm4494, %v6444, 0
      %v6611 = vsel %vm4494, %v6445, 0
      %v6614 = vsel %vm4494, %v6446, 0
      %v6617 = vsel %vm4494, %v6447, 0
      %v6620 = vsel %vm4494, %v6448, 0
      %v6623 = vsel %vm4494, %v6449, 0
      %v6626 = vsel %vm4494, %v6450, 0
      %v6629 = vsel %vm4494, %v6451, 0
      %v6632 = vsel %vm4494, %v6452, 0
      %vm6634 = vcmask 1045504
      %v6636 = vsel %vm6634, %v6585, 0
      %6638 = vmatprep.subr.bf16.mxu0 0
      %6639 = vmatpush1.bf16.msra.mxu0 %v6579
      %6640 = vmatprep.subr.bf16.mxu0 0
      %6641 = vmatpush1.bf16.msra.mxu0 %v6580
      %6642 = vmatprep.subr.bf16.mxu0 0
      %6643 = vmatpush1.bf16.msra.mxu0 %v6581
      %6644 = vmatprep.subr.bf16.mxu0 0
      %6645 = vmatpush1.bf16.msra.mxu0 %v6582
      %6646 = vmatprep.subr.bf16.mxu0 0
      %6647 = vmatpush1.bf16.msra.mxu0 %v6583
      %6648 = vmatprep.subr.bf16.mxu0 0
      %6649 = vmatpush1.bf16.msra.mxu0 %v6584
      %6650 = vmatprep.subr.bf16.mxu0 0
      %6651 = vmatpush1.bf16.msra.mxu0 %v6636
      %6652 = vmatprep.subr.bf16.mxu0 0
      %6653 = vmatpush1.bf16.msra.mxu0 0
      %6654 = vmatprep.subr.bf16.mxu0 0
      %6655 = vmatpush1.bf16.msra.mxu0 0
      %6656 = vmatprep.subr.bf16.mxu0 0
      %6657 = vmatpush1.bf16.msra.mxu0 0
      %6658 = vmatprep.subr.bf16.mxu0 0
      %6659 = vmatpush1.bf16.msra.mxu0 0
      %6660 = vmatprep.subr.bf16.mxu0 0
      %6661 = vmatpush1.bf16.msra.mxu0 0
      %6662 = vmatprep.subr.bf16.mxu0 0
      %6663 = vmatpush1.bf16.msra.mxu0 0
      %6664 = vmatprep.subr.bf16.mxu0 0
      %6665 = vmatpush1.bf16.msra.mxu0 0
      %6666 = vmatprep.subr.bf16.mxu0 0
      %6667 = vmatpush1.bf16.msra.mxu0 0
      %6668 = vmatprep.subr.bf16.mxu0 0
      %6669 = vmatpush1.bf16.msra.mxu0 0
      %6670 = vmatprep.mubr.bf16.mxu0 0
      %6671 = vmatmul.mubr.bf16.gmra.mrb[0].mxu0 %v6593
      %v6672 = vpop.f32.mrb[0].mxu0
      %v6673 = vadd.f32 0.0, %v6672
      %v6674 = vpop.f32.mrb[0].mxu0
      %v6675 = vpop.f32.mrb[0].mxu0
      %v6676 = vadd.f32 0.0, %v6675
      %v6677 = vpop.f32.mrb[0].mxu0
      %6678 = vmatprep.mubr.bf16.mxu0 0
      %6679 = vmatmul.mubr.bf16.gmra.mrb[0].mxu0 %v6596
      %v6680 = vpop.f32.mrb[0].mxu0
      %v6681 = vadd.f32 0.0, %v6680
      %v6682 = vpop.f32.mrb[0].mxu0
      %v6683 = vpop.f32.mrb[0].mxu0
      %v6684 = vadd.f32 0.0, %v6683
      %v6685 = vpop.f32.mrb[0].mxu0
      %6686 = vmatprep.mubr.bf16.mxu0 0
      %6687 = vmatmul.mubr.bf16.gmra.mrb[0].mxu0 %v6599
      %v6688 = vpop.f32.mrb[0].mxu0
      %v6689 = vadd.f32 0.0, %v6688
      %v6690 = vpop.f32.mrb[0].mxu0
      %v6691 = vpop.f32.mrb[0].mxu0
      %v6692 = vadd.f32 0.0, %v6691
      %v6693 = vpop.f32.mrb[0].mxu0
      %6694 = vmatprep.mubr.bf16.mxu0 0
      %6695 = vmatmul.mubr.bf16.gmra.mrb[0].mxu0 %v6602
      %v6696 = vpop.f32.mrb[0].mxu0
      %v6697 = vadd.f32 0.0, %v6696
      %v6698 = vpop.f32.mrb[0].mxu0
      %v6699 = vpop.f32.mrb[0].mxu0
      %v6700 = vadd.f32 0.0, %v6699
      %v6701 = vpop.f32.mrb[0].mxu0
      %6702 = vmatprep.mubr.bf16.mxu0 0
      %6703 = vmatmul.mubr.bf16.gmra.mrb[0].mxu0 %v6605
      %v6704 = vpop.f32.mrb[0].mxu0
      %v6705 = vadd.f32 0.0, %v6704
      %v6706 = vpop.f32.mrb[0].mxu0
      %v6707 = vpop.f32.mrb[0].mxu0
      %v6708 = vadd.f32 0.0, %v6707
      %v6709 = vpop.f32.mrb[0].mxu0
      %6710 = vmatprep.mubr.bf16.mxu0 0
      %6711 = vmatmul.mubr.bf16.gmra.mrb[0].mxu0 %v6608
      %v6712 = vpop.f32.mrb[0].mxu0
      %v6713 = vadd.f32 0.0, %v6712
      %v6714 = vpop.f32.mrb[0].mxu0
      %v6715 = vpop.f32.mrb[0].mxu0
      %v6716 = vadd.f32 0.0, %v6715
      %v6717 = vpop.f32.mrb[0].mxu0
      %6718 = vmatprep.mubr.bf16.mxu0 0
      %6719 = vmatmul.mubr.bf16.gmra.mrb[0].mxu0 %v6611
      %v6720 = vpop.f32.mrb[0].mxu0
      %v6721 = vadd.f32 0.0, %v6720
      %v6722 = vpop.f32.mrb[0].mxu0
      %v6723 = vpop.f32.mrb[0].mxu0
      %v6724 = vadd.f32 0.0, %v6723
      %v6725 = vpop.f32.mrb[0].mxu0
      %6726 = vmatprep.mubr.bf16.mxu0 0
      %6727 = vmatmul.mubr.bf16.gmra.mrb[0].mxu0 %v6614
      %v6728 = vpop.f32.mrb[0].mxu0
      %v6729 = vadd.f32 0.0, %v6728
      %v6730 = vpop.f32.mrb[0].mxu0
      %v6731 = vpop.f32.mrb[0].mxu0
      %v6732 = vadd.f32 0.0, %v6731
      %v6733 = vpop.f32.mrb[0].mxu0
      %6734 = vmatprep.mubr.bf16.mxu0 0
      %6735 = vmatmul.mubr.bf16.gmra.mrb[0].mxu0 %v6617
      %v6736 = vpop.f32.mrb[0].mxu0
      %v6737 = vadd.f32 0.0, %v6736
      %v6738 = vpop.f32.mrb[0].mxu0
      %v6739 = vpop.f32.mrb[0].mxu0
      %v6740 = vadd.f32 0.0, %v6739
      %v6741 = vpop.f32.mrb[0].mxu0
      %6742 = vmatprep.mubr.bf16.mxu0 0
      %6743 = vmatmul.mubr.bf16.gmra.mrb[0].mxu0 %v6620
      %v6744 = vpop.f32.mrb[0].mxu0
      %v6745 = vadd.f32 0.0, %v6744
      %v6746 = vpop.f32.mrb[0].mxu0
      %v6747 = vpop.f32.mrb[0].mxu0
      %v6748 = vadd.f32 0.0, %v6747
      %v6749 = vpop.f32.mrb[0].mxu0
      %6750 = vmatprep.mubr.bf16.mxu0 0
      %6751 = vmatmul.mubr.bf16.gmra.mrb[0].mxu0 %v6623
      %v6752 = vpop.f32.mrb[0].mxu0
      %v6753 = vadd.f32 0.0, %v6752
      %v6754 = vpop.f32.mrb[0].mxu0
      %v6755 = vpop.f32.mrb[0].mxu0
      %v6756 = vadd.f32 0.0, %v6755
      %v6757 = vpop.f32.mrb[0].mxu0
      %6758 = vmatprep.mubr.bf16.mxu0 0
      %6759 = vmatmul.mubr.bf16.gmra.mrb[0].mxu0 %v6626
      %v6760 = vpop.f32.mrb[0].mxu0
      %v6761 = vadd.f32 0.0, %v6760
      %v6762 = vpop.f32.mrb[0].mxu0
      %v6763 = vpop.f32.mrb[0].mxu0
      %v6764 = vadd.f32 0.0, %v6763
      %v6765 = vpop.f32.mrb[0].mxu0
      %6766 = vmatprep.mubr.bf16.mxu0 0
      %6767 = vmatmul.mubr.bf16.gmra.mrb[0].mxu0 %v6629
      %v6768 = vpop.f32.mrb[0].mxu0
      %v6769 = vadd.f32 0.0, %v6768
      %v6770 = vpop.f32.mrb[0].mxu0
      %v6771 = vpop.f32.mrb[0].mxu0
      %v6772 = vadd.f32 0.0, %v6771
      %v6773 = vpop.f32.mrb[0].mxu0
      %6774 = vmatprep.mubr.bf16.mxu0 0
      %6775 = vmatmul.mubr.bf16.gmra.mrb[0].mxu0 %v6632
      %v6776 = vpop.f32.mrb[0].mxu0
      %v6777 = vadd.f32 0.0, %v6776
      %v6778 = vpop.f32.mrb[0].mxu0
      %v6779 = vpop.f32.mrb[0].mxu0
      %v6780 = vpop.f32.mrb[0].mxu0
      %6781 = vdwg.mxu0
      %v6796 = vunpack.c.l.b16 %v1699
      %v6797 = vunpack.c.l.b16 %v1700
      %v6798 = vunpack.c.l.b16 %v1701
      %v6799 = vunpack.c.l.b16 %v1702
      %v6800 = vunpack.c.l.b16 %v1703
      %v6801 = vunpack.c.l.b16 %v1704
      %v6802 = vunpack.c.l.b16 %v1705
      %v6803 = vunpack.c.l.b16 %v1706
      %v6804 = vunpack.c.l.b16 %v1707
      %v6805 = vunpack.c.l.b16 %v1708
      %v6806 = vunpack.c.l.b16 %v1709
      %v6807 = vunpack.c.l.b16 %v1710
      %v6808 = vunpack.c.l.b16 %v1711
      %v6809 = vunpack.c.l.b16 %v1712
      %v6810 = vpack.c.b16 %v6797, %v6796
      %v6811 = vpack.c.b16 %v6799, %v6798
      %v6812 = vpack.c.b16 %v6801, %v6800
      %v6813 = vpack.c.b16 %v6803, %v6802
      %v6814 = vpack.c.b16 %v6805, %v6804
      %v6815 = vpack.c.b16 %v6807, %v6806
      %v6816 = vpack.c.b16 %v6809, %v6808
      %v6824 = vsel %vm4494, %v6453, 0
      %v6827 = vsel %vm4494, %v6454, 0
      %v6830 = vsel %vm4494, %v6455, 0
      %v6833 = vsel %vm4494, %v6456, 0
      %v6836 = vsel %vm4494, %v6457, 0
      %v6839 = vsel %vm4494, %v6458, 0
      %v6842 = vsel %vm4494, %v6459, 0
      %v6845 = vsel %vm4494, %v6460, 0
      %v6848 = vsel %vm4494, %v6461, 0
      %v6851 = vsel %vm4494, %v6462, 0
      %v6854 = vsel %vm4494, %v6463, 0
      %v6857 = vsel %vm4494, %v6464, 0
      %v6860 = vsel %vm4494, %v6465, 0
      %v6863 = vsel %vm4494, %v6466, 0
      %v6866 = vsel %vm6634, %v6816, 0
      %6868 = vmatprep.subr.bf16.mxu0 0
      %6869 = vmatpush1.bf16.msra.mxu0 %v6810
      %6870 = vmatprep.subr.bf16.mxu0 0
      %6871 = vmatpush1.bf16.msra.mxu0 %v6811
      %6872 = vmatprep.subr.bf16.mxu0 0
      %6873 = vmatpush1.bf16.msra.mxu0 %v6812
      %6874 = vmatprep.subr.bf16.mxu0 0
      %6875 = vmatpush1.bf16.msra.mxu0 %v6813
      %6876 = vmatprep.subr.bf16.mxu0 0
      %6877 = vmatpush1.bf16.msra.mxu0 %v6814
      %6878 = vmatprep.subr.bf16.mxu0 0
      %6879 = vmatpush1.bf16.msra.mxu0 %v6815
      %6880 = vmatprep.subr.bf16.mxu0 0
      %6881 = vmatpush1.bf16.msra.mxu0 %v6866
      %6882 = vmatprep.subr.bf16.mxu0 0
      %6883 = vmatpush1.bf16.msra.mxu0 0
      %6884 = vmatprep.subr.bf16.mxu0 0
      %6885 = vmatpush1.bf16.msra.mxu0 0
      %6886 = vmatprep.subr.bf16.mxu0 0
      %6887 = vmatpush1.bf16.msra.mxu0 0
      %6888 = vmatprep.subr.bf16.mxu0 0
      %6889 = vmatpush1.bf16.msra.mxu0 0
      %6890 = vmatprep.subr.bf16.mxu0 0
      %6891 = vmatpush1.bf16.msra.mxu0 0
      %6892 = vmatprep.subr.bf16.mxu0 0
      %6893 = vmatpush1.bf16.msra.mxu0 0
      %6894 = vmatprep.subr.bf16.mxu0 0
      %6895 = vmatpush1.bf16.msra.mxu0 0
      %6896 = vmatprep.subr.bf16.mxu0 0
      %6897 = vmatpush1.bf16.msra.mxu0 0
      %6898 = vmatprep.subr.bf16.mxu0 0
      %6899 = vmatpush1.bf16.msra.mxu0 0
      %6900 = vmatprep.mubr.bf16.mxu0 0
      %6901 = vmatmul.mubr.bf16.gmra.mrb[0].mxu0 %v6824
      %v6902 = vpop.f32.mrb[0].mxu0
      %v6903 = vadd.f32 0.0, %v6902
      %v6904 = vpop.f32.mrb[0].mxu0
      %v6905 = vpop.f32.mrb[0].mxu0
      %v6906 = vadd.f32 0.0, %v6905
      %v6907 = vpop.f32.mrb[0].mxu0
      %6908 = vmatprep.mubr.bf16.mxu0 0
      %6909 = vmatmul.mubr.bf16.gmra.mrb[0].mxu0 %v6827
      %v6910 = vpop.f32.mrb[0].mxu0
      %v6911 = vadd.f32 0.0, %v6910
      %v6912 = vpop.f32.mrb[0].mxu0
      %v6913 = vpop.f32.mrb[0].mxu0
      %v6914 = vadd.f32 0.0, %v6913
      %v6915 = vpop.f32.mrb[0].mxu0
      %6916 = vmatprep.mubr.bf16.mxu0 0
      %6917 = vmatmul.mubr.bf16.gmra.mrb[0].mxu0 %v6830
      %v6918 = vpop.f32.mrb[0].mxu0
      %v6919 = vadd.f32 0.0, %v6918
      %v6920 = vpop.f32.mrb[0].mxu0
      %v6921 = vpop.f32.mrb[0].mxu0
      %v6922 = vadd.f32 0.0, %v6921
      %v6923 = vpop.f32.mrb[0].mxu0
      %6924 = vmatprep.mubr.bf16.mxu0 0
      %6925 = vmatmul.mubr.bf16.gmra.mrb[0].mxu0 %v6833
      %v6926 = vpop.f32.mrb[0].mxu0
      %v6927 = vadd.f32 0.0, %v6926
      %v6928 = vpop.f32.mrb[0].mxu0
      %v6929 = vpop.f32.mrb[0].mxu0
      %v6930 = vadd.f32 0.0, %v6929
      %v6931 = vpop.f32.mrb[0].mxu0
      %6932 = vmatprep.mubr.bf16.mxu0 0
      %6933 = vmatmul.mubr.bf16.gmra.mrb[0].mxu0 %v6836
      %v6934 = vpop.f32.mrb[0].mxu0
      %v6935 = vadd.f32 0.0, %v6934
      %v6936 = vpop.f32.mrb[0].mxu0
      %v6937 = vpop.f32.mrb[0].mxu0
      %v6938 = vadd.f32 0.0, %v6937
      %v6939 = vpop.f32.mrb[0].mxu0
      %6940 = vmatprep.mubr.bf16.mxu0 0
      %6941 = vmatmul.mubr.bf16.gmra.mrb[0].mxu0 %v6839
      %v6942 = vpop.f32.mrb[0].mxu0
      %v6943 = vadd.f32 0.0, %v6942
      %v6944 = vpop.f32.mrb[0].mxu0
      %v6945 = vpop.f32.mrb[0].mxu0
      %v6946 = vadd.f32 0.0, %v6945
      %v6947 = vpop.f32.mrb[0].mxu0
      %6948 = vmatprep.mubr.bf16.mxu0 0
      %6949 = vmatmul.mubr.bf16.gmra.mrb[0].mxu0 %v6842
      %v6950 = vpop.f32.mrb[0].mxu0
      %v6951 = vadd.f32 0.0, %v6950
      %v6952 = vpop.f32.mrb[0].mxu0
      %v6953 = vpop.f32.mrb[0].mxu0
      %v6954 = vadd.f32 0.0, %v6953
      %v6955 = vpop.f32.mrb[0].mxu0
      %6956 = vmatprep.mubr.bf16.mxu0 0
      %6957 = vmatmul.mubr.bf16.gmra.mrb[0].mxu0 %v6845
      %v6958 = vpop.f32.mrb[0].mxu0
      %v6959 = vadd.f32 0.0, %v6958
      %v6960 = vpop.f32.mrb[0].mxu0
      %v6961 = vpop.f32.mrb[0].mxu0
      %v6962 = vadd.f32 0.0, %v6961
      %v6963 = vpop.f32.mrb[0].mxu0
      %6964 = vmatprep.mubr.bf16.mxu0 0
      %6965 = vmatmul.mubr.bf16.gmra.mrb[0].mxu0 %v6848
      %v6966 = vpop.f32.mrb[0].mxu0
      %v6967 = vadd.f32 0.0, %v6966
      %v6968 = vpop.f32.mrb[0].mxu0
      %v6969 = vpop.f32.mrb[0].mxu0
      %v6970 = vadd.f32 0.0, %v6969
      %v6971 = vpop.f32.mrb[0].mxu0
      %6972 = vmatprep.mubr.bf16.mxu0 0
      %6973 = vmatmul.mubr.bf16.gmra.mrb[0].mxu0 %v6851
      %v6974 = vpop.f32.mrb[0].mxu0
      %v6975 = vadd.f32 0.0, %v6974
      %v6976 = vpop.f32.mrb[0].mxu0
      %v6977 = vpop.f32.mrb[0].mxu0
      %v6978 = vadd.f32 0.0, %v6977
      %v6979 = vpop.f32.mrb[0].mxu0
      %6980 = vmatprep.mubr.bf16.mxu0 0
      %6981 = vmatmul.mubr.bf16.gmra.mrb[0].mxu0 %v6854
      %v6982 = vpop.f32.mrb[0].mxu0
      %v6983 = vadd.f32 0.0, %v6982
      %v6984 = vpop.f32.mrb[0].mxu0
      %v6985 = vpop.f32.mrb[0].mxu0
      %v6986 = vadd.f32 0.0, %v6985
      %v6987 = vpop.f32.mrb[0].mxu0
      %6988 = vmatprep.mubr.bf16.mxu0 0
      %6989 = vmatmul.mubr.bf16.gmra.mrb[0].mxu0 %v6857
      %v6990 = vpop.f32.mrb[0].mxu0
      %v6991 = vadd.f32 0.0, %v6990
      %v6992 = vpop.f32.mrb[0].mxu0
      %v6993 = vpop.f32.mrb[0].mxu0
      %v6994 = vadd.f32 0.0, %v6993
      %v6995 = vpop.f32.mrb[0].mxu0
      %6996 = vmatprep.mubr.bf16.mxu0 0
      %6997 = vmatmul.mubr.bf16.gmra.mrb[0].mxu0 %v6860
      %v6998 = vpop.f32.mrb[0].mxu0
      %v6999 = vadd.f32 0.0, %v6998
      %v7000 = vpop.f32.mrb[0].mxu0
      %v7001 = vpop.f32.mrb[0].mxu0
      %v7002 = vadd.f32 0.0, %v7001
      %v7003 = vpop.f32.mrb[0].mxu0
      %7004 = vmatprep.mubr.bf16.mxu0 0
      %7005 = vmatmul.mubr.bf16.gmra.mrb[0].mxu0 %v6863
      %v7006 = vpop.f32.mrb[0].mxu0
      %v7007 = vadd.f32 0.0, %v7006
      %v7008 = vpop.f32.mrb[0].mxu0
      %v7009 = vpop.f32.mrb[0].mxu0
      %v7010 = vpop.f32.mrb[0].mxu0
      %7011 = vdwg.mxu0
      %v7026 = vunpack.c.l.b16 %v1713
      %v7027 = vunpack.c.l.b16 %v1714
      %v7028 = vunpack.c.l.b16 %v1715
      %v7029 = vunpack.c.l.b16 %v1716
      %v7030 = vunpack.c.l.b16 %v1717
      %v7031 = vunpack.c.l.b16 %v1718
      %v7032 = vunpack.c.l.b16 %v1719
      %v7033 = vunpack.c.l.b16 %v1720
      %v7034 = vunpack.c.l.b16 %v1721
      %v7035 = vunpack.c.l.b16 %v1722
      %v7036 = vunpack.c.l.b16 %v1723
      %v7037 = vunpack.c.l.b16 %v1724
      %v7038 = vunpack.c.l.b16 %v1725
      %v7039 = vunpack.c.l.b16 %v1726
      %v7040 = vpack.c.b16 %v7027, %v7026
      %v7041 = vpack.c.b16 %v7029, %v7028
      %v7042 = vpack.c.b16 %v7031, %v7030
      %v7043 = vpack.c.b16 %v7033, %v7032
      %v7044 = vpack.c.b16 %v7035, %v7034
      %v7045 = vpack.c.b16 %v7037, %v7036
      %v7046 = vpack.c.b16 %v7039, %v7038
      %v7054 = vsel %vm4494, %v6467, 0
      %v7057 = vsel %vm4494, %v6468, 0
      %v7060 = vsel %vm4494, %v6469, 0
      %v7063 = vsel %vm4494, %v6470, 0
      %v7066 = vsel %vm4494, %v6471, 0
      %v7069 = vsel %vm4494, %v6472, 0
      %v7072 = vsel %vm4494, %v6473, 0
      %v7075 = vsel %vm4494, %v6474, 0
      %v7078 = vsel %vm4494, %v6475, 0
      %v7081 = vsel %vm4494, %v6476, 0
      %v7084 = vsel %vm4494, %v6477, 0
      %v7087 = vsel %vm4494, %v6478, 0
      %v7090 = vsel %vm4494, %v6479, 0
      %v7093 = vsel %vm4494, %v6480, 0
      %v7096 = vsel %vm6634, %v7046, 0
      %7098 = vmatprep.subr.bf16.mxu0 0
      %7099 = vmatpush1.bf16.msra.mxu0 %v7040
      %7100 = vmatprep.subr.bf16.mxu0 0
      %7101 = vmatpush1.bf16.msra.mxu0 %v7041
      %7102 = vmatprep.subr.bf16.mxu0 0
      %7103 = vmatpush1.bf16.msra.mxu0 %v7042
      %7104 = vmatprep.subr.bf16.mxu0 0
      %7105 = vmatpush1.bf16.msra.mxu0 %v7043
      %7106 = vmatprep.subr.bf16.mxu0 0
      %7107 = vmatpush1.bf16.msra.mxu0 %v7044
      %7108 = vmatprep.subr.bf16.mxu0 0
      %7109 = vmatpush1.bf16.msra.mxu0 %v7045
      %7110 = vmatprep.subr.bf16.mxu0 0
      %7111 = vmatpush1.bf16.msra.mxu0 %v7096
      %7112 = vmatprep.subr.bf16.mxu0 0
      %7113 = vmatpush1.bf16.msra.mxu0 0
      %7114 = vmatprep.subr.bf16.mxu0 0
      %7115 = vmatpush1.bf16.msra.mxu0 0
      %7116 = vmatprep.subr.bf16.mxu0 0
      %7117 = vmatpush1.bf16.msra.mxu0 0
      %7118 = vmatprep.subr.bf16.mxu0 0
      %7119 = vmatpush1.bf16.msra.mxu0 0
      %7120 = vmatprep.subr.bf16.mxu0 0
      %7121 = vmatpush1.bf16.msra.mxu0 0
      %7122 = vmatprep.subr.bf16.mxu0 0
      %7123 = vmatpush1.bf16.msra.mxu0 0
      %7124 = vmatprep.subr.bf16.mxu0 0
      %7125 = vmatpush1.bf16.msra.mxu0 0
      %7126 = vmatprep.subr.bf16.mxu0 0
      %7127 = vmatpush1.bf16.msra.mxu0 0
      %7128 = vmatprep.subr.bf16.mxu0 0
      %7129 = vmatpush1.bf16.msra.mxu0 0
      %7130 = vmatprep.mubr.bf16.mxu0 0
      %7131 = vmatmul.mubr.bf16.gmra.mrb[0].mxu0 %v7054
      %v7132 = vpop.f32.mrb[0].mxu0
      %v7133 = vadd.f32 0.0, %v7132
      %v7134 = vpop.f32.mrb[0].mxu0
      %v7135 = vpop.f32.mrb[0].mxu0
      %v7136 = vadd.f32 0.0, %v7135
      %v7137 = vpop.f32.mrb[0].mxu0
      %7138 = vmatprep.mubr.bf16.mxu0 0
      %7139 = vmatmul.mubr.bf16.gmra.mrb[0].mxu0 %v7057
      %v7140 = vpop.f32.mrb[0].mxu0
      %v7141 = vadd.f32 0.0, %v7140
      %v7142 = vpop.f32.mrb[0].mxu0
      %v7143 = vpop.f32.mrb[0].mxu0
      %v7144 = vadd.f32 0.0, %v7143
      %v7145 = vpop.f32.mrb[0].mxu0
      %7146 = vmatprep.mubr.bf16.mxu0 0
      %7147 = vmatmul.mubr.bf16.gmra.mrb[0].mxu0 %v7060
      %v7148 = vpop.f32.mrb[0].mxu0
      %v7149 = vadd.f32 0.0, %v7148
      %v7150 = vpop.f32.mrb[0].mxu0
      %v7151 = vpop.f32.mrb[0].mxu0
      %v7152 = vadd.f32 0.0, %v7151
      %v7153 = vpop.f32.mrb[0].mxu0
      %7154 = vmatprep.mubr.bf16.mxu0 0
      %7155 = vmatmul.mubr.bf16.gmra.mrb[0].mxu0 %v7063
      %v7156 = vpop.f32.mrb[0].mxu0
      %v7157 = vadd.f32 0.0, %v7156
      %v7158 = vpop.f32.mrb[0].mxu0
      %v7159 = vpop.f32.mrb[0].mxu0
      %v7160 = vadd.f32 0.0, %v7159
      %v7161 = vpop.f32.mrb[0].mxu0
      %7162 = vmatprep.mubr.bf16.mxu0 0
      %7163 = vmatmul.mubr.bf16.gmra.mrb[0].mxu0 %v7066
      %v7164 = vpop.f32.mrb[0].mxu0
      %v7165 = vadd.f32 0.0, %v7164
      %v7166 = vpop.f32.mrb[0].mxu0
      %v7167 = vpop.f32.mrb[0].mxu0
      %v7168 = vadd.f32 0.0, %v7167
      %v7169 = vpop.f32.mrb[0].mxu0
      %7170 = vmatprep.mubr.bf16.mxu0 0
      %7171 = vmatmul.mubr.bf16.gmra.mrb[0].mxu0 %v7069
      %v7172 = vpop.f32.mrb[0].mxu0
      %v7173 = vadd.f32 0.0, %v7172
      %v7174 = vpop.f32.mrb[0].mxu0
      %v7175 = vpop.f32.mrb[0].mxu0
      %v7176 = vadd.f32 0.0, %v7175
      %v7177 = vpop.f32.mrb[0].mxu0
      %7178 = vmatprep.mubr.bf16.mxu0 0
      %7179 = vmatmul.mubr.bf16.gmra.mrb[0].mxu0 %v7072
      %v7180 = vpop.f32.mrb[0].mxu0
      %v7181 = vadd.f32 0.0, %v7180
      %v7182 = vpop.f32.mrb[0].mxu0
      %v7183 = vpop.f32.mrb[0].mxu0
      %v7184 = vadd.f32 0.0, %v7183
      %v7185 = vpop.f32.mrb[0].mxu0
      %7186 = vmatprep.mubr.bf16.mxu0 0
      %7187 = vmatmul.mubr.bf16.gmra.mrb[0].mxu0 %v7075
      %v7188 = vpop.f32.mrb[0].mxu0
      %v7189 = vadd.f32 0.0, %v7188
      %v7190 = vpop.f32.mrb[0].mxu0
      %v7191 = vpop.f32.mrb[0].mxu0
      %v7192 = vadd.f32 0.0, %v7191
      %v7193 = vpop.f32.mrb[0].mxu0
      %7194 = vmatprep.mubr.bf16.mxu0 0
      %7195 = vmatmul.mubr.bf16.gmra.mrb[0].mxu0 %v7078
      %v7196 = vpop.f32.mrb[0].mxu0
      %v7197 = vadd.f32 0.0, %v7196
      %v7198 = vpop.f32.mrb[0].mxu0
      %v7199 = vpop.f32.mrb[0].mxu0
      %v7200 = vadd.f32 0.0, %v7199
      %v7201 = vpop.f32.mrb[0].mxu0
      %7202 = vmatprep.mubr.bf16.mxu0 0
      %7203 = vmatmul.mubr.bf16.gmra.mrb[0].mxu0 %v7081
      %v7204 = vpop.f32.mrb[0].mxu0
      %v7205 = vadd.f32 0.0, %v7204
      %v7206 = vpop.f32.mrb[0].mxu0
      %v7207 = vpop.f32.mrb[0].mxu0
      %v7208 = vadd.f32 0.0, %v7207
      %v7209 = vpop.f32.mrb[0].mxu0
      %7210 = vmatprep.mubr.bf16.mxu0 0
      %7211 = vmatmul.mubr.bf16.gmra.mrb[0].mxu0 %v7084
      %v7212 = vpop.f32.mrb[0].mxu0
      %v7213 = vadd.f32 0.0, %v7212
      %v7214 = vpop.f32.mrb[0].mxu0
      %v7215 = vpop.f32.mrb[0].mxu0
      %v7216 = vadd.f32 0.0, %v7215
      %v7217 = vpop.f32.mrb[0].mxu0
      %7218 = vmatprep.mubr.bf16.mxu0 0
      %7219 = vmatmul.mubr.bf16.gmra.mrb[0].mxu0 %v7087
      %v7220 = vpop.f32.mrb[0].mxu0
      %v7221 = vadd.f32 0.0, %v7220
      %v7222 = vpop.f32.mrb[0].mxu0
      %v7223 = vpop.f32.mrb[0].mxu0
      %v7224 = vadd.f32 0.0, %v7223
      %v7225 = vpop.f32.mrb[0].mxu0
      %7226 = vmatprep.mubr.bf16.mxu0 0
      %7227 = vmatmul.mubr.bf16.gmra.mrb[0].mxu0 %v7090
      %v7228 = vpop.f32.mrb[0].mxu0
      %v7229 = vadd.f32 0.0, %v7228
      %v7230 = vpop.f32.mrb[0].mxu0
      %v7231 = vpop.f32.mrb[0].mxu0
      %v7232 = vadd.f32 0.0, %v7231
      %v7233 = vpop.f32.mrb[0].mxu0
      %7234 = vmatprep.mubr.bf16.mxu0 0
      %7235 = vmatmul.mubr.bf16.gmra.mrb[0].mxu0 %v7093
      %v7236 = vpop.f32.mrb[0].mxu0
      %v7237 = vadd.f32 0.0, %v7236
      %v7238 = vpop.f32.mrb[0].mxu0
      %v7239 = vpop.f32.mrb[0].mxu0
      %v7240 = vpop.f32.mrb[0].mxu0
      %7241 = vdwg.mxu0
      %v7256 = vunpack.c.l.b16 %v1727
      %v7257 = vunpack.c.l.b16 %v1728
      %v7258 = vunpack.c.l.b16 %v1729
      %v7259 = vunpack.c.l.b16 %v1730
      %v7260 = vunpack.c.l.b16 %v1731
      %v7261 = vunpack.c.l.b16 %v1732
      %v7262 = vunpack.c.l.b16 %v1733
      %v7263 = vunpack.c.l.b16 %v1734
      %v7264 = vunpack.c.l.b16 %v1735
      %v7265 = vunpack.c.l.b16 %v1736
      %v7266 = vunpack.c.l.b16 %v1737
      %v7267 = vunpack.c.l.b16 %v1738
      %v7268 = vunpack.c.l.b16 %v1739
      %v7269 = vunpack.c.l.b16 %v1740
      %v7270 = vpack.c.b16 %v7257, %v7256
      %v7271 = vpack.c.b16 %v7259, %v7258
      %v7272 = vpack.c.b16 %v7261, %v7260
      %v7273 = vpack.c.b16 %v7263, %v7262
      %v7274 = vpack.c.b16 %v7265, %v7264
      %v7275 = vpack.c.b16 %v7267, %v7266
      %v7276 = vpack.c.b16 %v7269, %v7268
      %v7284 = vsel %vm4494, %v6481, 0
      %v7287 = vsel %vm4494, %v6482, 0
      %v7290 = vsel %vm4494, %v6483, 0
      %v7293 = vsel %vm4494, %v6484, 0
      %v7296 = vsel %vm4494, %v6485, 0
      %v7299 = vsel %vm4494, %v6486, 0
      %v7302 = vsel %vm4494, %v6487, 0
      %v7305 = vsel %vm4494, %v6488, 0
      %v7308 = vsel %vm4494, %v6489, 0
      %v7311 = vsel %vm4494, %v6490, 0
      %v7314 = vsel %vm4494, %v6491, 0
      %v7317 = vsel %vm4494, %v6492, 0
      %v7320 = vsel %vm4494, %v6493, 0
      %v7323 = vsel %vm4494, %v6494, 0
      %v7326 = vsel %vm6634, %v7276, 0
      %7328 = vmatprep.subr.bf16.mxu0 0
      %7329 = vmatpush1.bf16.msra.mxu0 %v7270
      %7330 = vmatprep.subr.bf16.mxu0 0
      %7331 = vmatpush1.bf16.msra.mxu0 %v7271
      %7332 = vmatprep.subr.bf16.mxu0 0
      %7333 = vmatpush1.bf16.msra.mxu0 %v7272
      %7334 = vmatprep.subr.bf16.mxu0 0
      %7335 = vmatpush1.bf16.msra.mxu0 %v7273
      %7336 = vmatprep.subr.bf16.mxu0 0
      %7337 = vmatpush1.bf16.msra.mxu0 %v7274
      %7338 = vmatprep.subr.bf16.mxu0 0
      %7339 = vmatpush1.bf16.msra.mxu0 %v7275
      %7340 = vmatprep.subr.bf16.mxu0 0
      %7341 = vmatpush1.bf16.msra.mxu0 %v7326
      %7342 = vmatprep.subr.bf16.mxu0 0
      %7343 = vmatpush1.bf16.msra.mxu0 0
      %7344 = vmatprep.subr.bf16.mxu0 0
      %7345 = vmatpush1.bf16.msra.mxu0 0
      %7346 = vmatprep.subr.bf16.mxu0 0
      %7347 = vmatpush1.bf16.msra.mxu0 0
      %7348 = vmatprep.subr.bf16.mxu0 0
      %7349 = vmatpush1.bf16.msra.mxu0 0
      %7350 = vmatprep.subr.bf16.mxu0 0
      %7351 = vmatpush1.bf16.msra.mxu0 0
      %7352 = vmatprep.subr.bf16.mxu0 0
      %7353 = vmatpush1.bf16.msra.mxu0 0
      %7354 = vmatprep.subr.bf16.mxu0 0
      %7355 = vmatpush1.bf16.msra.mxu0 0
      %7356 = vmatprep.subr.bf16.mxu0 0
      %7357 = vmatpush1.bf16.msra.mxu0 0
      %7358 = vmatprep.subr.bf16.mxu0 0
      %7359 = vmatpush1.bf16.msra.mxu0 0
      %7360 = vmatprep.mubr.bf16.mxu0 0
      %7361 = vmatmul.mubr.bf16.gmra.mrb[0].mxu0 %v7284
      %v7362 = vpop.f32.mrb[0].mxu0
      %v7363 = vadd.f32 0.0, %v7362
      %v7364 = vpop.f32.mrb[0].mxu0
      %v7365 = vpop.f32.mrb[0].mxu0
      %v7366 = vadd.f32 0.0, %v7365
      %v7367 = vpop.f32.mrb[0].mxu0
      %7368 = vmatprep.mubr.bf16.mxu0 0
      %7369 = vmatmul.mubr.bf16.gmra.mrb[0].mxu0 %v7287
      %v7370 = vpop.f32.mrb[0].mxu0
      %v7371 = vadd.f32 0.0, %v7370
      %v7372 = vpop.f32.mrb[0].mxu0
      %v7373 = vpop.f32.mrb[0].mxu0
      %v7374 = vadd.f32 0.0, %v7373
      %v7375 = vpop.f32.mrb[0].mxu0
      %7376 = vmatprep.mubr.bf16.mxu0 0
      %7377 = vmatmul.mubr.bf16.gmra.mrb[0].mxu0 %v7290
      %v7378 = vpop.f32.mrb[0].mxu0
      %v7379 = vadd.f32 0.0, %v7378
      %v7380 = vpop.f32.mrb[0].mxu0
      %v7381 = vpop.f32.mrb[0].mxu0
      %v7382 = vadd.f32 0.0, %v7381
      %v7383 = vpop.f32.mrb[0].mxu0
      %7384 = vmatprep.mubr.bf16.mxu0 0
      %7385 = vmatmul.mubr.bf16.gmra.mrb[0].mxu0 %v7293
      %v7386 = vpop.f32.mrb[0].mxu0
      %v7387 = vadd.f32 0.0, %v7386
      %v7388 = vpop.f32.mrb[0].mxu0
      %v7389 = vpop.f32.mrb[0].mxu0
      %v7390 = vadd.f32 0.0, %v7389
      %v7391 = vpop.f32.mrb[0].mxu0
      %7392 = vmatprep.mubr.bf16.mxu0 0
      %7393 = vmatmul.mubr.bf16.gmra.mrb[0].mxu0 %v7296
      %v7394 = vpop.f32.mrb[0].mxu0
      %v7395 = vadd.f32 0.0, %v7394
      %v7396 = vpop.f32.mrb[0].mxu0
      %v7397 = vpop.f32.mrb[0].mxu0
      %v7398 = vadd.f32 0.0, %v7397
      %v7399 = vpop.f32.mrb[0].mxu0
      %7400 = vmatprep.mubr.bf16.mxu0 0
      %7401 = vmatmul.mubr.bf16.gmra.mrb[0].mxu0 %v7299
      %v7402 = vpop.f32.mrb[0].mxu0
      %v7403 = vadd.f32 0.0, %v7402
      %v7404 = vpop.f32.mrb[0].mxu0
      %v7405 = vpop.f32.mrb[0].mxu0
      %v7406 = vadd.f32 0.0, %v7405
      %v7407 = vpop.f32.mrb[0].mxu0
      %7408 = vmatprep.mubr.bf16.mxu0 0
      %7409 = vmatmul.mubr.bf16.gmra.mrb[0].mxu0 %v7302
      %v7410 = vpop.f32.mrb[0].mxu0
      %v7411 = vadd.f32 0.0, %v7410
      %v7412 = vpop.f32.mrb[0].mxu0
      %v7413 = vpop.f32.mrb[0].mxu0
      %v7414 = vadd.f32 0.0, %v7413
      %v7415 = vpop.f32.mrb[0].mxu0
      %7416 = vmatprep.mubr.bf16.mxu0 0
      %7417 = vmatmul.mubr.bf16.gmra.mrb[0].mxu0 %v7305
      %v7418 = vpop.f32.mrb[0].mxu0
      %v7419 = vadd.f32 0.0, %v7418
      %v7420 = vpop.f32.mrb[0].mxu0
      %v7421 = vpop.f32.mrb[0].mxu0
      %v7422 = vadd.f32 0.0, %v7421
      %v7423 = vpop.f32.mrb[0].mxu0
      %7424 = vmatprep.mubr.bf16.mxu0 0
      %7425 = vmatmul.mubr.bf16.gmra.mrb[0].mxu0 %v7308
      %v7426 = vpop.f32.mrb[0].mxu0
      %v7427 = vadd.f32 0.0, %v7426
      %v7428 = vpop.f32.mrb[0].mxu0
      %v7429 = vpop.f32.mrb[0].mxu0
      %v7430 = vadd.f32 0.0, %v7429
      %v7431 = vpop.f32.mrb[0].mxu0
      %7432 = vmatprep.mubr.bf16.mxu0 0
      %7433 = vmatmul.mubr.bf16.gmra.mrb[0].mxu0 %v7311
      %v7434 = vpop.f32.mrb[0].mxu0
      %v7435 = vadd.f32 0.0, %v7434
      %v7436 = vpop.f32.mrb[0].mxu0
      %v7437 = vpop.f32.mrb[0].mxu0
      %v7438 = vadd.f32 0.0, %v7437
      %v7439 = vpop.f32.mrb[0].mxu0
      %7440 = vmatprep.mubr.bf16.mxu0 0
      %7441 = vmatmul.mubr.bf16.gmra.mrb[0].mxu0 %v7314
      %v7442 = vpop.f32.mrb[0].mxu0
      %v7443 = vadd.f32 0.0, %v7442
      %v7444 = vpop.f32.mrb[0].mxu0
      %v7445 = vpop.f32.mrb[0].mxu0
      %v7446 = vadd.f32 0.0, %v7445
      %v7447 = vpop.f32.mrb[0].mxu0
      %7448 = vmatprep.mubr.bf16.mxu0 0
      %7449 = vmatmul.mubr.bf16.gmra.mrb[0].mxu0 %v7317
      %v7450 = vpop.f32.mrb[0].mxu0
      %v7451 = vadd.f32 0.0, %v7450
      %v7452 = vpop.f32.mrb[0].mxu0
      %v7453 = vpop.f32.mrb[0].mxu0
      %v7454 = vadd.f32 0.0, %v7453
      %v7455 = vpop.f32.mrb[0].mxu0
      %7456 = vmatprep.mubr.bf16.mxu0 0
      %7457 = vmatmul.mubr.bf16.gmra.mrb[0].mxu0 %v7320
      %v7458 = vpop.f32.mrb[0].mxu0
      %v7459 = vadd.f32 0.0, %v7458
      %v7460 = vpop.f32.mrb[0].mxu0
      %v7461 = vpop.f32.mrb[0].mxu0
      %v7462 = vadd.f32 0.0, %v7461
      %v7463 = vpop.f32.mrb[0].mxu0
      %7464 = vmatprep.mubr.bf16.mxu0 0
      %7465 = vmatmul.mubr.bf16.gmra.mrb[0].mxu0 %v7323
      %v7466 = vpop.f32.mrb[0].mxu0
      %v7467 = vadd.f32 0.0, %v7466
      %v7468 = vpop.f32.mrb[0].mxu0
      %v7469 = vpop.f32.mrb[0].mxu0
      %v7470 = vpop.f32.mrb[0].mxu0
      %7471 = vdwg.mxu0
      %v7486 = vunpack.c.l.b16 %v1741
      %v7487 = vunpack.c.l.b16 %v1742
      %v7488 = vunpack.c.l.b16 %v1743
      %v7489 = vunpack.c.l.b16 %v1744
      %v7490 = vunpack.c.l.b16 %v1745
      %v7491 = vunpack.c.l.b16 %v1746
      %v7492 = vunpack.c.l.b16 %v1747
      %v7493 = vunpack.c.l.b16 %v1748
      %v7494 = vunpack.c.l.b16 %v1749
      %v7495 = vunpack.c.l.b16 %v1750
      %v7496 = vunpack.c.l.b16 %v1751
      %v7497 = vunpack.c.l.b16 %v1752
      %v7498 = vunpack.c.l.b16 %v1753
      %v7499 = vunpack.c.l.b16 %v1754
      %v7500 = vpack.c.b16 %v7487, %v7486
      %v7501 = vpack.c.b16 %v7489, %v7488
      %v7502 = vpack.c.b16 %v7491, %v7490
      %v7503 = vpack.c.b16 %v7493, %v7492
      %v7504 = vpack.c.b16 %v7495, %v7494
      %v7505 = vpack.c.b16 %v7497, %v7496
      %v7506 = vpack.c.b16 %v7499, %v7498
      %v7514 = vsel %vm4494, %v6495, 0
      %v7517 = vsel %vm4494, %v6496, 0
      %v7520 = vsel %vm4494, %v6497, 0
      %v7523 = vsel %vm4494, %v6498, 0
      %v7526 = vsel %vm4494, %v6499, 0
      %v7529 = vsel %vm4494, %v6500, 0
      %v7532 = vsel %vm4494, %v6501, 0
      %v7535 = vsel %vm4494, %v6502, 0
      %v7538 = vsel %vm4494, %v6503, 0
      %v7541 = vsel %vm4494, %v6504, 0
      %v7544 = vsel %vm4494, %v6505, 0
      %v7547 = vsel %vm4494, %v6506, 0
      %v7550 = vsel %vm4494, %v6507, 0
      %v7553 = vsel %vm4494, %v6508, 0
      %v7556 = vsel %vm6634, %v7506, 0
      %7558 = vmatprep.subr.bf16.mxu0 0
      %7559 = vmatpush1.bf16.msra.mxu0 %v7500
      %7560 = vmatprep.subr.bf16.mxu0 0
      %7561 = vmatpush1.bf16.msra.mxu0 %v7501
      %7562 = vmatprep.subr.bf16.mxu0 0
      %7563 = vmatpush1.bf16.msra.mxu0 %v7502
      %7564 = vmatprep.subr.bf16.mxu0 0
      %7565 = vmatpush1.bf16.msra.mxu0 %v7503
      %7566 = vmatprep.subr.bf16.mxu0 0
      %7567 = vmatpush1.bf16.msra.mxu0 %v7504
      %7568 = vmatprep.subr.bf16.mxu0 0
      %7569 = vmatpush1.bf16.msra.mxu0 %v7505
      %7570 = vmatprep.subr.bf16.mxu0 0
      %7571 = vmatpush1.bf16.msra.mxu0 %v7556
      %7572 = vmatprep.subr.bf16.mxu0 0
      %7573 = vmatpush1.bf16.msra.mxu0 0
      %7574 = vmatprep.subr.bf16.mxu0 0
      %7575 = vmatpush1.bf16.msra.mxu0 0
      %7576 = vmatprep.subr.bf16.mxu0 0
      %7577 = vmatpush1.bf16.msra.mxu0 0
      %7578 = vmatprep.subr.bf16.mxu0 0
      %7579 = vmatpush1.bf16.msra.mxu0 0
      %7580 = vmatprep.subr.bf16.mxu0 0
      %7581 = vmatpush1.bf16.msra.mxu0 0
      %7582 = vmatprep.subr.bf16.mxu0 0
      %7583 = vmatpush1.bf16.msra.mxu0 0
      %7584 = vmatprep.subr.bf16.mxu0 0
      %7585 = vmatpush1.bf16.msra.mxu0 0
      %7586 = vmatprep.subr.bf16.mxu0 0
      %7587 = vmatpush1.bf16.msra.mxu0 0
      %7588 = vmatprep.subr.bf16.mxu0 0
      %7589 = vmatpush1.bf16.msra.mxu0 0
      %7590 = vmatprep.mubr.bf16.mxu0 0
      %7591 = vmatmul.mubr.bf16.gmra.mrb[0].mxu0 %v7514
      %v7592 = vpop.f32.mrb[0].mxu0
      %v7593 = vadd.f32 0.0, %v7592
      %v7594 = vpop.f32.mrb[0].mxu0
      %v7595 = vpop.f32.mrb[0].mxu0
      %v7596 = vadd.f32 0.0, %v7595
      %v7597 = vpop.f32.mrb[0].mxu0
      %7598 = vmatprep.mubr.bf16.mxu0 0
      %7599 = vmatmul.mubr.bf16.gmra.mrb[0].mxu0 %v7517
      %v7600 = vpop.f32.mrb[0].mxu0
      %v7601 = vadd.f32 0.0, %v7600
      %v7602 = vpop.f32.mrb[0].mxu0
      %v7603 = vpop.f32.mrb[0].mxu0
      %v7604 = vadd.f32 0.0, %v7603
      %v7605 = vpop.f32.mrb[0].mxu0
      %7606 = vmatprep.mubr.bf16.mxu0 0
      %7607 = vmatmul.mubr.bf16.gmra.mrb[0].mxu0 %v7520
      %v7608 = vpop.f32.mrb[0].mxu0
      %v7609 = vadd.f32 0.0, %v7608
      %v7610 = vpop.f32.mrb[0].mxu0
      %v7611 = vpop.f32.mrb[0].mxu0
      %v7612 = vadd.f32 0.0, %v7611
      %v7613 = vpop.f32.mrb[0].mxu0
      %7614 = vmatprep.mubr.bf16.mxu0 0
      %7615 = vmatmul.mubr.bf16.gmra.mrb[0].mxu0 %v7523
      %v7616 = vpop.f32.mrb[0].mxu0
      %v7617 = vadd.f32 0.0, %v7616
      %v7618 = vpop.f32.mrb[0].mxu0
      %v7619 = vpop.f32.mrb[0].mxu0
      %v7620 = vadd.f32 0.0, %v7619
      %v7621 = vpop.f32.mrb[0].mxu0
      %7622 = vmatprep.mubr.bf16.mxu0 0
      %7623 = vmatmul.mubr.bf16.gmra.mrb[0].mxu0 %v7526
      %v7624 = vpop.f32.mrb[0].mxu0
      %v7625 = vadd.f32 0.0, %v7624
      %v7626 = vpop.f32.mrb[0].mxu0
      %v7627 = vpop.f32.mrb[0].mxu0
      %v7628 = vadd.f32 0.0, %v7627
      %v7629 = vpop.f32.mrb[0].mxu0
      %7630 = vmatprep.mubr.bf16.mxu0 0
      %7631 = vmatmul.mubr.bf16.gmra.mrb[0].mxu0 %v7529
      %v7632 = vpop.f32.mrb[0].mxu0
      %v7633 = vadd.f32 0.0, %v7632
      %v7634 = vpop.f32.mrb[0].mxu0
      %v7635 = vpop.f32.mrb[0].mxu0
      %v7636 = vadd.f32 0.0, %v7635
      %v7637 = vpop.f32.mrb[0].mxu0
      %7638 = vmatprep.mubr.bf16.mxu0 0
      %7639 = vmatmul.mubr.bf16.gmra.mrb[0].mxu0 %v7532
      %v7640 = vpop.f32.mrb[0].mxu0
      %v7641 = vadd.f32 0.0, %v7640
      %v7642 = vpop.f32.mrb[0].mxu0
      %v7643 = vpop.f32.mrb[0].mxu0
      %v7644 = vadd.f32 0.0, %v7643
      %v7645 = vpop.f32.mrb[0].mxu0
      %7646 = vmatprep.mubr.bf16.mxu0 0
      %7647 = vmatmul.mubr.bf16.gmra.mrb[0].mxu0 %v7535
      %v7648 = vpop.f32.mrb[0].mxu0
      %v7649 = vadd.f32 0.0, %v7648
      %v7650 = vpop.f32.mrb[0].mxu0
      %v7651 = vpop.f32.mrb[0].mxu0
      %v7652 = vadd.f32 0.0, %v7651
      %v7653 = vpop.f32.mrb[0].mxu0
      %7654 = vmatprep.mubr.bf16.mxu0 0
      %7655 = vmatmul.mubr.bf16.gmra.mrb[0].mxu0 %v7538
      %v7656 = vpop.f32.mrb[0].mxu0
      %v7657 = vadd.f32 0.0, %v7656
      %v7658 = vpop.f32.mrb[0].mxu0
      %v7659 = vpop.f32.mrb[0].mxu0
      %v7660 = vadd.f32 0.0, %v7659
      %v7661 = vpop.f32.mrb[0].mxu0
      %7662 = vmatprep.mubr.bf16.mxu0 0
      %7663 = vmatmul.mubr.bf16.gmra.mrb[0].mxu0 %v7541
      %v7664 = vpop.f32.mrb[0].mxu0
      %v7665 = vadd.f32 0.0, %v7664
      %v7666 = vpop.f32.mrb[0].mxu0
      %v7667 = vpop.f32.mrb[0].mxu0
      %v7668 = vadd.f32 0.0, %v7667
      %v7669 = vpop.f32.mrb[0].mxu0
      %7670 = vmatprep.mubr.bf16.mxu0 0
      %7671 = vmatmul.mubr.bf16.gmra.mrb[0].mxu0 %v7544
      %v7672 = vpop.f32.mrb[0].mxu0
      %v7673 = vadd.f32 0.0, %v7672
      %v7674 = vpop.f32.mrb[0].mxu0
      %v7675 = vpop.f32.mrb[0].mxu0
      %v7676 = vadd.f32 0.0, %v7675
      %v7677 = vpop.f32.mrb[0].mxu0
      %7678 = vmatprep.mubr.bf16.mxu0 0
      %7679 = vmatmul.mubr.bf16.gmra.mrb[0].mxu0 %v7547
      %v7680 = vpop.f32.mrb[0].mxu0
      %v7681 = vadd.f32 0.0, %v7680
      %v7682 = vpop.f32.mrb[0].mxu0
      %v7683 = vpop.f32.mrb[0].mxu0
      %v7684 = vadd.f32 0.0, %v7683
      %v7685 = vpop.f32.mrb[0].mxu0
      %7686 = vmatprep.mubr.bf16.mxu0 0
      %7687 = vmatmul.mubr.bf16.gmra.mrb[0].mxu0 %v7550
      %v7688 = vpop.f32.mrb[0].mxu0
      %v7689 = vadd.f32 0.0, %v7688
      %v7690 = vpop.f32.mrb[0].mxu0
      %v7691 = vpop.f32.mrb[0].mxu0
      %v7692 = vadd.f32 0.0, %v7691
      %v7693 = vpop.f32.mrb[0].mxu0
      %7694 = vmatprep.mubr.bf16.mxu0 0
      %7695 = vmatmul.mubr.bf16.gmra.mrb[0].mxu0 %v7553
      %v7696 = vpop.f32.mrb[0].mxu0
      %v7697 = vadd.f32 0.0, %v7696
      %v7698 = vpop.f32.mrb[0].mxu0
      %v7699 = vpop.f32.mrb[0].mxu0
      %v7700 = vpop.f32.mrb[0].mxu0
      %7701 = vdwg.mxu0
      %v7716 = vunpack.c.l.b16 %v1755
      %v7717 = vunpack.c.l.b16 %v1756
      %v7718 = vunpack.c.l.b16 %v1757
      %v7719 = vunpack.c.l.b16 %v1758
      %v7720 = vunpack.c.l.b16 %v1759
      %v7721 = vunpack.c.l.b16 %v1760
      %v7722 = vunpack.c.l.b16 %v1761
      %v7723 = vunpack.c.l.b16 %v1762
      %v7724 = vunpack.c.l.b16 %v1763
      %v7725 = vunpack.c.l.b16 %v1764
      %v7726 = vunpack.c.l.b16 %v1765
      %v7727 = vunpack.c.l.b16 %v1766
      %v7728 = vunpack.c.l.b16 %v1767
      %v7729 = vunpack.c.l.b16 %v1768
      %v7730 = vpack.c.b16 %v7717, %v7716
      %v7731 = vpack.c.b16 %v7719, %v7718
      %v7732 = vpack.c.b16 %v7721, %v7720
      %v7733 = vpack.c.b16 %v7723, %v7722
      %v7734 = vpack.c.b16 %v7725, %v7724
      %v7735 = vpack.c.b16 %v7727, %v7726
      %v7736 = vpack.c.b16 %v7729, %v7728
      %v7744 = vsel %vm4494, %v6509, 0
      %v7747 = vsel %vm4494, %v6510, 0
      %v7750 = vsel %vm4494, %v6511, 0
      %v7753 = vsel %vm4494, %v6512, 0
      %v7756 = vsel %vm4494, %v6513, 0
      %v7759 = vsel %vm4494, %v6514, 0
      %v7762 = vsel %vm4494, %v6515, 0
      %v7765 = vsel %vm4494, %v6516, 0
      %v7768 = vsel %vm4494, %v6517, 0
      %v7771 = vsel %vm4494, %v6518, 0
      %v7774 = vsel %vm4494, %v6519, 0
      %v7777 = vsel %vm4494, %v6520, 0
      %v7780 = vsel %vm4494, %v6521, 0
      %v7783 = vsel %vm4494, %v6522, 0
      %v7786 = vsel %vm6634, %v7736, 0
      %7788 = vmatprep.subr.bf16.mxu0 0
      %7789 = vmatpush1.bf16.msra.mxu0 %v7730
      %7790 = vmatprep.subr.bf16.mxu0 0
      %7791 = vmatpush1.bf16.msra.mxu0 %v7731
      %7792 = vmatprep.subr.bf16.mxu0 0
      %7793 = vmatpush1.bf16.msra.mxu0 %v7732
      %7794 = vmatprep.subr.bf16.mxu0 0
      %7795 = vmatpush1.bf16.msra.mxu0 %v7733
      %7796 = vmatprep.subr.bf16.mxu0 0
      %7797 = vmatpush1.bf16.msra.mxu0 %v7734
      %7798 = vmatprep.subr.bf16.mxu0 0
      %7799 = vmatpush1.bf16.msra.mxu0 %v7735
      %7800 = vmatprep.subr.bf16.mxu0 0
      %7801 = vmatpush1.bf16.msra.mxu0 %v7786
      %7802 = vmatprep.subr.bf16.mxu0 0
      %7803 = vmatpush1.bf16.msra.mxu0 0
      %7804 = vmatprep.subr.bf16.mxu0 0
      %7805 = vmatpush1.bf16.msra.mxu0 0
      %7806 = vmatprep.subr.bf16.mxu0 0
      %7807 = vmatpush1.bf16.msra.mxu0 0
      %7808 = vmatprep.subr.bf16.mxu0 0
      %7809 = vmatpush1.bf16.msra.mxu0 0
      %7810 = vmatprep.subr.bf16.mxu0 0
      %7811 = vmatpush1.bf16.msra.mxu0 0
      %7812 = vmatprep.subr.bf16.mxu0 0
      %7813 = vmatpush1.bf16.msra.mxu0 0
      %7814 = vmatprep.subr.bf16.mxu0 0
      %7815 = vmatpush1.bf16.msra.mxu0 0
      %7816 = vmatprep.subr.bf16.mxu0 0
      %7817 = vmatpush1.bf16.msra.mxu0 0
      %7818 = vmatprep.subr.bf16.mxu0 0
      %7819 = vmatpush1.bf16.msra.mxu0 0
      %7820 = vmatprep.mubr.bf16.mxu0 0
      %7821 = vmatmul.mubr.bf16.gmra.mrb[0].mxu0 %v7744
      %v7822 = vpop.f32.mrb[0].mxu0
      %v7823 = vadd.f32 0.0, %v7822
      %v7824 = vpop.f32.mrb[0].mxu0
      %v7825 = vpop.f32.mrb[0].mxu0
      %v7826 = vadd.f32 0.0, %v7825
      %v7827 = vpop.f32.mrb[0].mxu0
      %7828 = vmatprep.mubr.bf16.mxu0 0
      %7829 = vmatmul.mubr.bf16.gmra.mrb[0].mxu0 %v7747
      %v7830 = vpop.f32.mrb[0].mxu0
      %v7831 = vadd.f32 0.0, %v7830
      %v7832 = vpop.f32.mrb[0].mxu0
      %v7833 = vpop.f32.mrb[0].mxu0
      %v7834 = vadd.f32 0.0, %v7833
      %v7835 = vpop.f32.mrb[0].mxu0
      %7836 = vmatprep.mubr.bf16.mxu0 0
      %7837 = vmatmul.mubr.bf16.gmra.mrb[0].mxu0 %v7750
      %v7838 = vpop.f32.mrb[0].mxu0
      %v7839 = vadd.f32 0.0, %v7838
      %v7840 = vpop.f32.mrb[0].mxu0
      %v7841 = vpop.f32.mrb[0].mxu0
      %v7842 = vadd.f32 0.0, %v7841
      %v7843 = vpop.f32.mrb[0].mxu0
      %7844 = vmatprep.mubr.bf16.mxu0 0
      %7845 = vmatmul.mubr.bf16.gmra.mrb[0].mxu0 %v7753
      %v7846 = vpop.f32.mrb[0].mxu0
      %v7847 = vadd.f32 0.0, %v7846
      %v7848 = vpop.f32.mrb[0].mxu0
      %v7849 = vpop.f32.mrb[0].mxu0
      %v7850 = vadd.f32 0.0, %v7849
      %v7851 = vpop.f32.mrb[0].mxu0
      %7852 = vmatprep.mubr.bf16.mxu0 0
      %7853 = vmatmul.mubr.bf16.gmra.mrb[0].mxu0 %v7756
      %v7854 = vpop.f32.mrb[0].mxu0
      %v7855 = vadd.f32 0.0, %v7854
      %v7856 = vpop.f32.mrb[0].mxu0
      %v7857 = vpop.f32.mrb[0].mxu0
      %v7858 = vadd.f32 0.0, %v7857
      %v7859 = vpop.f32.mrb[0].mxu0
      %7860 = vmatprep.mubr.bf16.mxu0 0
      %7861 = vmatmul.mubr.bf16.gmra.mrb[0].mxu0 %v7759
      %v7862 = vpop.f32.mrb[0].mxu0
      %v7863 = vadd.f32 0.0, %v7862
      %v7864 = vpop.f32.mrb[0].mxu0
      %v7865 = vpop.f32.mrb[0].mxu0
      %v7866 = vadd.f32 0.0, %v7865
      %v7867 = vpop.f32.mrb[0].mxu0
      %7868 = vmatprep.mubr.bf16.mxu0 0
      %7869 = vmatmul.mubr.bf16.gmra.mrb[0].mxu0 %v7762
      %v7870 = vpop.f32.mrb[0].mxu0
      %v7871 = vadd.f32 0.0, %v7870
      %v7872 = vpop.f32.mrb[0].mxu0
      %v7873 = vpop.f32.mrb[0].mxu0
      %v7874 = vadd.f32 0.0, %v7873
      %v7875 = vpop.f32.mrb[0].mxu0
      %7876 = vmatprep.mubr.bf16.mxu0 0
      %7877 = vmatmul.mubr.bf16.gmra.mrb[0].mxu0 %v7765
      %v7878 = vpop.f32.mrb[0].mxu0
      %v7879 = vadd.f32 0.0, %v7878
      %v7880 = vpop.f32.mrb[0].mxu0
      %v7881 = vpop.f32.mrb[0].mxu0
      %v7882 = vadd.f32 0.0, %v7881
      %v7883 = vpop.f32.mrb[0].mxu0
      %7884 = vmatprep.mubr.bf16.mxu0 0
      %7885 = vmatmul.mubr.bf16.gmra.mrb[0].mxu0 %v7768
      %v7886 = vpop.f32.mrb[0].mxu0
      %v7887 = vadd.f32 0.0, %v7886
      %v7888 = vpop.f32.mrb[0].mxu0
      %v7889 = vpop.f32.mrb[0].mxu0
      %v7890 = vadd.f32 0.0, %v7889
      %v7891 = vpop.f32.mrb[0].mxu0
      %7892 = vmatprep.mubr.bf16.mxu0 0
      %7893 = vmatmul.mubr.bf16.gmra.mrb[0].mxu0 %v7771
      %v7894 = vpop.f32.mrb[0].mxu0
      %v7895 = vadd.f32 0.0, %v7894
      %v7896 = vpop.f32.mrb[0].mxu0
      %v7897 = vpop.f32.mrb[0].mxu0
      %v7898 = vadd.f32 0.0, %v7897
      %v7899 = vpop.f32.mrb[0].mxu0
      %7900 = vmatprep.mubr.bf16.mxu0 0
      %7901 = vmatmul.mubr.bf16.gmra.mrb[0].mxu0 %v7774
      %v7902 = vpop.f32.mrb[0].mxu0
      %v7903 = vadd.f32 0.0, %v7902
      %v7904 = vpop.f32.mrb[0].mxu0
      %v7905 = vpop.f32.mrb[0].mxu0
      %v7906 = vadd.f32 0.0, %v7905
      %v7907 = vpop.f32.mrb[0].mxu0
      %7908 = vmatprep.mubr.bf16.mxu0 0
      %7909 = vmatmul.mubr.bf16.gmra.mrb[0].mxu0 %v7777
      %v7910 = vpop.f32.mrb[0].mxu0
      %v7911 = vadd.f32 0.0, %v7910
      %v7912 = vpop.f32.mrb[0].mxu0
      %v7913 = vpop.f32.mrb[0].mxu0
      %v7914 = vadd.f32 0.0, %v7913
      %v7915 = vpop.f32.mrb[0].mxu0
      %7916 = vmatprep.mubr.bf16.mxu0 0
      %7917 = vmatmul.mubr.bf16.gmra.mrb[0].mxu0 %v7780
      %v7918 = vpop.f32.mrb[0].mxu0
      %v7919 = vadd.f32 0.0, %v7918
      %v7920 = vpop.f32.mrb[0].mxu0
      %v7921 = vpop.f32.mrb[0].mxu0
      %v7922 = vadd.f32 0.0, %v7921
      %v7923 = vpop.f32.mrb[0].mxu0
      %7924 = vmatprep.mubr.bf16.mxu0 0
      %7925 = vmatmul.mubr.bf16.gmra.mrb[0].mxu0 %v7783
      %v7926 = vpop.f32.mrb[0].mxu0
      %v7927 = vadd.f32 0.0, %v7926
      %v7928 = vpop.f32.mrb[0].mxu0
      %v7929 = vpop.f32.mrb[0].mxu0
      %v7930 = vpop.f32.mrb[0].mxu0
      %7931 = vdwg.mxu0
      %v7946 = vunpack.c.l.b16 %v1769
      %v7947 = vunpack.c.l.b16 %v1770
      %v7948 = vunpack.c.l.b16 %v1771
      %v7949 = vunpack.c.l.b16 %v1772
      %v7950 = vunpack.c.l.b16 %v1773
      %v7951 = vunpack.c.l.b16 %v1774
      %v7952 = vunpack.c.l.b16 %v1775
      %v7953 = vunpack.c.l.b16 %v1776
      %v7954 = vunpack.c.l.b16 %v1777
      %v7955 = vunpack.c.l.b16 %v1778
      %v7956 = vunpack.c.l.b16 %v1779
      %v7957 = vunpack.c.l.b16 %v1780
      %v7958 = vunpack.c.l.b16 %v1781
      %v7959 = vunpack.c.l.b16 %v1782
      %v7960 = vpack.c.b16 %v7947, %v7946
      %v7961 = vpack.c.b16 %v7949, %v7948
      %v7962 = vpack.c.b16 %v7951, %v7950
      %v7963 = vpack.c.b16 %v7953, %v7952
      %v7964 = vpack.c.b16 %v7955, %v7954
      %v7965 = vpack.c.b16 %v7957, %v7956
      %v7966 = vpack.c.b16 %v7959, %v7958
      %v7974 = vsel %vm4494, %v6523, 0
      %v7977 = vsel %vm4494, %v6524, 0
      %v7980 = vsel %vm4494, %v6525, 0
      %v7983 = vsel %vm4494, %v6526, 0
      %v7986 = vsel %vm4494, %v6527, 0
      %v7989 = vsel %vm4494, %v6528, 0
      %v7992 = vsel %vm4494, %v6529, 0
      %v7995 = vsel %vm4494, %v6530, 0
      %v7998 = vsel %vm4494, %v6531, 0
      %v8001 = vsel %vm4494, %v6532, 0
      %v8004 = vsel %vm4494, %v6533, 0
      %v8007 = vsel %vm4494, %v6534, 0
      %v8010 = vsel %vm4494, %v6535, 0
      %v8013 = vsel %vm4494, %v6536, 0
      %v8016 = vsel %vm6634, %v7966, 0
      %8018 = vmatprep.subr.bf16.mxu0 0
      %8019 = vmatpush1.bf16.msra.mxu0 %v7960
      %8020 = vmatprep.subr.bf16.mxu0 0
      %8021 = vmatpush1.bf16.msra.mxu0 %v7961
      %8022 = vmatprep.subr.bf16.mxu0 0
      %8023 = vmatpush1.bf16.msra.mxu0 %v7962
      %8024 = vmatprep.subr.bf16.mxu0 0
      %8025 = vmatpush1.bf16.msra.mxu0 %v7963
      %8026 = vmatprep.subr.bf16.mxu0 0
      %8027 = vmatpush1.bf16.msra.mxu0 %v7964
      %8028 = vmatprep.subr.bf16.mxu0 0
      %8029 = vmatpush1.bf16.msra.mxu0 %v7965
      %8030 = vmatprep.subr.bf16.mxu0 0
      %8031 = vmatpush1.bf16.msra.mxu0 %v8016
      %8032 = vmatprep.subr.bf16.mxu0 0
      %8033 = vmatpush1.bf16.msra.mxu0 0
      %8034 = vmatprep.subr.bf16.mxu0 0
      %8035 = vmatpush1.bf16.msra.mxu0 0
      %8036 = vmatprep.subr.bf16.mxu0 0
      %8037 = vmatpush1.bf16.msra.mxu0 0
      %8038 = vmatprep.subr.bf16.mxu0 0
      %8039 = vmatpush1.bf16.msra.mxu0 0
      %8040 = vmatprep.subr.bf16.mxu0 0
      %8041 = vmatpush1.bf16.msra.mxu0 0
      %8042 = vmatprep.subr.bf16.mxu0 0
      %8043 = vmatpush1.bf16.msra.mxu0 0
      %8044 = vmatprep.subr.bf16.mxu0 0
      %8045 = vmatpush1.bf16.msra.mxu0 0
      %8046 = vmatprep.subr.bf16.mxu0 0
      %8047 = vmatpush1.bf16.msra.mxu0 0
      %8048 = vmatprep.subr.bf16.mxu0 0
      %8049 = vmatpush1.bf16.msra.mxu0 0
      %8050 = vmatprep.mubr.bf16.mxu0 0
      %8051 = vmatmul.mubr.bf16.gmra.mrb[0].mxu0 %v7974
      %v8052 = vpop.f32.mrb[0].mxu0
      %v8053 = vadd.f32 0.0, %v8052
      %v8054 = vpop.f32.mrb[0].mxu0
      %v8055 = vpop.f32.mrb[0].mxu0
      %v8056 = vadd.f32 0.0, %v8055
      %v8057 = vpop.f32.mrb[0].mxu0
      %8058 = vmatprep.mubr.bf16.mxu0 0
      %8059 = vmatmul.mubr.bf16.gmra.mrb[0].mxu0 %v7977
      %v8060 = vpop.f32.mrb[0].mxu0
      %v8061 = vadd.f32 0.0, %v8060
      %v8062 = vpop.f32.mrb[0].mxu0
      %v8063 = vpop.f32.mrb[0].mxu0
      %v8064 = vadd.f32 0.0, %v8063
      %v8065 = vpop.f32.mrb[0].mxu0
      %8066 = vmatprep.mubr.bf16.mxu0 0
      %8067 = vmatmul.mubr.bf16.gmra.mrb[0].mxu0 %v7980
      %v8068 = vpop.f32.mrb[0].mxu0
      %v8069 = vadd.f32 0.0, %v8068
      %v8070 = vpop.f32.mrb[0].mxu0
      %v8071 = vpop.f32.mrb[0].mxu0
      %v8072 = vadd.f32 0.0, %v8071
      %v8073 = vpop.f32.mrb[0].mxu0
      %8074 = vmatprep.mubr.bf16.mxu0 0
      %8075 = vmatmul.mubr.bf16.gmra.mrb[0].mxu0 %v7983
      %v8076 = vpop.f32.mrb[0].mxu0
      %v8077 = vadd.f32 0.0, %v8076
      %v8078 = vpop.f32.mrb[0].mxu0
      %v8079 = vpop.f32.mrb[0].mxu0
      %v8080 = vadd.f32 0.0, %v8079
      %v8081 = vpop.f32.mrb[0].mxu0
      %8082 = vmatprep.mubr.bf16.mxu0 0
      %8083 = vmatmul.mubr.bf16.gmra.mrb[0].mxu0 %v7986
      %v8084 = vpop.f32.mrb[0].mxu0
      %v8085 = vadd.f32 0.0, %v8084
      %v8086 = vpop.f32.mrb[0].mxu0
      %v8087 = vpop.f32.mrb[0].mxu0
      %v8088 = vadd.f32 0.0, %v8087
      %v8089 = vpop.f32.mrb[0].mxu0
      %8090 = vmatprep.mubr.bf16.mxu0 0
      %8091 = vmatmul.mubr.bf16.gmra.mrb[0].mxu0 %v7989
      %v8092 = vpop.f32.mrb[0].mxu0
      %v8093 = vadd.f32 0.0, %v8092
      %v8094 = vpop.f32.mrb[0].mxu0
      %v8095 = vpop.f32.mrb[0].mxu0
      %v8096 = vadd.f32 0.0, %v8095
      %v8097 = vpop.f32.mrb[0].mxu0
      %8098 = vmatprep.mubr.bf16.mxu0 0
      %8099 = vmatmul.mubr.bf16.gmra.mrb[0].mxu0 %v7992
      %v8100 = vpop.f32.mrb[0].mxu0
      %v8101 = vadd.f32 0.0, %v8100
      %v8102 = vpop.f32.mrb[0].mxu0
      %v8103 = vpop.f32.mrb[0].mxu0
      %v8104 = vadd.f32 0.0, %v8103
      %v8105 = vpop.f32.mrb[0].mxu0
      %8106 = vmatprep.mubr.bf16.mxu0 0
      %8107 = vmatmul.mubr.bf16.gmra.mrb[0].mxu0 %v7995
      %v8108 = vpop.f32.mrb[0].mxu0
      %v8109 = vadd.f32 0.0, %v8108
      %v8110 = vpop.f32.mrb[0].mxu0
      %v8111 = vpop.f32.mrb[0].mxu0
      %v8112 = vadd.f32 0.0, %v8111
      %v8113 = vpop.f32.mrb[0].mxu0
      %8114 = vmatprep.mubr.bf16.mxu0 0
      %8115 = vmatmul.mubr.bf16.gmra.mrb[0].mxu0 %v7998
      %v8116 = vpop.f32.mrb[0].mxu0
      %v8117 = vadd.f32 0.0, %v8116
      %v8118 = vpop.f32.mrb[0].mxu0
      %v8119 = vpop.f32.mrb[0].mxu0
      %v8120 = vadd.f32 0.0, %v8119
      %v8121 = vpop.f32.mrb[0].mxu0
      %8122 = vmatprep.mubr.bf16.mxu0 0
      %8123 = vmatmul.mubr.bf16.gmra.mrb[0].mxu0 %v8001
      %v8124 = vpop.f32.mrb[0].mxu0
      %v8125 = vadd.f32 0.0, %v8124
      %v8126 = vpop.f32.mrb[0].mxu0
      %v8127 = vpop.f32.mrb[0].mxu0
      %v8128 = vadd.f32 0.0, %v8127
      %v8129 = vpop.f32.mrb[0].mxu0
      %8130 = vmatprep.mubr.bf16.mxu0 0
      %8131 = vmatmul.mubr.bf16.gmra.mrb[0].mxu0 %v8004
      %v8132 = vpop.f32.mrb[0].mxu0
      %v8133 = vadd.f32 0.0, %v8132
      %v8134 = vpop.f32.mrb[0].mxu0
      %v8135 = vpop.f32.mrb[0].mxu0
      %v8136 = vadd.f32 0.0, %v8135
      %v8137 = vpop.f32.mrb[0].mxu0
      %8138 = vmatprep.mubr.bf16.mxu0 0
      %8139 = vmatmul.mubr.bf16.gmra.mrb[0].mxu0 %v8007
      %v8140 = vpop.f32.mrb[0].mxu0
      %v8141 = vadd.f32 0.0, %v8140
      %v8142 = vpop.f32.mrb[0].mxu0
      %v8143 = vpop.f32.mrb[0].mxu0
      %v8144 = vadd.f32 0.0, %v8143
      %v8145 = vpop.f32.mrb[0].mxu0
      %8146 = vmatprep.mubr.bf16.mxu0 0
      %8147 = vmatmul.mubr.bf16.gmra.mrb[0].mxu0 %v8010
      %v8148 = vpop.f32.mrb[0].mxu0
      %v8149 = vadd.f32 0.0, %v8148
      %v8150 = vpop.f32.mrb[0].mxu0
      %v8151 = vpop.f32.mrb[0].mxu0
      %v8152 = vadd.f32 0.0, %v8151
      %v8153 = vpop.f32.mrb[0].mxu0
      %8154 = vmatprep.mubr.bf16.mxu0 0
      %8155 = vmatmul.mubr.bf16.gmra.mrb[0].mxu0 %v8013
      %v8156 = vpop.f32.mrb[0].mxu0
      %v8157 = vadd.f32 0.0, %v8156
      %v8158 = vpop.f32.mrb[0].mxu0
      %v8159 = vpop.f32.mrb[0].mxu0
      %v8160 = vpop.f32.mrb[0].mxu0
      %8161 = vdwg.mxu0
      %v8176 = vunpack.c.l.b16 %v1783
      %v8177 = vunpack.c.l.b16 %v1784
      %v8178 = vunpack.c.l.b16 %v1785
      %v8179 = vunpack.c.l.b16 %v1786
      %v8180 = vunpack.c.l.b16 %v1787
      %v8181 = vunpack.c.l.b16 %v1788
      %v8182 = vunpack.c.l.b16 %v1789
      %v8183 = vunpack.c.l.b16 %v1790
      %v8184 = vunpack.c.l.b16 %v1791
      %v8185 = vunpack.c.l.b16 %v1792
      %v8186 = vunpack.c.l.b16 %v1793
      %v8187 = vunpack.c.l.b16 %v1794
      %v8188 = vunpack.c.l.b16 %v1795
      %v8189 = vunpack.c.l.b16 %v1796
      %v8190 = vpack.c.b16 %v8177, %v8176
      %v8191 = vpack.c.b16 %v8179, %v8178
      %v8192 = vpack.c.b16 %v8181, %v8180
      %v8193 = vpack.c.b16 %v8183, %v8182
      %v8194 = vpack.c.b16 %v8185, %v8184
      %v8195 = vpack.c.b16 %v8187, %v8186
      %v8196 = vpack.c.b16 %v8189, %v8188
      %v8204 = vsel %vm4494, %v6537, 0
      %v8207 = vsel %vm4494, %v6538, 0
      %v8210 = vsel %vm4494, %v6539, 0
      %v8213 = vsel %vm4494, %v6540, 0
      %v8216 = vsel %vm4494, %v6541, 0
      %v8219 = vsel %vm4494, %v6542, 0
      %v8222 = vsel %vm4494, %v6543, 0
      %v8225 = vsel %vm4494, %v6544, 0
      %v8228 = vsel %vm4494, %v6545, 0
      %v8231 = vsel %vm4494, %v6546, 0
      %v8234 = vsel %vm4494, %v6547, 0
      %v8237 = vsel %vm4494, %v6548, 0
      %v8240 = vsel %vm4494, %v6549, 0
      %v8243 = vsel %vm4494, %v6550, 0
      %v8246 = vsel %vm6634, %v8196, 0
      %8248 = vmatprep.subr.bf16.mxu0 0
      %8249 = vmatpush1.bf16.msra.mxu0 %v8190
      %8250 = vmatprep.subr.bf16.mxu0 0
      %8251 = vmatpush1.bf16.msra.mxu0 %v8191
      %8252 = vmatprep.subr.bf16.mxu0 0
      %8253 = vmatpush1.bf16.msra.mxu0 %v8192
      %8254 = vmatprep.subr.bf16.mxu0 0
      %8255 = vmatpush1.bf16.msra.mxu0 %v8193
      %8256 = vmatprep.subr.bf16.mxu0 0
      %8257 = vmatpush1.bf16.msra.mxu0 %v8194
      %8258 = vmatprep.subr.bf16.mxu0 0
      %8259 = vmatpush1.bf16.msra.mxu0 %v8195
      %8260 = vmatprep.subr.bf16.mxu0 0
      %8261 = vmatpush1.bf16.msra.mxu0 %v8246
      %8262 = vmatprep.subr.bf16.mxu0 0
      %8263 = vmatpush1.bf16.msra.mxu0 0
      %8264 = vmatprep.subr.bf16.mxu0 0
      %8265 = vmatpush1.bf16.msra.mxu0 0
      %8266 = vmatprep.subr.bf16.mxu0 0
      %8267 = vmatpush1.bf16.msra.mxu0 0
      %8268 = vmatprep.subr.bf16.mxu0 0
      %8269 = vmatpush1.bf16.msra.mxu0 0
      %8270 = vmatprep.subr.bf16.mxu0 0
      %8271 = vmatpush1.bf16.msra.mxu0 0
      %8272 = vmatprep.subr.bf16.mxu0 0
      %8273 = vmatpush1.bf16.msra.mxu0 0
      %8274 = vmatprep.subr.bf16.mxu0 0
      %8275 = vmatpush1.bf16.msra.mxu0 0
      %8276 = vmatprep.subr.bf16.mxu0 0
      %8277 = vmatpush1.bf16.msra.mxu0 0
      %8278 = vmatprep.subr.bf16.mxu0 0
      %8279 = vmatpush1.bf16.msra.mxu0 0
      %8280 = vmatprep.mubr.bf16.mxu0 0
      %8281 = vmatmul.mubr.bf16.gmra.mrb[0].mxu0 %v8204
      %v8282 = vpop.f32.mrb[0].mxu0
      %v8283 = vadd.f32 0.0, %v8282
      %v8284 = vpop.f32.mrb[0].mxu0
      %v8285 = vpop.f32.mrb[0].mxu0
      %v8286 = vadd.f32 0.0, %v8285
      %v8287 = vpop.f32.mrb[0].mxu0
      %8288 = vmatprep.mubr.bf16.mxu0 0
      %8289 = vmatmul.mubr.bf16.gmra.mrb[0].mxu0 %v8207
      %v8290 = vpop.f32.mrb[0].mxu0
      %v8291 = vadd.f32 0.0, %v8290
      %v8292 = vpop.f32.mrb[0].mxu0
      %v8293 = vpop.f32.mrb[0].mxu0
      %v8294 = vadd.f32 0.0, %v8293
      %v8295 = vpop.f32.mrb[0].mxu0
      %8296 = vmatprep.mubr.bf16.mxu0 0
      %8297 = vmatmul.mubr.bf16.gmra.mrb[0].mxu0 %v8210
      %v8298 = vpop.f32.mrb[0].mxu0
      %v8299 = vadd.f32 0.0, %v8298
      %v8300 = vpop.f32.mrb[0].mxu0
      %v8301 = vpop.f32.mrb[0].mxu0
      %v8302 = vadd.f32 0.0, %v8301
      %v8303 = vpop.f32.mrb[0].mxu0
      %8304 = vmatprep.mubr.bf16.mxu0 0
      %8305 = vmatmul.mubr.bf16.gmra.mrb[0].mxu0 %v8213
      %v8306 = vpop.f32.mrb[0].mxu0
      %v8307 = vadd.f32 0.0, %v8306
      %v8308 = vpop.f32.mrb[0].mxu0
      %v8309 = vpop.f32.mrb[0].mxu0
      %v8310 = vadd.f32 0.0, %v8309
      %v8311 = vpop.f32.mrb[0].mxu0
      %8312 = vmatprep.mubr.bf16.mxu0 0
      %8313 = vmatmul.mubr.bf16.gmra.mrb[0].mxu0 %v8216
      %v8314 = vpop.f32.mrb[0].mxu0
      %v8315 = vadd.f32 0.0, %v8314
      %v8316 = vpop.f32.mrb[0].mxu0
      %v8317 = vpop.f32.mrb[0].mxu0
      %v8318 = vadd.f32 0.0, %v8317
      %v8319 = vpop.f32.mrb[0].mxu0
      %8320 = vmatprep.mubr.bf16.mxu0 0
      %8321 = vmatmul.mubr.bf16.gmra.mrb[0].mxu0 %v8219
      %v8322 = vpop.f32.mrb[0].mxu0
      %v8323 = vadd.f32 0.0, %v8322
      %v8324 = vpop.f32.mrb[0].mxu0
      %v8325 = vpop.f32.mrb[0].mxu0
      %v8326 = vadd.f32 0.0, %v8325
      %v8327 = vpop.f32.mrb[0].mxu0
      %8328 = vmatprep.mubr.bf16.mxu0 0
      %8329 = vmatmul.mubr.bf16.gmra.mrb[0].mxu0 %v8222
      %v8330 = vpop.f32.mrb[0].mxu0
      %v8331 = vadd.f32 0.0, %v8330
      %v8332 = vpop.f32.mrb[0].mxu0
      %v8333 = vpop.f32.mrb[0].mxu0
      %v8334 = vadd.f32 0.0, %v8333
      %v8335 = vpop.f32.mrb[0].mxu0
      %8336 = vmatprep.mubr.bf16.mxu0 0
      %8337 = vmatmul.mubr.bf16.gmra.mrb[0].mxu0 %v8225
      %v8338 = vpop.f32.mrb[0].mxu0
      %v8339 = vadd.f32 0.0, %v8338
      %v8340 = vpop.f32.mrb[0].mxu0
      %v8341 = vpop.f32.mrb[0].mxu0
      %v8342 = vadd.f32 0.0, %v8341
      %v8343 = vpop.f32.mrb[0].mxu0
      %8344 = vmatprep.mubr.bf16.mxu0 0
      %8345 = vmatmul.mubr.bf16.gmra.mrb[0].mxu0 %v8228
      %v8346 = vpop.f32.mrb[0].mxu0
      %v8347 = vadd.f32 0.0, %v8346
      %v8348 = vpop.f32.mrb[0].mxu0
      %v8349 = vpop.f32.mrb[0].mxu0
      %v8350 = vadd.f32 0.0, %v8349
      %v8351 = vpop.f32.mrb[0].mxu0
      %8352 = vmatprep.mubr.bf16.mxu0 0
      %8353 = vmatmul.mubr.bf16.gmra.mrb[0].mxu0 %v8231
      %v8354 = vpop.f32.mrb[0].mxu0
      %v8355 = vadd.f32 0.0, %v8354
      %v8356 = vpop.f32.mrb[0].mxu0
      %v8357 = vpop.f32.mrb[0].mxu0
      %v8358 = vadd.f32 0.0, %v8357
      %v8359 = vpop.f32.mrb[0].mxu0
      %8360 = vmatprep.mubr.bf16.mxu0 0
      %8361 = vmatmul.mubr.bf16.gmra.mrb[0].mxu0 %v8234
      %v8362 = vpop.f32.mrb[0].mxu0
      %v8363 = vadd.f32 0.0, %v8362
      %v8364 = vpop.f32.mrb[0].mxu0
      %v8365 = vpop.f32.mrb[0].mxu0
      %v8366 = vadd.f32 0.0, %v8365
      %v8367 = vpop.f32.mrb[0].mxu0
      %8368 = vmatprep.mubr.bf16.mxu0 0
      %8369 = vmatmul.mubr.bf16.gmra.mrb[0].mxu0 %v8237
      %v8370 = vpop.f32.mrb[0].mxu0
      %v8371 = vadd.f32 0.0, %v8370
      %v8372 = vpop.f32.mrb[0].mxu0
      %v8373 = vpop.f32.mrb[0].mxu0
      %v8374 = vadd.f32 0.0, %v8373
      %v8375 = vpop.f32.mrb[0].mxu0
      %8376 = vmatprep.mubr.bf16.mxu0 0
      %8377 = vmatmul.mubr.bf16.gmra.mrb[0].mxu0 %v8240
      %v8378 = vpop.f32.mrb[0].mxu0
      %v8379 = vadd.f32 0.0, %v8378
      %v8380 = vpop.f32.mrb[0].mxu0
      %v8381 = vpop.f32.mrb[0].mxu0
      %v8382 = vadd.f32 0.0, %v8381
      %v8383 = vpop.f32.mrb[0].mxu0
      %8384 = vmatprep.mubr.bf16.mxu0 0
      %8385 = vmatmul.mubr.bf16.gmra.mrb[0].mxu0 %v8243
      %v8386 = vpop.f32.mrb[0].mxu0
      %v8387 = vadd.f32 0.0, %v8386
      %v8388 = vpop.f32.mrb[0].mxu0
      %v8389 = vpop.f32.mrb[0].mxu0
      %v8390 = vpop.f32.mrb[0].mxu0
      %8391 = vdwg.mxu0
      %v8392 = vrcp.pop %v5793
      %v8393 = vrcp.pop %v5796
      %v8394 = vrcp.pop %v5799
      %v8395 = vrcp.pop %v5802
      %v8396 = vrcp.pop %v5805
      %v8397 = vrcp.pop %v5808
      %v8398 = vrcp.pop %v5811
      %v8399 = vrcp.pop %v5814
      %v8400 = vrcp.pop %v5817
      %v8401 = vrcp.pop %v5820
      %v8402 = vrcp.pop %v5823
      %v8403 = vrcp.pop %v5826
      %v8404 = vrcp.pop %v5829
      %v8405 = vrcp.pop %v5832
      %v8406 = vrcp.pop %v5835
      %v8407 = vrcp.pop %v5838
      %v8408 = vrcp.pop %v5841
      %v8409 = vrcp.pop %v5844
      %v8410 = vrcp.pop %v5847
      %v8411 = vrcp.pop %v5850
      %v8412 = vrcp.pop %v5853
      %v8413 = vrcp.pop %v5856
      %v8414 = vrcp.pop %v5859
      %v8415 = vrcp.pop %v5862
      %v8416 = vrcp.pop %v5865
      %v8417 = vrcp.pop %v5868
      %v8418 = vrcp.pop %v5871
      %v8419 = vrcp.pop %v5874
      %v8420 = vrcp.pop %v5877
      %v8421 = vrcp.pop %v5880
      %v8422 = vrcp.pop %v5883
      %v8423 = vrcp.pop %v5886
      %v8424 = vrcp.pop %v5889
      %v8425 = vrcp.pop %v5892
      %v8426 = vrcp.pop %v5895
      %v8427 = vrcp.pop %v5898
      %v8428 = vrcp.pop %v5901
      %v8429 = vrcp.pop %v5904
      %v8430 = vrcp.pop %v5907
      %v8431 = vrcp.pop %v5910
      %v8432 = vrcp.pop %v5913
      %v8433 = vrcp.pop %v5916
      %v8434 = vrcp.pop %v5919
      %v8435 = vrcp.pop %v5922
      %v8436 = vrcp.pop %v5925
      %v8437 = vrcp.pop %v5928
      %v8438 = vrcp.pop %v5931
      %v8439 = vrcp.pop %v5934
      %v8440 = vrcp.pop %v5937
      %v8441 = vrcp.pop %v5940
      %v8442 = vrcp.pop %v5943
      %v8443 = vrcp.pop %v5946
      %v8444 = vrcp.pop %v5949
      %v8445 = vrcp.pop %v5952
      %v8446 = vrcp.pop %v5955
      %v8447 = vrcp.pop %v5958
      %v8448 = vrcp.pop %v5961
      %v8449 = vrcp.pop %v5964
      %v8450 = vrcp.pop %v5967
      %v8451 = vrcp.pop %v5970
      %v8452 = vrcp.pop %v5973
      %v8453 = vrcp.pop %v5976
      %v8454 = vrcp.pop %v5979
      %v8455 = vrcp.pop %v5982
      %v8456 = vrcp.pop %v5985
      %v8457 = vrcp.pop %v5988
      %v8458 = vrcp.pop %v5991
      %v8459 = vrcp.pop %v5994
      %v8460 = vrcp.pop %v5997
      %v8461 = vrcp.pop %v6000
      %v8462 = vrcp.pop %v6003
      %v8463 = vrcp.pop %v6006
      %v8464 = vrcp.pop %v6009
      %v8465 = vrcp.pop %v6012
      %v8466 = vrcp.pop %v6015
      %v8467 = vrcp.pop %v6018
      %v8468 = vrcp.pop %v6021
      %v8469 = vrcp.pop %v6024
      %v8470 = vrcp.pop %v6027
      %v8471 = vrcp.pop %v6030
      %v8472 = vrcp.pop %v6033
      %v8473 = vrcp.pop %v6036
      %v8474 = vrcp.pop %v6039
      %v8475 = vrcp.pop %v6042
      %v8476 = vrcp.pop %v6045
      %v8477 = vrcp.pop %v6048
      %v8478 = vrcp.pop %v6051
      %v8479 = vrcp.pop %v6054
      %v8480 = vrcp.pop %v6057
      %v8481 = vrcp.pop %v6060
      %v8482 = vrcp.pop %v6063
      %v8483 = vrcp.pop %v6066
      %v8484 = vrcp.pop %v6069
      %v8485 = vrcp.pop %v6072
      %v8486 = vrcp.pop %v6075
      %v8487 = vrcp.pop %v6078
      %v8488 = vrcp.pop %v6081
      %v8489 = vrcp.pop %v6084
      %v8490 = vrcp.pop %v6087
      %v8491 = vrcp.pop %v6090
      %v8492 = vrcp.pop %v6093
      %v8493 = vrcp.pop %v6096
      %v8494 = vrcp.pop %v6099
      %v8495 = vrcp.pop %v6102
      %v8496 = vrcp.pop %v6105
      %v8497 = vrcp.pop %v6108
      %v8498 = vrcp.pop %v6111
      %v8499 = vrcp.pop %v6114
      %v8500 = vrcp.pop %v6117
      %v8501 = vrcp.pop %v6120
      %v8502 = vrcp.pop %v6123
      %v8503 = vrcp.pop %v6126
      %v8504 = vrcp.pop %v6129
      %v8505 = vrcp.pop %v6132
      %v8506 = vrcp.pop %v6135
      %v8507 = vrcp.pop %v6138
      %v8508 = vrcp.pop %v6141
      %v8509 = vrcp.pop %v6144
      %v8510 = vrcp.pop %v6147
      %v8511 = vrcp.pop %v6150
      %v8512 = vrcp.pop %v6153
      %v8513 = vrcp.pop %v6156
      %v8514 = vrcp.pop %v6159
      %v8515 = vrcp.pop %v6162
      %v8516 = vrcp.pop %v6165
      %v8517 = vrcp.pop %v6168
      %v8518 = vrcp.pop %v6171
      %v8519 = vrcp.pop %v6174
      %v8520 = vrcp.pop %v6177
      %v8521 = vrcp.pop %v6180
      %v8522 = vrcp.pop %v6183
      %v8523 = vrcp.pop %v6186
      %v8524 = vrcp.pop %v6189
      %v8525 = vrcp.pop %v6192
      %v8526 = vrcp.pop %v6195
      %v8527 = vrcp.pop %v6198
      %v8528 = vrcp.pop %v6201
      %v8529 = vrcp.pop %v6204
      %v8530 = vrcp.pop %v6207
      %v8531 = vrcp.pop %v6210
      %v8532 = vrcp.pop %v6213
      %v8533 = vrcp.pop %v6216
      %v8534 = vrcp.pop %v6219
      %v8535 = vrcp.pop %v6222
      %v8536 = vrcp.pop %v6225
      %v8537 = vrcp.pop %v6228
      %v8538 = vrcp.pop %v6231
      %v8539 = vrcp.pop %v6234
      %v8540 = vrcp.pop %v6237
      %v8541 = vrcp.pop %v6240
      %v8542 = vrcp.pop %v6243
      %v8543 = vrcp.pop %v6246
      %v8544 = vrcp.pop %v6249
      %v8545 = vrcp.pop %v6252
      %v8546 = vrcp.pop %v6255
      %v8547 = vrcp.pop %v6258
      %v8548 = vrcp.pop %v6261
      %v8549 = vrcp.pop %v6264
      %v8550 = vrcp.pop %v6267
      %v8551 = vrcp.pop %v6270
      %v8552 = vrcp.pop %v6273
      %v8553 = vrcp.pop %v6276
      %v8554 = vrcp.pop %v6279
      %v8555 = vrcp.pop %v6282
      %v8556 = vrcp.pop %v6285
      %v8557 = vrcp.pop %v6288
      %v8558 = vrcp.pop %v6291
      %v8559 = vrcp.pop %v6294
      %v8560 = vrcp.pop %v6297
      %v8561 = vrcp.pop %v6300
      %v8562 = vrcp.pop %v6303
      %v8563 = vrcp.pop %v6306
      %v8564 = vrcp.pop %v6309
      %v8565 = vrcp.pop %v6312
      %v8566 = vrcp.pop %v6315
      %v8567 = vrcp.pop %v6318
      %v8568 = vrcp.pop %v6321
      %v8569 = vrcp.pop %v6324
      %v8570 = vrcp.pop %v6327
      %v8571 = vrcp.pop %v6330
      %v8572 = vrcp.pop %v6333
      %v8573 = vrcp.pop %v6336
      %v8574 = vrcp.pop %v6339
      %v8575 = vrcp.pop %v6342
      %v8576 = vrcp.pop %v6345
      %v8577 = vrcp.pop %v6348
      %v8578 = vrcp.pop %v6351
      %v8579 = vrcp.pop %v6354
      %v8580 = vrcp.pop %v6357
      %v8581 = vrcp.pop %v6360
      %v8582 = vrcp.pop %v6363
      %v8583 = vrcp.pop %v6366
      %v8584 = vrcp.pop %v6369
      %v8585 = vrcp.pop %v6372
      %v8586 = vrcp.pop %v6375
      %v8587 = vrcp.pop %v6378
      %v8588 = vrcp.pop %v6381
      %v8589 = vrcp.pop %v6384
      %v8590 = vrcp.pop %v6387
      %v8591 = vrcp.pop %v6390
      %v8592 = vrcp.pop %v6393
      %v8593 = vrcp.pop %v6396
      %v8594 = vrcp.pop %v6399
      %v8595 = vrcp.pop %v6402
      %v8596 = vrcp.pop %v6405
      %v8597 = vrcp.pop %v6408
      %v8598 = vrcp.pop %v6411
      %v8599 = vrcp.pop %v6414
      %v8600 = vrcp.pop %v6417
      %v8601 = vrcp.pop %v6420
      %v8602 = vrcp.pop %v6423
      %v8603 = vrcp.pop %v6426
      %v8604 = vrcp.pop %v6429
      %v8605 = vrcp.pop %v6432
      %v8606 = vrcp.pop %v6435
      %v8607 = vrcp.pop %v6438
      %v8608 = vmul.f32 %v6673, %v8392
      %v8609 = vmul.f32 %v6676, %v8393
      %v8610 = vmul.f32 %v6681, %v8394
      %v8611 = vmul.f32 %v6684, %v8395
      %v8612 = vmul.f32 %v6689, %v8396
      %v8613 = vmul.f32 %v6692, %v8397
      %v8614 = vmul.f32 %v6697, %v8398
      %v8615 = vmul.f32 %v6700, %v8399
      %v8616 = vmul.f32 %v6705, %v8400
      %v8617 = vmul.f32 %v6708, %v8401
      %v8618 = vmul.f32 %v6713, %v8402
      %v8619 = vmul.f32 %v6716, %v8403
      %v8620 = vmul.f32 %v6721, %v8404
      %v8621 = vmul.f32 %v6724, %v8405
      %v8622 = vmul.f32 %v6729, %v8406
      %v8623 = vmul.f32 %v6732, %v8407
      %v8624 = vmul.f32 %v6737, %v8408
      %v8625 = vmul.f32 %v6740, %v8409
      %v8626 = vmul.f32 %v6745, %v8410
      %v8627 = vmul.f32 %v6748, %v8411
      %v8628 = vmul.f32 %v6753, %v8412
      %v8629 = vmul.f32 %v6756, %v8413
      %v8630 = vmul.f32 %v6761, %v8414
      %v8631 = vmul.f32 %v6764, %v8415
      %v8632 = vmul.f32 %v6769, %v8416
      %v8633 = vmul.f32 %v6772, %v8417
      %v8634 = vmul.f32 %v6777, %v8418
      %v8635 = vmul.f32 %v6903, %v8419
      %v8636 = vmul.f32 %v6906, %v8420
      %v8637 = vmul.f32 %v6911, %v8421
      %v8638 = vmul.f32 %v6914, %v8422
      %v8639 = vmul.f32 %v6919, %v8423
      %v8640 = vmul.f32 %v6922, %v8424
      %v8641 = vmul.f32 %v6927, %v8425
      %v8642 = vmul.f32 %v6930, %v8426
      %v8643 = vmul.f32 %v6935, %v8427
      %v8644 = vmul.f32 %v6938, %v8428
      %v8645 = vmul.f32 %v6943, %v8429
      %v8646 = vmul.f32 %v6946, %v8430
      %v8647 = vmul.f32 %v6951, %v8431
      %v8648 = vmul.f32 %v6954, %v8432
      %v8649 = vmul.f32 %v6959, %v8433
      %v8650 = vmul.f32 %v6962, %v8434
      %v8651 = vmul.f32 %v6967, %v8435
      %v8652 = vmul.f32 %v6970, %v8436
      %v8653 = vmul.f32 %v6975, %v8437
      %v8654 = vmul.f32 %v6978, %v8438
      %v8655 = vmul.f32 %v6983, %v8439
      %v8656 = vmul.f32 %v6986, %v8440
      %v8657 = vmul.f32 %v6991, %v8441
      %v8658 = vmul.f32 %v6994, %v8442
      %v8659 = vmul.f32 %v6999, %v8443
      %v8660 = vmul.f32 %v7002, %v8444
      %v8661 = vmul.f32 %v7007, %v8445
      %v8662 = vmul.f32 %v7133, %v8446
      %v8663 = vmul.f32 %v7136, %v8447
      %v8664 = vmul.f32 %v7141, %v8448
      %v8665 = vmul.f32 %v7144, %v8449
      %v8666 = vmul.f32 %v7149, %v8450
      %v8667 = vmul.f32 %v7152, %v8451
      %v8668 = vmul.f32 %v7157, %v8452
      %v8669 = vmul.f32 %v7160, %v8453
      %v8670 = vmul.f32 %v7165, %v8454
      %v8671 = vmul.f32 %v7168, %v8455
      %v8672 = vmul.f32 %v7173, %v8456
      %v8673 = vmul.f32 %v7176, %v8457
      %v8674 = vmul.f32 %v7181, %v8458
      %v8675 = vmul.f32 %v7184, %v8459
      %v8676 = vmul.f32 %v7189, %v8460
      %v8677 = vmul.f32 %v7192, %v8461
      %v8678 = vmul.f32 %v7197, %v8462
      %v8679 = vmul.f32 %v7200, %v8463
      %v8680 = vmul.f32 %v7205, %v8464
      %v8681 = vmul.f32 %v7208, %v8465
      %v8682 = vmul.f32 %v7213, %v8466
      %v8683 = vmul.f32 %v7216, %v8467
      %v8684 = vmul.f32 %v7221, %v8468
      %v8685 = vmul.f32 %v7224, %v8469
      %v8686 = vmul.f32 %v7229, %v8470
      %v8687 = vmul.f32 %v7232, %v8471
      %v8688 = vmul.f32 %v7237, %v8472
      %v8689 = vmul.f32 %v7363, %v8473
      %v8690 = vmul.f32 %v7366, %v8474
      %v8691 = vmul.f32 %v7371, %v8475
      %v8692 = vmul.f32 %v7374, %v8476
      %v8693 = vmul.f32 %v7379, %v8477
      %v8694 = vmul.f32 %v7382, %v8478
      %v8695 = vmul.f32 %v7387, %v8479
      %v8696 = vmul.f32 %v7390, %v8480
      %v8697 = vmul.f32 %v7395, %v8481
      %v8698 = vmul.f32 %v7398, %v8482
      %v8699 = vmul.f32 %v7403, %v8483
      %v8700 = vmul.f32 %v7406, %v8484
      %v8701 = vmul.f32 %v7411, %v8485
      %v8702 = vmul.f32 %v7414, %v8486
      %v8703 = vmul.f32 %v7419, %v8487
      %v8704 = vmul.f32 %v7422, %v8488
      %v8705 = vmul.f32 %v7427, %v8489
      %v8706 = vmul.f32 %v7430, %v8490
      %v8707 = vmul.f32 %v7435, %v8491
      %v8708 = vmul.f32 %v7438, %v8492
      %v8709 = vmul.f32 %v7443, %v8493
      %v8710 = vmul.f32 %v7446, %v8494
      %v8711 = vmul.f32 %v7451, %v8495
      %v8712 = vmul.f32 %v7454, %v8496
      %v8713 = vmul.f32 %v7459, %v8497
      %v8714 = vmul.f32 %v7462, %v8498
      %v8715 = vmul.f32 %v7467, %v8499
      %v8716 = vmul.f32 %v7593, %v8500
      %v8717 = vmul.f32 %v7596, %v8501
      %v8718 = vmul.f32 %v7601, %v8502
      %v8719 = vmul.f32 %v7604, %v8503
      %v8720 = vmul.f32 %v7609, %v8504
      %v8721 = vmul.f32 %v7612, %v8505
      %v8722 = vmul.f32 %v7617, %v8506
      %v8723 = vmul.f32 %v7620, %v8507
      %v8724 = vmul.f32 %v7625, %v8508
      %v8725 = vmul.f32 %v7628, %v8509
      %v8726 = vmul.f32 %v7633, %v8510
      %v8727 = vmul.f32 %v7636, %v8511
      %v8728 = vmul.f32 %v7641, %v8512
      %v8729 = vmul.f32 %v7644, %v8513
      %v8730 = vmul.f32 %v7649, %v8514
      %v8731 = vmul.f32 %v7652, %v8515
      %v8732 = vmul.f32 %v7657, %v8516
      %v8733 = vmul.f32 %v7660, %v8517
      %v8734 = vmul.f32 %v7665, %v8518
      %v8735 = vmul.f32 %v7668, %v8519
      %v8736 = vmul.f32 %v7673, %v8520
      %v8737 = vmul.f32 %v7676, %v8521
      %v8738 = vmul.f32 %v7681, %v8522
      %v8739 = vmul.f32 %v7684, %v8523
      %v8740 = vmul.f32 %v7689, %v8524
      %v8741 = vmul.f32 %v7692, %v8525
      %v8742 = vmul.f32 %v7697, %v8526
      %v8743 = vmul.f32 %v7823, %v8527
      %v8744 = vmul.f32 %v7826, %v8528
      %v8745 = vmul.f32 %v7831, %v8529
      %v8746 = vmul.f32 %v7834, %v8530
      %v8747 = vmul.f32 %v7839, %v8531
      %v8748 = vmul.f32 %v7842, %v8532
      %v8749 = vmul.f32 %v7847, %v8533
      %v8750 = vmul.f32 %v7850, %v8534
      %v8751 = vmul.f32 %v7855, %v8535
      %v8752 = vmul.f32 %v7858, %v8536
      %v8753 = vmul.f32 %v7863, %v8537
      %v8754 = vmul.f32 %v7866, %v8538
      %v8755 = vmul.f32 %v7871, %v8539
      %v8756 = vmul.f32 %v7874, %v8540
      %v8757 = vmul.f32 %v7879, %v8541
      %v8758 = vmul.f32 %v7882, %v8542
      %v8759 = vmul.f32 %v7887, %v8543
      %v8760 = vmul.f32 %v7890, %v8544
      %v8761 = vmul.f32 %v7895, %v8545
      %v8762 = vmul.f32 %v7898, %v8546
      %v8763 = vmul.f32 %v7903, %v8547
      %v8764 = vmul.f32 %v7906, %v8548
      %v8765 = vmul.f32 %v7911, %v8549
      %v8766 = vmul.f32 %v7914, %v8550
      %v8767 = vmul.f32 %v7919, %v8551
      %v8768 = vmul.f32 %v7922, %v8552
      %v8769 = vmul.f32 %v7927, %v8553
      %v8770 = vmul.f32 %v8053, %v8554
      %v8771 = vmul.f32 %v8056, %v8555
      %v8772 = vmul.f32 %v8061, %v8556
      %v8773 = vmul.f32 %v8064, %v8557
      %v8774 = vmul.f32 %v8069, %v8558
      %v8775 = vmul.f32 %v8072, %v8559
      %v8776 = vmul.f32 %v8077, %v8560
      %v8777 = vmul.f32 %v8080, %v8561
      %v8778 = vmul.f32 %v8085, %v8562
      %v8779 = vmul.f32 %v8088, %v8563
      %v8780 = vmul.f32 %v8093, %v8564
      %v8781 = vmul.f32 %v8096, %v8565
      %v8782 = vmul.f32 %v8101, %v8566
      %v8783 = vmul.f32 %v8104, %v8567
      %v8784 = vmul.f32 %v8109, %v8568
      %v8785 = vmul.f32 %v8112, %v8569
      %v8786 = vmul.f32 %v8117, %v8570
      %v8787 = vmul.f32 %v8120, %v8571
      %v8788 = vmul.f32 %v8125, %v8572
      %v8789 = vmul.f32 %v8128, %v8573
      %v8790 = vmul.f32 %v8133, %v8574
      %v8791 = vmul.f32 %v8136, %v8575
      %v8792 = vmul.f32 %v8141, %v8576
      %v8793 = vmul.f32 %v8144, %v8577
      %v8794 = vmul.f32 %v8149, %v8578
      %v8795 = vmul.f32 %v8152, %v8579
      %v8796 = vmul.f32 %v8157, %v8580
      %v8797 = vmul.f32 %v8283, %v8581
      %v8798 = vmul.f32 %v8286, %v8582
      %v8799 = vmul.f32 %v8291, %v8583
      %v8800 = vmul.f32 %v8294, %v8584
      %v8801 = vmul.f32 %v8299, %v8585
      %v8802 = vmul.f32 %v8302, %v8586
      %v8803 = vmul.f32 %v8307, %v8587
      %v8804 = vmul.f32 %v8310, %v8588
      %v8805 = vmul.f32 %v8315, %v8589
      %v8806 = vmul.f32 %v8318, %v8590
      %v8807 = vmul.f32 %v8323, %v8591
      %v8808 = vmul.f32 %v8326, %v8592
      %v8809 = vmul.f32 %v8331, %v8593
      %v8810 = vmul.f32 %v8334, %v8594
      %v8811 = vmul.f32 %v8339, %v8595
      %v8812 = vmul.f32 %v8342, %v8596
      %v8813 = vmul.f32 %v8347, %v8597
      %v8814 = vmul.f32 %v8350, %v8598
      %v8815 = vmul.f32 %v8355, %v8599
      %v8816 = vmul.f32 %v8358, %v8600
      %v8817 = vmul.f32 %v8363, %v8601
      %v8818 = vmul.f32 %v8366, %v8602
      %v8819 = vmul.f32 %v8371, %v8603
      %v8820 = vmul.f32 %v8374, %v8604
      %v8821 = vmul.f32 %v8379, %v8605
      %v8822 = vmul.f32 %v8382, %v8606
      %v8823 = vmul.f32 %v8387, %v8607
      %8824 = vst.msk [vmem:[#allocation3] sm:$0xff] %vm2116, %v8608
      %8825 = vst.msk [vmem:[#allocation3 + $0x8] sm:$0xff] %vm2116, %v8609
      %8826 = vst.msk [vmem:[#allocation3 + $0x10] sm:$0xff] %vm2116, %v8610
      %8827 = vst.msk [vmem:[#allocation3 + $0x18] sm:$0xff] %vm2116, %v8611
      %8828 = vst.msk [vmem:[#allocation3 + $0x20] sm:$0xff] %vm2116, %v8612
      %8829 = vst.msk [vmem:[#allocation3 + $0x28] sm:$0xff] %vm2116, %v8613
      %8830 = vst.msk [vmem:[#allocation3 + $0x30] sm:$0xff] %vm2116, %v8614
      %8831 = vst.msk [vmem:[#allocation3 + $0x38] sm:$0xff] %vm2116, %v8615
      %8832 = vst.msk [vmem:[#allocation3 + $0x40] sm:$0xff] %vm2116, %v8616
      %8833 = vst.msk [vmem:[#allocation3 + $0x48] sm:$0xff] %vm2116, %v8617
      %8834 = vst.msk [vmem:[#allocation3 + $0x50] sm:$0xff] %vm2116, %v8618
      %8835 = vst.msk [vmem:[#allocation3 + $0x58] sm:$0xff] %vm2116, %v8619
      %8836 = vst.msk [vmem:[#allocation3 + $0x60] sm:$0xff] %vm2116, %v8620
      %8837 = vst.msk [vmem:[#allocation3 + $0x68] sm:$0xff] %vm2116, %v8621
      %8838 = vst.msk [vmem:[#allocation3 + $0x70] sm:$0xff] %vm2116, %v8622
      %8839 = vst.msk [vmem:[#allocation3 + $0x78] sm:$0xff] %vm2116, %v8623
      %8840 = vst.msk [vmem:[#allocation3 + $0x80] sm:$0xff] %vm2116, %v8624
      %8841 = vst.msk [vmem:[#allocation3 + $0x88] sm:$0xff] %vm2116, %v8625
      %8842 = vst.msk [vmem:[#allocation3 + $0x90] sm:$0xff] %vm2116, %v8626
      %8843 = vst.msk [vmem:[#allocation3 + $0x98] sm:$0xff] %vm2116, %v8627
      %8844 = vst.msk [vmem:[#allocation3 + $0xa0] sm:$0xff] %vm2116, %v8628
      %8845 = vst.msk [vmem:[#allocation3 + $0xa8] sm:$0xff] %vm2116, %v8629
      %8846 = vst.msk [vmem:[#allocation3 + $0xb0] sm:$0xff] %vm2116, %v8630
      %8847 = vst.msk [vmem:[#allocation3 + $0xb8] sm:$0xff] %vm2116, %v8631
      %8848 = vst.msk [vmem:[#allocation3 + $0xc0] sm:$0xff] %vm2116, %v8632
      %8849 = vst.msk [vmem:[#allocation3 + $0xc8] sm:$0xff] %vm2116, %v8633
      %8850 = vst.msk [vmem:[#allocation3 + $0xd0] sm:$0xff] %vm2116, %v8634
      %8878 = vrot.lane.b32.xlu0 %v8635, 8
      %v8879 = vpop.permute.xlu0 %8878
      %8880 = vrot.lane.b32.xlu0 %v8636, 8
      %v8881 = vpop.permute.xlu0 %8880
      %8882 = vrot.lane.b32.xlu0 %v8637, 8
      %v8883 = vpop.permute.xlu0 %8882
      %8884 = vrot.lane.b32.xlu0 %v8638, 8
      %v8885 = vpop.permute.xlu0 %8884
      %8886 = vrot.lane.b32.xlu0 %v8639, 8
      %v8887 = vpop.permute.xlu0 %8886
      %8888 = vrot.lane.b32.xlu0 %v8640, 8
      %v8889 = vpop.permute.xlu0 %8888
      %8890 = vrot.lane.b32.xlu0 %v8641, 8
      %v8891 = vpop.permute.xlu0 %8890
      %8892 = vrot.lane.b32.xlu0 %v8642, 8
      %v8893 = vpop.permute.xlu0 %8892
      %8894 = vrot.lane.b32.xlu0 %v8643, 8
      %v8895 = vpop.permute.xlu0 %8894
      %8896 = vrot.lane.b32.xlu0 %v8644, 8
      %v8897 = vpop.permute.xlu0 %8896
      %8898 = vrot.lane.b32.xlu0 %v8645, 8
      %v8899 = vpop.permute.xlu0 %8898
      %8900 = vrot.lane.b32.xlu0 %v8646, 8
      %v8901 = vpop.permute.xlu0 %8900
      %8902 = vrot.lane.b32.xlu0 %v8647, 8
      %v8903 = vpop.permute.xlu0 %8902
      %8904 = vrot.lane.b32.xlu0 %v8648, 8
      %v8905 = vpop.permute.xlu0 %8904
      %8906 = vrot.lane.b32.xlu0 %v8649, 8
      %v8907 = vpop.permute.xlu0 %8906
      %8908 = vrot.lane.b32.xlu0 %v8650, 8
      %v8909 = vpop.permute.xlu0 %8908
      %8910 = vrot.lane.b32.xlu0 %v8651, 8
      %v8911 = vpop.permute.xlu0 %8910
      %8912 = vrot.lane.b32.xlu0 %v8652, 8
      %v8913 = vpop.permute.xlu0 %8912
      %8914 = vrot.lane.b32.xlu0 %v8653, 8
      %v8915 = vpop.permute.xlu0 %8914
      %8916 = vrot.lane.b32.xlu0 %v8654, 8
      %v8917 = vpop.permute.xlu0 %8916
      %8918 = vrot.lane.b32.xlu0 %v8655, 8
      %v8919 = vpop.permute.xlu0 %8918
      %8920 = vrot.lane.b32.xlu0 %v8656, 8
      %v8921 = vpop.permute.xlu0 %8920
      %8922 = vrot.lane.b32.xlu0 %v8657, 8
      %v8923 = vpop.permute.xlu0 %8922
      %8924 = vrot.lane.b32.xlu0 %v8658, 8
      %v8925 = vpop.permute.xlu0 %8924
      %8926 = vrot.lane.b32.xlu0 %v8659, 8
      %v8927 = vpop.permute.xlu0 %8926
      %8928 = vrot.lane.b32.xlu0 %v8660, 8
      %v8929 = vpop.permute.xlu0 %8928
      %8930 = vrot.lane.b32.xlu0 %v8661, 8
      %v8931 = vpop.permute.xlu0 %8930
      %vm8959 = vcmask 130112
      %8960 = vst.msk [vmem:[#allocation3] sm:$0xff] %vm8959, %v8879
      %8961 = vst.msk [vmem:[#allocation3 + $0x8] sm:$0xff] %vm8959, %v8881
      %8962 = vst.msk [vmem:[#allocation3 + $0x10] sm:$0xff] %vm8959, %v8883
      %8963 = vst.msk [vmem:[#allocation3 + $0x18] sm:$0xff] %vm8959, %v8885
      %8964 = vst.msk [vmem:[#allocation3 + $0x20] sm:$0xff] %vm8959, %v8887
      %8965 = vst.msk [vmem:[#allocation3 + $0x28] sm:$0xff] %vm8959, %v8889
      %8966 = vst.msk [vmem:[#allocation3 + $0x30] sm:$0xff] %vm8959, %v8891
      %8967 = vst.msk [vmem:[#allocation3 + $0x38] sm:$0xff] %vm8959, %v8893
      %8968 = vst.msk [vmem:[#allocation3 + $0x40] sm:$0xff] %vm8959, %v8895
      %8969 = vst.msk [vmem:[#allocation3 + $0x48] sm:$0xff] %vm8959, %v8897
      %8970 = vst.msk [vmem:[#allocation3 + $0x50] sm:$0xff] %vm8959, %v8899
      %8971 = vst.msk [vmem:[#allocation3 + $0x58] sm:$0xff] %vm8959, %v8901
      %8972 = vst.msk [vmem:[#allocation3 + $0x60] sm:$0xff] %vm8959, %v8903
      %8973 = vst.msk [vmem:[#allocation3 + $0x68] sm:$0xff] %vm8959, %v8905
      %8974 = vst.msk [vmem:[#allocation3 + $0x70] sm:$0xff] %vm8959, %v8907
      %8975 = vst.msk [vmem:[#allocation3 + $0x78] sm:$0xff] %vm8959, %v8909
      %8976 = vst.msk [vmem:[#allocation3 + $0x80] sm:$0xff] %vm8959, %v8911
      %8977 = vst.msk [vmem:[#allocation3 + $0x88] sm:$0xff] %vm8959, %v8913
      %8978 = vst.msk [vmem:[#allocation3 + $0x90] sm:$0xff] %vm8959, %v8915
      %8979 = vst.msk [vmem:[#allocation3 + $0x98] sm:$0xff] %vm8959, %v8917
      %8980 = vst.msk [vmem:[#allocation3 + $0xa0] sm:$0xff] %vm8959, %v8919
      %8981 = vst.msk [vmem:[#allocation3 + $0xa8] sm:$0xff] %vm8959, %v8921
      %8982 = vst.msk [vmem:[#allocation3 + $0xb0] sm:$0xff] %vm8959, %v8923
      %8983 = vst.msk [vmem:[#allocation3 + $0xb8] sm:$0xff] %vm8959, %v8925
      %8984 = vst.msk [vmem:[#allocation3 + $0xc0] sm:$0xff] %vm8959, %v8927
      %8985 = vst.msk [vmem:[#allocation3 + $0xc8] sm:$0xff] %vm8959, %v8929
      %8986 = vst.msk [vmem:[#allocation3 + $0xd0] sm:$0xff] %vm8959, %v8931
      %9014 = vrot.lane.b32.xlu0 %v8662, 16
      %v9015 = vpop.permute.xlu0 %9014
      %9016 = vrot.lane.b32.xlu0 %v8663, 16
      %v9017 = vpop.permute.xlu0 %9016
      %9018 = vrot.lane.b32.xlu0 %v8664, 16
      %v9019 = vpop.permute.xlu0 %9018
      %9020 = vrot.lane.b32.xlu0 %v8665, 16
      %v9021 = vpop.permute.xlu0 %9020
      %9022 = vrot.lane.b32.xlu0 %v8666, 16
      %v9023 = vpop.permute.xlu0 %9022
      %9024 = vrot.lane.b32.xlu0 %v8667, 16
      %v9025 = vpop.permute.xlu0 %9024
      %9026 = vrot.lane.b32.xlu0 %v8668, 16
      %v9027 = vpop.permute.xlu0 %9026
      %9028 = vrot.lane.b32.xlu0 %v8669, 16
      %v9029 = vpop.permute.xlu0 %9028
      %9030 = vrot.lane.b32.xlu0 %v8670, 16
      %v9031 = vpop.permute.xlu0 %9030
      %9032 = vrot.lane.b32.xlu0 %v8671, 16
      %v9033 = vpop.permute.xlu0 %9032
      %9034 = vrot.lane.b32.xlu0 %v8672, 16
      %v9035 = vpop.permute.xlu0 %9034
      %9036 = vrot.lane.b32.xlu0 %v8673, 16
      %v9037 = vpop.permute.xlu0 %9036
      %9038 = vrot.lane.b32.xlu0 %v8674, 16
      %v9039 = vpop.permute.xlu0 %9038
      %9040 = vrot.lane.b32.xlu0 %v8675, 16
      %v9041 = vpop.permute.xlu0 %9040
      %9042 = vrot.lane.b32.xlu0 %v8676, 16
      %v9043 = vpop.permute.xlu0 %9042
      %9044 = vrot.lane.b32.xlu0 %v8677, 16
      %v9045 = vpop.permute.xlu0 %9044
      %9046 = vrot.lane.b32.xlu0 %v8678, 16
      %v9047 = vpop.permute.xlu0 %9046
      %9048 = vrot.lane.b32.xlu0 %v8679, 16
      %v9049 = vpop.permute.xlu0 %9048
      %9050 = vrot.lane.b32.xlu0 %v8680, 16
      %v9051 = vpop.permute.xlu0 %9050
      %9052 = vrot.lane.b32.xlu0 %v8681, 16
      %v9053 = vpop.permute.xlu0 %9052
      %9054 = vrot.lane.b32.xlu0 %v8682, 16
      %v9055 = vpop.permute.xlu0 %9054
      %9056 = vrot.lane.b32.xlu0 %v8683, 16
      %v9057 = vpop.permute.xlu0 %9056
      %9058 = vrot.lane.b32.xlu0 %v8684, 16
      %v9059 = vpop.permute.xlu0 %9058
      %9060 = vrot.lane.b32.xlu0 %v8685, 16
      %v9061 = vpop.permute.xlu0 %9060
      %9062 = vrot.lane.b32.xlu0 %v8686, 16
      %v9063 = vpop.permute.xlu0 %9062
      %9064 = vrot.lane.b32.xlu0 %v8687, 16
      %v9065 = vpop.permute.xlu0 %9064
      %9066 = vrot.lane.b32.xlu0 %v8688, 16
      %v9067 = vpop.permute.xlu0 %9066
      %vm9095 = vcmask 195712
      %9096 = vst.msk [vmem:[#allocation3] sm:$0xff] %vm9095, %v9015
      %9097 = vst.msk [vmem:[#allocation3 + $0x8] sm:$0xff] %vm9095, %v9017
      %9098 = vst.msk [vmem:[#allocation3 + $0x10] sm:$0xff] %vm9095, %v9019
      %9099 = vst.msk [vmem:[#allocation3 + $0x18] sm:$0xff] %vm9095, %v9021
      %9100 = vst.msk [vmem:[#allocation3 + $0x20] sm:$0xff] %vm9095, %v9023
      %9101 = vst.msk [vmem:[#allocation3 + $0x28] sm:$0xff] %vm9095, %v9025
      %9102 = vst.msk [vmem:[#allocation3 + $0x30] sm:$0xff] %vm9095, %v9027
      %9103 = vst.msk [vmem:[#allocation3 + $0x38] sm:$0xff] %vm9095, %v9029
      %9104 = vst.msk [vmem:[#allocation3 + $0x40] sm:$0xff] %vm9095, %v9031
      %9105 = vst.msk [vmem:[#allocation3 + $0x48] sm:$0xff] %vm9095, %v9033
      %9106 = vst.msk [vmem:[#allocation3 + $0x50] sm:$0xff] %vm9095, %v9035
      %9107 = vst.msk [vmem:[#allocation3 + $0x58] sm:$0xff] %vm9095, %v9037
      %9108 = vst.msk [vmem:[#allocation3 + $0x60] sm:$0xff] %vm9095, %v9039
      %9109 = vst.msk [vmem:[#allocation3 + $0x68] sm:$0xff] %vm9095, %v9041
      %9110 = vst.msk [vmem:[#allocation3 + $0x70] sm:$0xff] %vm9095, %v9043
      %9111 = vst.msk [vmem:[#allocation3 + $0x78] sm:$0xff] %vm9095, %v9045
      %9112 = vst.msk [vmem:[#allocation3 + $0x80] sm:$0xff] %vm9095, %v9047
      %9113 = vst.msk [vmem:[#allocation3 + $0x88] sm:$0xff] %vm9095, %v9049
      %9114 = vst.msk [vmem:[#allocation3 + $0x90] sm:$0xff] %vm9095, %v9051
      %9115 = vst.msk [vmem:[#allocation3 + $0x98] sm:$0xff] %vm9095, %v9053
      %9116 = vst.msk [vmem:[#allocation3 + $0xa0] sm:$0xff] %vm9095, %v9055
      %9117 = vst.msk [vmem:[#allocation3 + $0xa8] sm:$0xff] %vm9095, %v9057
      %9118 = vst.msk [vmem:[#allocation3 + $0xb0] sm:$0xff] %vm9095, %v9059
      %9119 = vst.msk [vmem:[#allocation3 + $0xb8] sm:$0xff] %vm9095, %v9061
      %9120 = vst.msk [vmem:[#allocation3 + $0xc0] sm:$0xff] %vm9095, %v9063
      %9121 = vst.msk [vmem:[#allocation3 + $0xc8] sm:$0xff] %vm9095, %v9065
      %9122 = vst.msk [vmem:[#allocation3 + $0xd0] sm:$0xff] %vm9095, %v9067
      %9150 = vrot.lane.b32.xlu0 %v8689, 24
      %v9151 = vpop.permute.xlu0 %9150
      %9152 = vrot.lane.b32.xlu0 %v8690, 24
      %v9153 = vpop.permute.xlu0 %9152
      %9154 = vrot.lane.b32.xlu0 %v8691, 24
      %v9155 = vpop.permute.xlu0 %9154
      %9156 = vrot.lane.b32.xlu0 %v8692, 24
      %v9157 = vpop.permute.xlu0 %9156
      %9158 = vrot.lane.b32.xlu0 %v8693, 24
      %v9159 = vpop.permute.xlu0 %9158
      %9160 = vrot.lane.b32.xlu0 %v8694, 24
      %v9161 = vpop.permute.xlu0 %9160
      %9162 = vrot.lane.b32.xlu0 %v8695, 24
      %v9163 = vpop.permute.xlu0 %9162
      %9164 = vrot.lane.b32.xlu0 %v8696, 24
      %v9165 = vpop.permute.xlu0 %9164
      %9166 = vrot.lane.b32.xlu0 %v8697, 24
      %v9167 = vpop.permute.xlu0 %9166
      %9168 = vrot.lane.b32.xlu0 %v8698, 24
      %v9169 = vpop.permute.xlu0 %9168
      %9170 = vrot.lane.b32.xlu0 %v8699, 24
      %v9171 = vpop.permute.xlu0 %9170
      %9172 = vrot.lane.b32.xlu0 %v8700, 24
      %v9173 = vpop.permute.xlu0 %9172
      %9174 = vrot.lane.b32.xlu0 %v8701, 24
      %v9175 = vpop.permute.xlu0 %9174
      %9176 = vrot.lane.b32.xlu0 %v8702, 24
      %v9177 = vpop.permute.xlu0 %9176
      %9178 = vrot.lane.b32.xlu0 %v8703, 24
      %v9179 = vpop.permute.xlu0 %9178
      %9180 = vrot.lane.b32.xlu0 %v8704, 24
      %v9181 = vpop.permute.xlu0 %9180
      %9182 = vrot.lane.b32.xlu0 %v8705, 24
      %v9183 = vpop.permute.xlu0 %9182
      %9184 = vrot.lane.b32.xlu0 %v8706, 24
      %v9185 = vpop.permute.xlu0 %9184
      %9186 = vrot.lane.b32.xlu0 %v8707, 24
      %v9187 = vpop.permute.xlu0 %9186
      %9188 = vrot.lane.b32.xlu0 %v8708, 24
      %v9189 = vpop.permute.xlu0 %9188
      %9190 = vrot.lane.b32.xlu0 %v8709, 24
      %v9191 = vpop.permute.xlu0 %9190
      %9192 = vrot.lane.b32.xlu0 %v8710, 24
      %v9193 = vpop.permute.xlu0 %9192
      %9194 = vrot.lane.b32.xlu0 %v8711, 24
      %v9195 = vpop.permute.xlu0 %9194
      %9196 = vrot.lane.b32.xlu0 %v8712, 24
      %v9197 = vpop.permute.xlu0 %9196
      %9198 = vrot.lane.b32.xlu0 %v8713, 24
      %v9199 = vpop.permute.xlu0 %9198
      %9200 = vrot.lane.b32.xlu0 %v8714, 24
      %v9201 = vpop.permute.xlu0 %9200
      %9202 = vrot.lane.b32.xlu0 %v8715, 24
      %v9203 = vpop.permute.xlu0 %9202
      %vm9231 = vcmask 261312
      %9232 = vst.msk [vmem:[#allocation3] sm:$0xff] %vm9231, %v9151
      %9233 = vst.msk [vmem:[#allocation3 + $0x8] sm:$0xff] %vm9231, %v9153
      %9234 = vst.msk [vmem:[#allocation3 + $0x10] sm:$0xff] %vm9231, %v9155
      %9235 = vst.msk [vmem:[#allocation3 + $0x18] sm:$0xff] %vm9231, %v9157
      %9236 = vst.msk [vmem:[#allocation3 + $0x20] sm:$0xff] %vm9231, %v9159
      %9237 = vst.msk [vmem:[#allocation3 + $0x28] sm:$0xff] %vm9231, %v9161
      %9238 = vst.msk [vmem:[#allocation3 + $0x30] sm:$0xff] %vm9231, %v9163
      %9239 = vst.msk [vmem:[#allocation3 + $0x38] sm:$0xff] %vm9231, %v9165
      %9240 = vst.msk [vmem:[#allocation3 + $0x40] sm:$0xff] %vm9231, %v9167
      %9241 = vst.msk [vmem:[#allocation3 + $0x48] sm:$0xff] %vm9231, %v9169
      %9242 = vst.msk [vmem:[#allocation3 + $0x50] sm:$0xff] %vm9231, %v9171
      %9243 = vst.msk [vmem:[#allocation3 + $0x58] sm:$0xff] %vm9231, %v9173
      %9244 = vst.msk [vmem:[#allocation3 + $0x60] sm:$0xff] %vm9231, %v9175
      %9245 = vst.msk [vmem:[#allocation3 + $0x68] sm:$0xff] %vm9231, %v9177
      %9246 = vst.msk [vmem:[#allocation3 + $0x70] sm:$0xff] %vm9231, %v9179
      %9247 = vst.msk [vmem:[#allocation3 + $0x78] sm:$0xff] %vm9231, %v9181
      %9248 = vst.msk [vmem:[#allocation3 + $0x80] sm:$0xff] %vm9231, %v9183
      %9249 = vst.msk [vmem:[#allocation3 + $0x88] sm:$0xff] %vm9231, %v9185
      %9250 = vst.msk [vmem:[#allocation3 + $0x90] sm:$0xff] %vm9231, %v9187
      %9251 = vst.msk [vmem:[#allocation3 + $0x98] sm:$0xff] %vm9231, %v9189
      %9252 = vst.msk [vmem:[#allocation3 + $0xa0] sm:$0xff] %vm9231, %v9191
      %9253 = vst.msk [vmem:[#allocation3 + $0xa8] sm:$0xff] %vm9231, %v9193
      %9254 = vst.msk [vmem:[#allocation3 + $0xb0] sm:$0xff] %vm9231, %v9195
      %9255 = vst.msk [vmem:[#allocation3 + $0xb8] sm:$0xff] %vm9231, %v9197
      %9256 = vst.msk [vmem:[#allocation3 + $0xc0] sm:$0xff] %vm9231, %v9199
      %9257 = vst.msk [vmem:[#allocation3 + $0xc8] sm:$0xff] %vm9231, %v9201
      %9258 = vst.msk [vmem:[#allocation3 + $0xd0] sm:$0xff] %vm9231, %v9203
      %9286 = vrot.lane.b32.xlu0 %v8716, 32
      %v9287 = vpop.permute.xlu0 %9286
      %9288 = vrot.lane.b32.xlu0 %v8717, 32
      %v9289 = vpop.permute.xlu0 %9288
      %9290 = vrot.lane.b32.xlu0 %v8718, 32
      %v9291 = vpop.permute.xlu0 %9290
      %9292 = vrot.lane.b32.xlu0 %v8719, 32
      %v9293 = vpop.permute.xlu0 %9292
      %9294 = vrot.lane.b32.xlu0 %v8720, 32
      %v9295 = vpop.permute.xlu0 %9294
      %9296 = vrot.lane.b32.xlu0 %v8721, 32
      %v9297 = vpop.permute.xlu0 %9296
      %9298 = vrot.lane.b32.xlu0 %v8722, 32
      %v9299 = vpop.permute.xlu0 %9298
      %9300 = vrot.lane.b32.xlu0 %v8723, 32
      %v9301 = vpop.permute.xlu0 %9300
      %9302 = vrot.lane.b32.xlu0 %v8724, 32
      %v9303 = vpop.permute.xlu0 %9302
      %9304 = vrot.lane.b32.xlu0 %v8725, 32
      %v9305 = vpop.permute.xlu0 %9304
      %9306 = vrot.lane.b32.xlu0 %v8726, 32
      %v9307 = vpop.permute.xlu0 %9306
      %9308 = vrot.lane.b32.xlu0 %v8727, 32
      %v9309 = vpop.permute.xlu0 %9308
      %9310 = vrot.lane.b32.xlu0 %v8728, 32
      %v9311 = vpop.permute.xlu0 %9310
      %9312 = vrot.lane.b32.xlu0 %v8729, 32
      %v9313 = vpop.permute.xlu0 %9312
      %9314 = vrot.lane.b32.xlu0 %v8730, 32
      %v9315 = vpop.permute.xlu0 %9314
      %9316 = vrot.lane.b32.xlu0 %v8731, 32
      %v9317 = vpop.permute.xlu0 %9316
      %9318 = vrot.lane.b32.xlu0 %v8732, 32
      %v9319 = vpop.permute.xlu0 %9318
      %9320 = vrot.lane.b32.xlu0 %v8733, 32
      %v9321 = vpop.permute.xlu0 %9320
      %9322 = vrot.lane.b32.xlu0 %v8734, 32
      %v9323 = vpop.permute.xlu0 %9322
      %9324 = vrot.lane.b32.xlu0 %v8735, 32
      %v9325 = vpop.permute.xlu0 %9324
      %9326 = vrot.lane.b32.xlu0 %v8736, 32
      %v9327 = vpop.permute.xlu0 %9326
      %9328 = vrot.lane.b32.xlu0 %v8737, 32
      %v9329 = vpop.permute.xlu0 %9328
      %9330 = vrot.lane.b32.xlu0 %v8738, 32
      %v9331 = vpop.permute.xlu0 %9330
      %9332 = vrot.lane.b32.xlu0 %v8739, 32
      %v9333 = vpop.permute.xlu0 %9332
      %9334 = vrot.lane.b32.xlu0 %v8740, 32
      %v9335 = vpop.permute.xlu0 %9334
      %9336 = vrot.lane.b32.xlu0 %v8741, 32
      %v9337 = vpop.permute.xlu0 %9336
      %9338 = vrot.lane.b32.xlu0 %v8742, 32
      %v9339 = vpop.permute.xlu0 %9338
      %vm9367 = vcmask 326912
      %9368 = vst.msk [vmem:[#allocation3] sm:$0xff] %vm9367, %v9287
      %9369 = vst.msk [vmem:[#allocation3 + $0x8] sm:$0xff] %vm9367, %v9289
      %9370 = vst.msk [vmem:[#allocation3 + $0x10] sm:$0xff] %vm9367, %v9291
      %9371 = vst.msk [vmem:[#allocation3 + $0x18] sm:$0xff] %vm9367, %v9293
      %9372 = vst.msk [vmem:[#allocation3 + $0x20] sm:$0xff] %vm9367, %v9295
      %9373 = vst.msk [vmem:[#allocation3 + $0x28] sm:$0xff] %vm9367, %v9297
      %9374 = vst.msk [vmem:[#allocation3 + $0x30] sm:$0xff] %vm9367, %v9299
      %9375 = vst.msk [vmem:[#allocation3 + $0x38] sm:$0xff] %vm9367, %v9301
      %9376 = vst.msk [vmem:[#allocation3 + $0x40] sm:$0xff] %vm9367, %v9303
      %9377 = vst.msk [vmem:[#allocation3 + $0x48] sm:$0xff] %vm9367, %v9305
      %9378 = vst.msk [vmem:[#allocation3 + $0x50] sm:$0xff] %vm9367, %v9307
      %9379 = vst.msk [vmem:[#allocation3 + $0x58] sm:$0xff] %vm9367, %v9309
      %9380 = vst.msk [vmem:[#allocation3 + $0x60] sm:$0xff] %vm9367, %v9311
      %9381 = vst.msk [vmem:[#allocation3 + $0x68] sm:$0xff] %vm9367, %v9313
      %9382 = vst.msk [vmem:[#allocation3 + $0x70] sm:$0xff] %vm9367, %v9315
      %9383 = vst.msk [vmem:[#allocation3 + $0x78] sm:$0xff] %vm9367, %v9317
      %9384 = vst.msk [vmem:[#allocation3 + $0x80] sm:$0xff] %vm9367, %v9319
      %9385 = vst.msk [vmem:[#allocation3 + $0x88] sm:$0xff] %vm9367, %v9321
      %9386 = vst.msk [vmem:[#allocation3 + $0x90] sm:$0xff] %vm9367, %v9323
      %9387 = vst.msk [vmem:[#allocation3 + $0x98] sm:$0xff] %vm9367, %v9325
      %9388 = vst.msk [vmem:[#allocation3 + $0xa0] sm:$0xff] %vm9367, %v9327
      %9389 = vst.msk [vmem:[#allocation3 + $0xa8] sm:$0xff] %vm9367, %v9329
      %9390 = vst.msk [vmem:[#allocation3 + $0xb0] sm:$0xff] %vm9367, %v9331
      %9391 = vst.msk [vmem:[#allocation3 + $0xb8] sm:$0xff] %vm9367, %v9333
      %9392 = vst.msk [vmem:[#allocation3 + $0xc0] sm:$0xff] %vm9367, %v9335
      %9393 = vst.msk [vmem:[#allocation3 + $0xc8] sm:$0xff] %vm9367, %v9337
      %9394 = vst.msk [vmem:[#allocation3 + $0xd0] sm:$0xff] %vm9367, %v9339
      %9422 = vrot.lane.b32.xlu0 %v8743, 40
      %v9423 = vpop.permute.xlu0 %9422
      %9424 = vrot.lane.b32.xlu0 %v8744, 40
      %v9425 = vpop.permute.xlu0 %9424
      %9426 = vrot.lane.b32.xlu0 %v8745, 40
      %v9427 = vpop.permute.xlu0 %9426
      %9428 = vrot.lane.b32.xlu0 %v8746, 40
      %v9429 = vpop.permute.xlu0 %9428
      %9430 = vrot.lane.b32.xlu0 %v8747, 40
      %v9431 = vpop.permute.xlu0 %9430
      %9432 = vrot.lane.b32.xlu0 %v8748, 40
      %v9433 = vpop.permute.xlu0 %9432
      %9434 = vrot.lane.b32.xlu0 %v8749, 40
      %v9435 = vpop.permute.xlu0 %9434
      %9436 = vrot.lane.b32.xlu0 %v8750, 40
      %v9437 = vpop.permute.xlu0 %9436
      %9438 = vrot.lane.b32.xlu0 %v8751, 40
      %v9439 = vpop.permute.xlu0 %9438
      %9440 = vrot.lane.b32.xlu0 %v8752, 40
      %v9441 = vpop.permute.xlu0 %9440
      %9442 = vrot.lane.b32.xlu0 %v8753, 40
      %v9443 = vpop.permute.xlu0 %9442
      %9444 = vrot.lane.b32.xlu0 %v8754, 40
      %v9445 = vpop.permute.xlu0 %9444
      %9446 = vrot.lane.b32.xlu0 %v8755, 40
      %v9447 = vpop.permute.xlu0 %9446
      %9448 = vrot.lane.b32.xlu0 %v8756, 40
      %v9449 = vpop.permute.xlu0 %9448
      %9450 = vrot.lane.b32.xlu0 %v8757, 40
      %v9451 = vpop.permute.xlu0 %9450
      %9452 = vrot.lane.b32.xlu0 %v8758, 40
      %v9453 = vpop.permute.xlu0 %9452
      %9454 = vrot.lane.b32.xlu0 %v8759, 40
      %v9455 = vpop.permute.xlu0 %9454
      %9456 = vrot.lane.b32.xlu0 %v8760, 40
      %v9457 = vpop.permute.xlu0 %9456
      %9458 = vrot.lane.b32.xlu0 %v8761, 40
      %v9459 = vpop.permute.xlu0 %9458
      %9460 = vrot.lane.b32.xlu0 %v8762, 40
      %v9461 = vpop.permute.xlu0 %9460
      %9462 = vrot.lane.b32.xlu0 %v8763, 40
      %v9463 = vpop.permute.xlu0 %9462
      %9464 = vrot.lane.b32.xlu0 %v8764, 40
      %v9465 = vpop.permute.xlu0 %9464
      %9466 = vrot.lane.b32.xlu0 %v8765, 40
      %v9467 = vpop.permute.xlu0 %9466
      %9468 = vrot.lane.b32.xlu0 %v8766, 40
      %v9469 = vpop.permute.xlu0 %9468
      %9470 = vrot.lane.b32.xlu0 %v8767, 40
      %v9471 = vpop.permute.xlu0 %9470
      %9472 = vrot.lane.b32.xlu0 %v8768, 40
      %v9473 = vpop.permute.xlu0 %9472
      %9474 = vrot.lane.b32.xlu0 %v8769, 40
      %v9475 = vpop.permute.xlu0 %9474
      %vm9503 = vcmask 392512
      %9504 = vst.msk [vmem:[#allocation3] sm:$0xff] %vm9503, %v9423
      %9505 = vst.msk [vmem:[#allocation3 + $0x8] sm:$0xff] %vm9503, %v9425
      %9506 = vst.msk [vmem:[#allocation3 + $0x10] sm:$0xff] %vm9503, %v9427
      %9507 = vst.msk [vmem:[#allocation3 + $0x18] sm:$0xff] %vm9503, %v9429
      %9508 = vst.msk [vmem:[#allocation3 + $0x20] sm:$0xff] %vm9503, %v9431
      %9509 = vst.msk [vmem:[#allocation3 + $0x28] sm:$0xff] %vm9503, %v9433
      %9510 = vst.msk [vmem:[#allocation3 + $0x30] sm:$0xff] %vm9503, %v9435
      %9511 = vst.msk [vmem:[#allocation3 + $0x38] sm:$0xff] %vm9503, %v9437
      %9512 = vst.msk [vmem:[#allocation3 + $0x40] sm:$0xff] %vm9503, %v9439
      %9513 = vst.msk [vmem:[#allocation3 + $0x48] sm:$0xff] %vm9503, %v9441
      %9514 = vst.msk [vmem:[#allocation3 + $0x50] sm:$0xff] %vm9503, %v9443
      %9515 = vst.msk [vmem:[#allocation3 + $0x58] sm:$0xff] %vm9503, %v9445
      %9516 = vst.msk [vmem:[#allocation3 + $0x60] sm:$0xff] %vm9503, %v9447
      %9517 = vst.msk [vmem:[#allocation3 + $0x68] sm:$0xff] %vm9503, %v9449
      %9518 = vst.msk [vmem:[#allocation3 + $0x70] sm:$0xff] %vm9503, %v9451
      %9519 = vst.msk [vmem:[#allocation3 + $0x78] sm:$0xff] %vm9503, %v9453
      %9520 = vst.msk [vmem:[#allocation3 + $0x80] sm:$0xff] %vm9503, %v9455
      %9521 = vst.msk [vmem:[#allocation3 + $0x88] sm:$0xff] %vm9503, %v9457
      %9522 = vst.msk [vmem:[#allocation3 + $0x90] sm:$0xff] %vm9503, %v9459
      %9523 = vst.msk [vmem:[#allocation3 + $0x98] sm:$0xff] %vm9503, %v9461
      %9524 = vst.msk [vmem:[#allocation3 + $0xa0] sm:$0xff] %vm9503, %v9463
      %9525 = vst.msk [vmem:[#allocation3 + $0xa8] sm:$0xff] %vm9503, %v9465
      %9526 = vst.msk [vmem:[#allocation3 + $0xb0] sm:$0xff] %vm9503, %v9467
      %9527 = vst.msk [vmem:[#allocation3 + $0xb8] sm:$0xff] %vm9503, %v9469
      %9528 = vst.msk [vmem:[#allocation3 + $0xc0] sm:$0xff] %vm9503, %v9471
      %9529 = vst.msk [vmem:[#allocation3 + $0xc8] sm:$0xff] %vm9503, %v9473
      %9530 = vst.msk [vmem:[#allocation3 + $0xd0] sm:$0xff] %vm9503, %v9475
      %9558 = vrot.lane.b32.xlu0 %v8770, 48
      %v9559 = vpop.permute.xlu0 %9558
      %9560 = vrot.lane.b32.xlu0 %v8771, 48
      %v9561 = vpop.permute.xlu0 %9560
      %9562 = vrot.lane.b32.xlu0 %v8772, 48
      %v9563 = vpop.permute.xlu0 %9562
      %9564 = vrot.lane.b32.xlu0 %v8773, 48
      %v9565 = vpop.permute.xlu0 %9564
      %9566 = vrot.lane.b32.xlu0 %v8774, 48
      %v9567 = vpop.permute.xlu0 %9566
      %9568 = vrot.lane.b32.xlu0 %v8775, 48
      %v9569 = vpop.permute.xlu0 %9568
      %9570 = vrot.lane.b32.xlu0 %v8776, 48
      %v9571 = vpop.permute.xlu0 %9570
      %9572 = vrot.lane.b32.xlu0 %v8777, 48
      %v9573 = vpop.permute.xlu0 %9572
      %9574 = vrot.lane.b32.xlu0 %v8778, 48
      %v9575 = vpop.permute.xlu0 %9574
      %9576 = vrot.lane.b32.xlu0 %v8779, 48
      %v9577 = vpop.permute.xlu0 %9576
      %9578 = vrot.lane.b32.xlu0 %v8780, 48
      %v9579 = vpop.permute.xlu0 %9578
      %9580 = vrot.lane.b32.xlu0 %v8781, 48
      %v9581 = vpop.permute.xlu0 %9580
      %9582 = vrot.lane.b32.xlu0 %v8782, 48
      %v9583 = vpop.permute.xlu0 %9582
      %9584 = vrot.lane.b32.xlu0 %v8783, 48
      %v9585 = vpop.permute.xlu0 %9584
      %9586 = vrot.lane.b32.xlu0 %v8784, 48
      %v9587 = vpop.permute.xlu0 %9586
      %9588 = vrot.lane.b32.xlu0 %v8785, 48
      %v9589 = vpop.permute.xlu0 %9588
      %9590 = vrot.lane.b32.xlu0 %v8786, 48
      %v9591 = vpop.permute.xlu0 %9590
      %9592 = vrot.lane.b32.xlu0 %v8787, 48
      %v9593 = vpop.permute.xlu0 %9592
      %9594 = vrot.lane.b32.xlu0 %v8788, 48
      %v9595 = vpop.permute.xlu0 %9594
      %9596 = vrot.lane.b32.xlu0 %v8789, 48
      %v9597 = vpop.permute.xlu0 %9596
      %9598 = vrot.lane.b32.xlu0 %v8790, 48
      %v9599 = vpop.permute.xlu0 %9598
      %9600 = vrot.lane.b32.xlu0 %v8791, 48
      %v9601 = vpop.permute.xlu0 %9600
      %9602 = vrot.lane.b32.xlu0 %v8792, 48
      %v9603 = vpop.permute.xlu0 %9602
      %9604 = vrot.lane.b32.xlu0 %v8793, 48
      %v9605 = vpop.permute.xlu0 %9604
      %9606 = vrot.lane.b32.xlu0 %v8794, 48
      %v9607 = vpop.permute.xlu0 %9606
      %9608 = vrot.lane.b32.xlu0 %v8795, 48
      %v9609 = vpop.permute.xlu0 %9608
      %9610 = vrot.lane.b32.xlu0 %v8796, 48
      %v9611 = vpop.permute.xlu0 %9610
      %vm9639 = vcmask 458112
      %9640 = vst.msk [vmem:[#allocation3] sm:$0xff] %vm9639, %v9559
      %9641 = vst.msk [vmem:[#allocation3 + $0x8] sm:$0xff] %vm9639, %v9561
      %9642 = vst.msk [vmem:[#allocation3 + $0x10] sm:$0xff] %vm9639, %v9563
      %9643 = vst.msk [vmem:[#allocation3 + $0x18] sm:$0xff] %vm9639, %v9565
      %9644 = vst.msk [vmem:[#allocation3 + $0x20] sm:$0xff] %vm9639, %v9567
      %9645 = vst.msk [vmem:[#allocation3 + $0x28] sm:$0xff] %vm9639, %v9569
      %9646 = vst.msk [vmem:[#allocation3 + $0x30] sm:$0xff] %vm9639, %v9571
      %9647 = vst.msk [vmem:[#allocation3 + $0x38] sm:$0xff] %vm9639, %v9573
      %9648 = vst.msk [vmem:[#allocation3 + $0x40] sm:$0xff] %vm9639, %v9575
      %9649 = vst.msk [vmem:[#allocation3 + $0x48] sm:$0xff] %vm9639, %v9577
      %9650 = vst.msk [vmem:[#allocation3 + $0x50] sm:$0xff] %vm9639, %v9579
      %9651 = vst.msk [vmem:[#allocation3 + $0x58] sm:$0xff] %vm9639, %v9581
      %9652 = vst.msk [vmem:[#allocation3 + $0x60] sm:$0xff] %vm9639, %v9583
      %9653 = vst.msk [vmem:[#allocation3 + $0x68] sm:$0xff] %vm9639, %v9585
      %9654 = vst.msk [vmem:[#allocation3 + $0x70] sm:$0xff] %vm9639, %v9587
      %9655 = vst.msk [vmem:[#allocation3 + $0x78] sm:$0xff] %vm9639, %v9589
      %9656 = vst.msk [vmem:[#allocation3 + $0x80] sm:$0xff] %vm9639, %v9591
      %9657 = vst.msk [vmem:[#allocation3 + $0x88] sm:$0xff] %vm9639, %v9593
      %9658 = vst.msk [vmem:[#allocation3 + $0x90] sm:$0xff] %vm9639, %v9595
      %9659 = vst.msk [vmem:[#allocation3 + $0x98] sm:$0xff] %vm9639, %v9597
      %9660 = vst.msk [vmem:[#allocation3 + $0xa0] sm:$0xff] %vm9639, %v9599
      %9661 = vst.msk [vmem:[#allocation3 + $0xa8] sm:$0xff] %vm9639, %v9601
      %9662 = vst.msk [vmem:[#allocation3 + $0xb0] sm:$0xff] %vm9639, %v9603
      %9663 = vst.msk [vmem:[#allocation3 + $0xb8] sm:$0xff] %vm9639, %v9605
      %9664 = vst.msk [vmem:[#allocation3 + $0xc0] sm:$0xff] %vm9639, %v9607
      %9665 = vst.msk [vmem:[#allocation3 + $0xc8] sm:$0xff] %vm9639, %v9609
      %9666 = vst.msk [vmem:[#allocation3 + $0xd0] sm:$0xff] %vm9639, %v9611
      %9694 = vrot.lane.b32.xlu0 %v8797, 56
      %v9695 = vpop.permute.xlu0 %9694
      %9696 = vrot.lane.b32.xlu0 %v8798, 56
      %v9697 = vpop.permute.xlu0 %9696
      %9698 = vrot.lane.b32.xlu0 %v8799, 56
      %v9699 = vpop.permute.xlu0 %9698
      %9700 = vrot.lane.b32.xlu0 %v8800, 56
      %v9701 = vpop.permute.xlu0 %9700
      %9702 = vrot.lane.b32.xlu0 %v8801, 56
      %v9703 = vpop.permute.xlu0 %9702
      %9704 = vrot.lane.b32.xlu0 %v8802, 56
      %v9705 = vpop.permute.xlu0 %9704
      %9706 = vrot.lane.b32.xlu0 %v8803, 56
      %v9707 = vpop.permute.xlu0 %9706
      %9708 = vrot.lane.b32.xlu0 %v8804, 56
      %v9709 = vpop.permute.xlu0 %9708
      %9710 = vrot.lane.b32.xlu0 %v8805, 56
      %v9711 = vpop.permute.xlu0 %9710
      %9712 = vrot.lane.b32.xlu0 %v8806, 56
      %v9713 = vpop.permute.xlu0 %9712
      %9714 = vrot.lane.b32.xlu0 %v8807, 56
      %v9715 = vpop.permute.xlu0 %9714
      %9716 = vrot.lane.b32.xlu0 %v8808, 56
      %v9717 = vpop.permute.xlu0 %9716
      %9718 = vrot.lane.b32.xlu0 %v8809, 56
      %v9719 = vpop.permute.xlu0 %9718
      %9720 = vrot.lane.b32.xlu0 %v8810, 56
      %v9721 = vpop.permute.xlu0 %9720
      %9722 = vrot.lane.b32.xlu0 %v8811, 56
      %v9723 = vpop.permute.xlu0 %9722
      %9724 = vrot.lane.b32.xlu0 %v8812, 56
      %v9725 = vpop.permute.xlu0 %9724
      %9726 = vrot.lane.b32.xlu0 %v8813, 56
      %v9727 = vpop.permute.xlu0 %9726
      %9728 = vrot.lane.b32.xlu0 %v8814, 56
      %v9729 = vpop.permute.xlu0 %9728
      %9730 = vrot.lane.b32.xlu0 %v8815, 56
      %v9731 = vpop.permute.xlu0 %9730
      %9732 = vrot.lane.b32.xlu0 %v8816, 56
      %v9733 = vpop.permute.xlu0 %9732
      %9734 = vrot.lane.b32.xlu0 %v8817, 56
      %v9735 = vpop.permute.xlu0 %9734
      %9736 = vrot.lane.b32.xlu0 %v8818, 56
      %v9737 = vpop.permute.xlu0 %9736
      %9738 = vrot.lane.b32.xlu0 %v8819, 56
      %v9739 = vpop.permute.xlu0 %9738
      %9740 = vrot.lane.b32.xlu0 %v8820, 56
      %v9741 = vpop.permute.xlu0 %9740
      %9742 = vrot.lane.b32.xlu0 %v8821, 56
      %v9743 = vpop.permute.xlu0 %9742
      %9744 = vrot.lane.b32.xlu0 %v8822, 56
      %v9745 = vpop.permute.xlu0 %9744
      %9746 = vrot.lane.b32.xlu0 %v8823, 56
      %v9747 = vpop.permute.xlu0 %9746
      %vm9775 = vcmask 523712
      %9776 = vst.msk [vmem:[#allocation3] sm:$0xff] %vm9775, %v9695
      %9777 = vst.msk [vmem:[#allocation3 + $0x8] sm:$0xff] %vm9775, %v9697
      %9778 = vst.msk [vmem:[#allocation3 + $0x10] sm:$0xff] %vm9775, %v9699
      %9779 = vst.msk [vmem:[#allocation3 + $0x18] sm:$0xff] %vm9775, %v9701
      %9780 = vst.msk [vmem:[#allocation3 + $0x20] sm:$0xff] %vm9775, %v9703
      %9781 = vst.msk [vmem:[#allocation3 + $0x28] sm:$0xff] %vm9775, %v9705
      %9782 = vst.msk [vmem:[#allocation3 + $0x30] sm:$0xff] %vm9775, %v9707
      %9783 = vst.msk [vmem:[#allocation3 + $0x38] sm:$0xff] %vm9775, %v9709
      %9784 = vst.msk [vmem:[#allocation3 + $0x40] sm:$0xff] %vm9775, %v9711
      %9785 = vst.msk [vmem:[#allocation3 + $0x48] sm:$0xff] %vm9775, %v9713
      %9786 = vst.msk [vmem:[#allocation3 + $0x50] sm:$0xff] %vm9775, %v9715
      %9787 = vst.msk [vmem:[#allocation3 + $0x58] sm:$0xff] %vm9775, %v9717
      %9788 = vst.msk [vmem:[#allocation3 + $0x60] sm:$0xff] %vm9775, %v9719
      %9789 = vst.msk [vmem:[#allocation3 + $0x68] sm:$0xff] %vm9775, %v9721
      %9790 = vst.msk [vmem:[#allocation3 + $0x70] sm:$0xff] %vm9775, %v9723
      %9791 = vst.msk [vmem:[#allocation3 + $0x78] sm:$0xff] %vm9775, %v9725
      %9792 = vst.msk [vmem:[#allocation3 + $0x80] sm:$0xff] %vm9775, %v9727
      %9793 = vst.msk [vmem:[#allocation3 + $0x88] sm:$0xff] %vm9775, %v9729
      %9794 = vst.msk [vmem:[#allocation3 + $0x90] sm:$0xff] %vm9775, %v9731
      %9795 = vst.msk [vmem:[#allocation3 + $0x98] sm:$0xff] %vm9775, %v9733
      %9796 = vst.msk [vmem:[#allocation3 + $0xa0] sm:$0xff] %vm9775, %v9735
      %9797 = vst.msk [vmem:[#allocation3 + $0xa8] sm:$0xff] %vm9775, %v9737
      %9798 = vst.msk [vmem:[#allocation3 + $0xb0] sm:$0xff] %vm9775, %v9739
      %9799 = vst.msk [vmem:[#allocation3 + $0xb8] sm:$0xff] %vm9775, %v9741
      %9800 = vst.msk [vmem:[#allocation3 + $0xc0] sm:$0xff] %vm9775, %v9743
      %9801 = vst.msk [vmem:[#allocation3 + $0xc8] sm:$0xff] %vm9775, %v9745
      %9802 = vst.msk [vmem:[#allocation3 + $0xd0] sm:$0xff] %vm9775, %v9747
      %v9803 = vld [vmem:[#allocation3] sm:$0xff]
      %v9804 = vld [vmem:[#allocation3 + $0x8] sm:$0xff]
      %v9805 = vld [vmem:[#allocation3 + $0x10] sm:$0xff]
      %v9806 = vld [vmem:[#allocation3 + $0x18] sm:$0xff]
      %v9807 = vld [vmem:[#allocation3 + $0x20] sm:$0xff]
      %v9808 = vld [vmem:[#allocation3 + $0x28] sm:$0xff]
      %v9809 = vld [vmem:[#allocation3 + $0x30] sm:$0xff]
      %v9810 = vld [vmem:[#allocation3 + $0x38] sm:$0xff]
      %v9811 = vld [vmem:[#allocation3 + $0x40] sm:$0xff]
      %v9812 = vld [vmem:[#allocation3 + $0x48] sm:$0xff]
      %v9813 = vld [vmem:[#allocation3 + $0x50] sm:$0xff]
      %v9814 = vld [vmem:[#allocation3 + $0x58] sm:$0xff]
      %v9815 = vld [vmem:[#allocation3 + $0x60] sm:$0xff]
      %v9816 = vld [vmem:[#allocation3 + $0x68] sm:$0xff]
      %v9817 = vld [vmem:[#allocation3 + $0x70] sm:$0xff]
      %v9818 = vld [vmem:[#allocation3 + $0x78] sm:$0xff]
      %v9819 = vld [vmem:[#allocation3 + $0x80] sm:$0xff]
      %v9820 = vld [vmem:[#allocation3 + $0x88] sm:$0xff]
      %v9821 = vld [vmem:[#allocation3 + $0x90] sm:$0xff]
      %v9822 = vld [vmem:[#allocation3 + $0x98] sm:$0xff]
      %v9823 = vld [vmem:[#allocation3 + $0xa0] sm:$0xff]
      %v9824 = vld [vmem:[#allocation3 + $0xa8] sm:$0xff]
      %v9825 = vld [vmem:[#allocation3 + $0xb0] sm:$0xff]
      %v9826 = vld [vmem:[#allocation3 + $0xb8] sm:$0xff]
      %v9827 = vld [vmem:[#allocation3 + $0xc0] sm:$0xff]
      %v9828 = vld [vmem:[#allocation3 + $0xc8] sm:$0xff]
      %v9829 = vld [vmem:[#allocation3 + $0xd0] sm:$0xff]
      %v9830 = vpack.c.bf16 %v9804, %v9803
      %v9831 = vpack.c.bf16 %v9806, %v9805
      %v9832 = vpack.c.bf16 %v9808, %v9807
      %v9833 = vpack.c.bf16 %v9810, %v9809
      %v9834 = vpack.c.bf16 %v9812, %v9811
      %v9835 = vpack.c.bf16 %v9814, %v9813
      %v9836 = vpack.c.bf16 %v9816, %v9815
      %v9837 = vpack.c.bf16 %v9818, %v9817
      %v9838 = vpack.c.bf16 %v9820, %v9819
      %v9839 = vpack.c.bf16 %v9822, %v9821
      %v9840 = vpack.c.bf16 %v9824, %v9823
      %v9841 = vpack.c.bf16 %v9826, %v9825
      %v9842 = vpack.c.bf16 %v9828, %v9827
      %v9843 = vpack.c.bf16 %v9829, %v9829
      %v9844 = vld [vmem:[%s4] sm:$0xf]
      %v9845 = vld [vmem:[%s4 + $0x4] sm:$0xf]
      %v9846 = vld [vmem:[%s4 + $0x8] sm:$0xf]
      %v9847 = vld [vmem:[%s4 + $0xc] sm:$0xf]
      %v9848 = vld [vmem:[%s4 + $0x10] sm:$0xf]
      %v9849 = vld [vmem:[%s4 + $0x14] sm:$0xf]
      %v9850 = vld [vmem:[%s4 + $0x18] sm:$0xf]
      %v9851 = vld [vmem:[%s4 + $0x1c] sm:$0xf]
      %v9852 = vld [vmem:[%s5] sm:$0x1]
      %v9854 = vlaneseq
      %v9855 = vshrl.u32 %v9854, 7
      %v9856 = vsub.s32 0, %v9855
      %v9857 = vrot.slane %v9852, %v9856
      %v9867 = vunpack.c.l.b16 %v9844
      %v9868 = vunpack.c.l.b16 %v9845
      %v9869 = vunpack.c.l.b16 %v9846
      %v9870 = vunpack.c.l.b16 %v9847
      %v9871 = vunpack.c.l.b16 %v9848
      %v9872 = vunpack.c.l.b16 %v9849
      %v9873 = vunpack.c.l.b16 %v9850
      %v9874 = vunpack.c.l.b16 %v9851
      %v9875 = vpack.c.b16 %v9868, %v9867
      %v9876 = vpack.c.b16 %v9870, %v9869
      %v9877 = vpack.c.b16 %v9872, %v9871
      %v9878 = vpack.c.b16 %v9874, %v9873
      %v9884 = vsel %vm459, %v9830, 0
      %v9887 = vsel %vm459, %v9831, 0
      %v9890 = vsel %vm459, %v9832, 0
      %v9893 = vsel %vm459, %v9833, 0
      %v9896 = vsel %vm459, %v9834, 0
      %v9899 = vsel %vm459, %v9835, 0
      %v9902 = vsel %vm459, %v9836, 0
      %v9905 = vsel %vm459, %v9837, 0
      %v9908 = vsel %vm459, %v9838, 0
      %v9911 = vsel %vm459, %v9839, 0
      %v9914 = vsel %vm459, %v9840, 0
      %v9917 = vsel %vm459, %v9841, 0
      %v9920 = vsel %vm459, %v9842, 0
      %v9923 = vsel %vm459, %v9843, 0
      %9925 = vmatprep.subr.bf16.mxu0 0
      %9926 = vmatpush1.bf16.msra.mxu0 %v9875
      %9927 = vmatprep.subr.bf16.mxu0 0
      %9928 = vmatpush1.bf16.msra.mxu0 %v9876
      %9929 = vmatprep.subr.bf16.mxu0 0
      %9930 = vmatpush1.bf16.msra.mxu0 %v9877
      %9931 = vmatprep.subr.bf16.mxu0 0
      %9932 = vmatpush1.bf16.msra.mxu0 %v9878
      %9933 = vmatprep.subr.bf16.mxu0 0
      %9934 = vmatpush1.bf16.msra.mxu0 0
      %9935 = vmatprep.subr.bf16.mxu0 0
      %9936 = vmatpush1.bf16.msra.mxu0 0
      %9937 = vmatprep.subr.bf16.mxu0 0
      %9938 = vmatpush1.bf16.msra.mxu0 0
      %9939 = vmatprep.subr.bf16.mxu0 0
      %9940 = vmatpush1.bf16.msra.mxu0 0
      %9941 = vmatprep.subr.bf16.mxu0 0
      %9942 = vmatpush1.bf16.msra.mxu0 0
      %9943 = vmatprep.subr.bf16.mxu0 0
      %9944 = vmatpush1.bf16.msra.mxu0 0
      %9945 = vmatprep.subr.bf16.mxu0 0
      %9946 = vmatpush1.bf16.msra.mxu0 0
      %9947 = vmatprep.subr.bf16.mxu0 0
      %9948 = vmatpush1.bf16.msra.mxu0 0
      %9949 = vmatprep.subr.bf16.mxu0 0
      %9950 = vmatpush1.bf16.msra.mxu0 0
      %9951 = vmatprep.subr.bf16.mxu0 0
      %9952 = vmatpush1.bf16.msra.mxu0 0
      %9953 = vmatprep.subr.bf16.mxu0 0
      %9954 = vmatpush1.bf16.msra.mxu0 0
      %9955 = vmatprep.subr.bf16.mxu0 0
      %9956 = vmatpush1.bf16.msra.mxu0 0
      %9957 = vmatprep.mubr.bf16.mxu0 0
      %9958 = vmatmul.mubr.bf16.gmra.mrb[0].mxu0 %v9884
      %v9959 = vpop.f32.mrb[0].mxu0
      %v9960 = vadd.f32 %v9857, %v9959
      %v9961 = vpop.f32.mrb[0].mxu0
      %v9962 = vpop.f32.mrb[0].mxu0
      %v9963 = vadd.f32 %v9857, %v9962
      %v9964 = vpop.f32.mrb[0].mxu0
      %9965 = vmatprep.mubr.bf16.mxu0 0
      %9966 = vmatmul.mubr.bf16.gmra.mrb[0].mxu0 %v9887
      %v9967 = vpop.f32.mrb[0].mxu0
      %v9968 = vadd.f32 %v9857, %v9967
      %v9969 = vpop.f32.mrb[0].mxu0
      %v9970 = vpop.f32.mrb[0].mxu0
      %v9971 = vadd.f32 %v9857, %v9970
      %v9972 = vpop.f32.mrb[0].mxu0
      %9973 = vmatprep.mubr.bf16.mxu0 0
      %9974 = vmatmul.mubr.bf16.gmra.mrb[0].mxu0 %v9890
      %v9975 = vpop.f32.mrb[0].mxu0
      %v9976 = vadd.f32 %v9857, %v9975
      %v9977 = vpop.f32.mrb[0].mxu0
      %v9978 = vpop.f32.mrb[0].mxu0
      %v9979 = vadd.f32 %v9857, %v9978
      %v9980 = vpop.f32.mrb[0].mxu0
      %9981 = vmatprep.mubr.bf16.mxu0 0
      %9982 = vmatmul.mubr.bf16.gmra.mrb[0].mxu0 %v9893
      %v9983 = vpop.f32.mrb[0].mxu0
      %v9984 = vadd.f32 %v9857, %v9983
      %v9985 = vpop.f32.mrb[0].mxu0
      %v9986 = vpop.f32.mrb[0].mxu0
      %v9987 = vadd.f32 %v9857, %v9986
      %v9988 = vpop.f32.mrb[0].mxu0
      %9989 = vmatprep.mubr.bf16.mxu0 0
      %9990 = vmatmul.mubr.bf16.gmra.mrb[0].mxu0 %v9896
      %v9991 = vpop.f32.mrb[0].mxu0
      %v9992 = vadd.f32 %v9857, %v9991
      %v9993 = vpop.f32.mrb[0].mxu0
      %v9994 = vpop.f32.mrb[0].mxu0
      %v9995 = vadd.f32 %v9857, %v9994
      %v9996 = vpop.f32.mrb[0].mxu0
      %9997 = vmatprep.mubr.bf16.mxu0 0
      %9998 = vmatmul.mubr.bf16.gmra.mrb[0].mxu0 %v9899
      %v9999 = vpop.f32.mrb[0].mxu0
      %v10000 = vadd.f32 %v9857, %v9999
      %v10001 = vpop.f32.mrb[0].mxu0
      %v10002 = vpop.f32.mrb[0].mxu0
      %v10003 = vadd.f32 %v9857, %v10002
      %v10004 = vpop.f32.mrb[0].mxu0
      %10005 = vmatprep.mubr.bf16.mxu0 0
      %10006 = vmatmul.mubr.bf16.gmra.mrb[0].mxu0 %v9902
      %v10007 = vpop.f32.mrb[0].mxu0
      %v10008 = vadd.f32 %v9857, %v10007
      %v10009 = vpop.f32.mrb[0].mxu0
      %v10010 = vpop.f32.mrb[0].mxu0
      %v10011 = vadd.f32 %v9857, %v10010
      %v10012 = vpop.f32.mrb[0].mxu0
      %10013 = vmatprep.mubr.bf16.mxu0 0
      %10014 = vmatmul.mubr.bf16.gmra.mrb[0].mxu0 %v9905
      %v10015 = vpop.f32.mrb[0].mxu0
      %v10016 = vadd.f32 %v9857, %v10015
      %v10017 = vpop.f32.mrb[0].mxu0
      %v10018 = vpop.f32.mrb[0].mxu0
      %v10019 = vadd.f32 %v9857, %v10018
      %v10020 = vpop.f32.mrb[0].mxu0
      %10021 = vmatprep.mubr.bf16.mxu0 0
      %10022 = vmatmul.mubr.bf16.gmra.mrb[0].mxu0 %v9908
      %v10023 = vpop.f32.mrb[0].mxu0
      %v10024 = vadd.f32 %v9857, %v10023
      %v10025 = vpop.f32.mrb[0].mxu0
      %v10026 = vpop.f32.mrb[0].mxu0
      %v10027 = vadd.f32 %v9857, %v10026
      %v10028 = vpop.f32.mrb[0].mxu0
      %10029 = vmatprep.mubr.bf16.mxu0 0
      %10030 = vmatmul.mubr.bf16.gmra.mrb[0].mxu0 %v9911
      %v10031 = vpop.f32.mrb[0].mxu0
      %v10032 = vadd.f32 %v9857, %v10031
      %v10033 = vpop.f32.mrb[0].mxu0
      %v10034 = vpop.f32.mrb[0].mxu0
      %v10035 = vadd.f32 %v9857, %v10034
      %v10036 = vpop.f32.mrb[0].mxu0
      %10037 = vmatprep.mubr.bf16.mxu0 0
      %10038 = vmatmul.mubr.bf16.gmra.mrb[0].mxu0 %v9914
      %v10039 = vpop.f32.mrb[0].mxu0
      %v10040 = vadd.f32 %v9857, %v10039
      %v10041 = vpop.f32.mrb[0].mxu0
      %v10042 = vpop.f32.mrb[0].mxu0
      %v10043 = vadd.f32 %v9857, %v10042
      %v10044 = vpop.f32.mrb[0].mxu0
      %10045 = vmatprep.mubr.bf16.mxu0 0
      %10046 = vmatmul.mubr.bf16.gmra.mrb[0].mxu0 %v9917
      %v10047 = vpop.f32.mrb[0].mxu0
      %v10048 = vadd.f32 %v9857, %v10047
      %v10049 = vpop.f32.mrb[0].mxu0
      %v10050 = vpop.f32.mrb[0].mxu0
      %v10051 = vadd.f32 %v9857, %v10050
      %v10052 = vpop.f32.mrb[0].mxu0
      %10053 = vmatprep.mubr.bf16.mxu0 0
      %10054 = vmatmul.mubr.bf16.gmra.mrb[0].mxu0 %v9920
      %v10055 = vpop.f32.mrb[0].mxu0
      %v10056 = vadd.f32 %v9857, %v10055
      %v10057 = vpop.f32.mrb[0].mxu0
      %v10058 = vpop.f32.mrb[0].mxu0
      %v10059 = vadd.f32 %v9857, %v10058
      %v10060 = vpop.f32.mrb[0].mxu0
      %10061 = vmatprep.mubr.bf16.mxu0 0
      %10062 = vmatmul.mubr.bf16.gmra.mrb[0].mxu0 %v9923
      %v10063 = vpop.f32.mrb[0].mxu0
      %v10064 = vadd.f32 %v9857, %v10063
      %v10065 = vpop.f32.mrb[0].mxu0
      %v10066 = vpop.f32.mrb[0].mxu0
      %v10067 = vpop.f32.mrb[0].mxu0
      %10068 = vdwg.mxu0
      %v10069 = vpack.c.bf16 %v9963, %v9960
      %v10070 = vpack.c.bf16 %v9971, %v9968
      %v10071 = vpack.c.bf16 %v9979, %v9976
      %v10072 = vpack.c.bf16 %v9987, %v9984
      %v10073 = vpack.c.bf16 %v9995, %v9992
      %v10074 = vpack.c.bf16 %v10003, %v10000
      %v10075 = vpack.c.bf16 %v10011, %v10008
      %v10076 = vpack.c.bf16 %v10019, %v10016
      %v10077 = vpack.c.bf16 %v10027, %v10024
      %v10078 = vpack.c.bf16 %v10035, %v10032
      %v10079 = vpack.c.bf16 %v10043, %v10040
      %v10080 = vpack.c.bf16 %v10051, %v10048
      %v10081 = vpack.c.bf16 %v10059, %v10056
      %v10082 = vpack.c.bf16 %v10064, %v10064
      %v10097 = vunpack.c.l.b16 %v10069
      %v10098 = vunpack.c.h.b16 %v10069
      %v10099 = vunpack.c.l.b16 %v10070
      %v10100 = vunpack.c.h.b16 %v10070
      %v10101 = vunpack.c.l.b16 %v10071
      %v10102 = vunpack.c.h.b16 %v10071
      %v10103 = vunpack.c.l.b16 %v10072
      %v10104 = vunpack.c.h.b16 %v10072
      %v10105 = vunpack.c.l.b16 %v10073
      %v10106 = vunpack.c.h.b16 %v10073
      %v10107 = vunpack.c.l.b16 %v10074
      %v10108 = vunpack.c.h.b16 %v10074
      %v10109 = vunpack.c.l.b16 %v10075
      %v10110 = vunpack.c.h.b16 %v10075
      %v10111 = vunpack.c.l.b16 %v10076
      %v10112 = vunpack.c.h.b16 %v10076
      %v10113 = vunpack.c.l.b16 %v10077
      %v10114 = vunpack.c.h.b16 %v10077
      %v10115 = vunpack.c.l.b16 %v10078
      %v10116 = vunpack.c.h.b16 %v10078
      %v10117 = vunpack.c.l.b16 %v10079
      %v10118 = vunpack.c.h.b16 %v10079
      %v10119 = vunpack.c.l.b16 %v10080
      %v10120 = vunpack.c.h.b16 %v10080
      %v10121 = vunpack.c.l.b16 %v10081
      %v10122 = vunpack.c.h.b16 %v10081
      %v10123 = vunpack.c.l.b16 %v10082
      %v10124 = vpack.c.b16 %v10097, %v10097
      %v10125 = vpack.c.b16 %v10098, %v10098
      %v10126 = vpack.c.b16 %v10099, %v10099
      %v10127 = vpack.c.b16 %v10100, %v10100
      %v10128 = vpack.c.b16 %v10101, %v10101
      %v10129 = vpack.c.b16 %v10102, %v10102
      %v10130 = vpack.c.b16 %v10103, %v10103
      %v10131 = vpack.c.b16 %v10104, %v10104
      %v10132 = vpack.c.b16 %v10105, %v10105
      %v10133 = vpack.c.b16 %v10106, %v10106
      %v10134 = vpack.c.b16 %v10107, %v10107
      %v10135 = vpack.c.b16 %v10108, %v10108
      %v10136 = vpack.c.b16 %v10109, %v10109
      %v10137 = vpack.c.b16 %v10110, %v10110
      %v10138 = vpack.c.b16 %v10111, %v10111
      %v10139 = vpack.c.b16 %v10112, %v10112
      %v10140 = vpack.c.b16 %v10113, %v10113
      %v10141 = vpack.c.b16 %v10114, %v10114
      %v10142 = vpack.c.b16 %v10115, %v10115
      %v10143 = vpack.c.b16 %v10116, %v10116
      %v10144 = vpack.c.b16 %v10117, %v10117
      %v10145 = vpack.c.b16 %v10118, %v10118
      %v10146 = vpack.c.b16 %v10119, %v10119
      %v10147 = vpack.c.b16 %v10120, %v10120
      %v10148 = vpack.c.b16 %v10121, %v10121
      %v10149 = vpack.c.b16 %v10122, %v10122
      %v10150 = vpack.c.b16 %v10123, %v10123
      %10178 = vst [vmem:[%s329] sm:$0xf] %v10124
      %10179 = vst [vmem:[%s329 + $0x4] sm:$0xf] %v10125
      %10180 = vst [vmem:[%s329 + $0x8] sm:$0xf] %v10126
      %10181 = vst [vmem:[%s329 + $0xc] sm:$0xf] %v10127
      %10182 = vst [vmem:[%s329 + $0x10] sm:$0xf] %v10128
      %10183 = vst [vmem:[%s329 + $0x14] sm:$0xf] %v10129
      %10184 = vst [vmem:[%s329 + $0x18] sm:$0xf] %v10130
      %10185 = vst [vmem:[%s329 + $0x1c] sm:$0xf] %v10131
      %10186 = vst [vmem:[%s329 + $0x20] sm:$0xf] %v10132
      %10187 = vst [vmem:[%s329 + $0x24] sm:$0xf] %v10133
      %10188 = vst [vmem:[%s329 + $0x28] sm:$0xf] %v10134
      %10189 = vst [vmem:[%s329 + $0x2c] sm:$0xf] %v10135
      %10190 = vst [vmem:[%s329 + $0x30] sm:$0xf] %v10136
      %10191 = vst [vmem:[%s329 + $0x34] sm:$0xf] %v10137
      %10192 = vst [vmem:[%s329 + $0x38] sm:$0xf] %v10138
      %10193 = vst [vmem:[%s329 + $0x3c] sm:$0xf] %v10139
      %10194 = vst [vmem:[%s329 + $0x40] sm:$0xf] %v10140
      %10195 = vst [vmem:[%s329 + $0x44] sm:$0xf] %v10141
      %10196 = vst [vmem:[%s329 + $0x48] sm:$0xf] %v10142
      %10197 = vst [vmem:[%s329 + $0x4c] sm:$0xf] %v10143
      %10198 = vst [vmem:[%s329 + $0x50] sm:$0xf] %v10144
      %10199 = vst [vmem:[%s329 + $0x54] sm:$0xf] %v10145
      %10200 = vst [vmem:[%s329 + $0x58] sm:$0xf] %v10146
      %10201 = vst [vmem:[%s329 + $0x5c] sm:$0xf] %v10147
      %10202 = vst [vmem:[%s329 + $0x60] sm:$0xf] %v10148
      %10203 = vst [vmem:[%s329 + $0x64] sm:$0xf] %v10149
      %10204 = vst [vmem:[%s329 + $0x68] sm:$0xf] %v10150
      %s10205 = smul.u32 27, %s22
      %p10206 = scmp.lt.s32.totalorder %s21, 1
      %s10207 = scalar_select %p10206, %s21, 1
      %p10208 = scmp.lt.s32.totalorder %s10205, 107
      %s10209 = scalar_select %p10208, %s10205, 107
      %s10210 = smul.addr %s10207, 108
      %s10211 = sadd.s32 %s10209, %s10210
      %s10212 = smul.addr %s10211, 4
      %s10213 = scalar_lea.vmem %s6, %s10212
      // Predicated region
      $region45: #{sra_attention_forward.3} parent=43 // pred_check
        %p10214 = pneg %p192
      $region46: #{sra_attention_forward.3} parent=43 // pred_check_branch
        %10216 = sbr.rel (%p10214) target = $region48
      $region47: #{sra_attention_forward.3} parent=43 // pred_region
        %s10217 = smul.u32 27, %s22
      $region48: #{sra_attention_forward.3} parent=43 // pred_fallthru
        _
    $region44: #{sra_attention_forward.3} parent=5 // pred_fallthru
      _
    %p10218 = scmp.le.s32.totalorder 2, %s12
    // Predicated region
    $region49: #{sra_attention_forward.3} parent=5 // pred_check
      %p10219 = pneg %p10218
    $region50: #{sra_attention_forward.3} parent=5 // pred_check_branch
      %10221 = sbr.rel (%p10219) target = $region52
    $region51: #{sra_attention_forward.3} parent=5 // pred_region
      %s10222 = ssub.s32 %s12, 2
      // Predicated region
      $region53: #{sra_attention_forward.3} parent=51 // pred_check
        %p10223 = pneg %p198
      $region54: #{sra_attention_forward.3} parent=51 // pred_check_branch
        %10225 = sbr.rel (%p10223) target = $region56
      $region55: #{sra_attention_forward.3} parent=51 // pred_region
        %s10226 = smul.u32 27, %s24
        %p10227 = scmp.lt.s32.totalorder %s23, 1
        %s10228 = scalar_select %p10227, %s23, 1
        %p10229 = scmp.lt.s32.totalorder %s10226, 107
        %s10230 = scalar_select %p10229, %s10226, 107
        %s10231 = smul.addr %s10228, 108
        %s10232 = sadd.s32 %s10230, %s10231
        %s10233 = smul.addr %s10232, 4
        %s10234 = scalar_lea.vmem %s6, %s10233
      $region56: #{sra_attention_forward.3} parent=51 // pred_fallthru
        _
    $region52: #{sra_attention_forward.3} parent=5 // pred_fallthru
      _
  $region6: #{sra_attention_forward.3} parent=0 // loop_footer
    %s16 = sadd.s32 1, %s12
  $region7: #{sra_attention_forward.3} parent=0 // loop_footer_branch
    %11 = sbr.rel target = $region3
  $region8: #{sra_attention_forward.3} parent=0 // loop_exit
    _

</llo_original>
